<compile_context>
chip_gen: v6e
topology: v6e:2x2x1
jax: 0.10.0
libtpu: 0.0.40
codegen_flags: <defaults>
</compile_context>

<pallas_src>
import functools

import jax
import jax.numpy as jnp
from jax.experimental import pallas as pl
from jax.experimental.pallas import tpu as pltpu

KH, KW = 5, 5
PAD = 2


def _relu_dwconv_kernel(x_ref, w_ref, o_ref, xp_ref, *, H, W, lane_chunk):
    # x_ref : [1, H, W, Cb]          un-padded channels-last input block
    # w_ref : [KH, KW, Cb]           depthwise filters for this channel block
    # o_ref : [1, H, W, Cb]
    # xp_ref: [H+2*PAD, W+2*PAD, Cb] VMEM scratch (zero halo + ReLU'd interior)
    Hp = H + 2 * PAD
    Wp = W + 2 * PAD
    Cb = x_ref.shape[-1]
    f32 = xp_ref.dtype

    # Zero only the 2-wide halo strips; the interior is fully overwritten below.
    zrow = jnp.zeros((PAD, Wp, Cb), f32)
    xp_ref[0:PAD, :, :] = zrow
    xp_ref[PAD + H:Hp, :, :] = zrow
    zcol = jnp.zeros((H, PAD, Cb), f32)
    xp_ref[PAD:PAD + H, 0:PAD, :] = zcol
    xp_ref[PAD:PAD + H, PAD + W:Wp, :] = zcol

    # ReLU'd interior (relu(0) = 0, so the zero halo matches zero padding).
    xp_ref[PAD:PAD + H, PAD:PAD + W, :] = jnp.maximum(x_ref[0].astype(f32), 0.0)

    w_all = w_ref[...].astype(f32)  # (KH, KW, Cb), read once per grid step

    n_chunks = Cb // lane_chunk
    for c in range(n_chunks):  # static loop over 128-lane channel chunks
        c0 = c * lane_chunk
        # Load the whole padded chunk into vregs once (~22 vregs), then take
        # the 25 shifted views from the value: kw shifts become cheap XLU work
        # that overlaps with the VALU mul/adds.
        xp = xp_ref[:, :, c0:c0 + lane_chunk]          # (Hp, Wp, lane_chunk)
        wc = w_all[:, :, c0:c0 + lane_chunk]           # (KH, KW, lane_chunk)
        acc = None
        for kh in range(KH):
            for kw in range(KW):
                term = xp[kh:kh + H, kw:kw + W, :] * wc[kh, kw]
                acc = term if acc is None else acc + term
        o_ref[0, :, :, c0:c0 + lane_chunk] = acc.astype(o_ref.dtype)


def relu_dwconv2d(x_nchw, weight, *, num_channel_blocks=1, lane_chunk=128,
                  channel_axis_semantics="parallel"):
    """x_nchw: [N, C, H, W] float32; weight: [C, 1, KH, KW] (PyTorch depthwise layout).

    num_channel_blocks=1 -> one grid step per batch element (best on v5e/v6e).
    On v7x, use num_channel_blocks=2 and channel_axis_semantics=pltpu.CORE_PARALLEL
    for a balanced 2-TensorCore split.
    """
    N, C, H, W = x_nchw.shape
    assert weight.shape == (C, 1, KH, KW)
    G = num_channel_blocks
    assert C % G == 0
    Cb = C // G
    assert Cb % lane_chunk == 0, "channel block must be a multiple of the lane chunk"
    Hp, Wp = H + 2 * PAD, W + 2 * PAD

    # Single channels-last transpose each way; no padded copy ever hits HBM.
    # TODO(synk): in a full MBConv block, keep activations channels-last across
    # the neighboring 1x1 convs so these wrapper transposes disappear entirely.
    x_t = jnp.transpose(x_nchw, (0, 2, 3, 1))          # [N, H, W, C]
    w_t = jnp.transpose(weight[:, 0], (1, 2, 0))       # [KH, KW, C]

    kernel = functools.partial(_relu_dwconv_kernel, H=H, W=W, lane_chunk=lane_chunk)

    itemsize = jnp.dtype(x_nchw.dtype).itemsize
    cost = pl.CostEstimate(
        flops=2 * N * C * H * W * KH * KW + N * C * H * W,
        transcendentals=0,
        bytes_accessed=(2 * N * C * H * W + C * KH * KW) * itemsize,
    )

    out_t = pl.pallas_call(
        kernel,
        out_shape=jax.ShapeDtypeStruct((N, H, W, C), x_nchw.dtype),
        grid_spec=pltpu.PrefetchScalarGridSpec(
            num_scalar_prefetch=0,
            grid=(N, G),
            in_specs=[
                pl.BlockSpec((1, H, W, Cb), lambda n, c: (n, 0, 0, c)),
                pl.BlockSpec((KH, KW, Cb), lambda n, c: (0, 0, c)),
            ],
            out_specs=pl.BlockSpec((1, H, W, Cb), lambda n, c: (n, 0, 0, c)),
            scratch_shapes=[pltpu.VMEM((Hp, Wp, Cb), jnp.float32)],
        ),
        compiler_params=pltpu.CompilerParams(
            dimension_semantics=("parallel", channel_axis_semantics),
        ),
        cost_estimate=cost,
    )(x_t, w_t)

    # Back to NCHW to match the PyTorch module's output convention.
    return jnp.transpose(out_t, (0, 3, 1, 2))


def _reference(x_nchw, weight):
    # Pure-JAX reference: ReLU followed by depthwise conv (feature_group_count=C).
    C = x_nchw.shape[1]
    x = jnp.maximum(x_nchw, 0.0)
    return jax.lax.conv_general_dilated(
        x, weight,
        window_strides=(1, 1),
        padding=((PAD, PAD), (PAD, PAD)),
        dimension_numbers=("NCHW", "OIHW", "NCHW"),
        feature_group_count=C,
        precision=jax.lax.Precision.HIGHEST,
    )


if __name__ == "__main__":
    # Shapes implied by the module's forward: x131 is [1, 1152, 7, 7].
    N, C, H, W = 1, 1152, 7, 7
    key = jax.random.PRNGKey(0)
    kx, kw = jax.random.split(key)
    x = jax.random.normal(kx, (N, C, H, W), dtype=jnp.float32)
    # Deterministic weight init (fan_in = 1 * 5 * 5 for depthwise).
    fan_in = KH * KW
    weight = jax.random.normal(kw, (C, 1, KH, KW), dtype=jnp.float32) * (1.0 / fan_in) ** 0.5

    out = jax.block_until_ready(relu_dwconv2d(x, weight))
    ref = jax.block_until_ready(_reference(x, weight))
    assert out.shape == (N, C, H, W)
    assert jnp.allclose(out, ref, rtol=1e-3, atol=1e-3)

    print("KERNEL_OK")
</pallas_src>

<mosaic_0001>
module attributes {stable_mosaic.version = 11 : i64} {
  func.func @_relu_dwconv_kernel(%arg0: i32, %arg1: i32, %arg2: memref<1x7x7x1152xf32, #tpu.memory_space<vmem>>, %arg3: memref<5x5x1152xf32, #tpu.memory_space<vmem>>, %arg4: memref<1x7x7x1152xf32, #tpu.memory_space<vmem>>, %arg5: memref<11x11x1152xf32, #tpu.memory_space<vmem>>) attributes {dimension_semantics = [#tpu.dimension_semantics<parallel>, #tpu.dimension_semantics<parallel>], iteration_bounds = array<i64: 1, 1>, scalar_prefetch = 0 : i64, scratch_operands = 1 : i64, tpu.core_type = #tpu.core_type<tc>, window_params = [{transform_indices = @transform_0, window_bounds = array<i64: 1, 7, 7, 1152>}, {transform_indices = @transform_1, window_bounds = array<i64: 5, 5, 1152>}, {transform_indices = @transform_2, window_bounds = array<i64: 1, 7, 7, 1152>}]} {
    %cst = arith.constant 0.000000e+00 : f32
    %0 = vector.broadcast %cst : f32 to vector<2x11x1152xf32>
    %c0 = arith.constant 0 : index
    %c0_0 = arith.constant 0 : index
    %c0_1 = arith.constant 0 : index
    %1 = vector.load %arg5[%c0, %c0_0, %c0_1] : memref<11x11x1152xf32, #tpu.memory_space<vmem>>, vector<2x11x1152xf32>
    tpu.vector_store %arg5[%c0, %c0_0, %c0_1], %0 {strides = array<i32>} : memref<11x11x1152xf32, #tpu.memory_space<vmem>>, vector<2x11x1152xf32>,
    %c9 = arith.constant 9 : index
    %c0_2 = arith.constant 0 : index
    %c0_3 = arith.constant 0 : index
    %2 = vector.load %arg5[%c9, %c0_2, %c0_3] : memref<11x11x1152xf32, #tpu.memory_space<vmem>>, vector<2x11x1152xf32>
    tpu.vector_store %arg5[%c9, %c0_2, %c0_3], %0 {strides = array<i32>} : memref<11x11x1152xf32, #tpu.memory_space<vmem>>, vector<2x11x1152xf32>,
    %cst_4 = arith.constant 0.000000e+00 : f32
    %3 = vector.broadcast %cst_4 : f32 to vector<7x2x1152xf32>
    %c2 = arith.constant 2 : index
    %c0_5 = arith.constant 0 : index
    %c0_6 = arith.constant 0 : index
    %4 = vector.load %arg5[%c2, %c0_5, %c0_6] : memref<11x11x1152xf32, #tpu.memory_space<vmem>>, vector<7x2x1152xf32>
    tpu.vector_store %arg5[%c2, %c0_5, %c0_6], %3 {strides = array<i32>} : memref<11x11x1152xf32, #tpu.memory_space<vmem>>, vector<7x2x1152xf32>,
    %c2_7 = arith.constant 2 : index
    %c9_8 = arith.constant 9 : index
    %c0_9 = arith.constant 0 : index
    %5 = vector.load %arg5[%c2_7, %c9_8, %c0_9] : memref<11x11x1152xf32, #tpu.memory_space<vmem>>, vector<7x2x1152xf32>
    tpu.vector_store %arg5[%c2_7, %c9_8, %c0_9], %3 {strides = array<i32>} : memref<11x11x1152xf32, #tpu.memory_space<vmem>>, vector<7x2x1152xf32>,
    %c0_10 = arith.constant 0 : index
    %c0_11 = arith.constant 0 : index
    %c0_12 = arith.constant 0 : index
    %c0_13 = arith.constant 0 : index
    %6 = vector.load %arg2[%c0_10, %c0_11, %c0_12, %c0_13] : memref<1x7x7x1152xf32, #tpu.memory_space<vmem>>, vector<1x7x7x1152xf32>
    %7 = vector.shape_cast %6 : vector<1x7x7x1152xf32> to vector<7x7x1152xf32>
    %cst_14 = arith.constant 0.000000e+00 : f32
    %8 = vector.broadcast %cst_14 : f32 to vector<7x7x1152xf32>
    %9 = arith.maximumf %7, %8 : vector<7x7x1152xf32>
    %c2_15 = arith.constant 2 : index
    %c2_16 = arith.constant 2 : index
    %c0_17 = arith.constant 0 : index
    %10 = vector.load %arg5[%c2_15, %c2_16, %c0_17] : memref<11x11x1152xf32, #tpu.memory_space<vmem>>, vector<7x7x1152xf32>
    tpu.vector_store %arg5[%c2_15, %c2_16, %c0_17], %9 {strides = array<i32>} : memref<11x11x1152xf32, #tpu.memory_space<vmem>>, vector<7x7x1152xf32>,
    %c0_18 = arith.constant 0 : index
    %c0_19 = arith.constant 0 : index
    %c0_20 = arith.constant 0 : index
    %11 = vector.load %arg3[%c0_18, %c0_19, %c0_20] : memref<5x5x1152xf32, #tpu.memory_space<vmem>>, vector<5x5x1152xf32>
    %c0_21 = arith.constant 0 : index
    %c0_22 = arith.constant 0 : index
    %c0_23 = arith.constant 0 : index
    %12 = vector.load %arg5[%c0_21, %c0_22, %c0_23] : memref<11x11x1152xf32, #tpu.memory_space<vmem>>, vector<11x11x128xf32>
    %13 = vector.extract_strided_slice %11 {offsets = [0, 0, 0], sizes = [5, 5, 128], strides = [1, 1, 1]} : vector<5x5x1152xf32> to vector<5x5x128xf32>
    %14 = vector.extract_strided_slice %12 {offsets = [0, 0, 0], sizes = [7, 7, 128], strides = [1, 1, 1]} : vector<11x11x128xf32> to vector<7x7x128xf32>
    %15 = vector.extract_strided_slice %13 {offsets = [0, 0, 0], sizes = [1, 1, 128], strides = [1, 1, 1]} : vector<5x5x128xf32> to vector<1x1x128xf32>
    %16 = vector.shape_cast %15 : vector<1x1x128xf32> to vector<128xf32>
    %17 = vector.shape_cast %16 : vector<128xf32> to vector<1x1x128xf32>
    %18 = vector.broadcast %17 : vector<1x1x128xf32> to vector<7x7x128xf32>
    %19 = arith.mulf %14, %18 : vector<7x7x128xf32>
    %20 = vector.extract_strided_slice %12 {offsets = [0, 1, 0], sizes = [7, 7, 128], strides = [1, 1, 1]} : vector<11x11x128xf32> to vector<7x7x128xf32>
    %21 = vector.extract_strided_slice %13 {offsets = [0, 1, 0], sizes = [1, 1, 128], strides = [1, 1, 1]} : vector<5x5x128xf32> to vector<1x1x128xf32>
    %22 = vector.shape_cast %21 : vector<1x1x128xf32> to vector<128xf32>
    %23 = vector.shape_cast %22 : vector<128xf32> to vector<1x1x128xf32>
    %24 = vector.broadcast %23 : vector<1x1x128xf32> to vector<7x7x128xf32>
    %25 = arith.mulf %20, %24 : vector<7x7x128xf32>
    %26 = arith.addf %19, %25 : vector<7x7x128xf32>
    %27 = vector.extract_strided_slice %12 {offsets = [0, 2, 0], sizes = [7, 7, 128], strides = [1, 1, 1]} : vector<11x11x128xf32> to vector<7x7x128xf32>
    %28 = vector.extract_strided_slice %13 {offsets = [0, 2, 0], sizes = [1, 1, 128], strides = [1, 1, 1]} : vector<5x5x128xf32> to vector<1x1x128xf32>
    %29 = vector.shape_cast %28 : vector<1x1x128xf32> to vector<128xf32>
    %30 = vector.shape_cast %29 : vector<128xf32> to vector<1x1x128xf32>
    %31 = vector.broadcast %30 : vector<1x1x128xf32> to vector<7x7x128xf32>
    %32 = arith.mulf %27, %31 : vector<7x7x128xf32>
    %33 = arith.addf %26, %32 : vector<7x7x128xf32>
    %34 = vector.extract_strided_slice %12 {offsets = [0, 3, 0], sizes = [7, 7, 128], strides = [1, 1, 1]} : vector<11x11x128xf32> to vector<7x7x128xf32>
    %35 = vector.extract_strided_slice %13 {offsets = [0, 3, 0], sizes = [1, 1, 128], strides = [1, 1, 1]} : vector<5x5x128xf32> to vector<1x1x128xf32>
    %36 = vector.shape_cast %35 : vector<1x1x128xf32> to vector<128xf32>
    %37 = vector.shape_cast %36 : vector<128xf32> to vector<1x1x128xf32>
    %38 = vector.broadcast %37 : vector<1x1x128xf32> to vector<7x7x128xf32>
    %39 = arith.mulf %34, %38 : vector<7x7x128xf32>
    %40 = arith.addf %33, %39 : vector<7x7x128xf32>
    %41 = vector.extract_strided_slice %12 {offsets = [0, 4, 0], sizes = [7, 7, 128], strides = [1, 1, 1]} : vector<11x11x128xf32> to vector<7x7x128xf32>
    %42 = vector.extract_strided_slice %13 {offsets = [0, 4, 0], sizes = [1, 1, 128], strides = [1, 1, 1]} : vector<5x5x128xf32> to vector<1x1x128xf32>
    %43 = vector.shape_cast %42 : vector<1x1x128xf32> to vector<128xf32>
    %44 = vector.shape_cast %43 : vector<128xf32> to vector<1x1x128xf32>
    %45 = vector.broadcast %44 : vector<1x1x128xf32> to vector<7x7x128xf32>
    %46 = arith.mulf %41, %45 : vector<7x7x128xf32>
    %47 = arith.addf %40, %46 : vector<7x7x128xf32>
    %48 = vector.extract_strided_slice %12 {offsets = [1, 0, 0], sizes = [7, 7, 128], strides = [1, 1, 1]} : vector<11x11x128xf32> to vector<7x7x128xf32>
    %49 = vector.extract_strided_slice %13 {offsets = [1, 0, 0], sizes = [1, 1, 128], strides = [1, 1, 1]} : vector<5x5x128xf32> to vector<1x1x128xf32>
    %50 = vector.shape_cast %49 : vector<1x1x128xf32> to vector<128xf32>
    %51 = vector.shape_cast %50 : vector<128xf32> to vector<1x1x128xf32>
    %52 = vector.broadcast %51 : vector<1x1x128xf32> to vector<7x7x128xf32>
    %53 = arith.mulf %48, %52 : vector<7x7x128xf32>
    %54 = arith.addf %47, %53 : vector<7x7x128xf32>
    %55 = vector.extract_strided_slice %12 {offsets = [1, 1, 0], sizes = [7, 7, 128], strides = [1, 1, 1]} : vector<11x11x128xf32> to vector<7x7x128xf32>
    %56 = vector.extract_strided_slice %13 {offsets = [1, 1, 0], sizes = [1, 1, 128], strides = [1, 1, 1]} : vector<5x5x128xf32> to vector<1x1x128xf32>
    %57 = vector.shape_cast %56 : vector<1x1x128xf32> to vector<128xf32>
    %58 = vector.shape_cast %57 : vector<128xf32> to vector<1x1x128xf32>
    %59 = vector.broadcast %58 : vector<1x1x128xf32> to vector<7x7x128xf32>
    %60 = arith.mulf %55, %59 : vector<7x7x128xf32>
    %61 = arith.addf %54, %60 : vector<7x7x128xf32>
    %62 = vector.extract_strided_slice %12 {offsets = [1, 2, 0], sizes = [7, 7, 128], strides = [1, 1, 1]} : vector<11x11x128xf32> to vector<7x7x128xf32>
    %63 = vector.extract_strided_slice %13 {offsets = [1, 2, 0], sizes = [1, 1, 128], strides = [1, 1, 1]} : vector<5x5x128xf32> to vector<1x1x128xf32>
    %64 = vector.shape_cast %63 : vector<1x1x128xf32> to vector<128xf32>
    %65 = vector.shape_cast %64 : vector<128xf32> to vector<1x1x128xf32>
    %66 = vector.broadcast %65 : vector<1x1x128xf32> to vector<7x7x128xf32>
    %67 = arith.mulf %62, %66 : vector<7x7x128xf32>
    %68 = arith.addf %61, %67 : vector<7x7x128xf32>
    %69 = vector.extract_strided_slice %12 {offsets = [1, 3, 0], sizes = [7, 7, 128], strides = [1, 1, 1]} : vector<11x11x128xf32> to vector<7x7x128xf32>
    %70 = vector.extract_strided_slice %13 {offsets = [1, 3, 0], sizes = [1, 1, 128], strides = [1, 1, 1]} : vector<5x5x128xf32> to vector<1x1x128xf32>
    %71 = vector.shape_cast %70 : vector<1x1x128xf32> to vector<128xf32>
    %72 = vector.shape_cast %71 : vector<128xf32> to vector<1x1x128xf32>
    %73 = vector.broadcast %72 : vector<1x1x128xf32> to vector<7x7x128xf32>
    %74 = arith.mulf %69, %73 : vector<7x7x128xf32>
    %75 = arith.addf %68, %74 : vector<7x7x128xf32>
    %76 = vector.extract_strided_slice %12 {offsets = [1, 4, 0], sizes = [7, 7, 128], strides = [1, 1, 1]} : vector<11x11x128xf32> to vector<7x7x128xf32>
    %77 = vector.extract_strided_slice %13 {offsets = [1, 4, 0], sizes = [1, 1, 128], strides = [1, 1, 1]} : vector<5x5x128xf32> to vector<1x1x128xf32>
    %78 = vector.shape_cast %77 : vector<1x1x128xf32> to vector<128xf32>
    %79 = vector.shape_cast %78 : vector<128xf32> to vector<1x1x128xf32>
    %80 = vector.broadcast %79 : vector<1x1x128xf32> to vector<7x7x128xf32>
    %81 = arith.mulf %76, %80 : vector<7x7x128xf32>
    %82 = arith.addf %75, %81 : vector<7x7x128xf32>
    %83 = vector.extract_strided_slice %12 {offsets = [2, 0, 0], sizes = [7, 7, 128], strides = [1, 1, 1]} : vector<11x11x128xf32> to vector<7x7x128xf32>
    %84 = vector.extract_strided_slice %13 {offsets = [2, 0, 0], sizes = [1, 1, 128], strides = [1, 1, 1]} : vector<5x5x128xf32> to vector<1x1x128xf32>
    %85 = vector.shape_cast %84 : vector<1x1x128xf32> to vector<128xf32>
    %86 = vector.shape_cast %85 : vector<128xf32> to vector<1x1x128xf32>
    %87 = vector.broadcast %86 : vector<1x1x128xf32> to vector<7x7x128xf32>
    %88 = arith.mulf %83, %87 : vector<7x7x128xf32>
    %89 = arith.addf %82, %88 : vector<7x7x128xf32>
    %90 = vector.extract_strided_slice %12 {offsets = [2, 1, 0], sizes = [7, 7, 128], strides = [1, 1, 1]} : vector<11x11x128xf32> to vector<7x7x128xf32>
    %91 = vector.extract_strided_slice %13 {offsets = [2, 1, 0], sizes = [1, 1, 128], strides = [1, 1, 1]} : vector<5x5x128xf32> to vector<1x1x128xf32>
    %92 = vector.shape_cast %91 : vector<1x1x128xf32> to vector<128xf32>
    %93 = vector.shape_cast %92 : vector<128xf32> to vector<1x1x128xf32>
    %94 = vector.broadcast %93 : vector<1x1x128xf32> to vector<7x7x128xf32>
    %95 = arith.mulf %90, %94 : vector<7x7x128xf32>
    %96 = arith.addf %89, %95 : vector<7x7x128xf32>
    %97 = vector.extract_strided_slice %12 {offsets = [2, 2, 0], sizes = [7, 7, 128], strides = [1, 1, 1]} : vector<11x11x128xf32> to vector<7x7x128xf32>
    %98 = vector.extract_strided_slice %13 {offsets = [2, 2, 0], sizes = [1, 1, 128], strides = [1, 1, 1]} : vector<5x5x128xf32> to vector<1x1x128xf32>
    %99 = vector.shape_cast %98 : vector<1x1x128xf32> to vector<128xf32>
    %100 = vector.shape_cast %99 : vector<128xf32> to vector<1x1x128xf32>
    %101 = vector.broadcast %100 : vector<1x1x128xf32> to vector<7x7x128xf32>
    %102 = arith.mulf %97, %101 : vector<7x7x128xf32>
    %103 = arith.addf %96, %102 : vector<7x7x128xf32>
    %104 = vector.extract_strided_slice %12 {offsets = [2, 3, 0], sizes = [7, 7, 128], strides = [1, 1, 1]} : vector<11x11x128xf32> to vector<7x7x128xf32>
    %105 = vector.extract_strided_slice %13 {offsets = [2, 3, 0], sizes = [1, 1, 128], strides = [1, 1, 1]} : vector<5x5x128xf32> to vector<1x1x128xf32>
    %106 = vector.shape_cast %105 : vector<1x1x128xf32> to vector<128xf32>
    %107 = vector.shape_cast %106 : vector<128xf32> to vector<1x1x128xf32>
    %108 = vector.broadcast %107 : vector<1x1x128xf32> to vector<7x7x128xf32>
    %109 = arith.mulf %104, %108 : vector<7x7x128xf32>
    %110 = arith.addf %103, %109 : vector<7x7x128xf32>
    %111 = vector.extract_strided_slice %12 {offsets = [2, 4, 0], sizes = [7, 7, 128], strides = [1, 1, 1]} : vector<11x11x128xf32> to vector<7x7x128xf32>
    %112 = vector.extract_strided_slice %13 {offsets = [2, 4, 0], sizes = [1, 1, 128], strides = [1, 1, 1]} : vector<5x5x128xf32> to vector<1x1x128xf32>
    %113 = vector.shape_cast %112 : vector<1x1x128xf32> to vector<128xf32>
    %114 = vector.shape_cast %113 : vector<128xf32> to vector<1x1x128xf32>
    %115 = vector.broadcast %114 : vector<1x1x128xf32> to vector<7x7x128xf32>
    %116 = arith.mulf %111, %115 : vector<7x7x128xf32>
    %117 = arith.addf %110, %116 : vector<7x7x128xf32>
    %118 = vector.extract_strided_slice %12 {offsets = [3, 0, 0], sizes = [7, 7, 128], strides = [1, 1, 1]} : vector<11x11x128xf32> to vector<7x7x128xf32>
    %119 = vector.extract_strided_slice %13 {offsets = [3, 0, 0], sizes = [1, 1, 128], strides = [1, 1, 1]} : vector<5x5x128xf32> to vector<1x1x128xf32>
    %120 = vector.shape_cast %119 : vector<1x1x128xf32> to vector<128xf32>
    %121 = vector.shape_cast %120 : vector<128xf32> to vector<1x1x128xf32>
    %122 = vector.broadcast %121 : vector<1x1x128xf32> to vector<7x7x128xf32>
    %123 = arith.mulf %118, %122 : vector<7x7x128xf32>
    %124 = arith.addf %117, %123 : vector<7x7x128xf32>
    %125 = vector.extract_strided_slice %12 {offsets = [3, 1, 0], sizes = [7, 7, 128], strides = [1, 1, 1]} : vector<11x11x128xf32> to vector<7x7x128xf32>
    %126 = vector.extract_strided_slice %13 {offsets = [3, 1, 0], sizes = [1, 1, 128], strides = [1, 1, 1]} : vector<5x5x128xf32> to vector<1x1x128xf32>
    %127 = vector.shape_cast %126 : vector<1x1x128xf32> to vector<128xf32>
    %128 = vector.shape_cast %127 : vector<128xf32> to vector<1x1x128xf32>
    %129 = vector.broadcast %128 : vector<1x1x128xf32> to vector<7x7x128xf32>
    %130 = arith.mulf %125, %129 : vector<7x7x128xf32>
    %131 = arith.addf %124, %130 : vector<7x7x128xf32>
    %132 = vector.extract_strided_slice %12 {offsets = [3, 2, 0], sizes = [7, 7, 128], strides = [1, 1, 1]} : vector<11x11x128xf32> to vector<7x7x128xf32>
    %133 = vector.extract_strided_slice %13 {offsets = [3, 2, 0], sizes = [1, 1, 128], strides = [1, 1, 1]} : vector<5x5x128xf32> to vector<1x1x128xf32>
    %134 = vector.shape_cast %133 : vector<1x1x128xf32> to vector<128xf32>
    %135 = vector.shape_cast %134 : vector<128xf32> to vector<1x1x128xf32>
    %136 = vector.broadcast %135 : vector<1x1x128xf32> to vector<7x7x128xf32>
    %137 = arith.mulf %132, %136 : vector<7x7x128xf32>
    %138 = arith.addf %131, %137 : vector<7x7x128xf32>
    %139 = vector.extract_strided_slice %12 {offsets = [3, 3, 0], sizes = [7, 7, 128], strides = [1, 1, 1]} : vector<11x11x128xf32> to vector<7x7x128xf32>
    %140 = vector.extract_strided_slice %13 {offsets = [3, 3, 0], sizes = [1, 1, 128], strides = [1, 1, 1]} : vector<5x5x128xf32> to vector<1x1x128xf32>
    %141 = vector.shape_cast %140 : vector<1x1x128xf32> to vector<128xf32>
    %142 = vector.shape_cast %141 : vector<128xf32> to vector<1x1x128xf32>
    %143 = vector.broadcast %142 : vector<1x1x128xf32> to vector<7x7x128xf32>
    %144 = arith.mulf %139, %143 : vector<7x7x128xf32>
    %145 = arith.addf %138, %144 : vector<7x7x128xf32>
    %146 = vector.extract_strided_slice %12 {offsets = [3, 4, 0], sizes = [7, 7, 128], strides = [1, 1, 1]} : vector<11x11x128xf32> to vector<7x7x128xf32>
    %147 = vector.extract_strided_slice %13 {offsets = [3, 4, 0], sizes = [1, 1, 128], strides = [1, 1, 1]} : vector<5x5x128xf32> to vector<1x1x128xf32>
    %148 = vector.shape_cast %147 : vector<1x1x128xf32> to vector<128xf32>
    %149 = vector.shape_cast %148 : vector<128xf32> to vector<1x1x128xf32>
    %150 = vector.broadcast %149 : vector<1x1x128xf32> to vector<7x7x128xf32>
    %151 = arith.mulf %146, %150 : vector<7x7x128xf32>
    %152 = arith.addf %145, %151 : vector<7x7x128xf32>
    %153 = vector.extract_strided_slice %12 {offsets = [4, 0, 0], sizes = [7, 7, 128], strides = [1, 1, 1]} : vector<11x11x128xf32> to vector<7x7x128xf32>
    %154 = vector.extract_strided_slice %13 {offsets = [4, 0, 0], sizes = [1, 1, 128], strides = [1, 1, 1]} : vector<5x5x128xf32> to vector<1x1x128xf32>
    %155 = vector.shape_cast %154 : vector<1x1x128xf32> to vector<128xf32>
    %156 = vector.shape_cast %155 : vector<128xf32> to vector<1x1x128xf32>
    %157 = vector.broadcast %156 : vector<1x1x128xf32> to vector<7x7x128xf32>
    %158 = arith.mulf %153, %157 : vector<7x7x128xf32>
    %159 = arith.addf %152, %158 : vector<7x7x128xf32>
    %160 = vector.extract_strided_slice %12 {offsets = [4, 1, 0], sizes = [7, 7, 128], strides = [1, 1, 1]} : vector<11x11x128xf32> to vector<7x7x128xf32>
    %161 = vector.extract_strided_slice %13 {offsets = [4, 1, 0], sizes = [1, 1, 128], strides = [1, 1, 1]} : vector<5x5x128xf32> to vector<1x1x128xf32>
    %162 = vector.shape_cast %161 : vector<1x1x128xf32> to vector<128xf32>
    %163 = vector.shape_cast %162 : vector<128xf32> to vector<1x1x128xf32>
    %164 = vector.broadcast %163 : vector<1x1x128xf32> to vector<7x7x128xf32>
    %165 = arith.mulf %160, %164 : vector<7x7x128xf32>
    %166 = arith.addf %159, %165 : vector<7x7x128xf32>
    %167 = vector.extract_strided_slice %12 {offsets = [4, 2, 0], sizes = [7, 7, 128], strides = [1, 1, 1]} : vector<11x11x128xf32> to vector<7x7x128xf32>
    %168 = vector.extract_strided_slice %13 {offsets = [4, 2, 0], sizes = [1, 1, 128], strides = [1, 1, 1]} : vector<5x5x128xf32> to vector<1x1x128xf32>
    %169 = vector.shape_cast %168 : vector<1x1x128xf32> to vector<128xf32>
    %170 = vector.shape_cast %169 : vector<128xf32> to vector<1x1x128xf32>
    %171 = vector.broadcast %170 : vector<1x1x128xf32> to vector<7x7x128xf32>
    %172 = arith.mulf %167, %171 : vector<7x7x128xf32>
    %173 = arith.addf %166, %172 : vector<7x7x128xf32>
    %174 = vector.extract_strided_slice %12 {offsets = [4, 3, 0], sizes = [7, 7, 128], strides = [1, 1, 1]} : vector<11x11x128xf32> to vector<7x7x128xf32>
    %175 = vector.extract_strided_slice %13 {offsets = [4, 3, 0], sizes = [1, 1, 128], strides = [1, 1, 1]} : vector<5x5x128xf32> to vector<1x1x128xf32>
    %176 = vector.shape_cast %175 : vector<1x1x128xf32> to vector<128xf32>
    %177 = vector.shape_cast %176 : vector<128xf32> to vector<1x1x128xf32>
    %178 = vector.broadcast %177 : vector<1x1x128xf32> to vector<7x7x128xf32>
    %179 = arith.mulf %174, %178 : vector<7x7x128xf32>
    %180 = arith.addf %173, %179 : vector<7x7x128xf32>
    %181 = vector.extract_strided_slice %12 {offsets = [4, 4, 0], sizes = [7, 7, 128], strides = [1, 1, 1]} : vector<11x11x128xf32> to vector<7x7x128xf32>
    %182 = vector.extract_strided_slice %13 {offsets = [4, 4, 0], sizes = [1, 1, 128], strides = [1, 1, 1]} : vector<5x5x128xf32> to vector<1x1x128xf32>
    %183 = vector.shape_cast %182 : vector<1x1x128xf32> to vector<128xf32>
    %184 = vector.shape_cast %183 : vector<128xf32> to vector<1x1x128xf32>
    %185 = vector.broadcast %184 : vector<1x1x128xf32> to vector<7x7x128xf32>
    %186 = arith.mulf %181, %185 : vector<7x7x128xf32>
    %187 = arith.addf %180, %186 : vector<7x7x128xf32>
    %c0_24 = arith.constant 0 : index
    %c0_25 = arith.constant 0 : index
    %c0_26 = arith.constant 0 : index
    %c0_27 = arith.constant 0 : index
    %188 = vector.load %arg4[%c0_24, %c0_25, %c0_26, %c0_27] : memref<1x7x7x1152xf32, #tpu.memory_space<vmem>>, vector<1x7x7x128xf32>
    %189 = vector.shape_cast %188 : vector<1x7x7x128xf32> to vector<7x7x128xf32>
    %190 = vector.shape_cast %187 : vector<7x7x128xf32> to vector<1x7x7x128xf32>
    tpu.vector_store %arg4[%c0_24, %c0_25, %c0_26, %c0_27], %190 {strides = array<i32>} : memref<1x7x7x1152xf32, #tpu.memory_space<vmem>>, vector<1x7x7x128xf32>,
    %c0_28 = arith.constant 0 : index
    %c0_29 = arith.constant 0 : index
    %c128 = arith.constant 128 : index
    %191 = vector.load %arg5[%c0_28, %c0_29, %c128] : memref<11x11x1152xf32, #tpu.memory_space<vmem>>, vector<11x11x128xf32>
    %192 = vector.extract_strided_slice %11 {offsets = [0, 0, 128], sizes = [5, 5, 128], strides = [1, 1, 1]} : vector<5x5x1152xf32> to vector<5x5x128xf32>
    %193 = vector.extract_strided_slice %191 {offsets = [0, 0, 0], sizes = [7, 7, 128], strides = [1, 1, 1]} : vector<11x11x128xf32> to vector<7x7x128xf32>
    %194 = vector.extract_strided_slice %192 {offsets = [0, 0, 0], sizes = [1, 1, 128], strides = [1, 1, 1]} : vector<5x5x128xf32> to vector<1x1x128xf32>
    %195 = vector.shape_cast %194 : vector<1x1x128xf32> to vector<128xf32>
    %196 = vector.shape_cast %195 : vector<128xf32> to vector<1x1x128xf32>
    %197 = vector.broadcast %196 : vector<1x1x128xf32> to vector<7x7x128xf32>
    %198 = arith.mulf %193, %197 : vector<7x7x128xf32>
    %199 = vector.extract_strided_slice %191 {offsets = [0, 1, 0], sizes = [7, 7, 128], strides = [1, 1, 1]} : vector<11x11x128xf32> to vector<7x7x128xf32>
    %200 = vector.extract_strided_slice %192 {offsets = [0, 1, 0], sizes = [1, 1, 128], strides = [1, 1, 1]} : vector<5x5x128xf32> to vector<1x1x128xf32>
    %201 = vector.shape_cast %200 : vector<1x1x128xf32> to vector<128xf32>
    %202 = vector.shape_cast %201 : vector<128xf32> to vector<1x1x128xf32>
    %203 = vector.broadcast %202 : vector<1x1x128xf32> to vector<7x7x128xf32>
    %204 = arith.mulf %199, %203 : vector<7x7x128xf32>
    %205 = arith.addf %198, %204 : vector<7x7x128xf32>
    %206 = vector.extract_strided_slice %191 {offsets = [0, 2, 0], sizes = [7, 7, 128], strides = [1, 1, 1]} : vector<11x11x128xf32> to vector<7x7x128xf32>
    %207 = vector.extract_strided_slice %192 {offsets = [0, 2, 0], sizes = [1, 1, 128], strides = [1, 1, 1]} : vector<5x5x128xf32> to vector<1x1x128xf32>
    %208 = vector.shape_cast %207 : vector<1x1x128xf32> to vector<128xf32>
    %209 = vector.shape_cast %208 : vector<128xf32> to vector<1x1x128xf32>
    %210 = vector.broadcast %209 : vector<1x1x128xf32> to vector<7x7x128xf32>
    %211 = arith.mulf %206, %210 : vector<7x7x128xf32>
    %212 = arith.addf %205, %211 : vector<7x7x128xf32>
    %213 = vector.extract_strided_slice %191 {offsets = [0, 3, 0], sizes = [7, 7, 128], strides = [1, 1, 1]} : vector<11x11x128xf32> to vector<7x7x128xf32>
    %214 = vector.extract_strided_slice %192 {offsets = [0, 3, 0], sizes = [1, 1, 128], strides = [1, 1, 1]} : vector<5x5x128xf32> to vector<1x1x128xf32>
    %215 = vector.shape_cast %214 : vector<1x1x128xf32> to vector<128xf32>
    %216 = vector.shape_cast %215 : vector<128xf32> to vector<1x1x128xf32>
    %217 = vector.broadcast %216 : vector<1x1x128xf32> to vector<7x7x128xf32>
    %218 = arith.mulf %213, %217 : vector<7x7x128xf32>
    %219 = arith.addf %212, %218 : vector<7x7x128xf32>
    %220 = vector.extract_strided_slice %191 {offsets = [0, 4, 0], sizes = [7, 7, 128], strides = [1, 1, 1]} : vector<11x11x128xf32> to vector<7x7x128xf32>
    %221 = vector.extract_strided_slice %192 {offsets = [0, 4, 0], sizes = [1, 1, 128], strides = [1, 1, 1]} : vector<5x5x128xf32> to vector<1x1x128xf32>
    %222 = vector.shape_cast %221 : vector<1x1x128xf32> to vector<128xf32>
    %223 = vector.shape_cast %222 : vector<128xf32> to vector<1x1x128xf32>
    %224 = vector.broadcast %223 : vector<1x1x128xf32> to vector<7x7x128xf32>
    %225 = arith.mulf %220, %224 : vector<7x7x128xf32>
    %226 = arith.addf %219, %225 : vector<7x7x128xf32>
    %227 = vector.extract_strided_slice %191 {offsets = [1, 0, 0], sizes = [7, 7, 128], strides = [1, 1, 1]} : vector<11x11x128xf32> to vector<7x7x128xf32>
    %228 = vector.extract_strided_slice %192 {offsets = [1, 0, 0], sizes = [1, 1, 128], strides = [1, 1, 1]} : vector<5x5x128xf32> to vector<1x1x128xf32>
    %229 = vector.shape_cast %228 : vector<1x1x128xf32> to vector<128xf32>
    %230 = vector.shape_cast %229 : vector<128xf32> to vector<1x1x128xf32>
    %231 = vector.broadcast %230 : vector<1x1x128xf32> to vector<7x7x128xf32>
    %232 = arith.mulf %227, %231 : vector<7x7x128xf32>
    %233 = arith.addf %226, %232 : vector<7x7x128xf32>
    %234 = vector.extract_strided_slice %191 {offsets = [1, 1, 0], sizes = [7, 7, 128], strides = [1, 1, 1]} : vector<11x11x128xf32> to vector<7x7x128xf32>
    %235 = vector.extract_strided_slice %192 {offsets = [1, 1, 0], sizes = [1, 1, 128], strides = [1, 1, 1]} : vector<5x5x128xf32> to vector<1x1x128xf32>
    %236 = vector.shape_cast %235 : vector<1x1x128xf32> to vector<128xf32>
    %237 = vector.shape_cast %236 : vector<128xf32> to vector<1x1x128xf32>
    %238 = vector.broadcast %237 : vector<1x1x128xf32> to vector<7x7x128xf32>
    %239 = arith.mulf %234, %238 : vector<7x7x128xf32>
    %240 = arith.addf %233, %239 : vector<7x7x128xf32>
    %241 = vector.extract_strided_slice %191 {offsets = [1, 2, 0], sizes = [7, 7, 128], strides = [1, 1, 1]} : vector<11x11x128xf32> to vector<7x7x128xf32>
    %242 = vector.extract_strided_slice %192 {offsets = [1, 2, 0], sizes = [1, 1, 128], strides = [1, 1, 1]} : vector<5x5x128xf32> to vector<1x1x128xf32>
    %243 = vector.shape_cast %242 : vector<1x1x128xf32> to vector<128xf32>
    %244 = vector.shape_cast %243 : vector<128xf32> to vector<1x1x128xf32>
    %245 = vector.broadcast %244 : vector<1x1x128xf32> to vector<7x7x128xf32>
    %246 = arith.mulf %241, %245 : vector<7x7x128xf32>
    %247 = arith.addf %240, %246 : vector<7x7x128xf32>
    %248 = vector.extract_strided_slice %191 {offsets = [1, 3, 0], sizes = [7, 7, 128], strides = [1, 1, 1]} : vector<11x11x128xf32> to vector<7x7x128xf32>
    %249 = vector.extract_strided_slice %192 {offsets = [1, 3, 0], sizes = [1, 1, 128], strides = [1, 1, 1]} : vector<5x5x128xf32> to vector<1x1x128xf32>
    %250 = vector.shape_cast %249 : vector<1x1x128xf32> to vector<128xf32>
    %251 = vector.shape_cast %250 : vector<128xf32> to vector<1x1x128xf32>
    %252 = vector.broadcast %251 : vector<1x1x128xf32> to vector<7x7x128xf32>
    %253 = arith.mulf %248, %252 : vector<7x7x128xf32>
    %254 = arith.addf %247, %253 : vector<7x7x128xf32>
    %255 = vector.extract_strided_slice %191 {offsets = [1, 4, 0], sizes = [7, 7, 128], strides = [1, 1, 1]} : vector<11x11x128xf32> to vector<7x7x128xf32>
    %256 = vector.extract_strided_slice %192 {offsets = [1, 4, 0], sizes = [1, 1, 128], strides = [1, 1, 1]} : vector<5x5x128xf32> to vector<1x1x128xf32>
    %257 = vector.shape_cast %256 : vector<1x1x128xf32> to vector<128xf32>
    %258 = vector.shape_cast %257 : vector<128xf32> to vector<1x1x128xf32>
    %259 = vector.broadcast %258 : vector<1x1x128xf32> to vector<7x7x128xf32>
    %260 = arith.mulf %255, %259 : vector<7x7x128xf32>
    %261 = arith.addf %254, %260 : vector<7x7x128xf32>
    %262 = vector.extract_strided_slice %191 {offsets = [2, 0, 0], sizes = [7, 7, 128], strides = [1, 1, 1]} : vector<11x11x128xf32> to vector<7x7x128xf32>
    %263 = vector.extract_strided_slice %192 {offsets = [2, 0, 0], sizes = [1, 1, 128], strides = [1, 1, 1]} : vector<5x5x128xf32> to vector<1x1x128xf32>
    %264 = vector.shape_cast %263 : vector<1x1x128xf32> to vector<128xf32>
    %265 = vector.shape_cast %264 : vector<128xf32> to vector<1x1x128xf32>
    %266 = vector.broadcast %265 : vector<1x1x128xf32> to vector<7x7x128xf32>
    %267 = arith.mulf %262, %266 : vector<7x7x128xf32>
    %268 = arith.addf %261, %267 : vector<7x7x128xf32>
    %269 = vector.extract_strided_slice %191 {offsets = [2, 1, 0], sizes = [7, 7, 128], strides = [1, 1, 1]} : vector<11x11x128xf32> to vector<7x7x128xf32>
    %270 = vector.extract_strided_slice %192 {offsets = [2, 1, 0], sizes = [1, 1, 128], strides = [1, 1, 1]} : vector<5x5x128xf32> to vector<1x1x128xf32>
    %271 = vector.shape_cast %270 : vector<1x1x128xf32> to vector<128xf32>
    %272 = vector.shape_cast %271 : vector<128xf32> to vector<1x1x128xf32>
    %273 = vector.broadcast %272 : vector<1x1x128xf32> to vector<7x7x128xf32>
    %274 = arith.mulf %269, %273 : vector<7x7x128xf32>
    %275 = arith.addf %268, %274 : vector<7x7x128xf32>
    %276 = vector.extract_strided_slice %191 {offsets = [2, 2, 0], sizes = [7, 7, 128], strides = [1, 1, 1]} : vector<11x11x128xf32> to vector<7x7x128xf32>
    %277 = vector.extract_strided_slice %192 {offsets = [2, 2, 0], sizes = [1, 1, 128], strides = [1, 1, 1]} : vector<5x5x128xf32> to vector<1x1x128xf32>
    %278 = vector.shape_cast %277 : vector<1x1x128xf32> to vector<128xf32>
    %279 = vector.shape_cast %278 : vector<128xf32> to vector<1x1x128xf32>
    %280 = vector.broadcast %279 : vector<1x1x128xf32> to vector<7x7x128xf32>
    %281 = arith.mulf %276, %280 : vector<7x7x128xf32>
    %282 = arith.addf %275, %281 : vector<7x7x128xf32>
    %283 = vector.extract_strided_slice %191 {offsets = [2, 3, 0], sizes = [7, 7, 128], strides = [1, 1, 1]} : vector<11x11x128xf32> to vector<7x7x128xf32>
    %284 = vector.extract_strided_slice %192 {offsets = [2, 3, 0], sizes = [1, 1, 128], strides = [1, 1, 1]} : vector<5x5x128xf32> to vector<1x1x128xf32>
    %285 = vector.shape_cast %284 : vector<1x1x128xf32> to vector<128xf32>
    %286 = vector.shape_cast %285 : vector<128xf32> to vector<1x1x128xf32>
    %287 = vector.broadcast %286 : vector<1x1x128xf32> to vector<7x7x128xf32>
    %288 = arith.mulf %283, %287 : vector<7x7x128xf32>
    %289 = arith.addf %282, %288 : vector<7x7x128xf32>
    %290 = vector.extract_strided_slice %191 {offsets = [2, 4, 0], sizes = [7, 7, 128], strides = [1, 1, 1]} : vector<11x11x128xf32> to vector<7x7x128xf32>
    %291 = vector.extract_strided_slice %192 {offsets = [2, 4, 0], sizes = [1, 1, 128], strides = [1, 1, 1]} : vector<5x5x128xf32> to vector<1x1x128xf32>
    %292 = vector.shape_cast %291 : vector<1x1x128xf32> to vector<128xf32>
    %293 = vector.shape_cast %292 : vector<128xf32> to vector<1x1x128xf32>
    %294 = vector.broadcast %293 : vector<1x1x128xf32> to vector<7x7x128xf32>
    %295 = arith.mulf %290, %294 : vector<7x7x128xf32>
    %296 = arith.addf %289, %295 : vector<7x7x128xf32>
    %297 = vector.extract_strided_slice %191 {offsets = [3, 0, 0], sizes = [7, 7, 128], strides = [1, 1, 1]} : vector<11x11x128xf32> to vector<7x7x128xf32>
    %298 = vector.extract_strided_slice %192 {offsets = [3, 0, 0], sizes = [1, 1, 128], strides = [1, 1, 1]} : vector<5x5x128xf32> to vector<1x1x128xf32>
    %299 = vector.shape_cast %298 : vector<1x1x128xf32> to vector<128xf32>
    %300 = vector.shape_cast %299 : vector<128xf32> to vector<1x1x128xf32>
    %301 = vector.broadcast %300 : vector<1x1x128xf32> to vector<7x7x128xf32>
    %302 = arith.mulf %297, %301 : vector<7x7x128xf32>
    %303 = arith.addf %296, %302 : vector<7x7x128xf32>
    %304 = vector.extract_strided_slice %191 {offsets = [3, 1, 0], sizes = [7, 7, 128], strides = [1, 1, 1]} : vector<11x11x128xf32> to vector<7x7x128xf32>
    %305 = vector.extract_strided_slice %192 {offsets = [3, 1, 0], sizes = [1, 1, 128], strides = [1, 1, 1]} : vector<5x5x128xf32> to vector<1x1x128xf32>
    %306 = vector.shape_cast %305 : vector<1x1x128xf32> to vector<128xf32>
    %307 = vector.shape_cast %306 : vector<128xf32> to vector<1x1x128xf32>
    %308 = vector.broadcast %307 : vector<1x1x128xf32> to vector<7x7x128xf32>
    %309 = arith.mulf %304, %308 : vector<7x7x128xf32>
    %310 = arith.addf %303, %309 : vector<7x7x128xf32>
    %311 = vector.extract_strided_slice %191 {offsets = [3, 2, 0], sizes = [7, 7, 128], strides = [1, 1, 1]} : vector<11x11x128xf32> to vector<7x7x128xf32>
    %312 = vector.extract_strided_slice %192 {offsets = [3, 2, 0], sizes = [1, 1, 128], strides = [1, 1, 1]} : vector<5x5x128xf32> to vector<1x1x128xf32>
    %313 = vector.shape_cast %312 : vector<1x1x128xf32> to vector<128xf32>
    %314 = vector.shape_cast %313 : vector<128xf32> to vector<1x1x128xf32>
    %315 = vector.broadcast %314 : vector<1x1x128xf32> to vector<7x7x128xf32>
    %316 = arith.mulf %311, %315 : vector<7x7x128xf32>
    %317 = arith.addf %310, %316 : vector<7x7x128xf32>
    %318 = vector.extract_strided_slice %191 {offsets = [3, 3, 0], sizes = [7, 7, 128], strides = [1, 1, 1]} : vector<11x11x128xf32> to vector<7x7x128xf32>
    %319 = vector.extract_strided_slice %192 {offsets = [3, 3, 0], sizes = [1, 1, 128], strides = [1, 1, 1]} : vector<5x5x128xf32> to vector<1x1x128xf32>
    %320 = vector.shape_cast %319 : vector<1x1x128xf32> to vector<128xf32>
    %321 = vector.shape_cast %320 : vector<128xf32> to vector<1x1x128xf32>
    %322 = vector.broadcast %321 : vector<1x1x128xf32> to vector<7x7x128xf32>
    %323 = arith.mulf %318, %322 : vector<7x7x128xf32>
    %324 = arith.addf %317, %323 : vector<7x7x128xf32>
    %325 = vector.extract_strided_slice %191 {offsets = [3, 4, 0], sizes = [7, 7, 128], strides = [1, 1, 1]} : vector<11x11x128xf32> to vector<7x7x128xf32>
    %326 = vector.extract_strided_slice %192 {offsets = [3, 4, 0], sizes = [1, 1, 128], strides = [1, 1, 1]} : vector<5x5x128xf32> to vector<1x1x128xf32>
    %327 = vector.shape_cast %326 : vector<1x1x128xf32> to vector<128xf32>
    %328 = vector.shape_cast %327 : vector<128xf32> to vector<1x1x128xf32>
    %329 = vector.broadcast %328 : vector<1x1x128xf32> to vector<7x7x128xf32>
    %330 = arith.mulf %325, %329 : vector<7x7x128xf32>
    %331 = arith.addf %324, %330 : vector<7x7x128xf32>
    %332 = vector.extract_strided_slice %191 {offsets = [4, 0, 0], sizes = [7, 7, 128], strides = [1, 1, 1]} : vector<11x11x128xf32> to vector<7x7x128xf32>
    %333 = vector.extract_strided_slice %192 {offsets = [4, 0, 0], sizes = [1, 1, 128], strides = [1, 1, 1]} : vector<5x5x128xf32> to vector<1x1x128xf32>
    %334 = vector.shape_cast %333 : vector<1x1x128xf32> to vector<128xf32>
    %335 = vector.shape_cast %334 : vector<128xf32> to vector<1x1x128xf32>
    %336 = vector.broadcast %335 : vector<1x1x128xf32> to vector<7x7x128xf32>
    %337 = arith.mulf %332, %336 : vector<7x7x128xf32>
    %338 = arith.addf %331, %337 : vector<7x7x128xf32>
    %339 = vector.extract_strided_slice %191 {offsets = [4, 1, 0], sizes = [7, 7, 128], strides = [1, 1, 1]} : vector<11x11x128xf32> to vector<7x7x128xf32>
    %340 = vector.extract_strided_slice %192 {offsets = [4, 1, 0], sizes = [1, 1, 128], strides = [1, 1, 1]} : vector<5x5x128xf32> to vector<1x1x128xf32>
    %341 = vector.shape_cast %340 : vector<1x1x128xf32> to vector<128xf32>
    %342 = vector.shape_cast %341 : vector<128xf32> to vector<1x1x128xf32>
    %343 = vector.broadcast %342 : vector<1x1x128xf32> to vector<7x7x128xf32>
    %344 = arith.mulf %339, %343 : vector<7x7x128xf32>
    %345 = arith.addf %338, %344 : vector<7x7x128xf32>
    %346 = vector.extract_strided_slice %191 {offsets = [4, 2, 0], sizes = [7, 7, 128], strides = [1, 1, 1]} : vector<11x11x128xf32> to vector<7x7x128xf32>
    %347 = vector.extract_strided_slice %192 {offsets = [4, 2, 0], sizes = [1, 1, 128], strides = [1, 1, 1]} : vector<5x5x128xf32> to vector<1x1x128xf32>
    %348 = vector.shape_cast %347 : vector<1x1x128xf32> to vector<128xf32>
    %349 = vector.shape_cast %348 : vector<128xf32> to vector<1x1x128xf32>
    %350 = vector.broadcast %349 : vector<1x1x128xf32> to vector<7x7x128xf32>
    %351 = arith.mulf %346, %350 : vector<7x7x128xf32>
    %352 = arith.addf %345, %351 : vector<7x7x128xf32>
    %353 = vector.extract_strided_slice %191 {offsets = [4, 3, 0], sizes = [7, 7, 128], strides = [1, 1, 1]} : vector<11x11x128xf32> to vector<7x7x128xf32>
    %354 = vector.extract_strided_slice %192 {offsets = [4, 3, 0], sizes = [1, 1, 128], strides = [1, 1, 1]} : vector<5x5x128xf32> to vector<1x1x128xf32>
    %355 = vector.shape_cast %354 : vector<1x1x128xf32> to vector<128xf32>
    %356 = vector.shape_cast %355 : vector<128xf32> to vector<1x1x128xf32>
    %357 = vector.broadcast %356 : vector<1x1x128xf32> to vector<7x7x128xf32>
    %358 = arith.mulf %353, %357 : vector<7x7x128xf32>
    %359 = arith.addf %352, %358 : vector<7x7x128xf32>
    %360 = vector.extract_strided_slice %191 {offsets = [4, 4, 0], sizes = [7, 7, 128], strides = [1, 1, 1]} : vector<11x11x128xf32> to vector<7x7x128xf32>
    %361 = vector.extract_strided_slice %192 {offsets = [4, 4, 0], sizes = [1, 1, 128], strides = [1, 1, 1]} : vector<5x5x128xf32> to vector<1x1x128xf32>
    %362 = vector.shape_cast %361 : vector<1x1x128xf32> to vector<128xf32>
    %363 = vector.shape_cast %362 : vector<128xf32> to vector<1x1x128xf32>
    %364 = vector.broadcast %363 : vector<1x1x128xf32> to vector<7x7x128xf32>
    %365 = arith.mulf %360, %364 : vector<7x7x128xf32>
    %366 = arith.addf %359, %365 : vector<7x7x128xf32>
    %c0_30 = arith.constant 0 : index
    %c0_31 = arith.constant 0 : index
    %c0_32 = arith.constant 0 : index
    %c128_33 = arith.constant 128 : index
    %367 = vector.load %arg4[%c0_30, %c0_31, %c0_32, %c128_33] : memref<1x7x7x1152xf32, #tpu.memory_space<vmem>>, vector<1x7x7x128xf32>
    %368 = vector.shape_cast %367 : vector<1x7x7x128xf32> to vector<7x7x128xf32>
    %369 = vector.shape_cast %366 : vector<7x7x128xf32> to vector<1x7x7x128xf32>
    tpu.vector_store %arg4[%c0_30, %c0_31, %c0_32, %c128_33], %369 {strides = array<i32>} : memref<1x7x7x1152xf32, #tpu.memory_space<vmem>>, vector<1x7x7x128xf32>,
    %c0_34 = arith.constant 0 : index
    %c0_35 = arith.constant 0 : index
    %c256 = arith.constant 256 : index
    %370 = vector.load %arg5[%c0_34, %c0_35, %c256] : memref<11x11x1152xf32, #tpu.memory_space<vmem>>, vector<11x11x128xf32>
    %371 = vector.extract_strided_slice %11 {offsets = [0, 0, 256], sizes = [5, 5, 128], strides = [1, 1, 1]} : vector<5x5x1152xf32> to vector<5x5x128xf32>
    %372 = vector.extract_strided_slice %370 {offsets = [0, 0, 0], sizes = [7, 7, 128], strides = [1, 1, 1]} : vector<11x11x128xf32> to vector<7x7x128xf32>
    %373 = vector.extract_strided_slice %371 {offsets = [0, 0, 0], sizes = [1, 1, 128], strides = [1, 1, 1]} : vector<5x5x128xf32> to vector<1x1x128xf32>
    %374 = vector.shape_cast %373 : vector<1x1x128xf32> to vector<128xf32>
    %375 = vector.shape_cast %374 : vector<128xf32> to vector<1x1x128xf32>
    %376 = vector.broadcast %375 : vector<1x1x128xf32> to vector<7x7x128xf32>
    %377 = arith.mulf %372, %376 : vector<7x7x128xf32>
    %378 = vector.extract_strided_slice %370 {offsets = [0, 1, 0], sizes = [7, 7, 128], strides = [1, 1, 1]} : vector<11x11x128xf32> to vector<7x7x128xf32>
    %379 = vector.extract_strided_slice %371 {offsets = [0, 1, 0], sizes = [1, 1, 128], strides = [1, 1, 1]} : vector<5x5x128xf32> to vector<1x1x128xf32>
    %380 = vector.shape_cast %379 : vector<1x1x128xf32> to vector<128xf32>
    %381 = vector.shape_cast %380 : vector<128xf32> to vector<1x1x128xf32>
    %382 = vector.broadcast %381 : vector<1x1x128xf32> to vector<7x7x128xf32>
    %383 = arith.mulf %378, %382 : vector<7x7x128xf32>
    %384 = arith.addf %377, %383 : vector<7x7x128xf32>
    %385 = vector.extract_strided_slice %370 {offsets = [0, 2, 0], sizes = [7, 7, 128], strides = [1, 1, 1]} : vector<11x11x128xf32> to vector<7x7x128xf32>
    %386 = vector.extract_strided_slice %371 {offsets = [0, 2, 0], sizes = [1, 1, 128], strides = [1, 1, 1]} : vector<5x5x128xf32> to vector<1x1x128xf32>
    %387 = vector.shape_cast %386 : vector<1x1x128xf32> to vector<128xf32>
    %388 = vector.shape_cast %387 : vector<128xf32> to vector<1x1x128xf32>
    %389 = vector.broadcast %388 : vector<1x1x128xf32> to vector<7x7x128xf32>
    %390 = arith.mulf %385, %389 : vector<7x7x128xf32>
    %391 = arith.addf %384, %390 : vector<7x7x128xf32>
    %392 = vector.extract_strided_slice %370 {offsets = [0, 3, 0], sizes = [7, 7, 128], strides = [1, 1, 1]} : vector<11x11x128xf32> to vector<7x7x128xf32>
    %393 = vector.extract_strided_slice %371 {offsets = [0, 3, 0], sizes = [1, 1, 128], strides = [1, 1, 1]} : vector<5x5x128xf32> to vector<1x1x128xf32>
    %394 = vector.shape_cast %393 : vector<1x1x128xf32> to vector<128xf32>
    %395 = vector.shape_cast %394 : vector<128xf32> to vector<1x1x128xf32>
    %396 = vector.broadcast %395 : vector<1x1x128xf32> to vector<7x7x128xf32>
    %397 = arith.mulf %392, %396 : vector<7x7x128xf32>
    %398 = arith.addf %391, %397 : vector<7x7x128xf32>
    %399 = vector.extract_strided_slice %370 {offsets = [0, 4, 0], sizes = [7, 7, 128], strides = [1, 1, 1]} : vector<11x11x128xf32> to vector<7x7x128xf32>
    %400 = vector.extract_strided_slice %371 {offsets = [0, 4, 0], sizes = [1, 1, 128], strides = [1, 1, 1]} : vector<5x5x128xf32> to vector<1x1x128xf32>
    %401 = vector.shape_cast %400 : vector<1x1x128xf32> to vector<128xf32>
    %402 = vector.shape_cast %401 : vector<128xf32> to vector<1x1x128xf32>
    %403 = vector.broadcast %402 : vector<1x1x128xf32> to vector<7x7x128xf32>
    %404 = arith.mulf %399, %403 : vector<7x7x128xf32>
    %405 = arith.addf %398, %404 : vector<7x7x128xf32>
    %406 = vector.extract_strided_slice %370 {offsets = [1, 0, 0], sizes = [7, 7, 128], strides = [1, 1, 1]} : vector<11x11x128xf32> to vector<7x7x128xf32>
    %407 = vector.extract_strided_slice %371 {offsets = [1, 0, 0], sizes = [1, 1, 128], strides = [1, 1, 1]} : vector<5x5x128xf32> to vector<1x1x128xf32>
    %408 = vector.shape_cast %407 : vector<1x1x128xf32> to vector<128xf32>
    %409 = vector.shape_cast %408 : vector<128xf32> to vector<1x1x128xf32>
    %410 = vector.broadcast %409 : vector<1x1x128xf32> to vector<7x7x128xf32>
    %411 = arith.mulf %406, %410 : vector<7x7x128xf32>
    %412 = arith.addf %405, %411 : vector<7x7x128xf32>
    %413 = vector.extract_strided_slice %370 {offsets = [1, 1, 0], sizes = [7, 7, 128], strides = [1, 1, 1]} : vector<11x11x128xf32> to vector<7x7x128xf32>
    %414 = vector.extract_strided_slice %371 {offsets = [1, 1, 0], sizes = [1, 1, 128], strides = [1, 1, 1]} : vector<5x5x128xf32> to vector<1x1x128xf32>
    %415 = vector.shape_cast %414 : vector<1x1x128xf32> to vector<128xf32>
    %416 = vector.shape_cast %415 : vector<128xf32> to vector<1x1x128xf32>
    %417 = vector.broadcast %416 : vector<1x1x128xf32> to vector<7x7x128xf32>
    %418 = arith.mulf %413, %417 : vector<7x7x128xf32>
    %419 = arith.addf %412, %418 : vector<7x7x128xf32>
    %420 = vector.extract_strided_slice %370 {offsets = [1, 2, 0], sizes = [7, 7, 128], strides = [1, 1, 1]} : vector<11x11x128xf32> to vector<7x7x128xf32>
    %421 = vector.extract_strided_slice %371 {offsets = [1, 2, 0], sizes = [1, 1, 128], strides = [1, 1, 1]} : vector<5x5x128xf32> to vector<1x1x128xf32>
    %422 = vector.shape_cast %421 : vector<1x1x128xf32> to vector<128xf32>
    %423 = vector.shape_cast %422 : vector<128xf32> to vector<1x1x128xf32>
    %424 = vector.broadcast %423 : vector<1x1x128xf32> to vector<7x7x128xf32>
    %425 = arith.mulf %420, %424 : vector<7x7x128xf32>
    %426 = arith.addf %419, %425 : vector<7x7x128xf32>
    %427 = vector.extract_strided_slice %370 {offsets = [1, 3, 0], sizes = [7, 7, 128], strides = [1, 1, 1]} : vector<11x11x128xf32> to vector<7x7x128xf32>
    %428 = vector.extract_strided_slice %371 {offsets = [1, 3, 0], sizes = [1, 1, 128], strides = [1, 1, 1]} : vector<5x5x128xf32> to vector<1x1x128xf32>
    %429 = vector.shape_cast %428 : vector<1x1x128xf32> to vector<128xf32>
    %430 = vector.shape_cast %429 : vector<128xf32> to vector<1x1x128xf32>
    %431 = vector.broadcast %430 : vector<1x1x128xf32> to vector<7x7x128xf32>
    %432 = arith.mulf %427, %431 : vector<7x7x128xf32>
    %433 = arith.addf %426, %432 : vector<7x7x128xf32>
    %434 = vector.extract_strided_slice %370 {offsets = [1, 4, 0], sizes = [7, 7, 128], strides = [1, 1, 1]} : vector<11x11x128xf32> to vector<7x7x128xf32>
    %435 = vector.extract_strided_slice %371 {offsets = [1, 4, 0], sizes = [1, 1, 128], strides = [1, 1, 1]} : vector<5x5x128xf32> to vector<1x1x128xf32>
    %436 = vector.shape_cast %435 : vector<1x1x128xf32> to vector<128xf32>
    %437 = vector.shape_cast %436 : vector<128xf32> to vector<1x1x128xf32>
    %438 = vector.broadcast %437 : vector<1x1x128xf32> to vector<7x7x128xf32>
    %439 = arith.mulf %434, %438 : vector<7x7x128xf32>
    %440 = arith.addf %433, %439 : vector<7x7x128xf32>
    %441 = vector.extract_strided_slice %370 {offsets = [2, 0, 0], sizes = [7, 7, 128], strides = [1, 1, 1]} : vector<11x11x128xf32> to vector<7x7x128xf32>
    %442 = vector.extract_strided_slice %371 {offsets = [2, 0, 0], sizes = [1, 1, 128], strides = [1, 1, 1]} : vector<5x5x128xf32> to vector<1x1x128xf32>
    %443 = vector.shape_cast %442 : vector<1x1x128xf32> to vector<128xf32>
    %444 = vector.shape_cast %443 : vector<128xf32> to vector<1x1x128xf32>
    %445 = vector.broadcast %444 : vector<1x1x128xf32> to vector<7x7x128xf32>
    %446 = arith.mulf %441, %445 : vector<7x7x128xf32>
    %447 = arith.addf %440, %446 : vector<7x7x128xf32>
    %448 = vector.extract_strided_slice %370 {offsets = [2, 1, 0], sizes = [7, 7, 128], strides = [1, 1, 1]} : vector<11x11x128xf32> to vector<7x7x128xf32>
    %449 = vector.extract_strided_slice %371 {offsets = [2, 1, 0], sizes = [1, 1, 128], strides = [1, 1, 1]} : vector<5x5x128xf32> to vector<1x1x128xf32>
    %450 = vector.shape_cast %449 : vector<1x1x128xf32> to vector<128xf32>
    %451 = vector.shape_cast %450 : vector<128xf32> to vector<1x1x128xf32>
    %452 = vector.broadcast %451 : vector<1x1x128xf32> to vector<7x7x128xf32>
    %453 = arith.mulf %448, %452 : vector<7x7x128xf32>
    %454 = arith.addf %447, %453 : vector<7x7x128xf32>
    %455 = vector.extract_strided_slice %370 {offsets = [2, 2, 0], sizes = [7, 7, 128], strides = [1, 1, 1]} : vector<11x11x128xf32> to vector<7x7x128xf32>
    %456 = vector.extract_strided_slice %371 {offsets = [2, 2, 0], sizes = [1, 1, 128], strides = [1, 1, 1]} : vector<5x5x128xf32> to vector<1x1x128xf32>
    %457 = vector.shape_cast %456 : vector<1x1x128xf32> to vector<128xf32>
    %458 = vector.shape_cast %457 : vector<128xf32> to vector<1x1x128xf32>
    %459 = vector.broadcast %458 : vector<1x1x128xf32> to vector<7x7x128xf32>
    %460 = arith.mulf %455, %459 : vector<7x7x128xf32>
    %461 = arith.addf %454, %460 : vector<7x7x128xf32>
    %462 = vector.extract_strided_slice %370 {offsets = [2, 3, 0], sizes = [7, 7, 128], strides = [1, 1, 1]} : vector<11x11x128xf32> to vector<7x7x128xf32>
    %463 = vector.extract_strided_slice %371 {offsets = [2, 3, 0], sizes = [1, 1, 128], strides = [1, 1, 1]} : vector<5x5x128xf32> to vector<1x1x128xf32>
    %464 = vector.shape_cast %463 : vector<1x1x128xf32> to vector<128xf32>
    %465 = vector.shape_cast %464 : vector<128xf32> to vector<1x1x128xf32>
    %466 = vector.broadcast %465 : vector<1x1x128xf32> to vector<7x7x128xf32>
    %467 = arith.mulf %462, %466 : vector<7x7x128xf32>
    %468 = arith.addf %461, %467 : vector<7x7x128xf32>
    %469 = vector.extract_strided_slice %370 {offsets = [2, 4, 0], sizes = [7, 7, 128], strides = [1, 1, 1]} : vector<11x11x128xf32> to vector<7x7x128xf32>
    %470 = vector.extract_strided_slice %371 {offsets = [2, 4, 0], sizes = [1, 1, 128], strides = [1, 1, 1]} : vector<5x5x128xf32> to vector<1x1x128xf32>
    %471 = vector.shape_cast %470 : vector<1x1x128xf32> to vector<128xf32>
    %472 = vector.shape_cast %471 : vector<128xf32> to vector<1x1x128xf32>
    %473 = vector.broadcast %472 : vector<1x1x128xf32> to vector<7x7x128xf32>
    %474 = arith.mulf %469, %473 : vector<7x7x128xf32>
    %475 = arith.addf %468, %474 : vector<7x7x128xf32>
    %476 = vector.extract_strided_slice %370 {offsets = [3, 0, 0], sizes = [7, 7, 128], strides = [1, 1, 1]} : vector<11x11x128xf32> to vector<7x7x128xf32>
    %477 = vector.extract_strided_slice %371 {offsets = [3, 0, 0], sizes = [1, 1, 128], strides = [1, 1, 1]} : vector<5x5x128xf32> to vector<1x1x128xf32>
    %478 = vector.shape_cast %477 : vector<1x1x128xf32> to vector<128xf32>
    %479 = vector.shape_cast %478 : vector<128xf32> to vector<1x1x128xf32>
    %480 = vector.broadcast %479 : vector<1x1x128xf32> to vector<7x7x128xf32>
    %481 = arith.mulf %476, %480 : vector<7x7x128xf32>
    %482 = arith.addf %475, %481 : vector<7x7x128xf32>
    %483 = vector.extract_strided_slice %370 {offsets = [3, 1, 0], sizes = [7, 7, 128], strides = [1, 1, 1]} : vector<11x11x128xf32> to vector<7x7x128xf32>
    %484 = vector.extract_strided_slice %371 {offsets = [3, 1, 0], sizes = [1, 1, 128], strides = [1, 1, 1]} : vector<5x5x128xf32> to vector<1x1x128xf32>
    %485 = vector.shape_cast %484 : vector<1x1x128xf32> to vector<128xf32>
    %486 = vector.shape_cast %485 : vector<128xf32> to vector<1x1x128xf32>
    %487 = vector.broadcast %486 : vector<1x1x128xf32> to vector<7x7x128xf32>
    %488 = arith.mulf %483, %487 : vector<7x7x128xf32>
    %489 = arith.addf %482, %488 : vector<7x7x128xf32>
    %490 = vector.extract_strided_slice %370 {offsets = [3, 2, 0], sizes = [7, 7, 128], strides = [1, 1, 1]} : vector<11x11x128xf32> to vector<7x7x128xf32>
    %491 = vector.extract_strided_slice %371 {offsets = [3, 2, 0], sizes = [1, 1, 128], strides = [1, 1, 1]} : vector<5x5x128xf32> to vector<1x1x128xf32>
    %492 = vector.shape_cast %491 : vector<1x1x128xf32> to vector<128xf32>
    %493 = vector.shape_cast %492 : vector<128xf32> to vector<1x1x128xf32>
    %494 = vector.broadcast %493 : vector<1x1x128xf32> to vector<7x7x128xf32>
    %495 = arith.mulf %490, %494 : vector<7x7x128xf32>
    %496 = arith.addf %489, %495 : vector<7x7x128xf32>
    %497 = vector.extract_strided_slice %370 {offsets = [3, 3, 0], sizes = [7, 7, 128], strides = [1, 1, 1]} : vector<11x11x128xf32> to vector<7x7x128xf32>
    %498 = vector.extract_strided_slice %371 {offsets = [3, 3, 0], sizes = [1, 1, 128], strides = [1, 1, 1]} : vector<5x5x128xf32> to vector<1x1x128xf32>
    %499 = vector.shape_cast %498 : vector<1x1x128xf32> to vector<128xf32>
    %500 = vector.shape_cast %499 : vector<128xf32> to vector<1x1x128xf32>
    %501 = vector.broadcast %500 : vector<1x1x128xf32> to vector<7x7x128xf32>
    %502 = arith.mulf %497, %501 : vector<7x7x128xf32>
    %503 = arith.addf %496, %502 : vector<7x7x128xf32>
    %504 = vector.extract_strided_slice %370 {offsets = [3, 4, 0], sizes = [7, 7, 128], strides = [1, 1, 1]} : vector<11x11x128xf32> to vector<7x7x128xf32>
    %505 = vector.extract_strided_slice %371 {offsets = [3, 4, 0], sizes = [1, 1, 128], strides = [1, 1, 1]} : vector<5x5x128xf32> to vector<1x1x128xf32>
    %506 = vector.shape_cast %505 : vector<1x1x128xf32> to vector<128xf32>
    %507 = vector.shape_cast %506 : vector<128xf32> to vector<1x1x128xf32>
    %508 = vector.broadcast %507 : vector<1x1x128xf32> to vector<7x7x128xf32>
    %509 = arith.mulf %504, %508 : vector<7x7x128xf32>
    %510 = arith.addf %503, %509 : vector<7x7x128xf32>
    %511 = vector.extract_strided_slice %370 {offsets = [4, 0, 0], sizes = [7, 7, 128], strides = [1, 1, 1]} : vector<11x11x128xf32> to vector<7x7x128xf32>
    %512 = vector.extract_strided_slice %371 {offsets = [4, 0, 0], sizes = [1, 1, 128], strides = [1, 1, 1]} : vector<5x5x128xf32> to vector<1x1x128xf32>
    %513 = vector.shape_cast %512 : vector<1x1x128xf32> to vector<128xf32>
    %514 = vector.shape_cast %513 : vector<128xf32> to vector<1x1x128xf32>
    %515 = vector.broadcast %514 : vector<1x1x128xf32> to vector<7x7x128xf32>
    %516 = arith.mulf %511, %515 : vector<7x7x128xf32>
    %517 = arith.addf %510, %516 : vector<7x7x128xf32>
    %518 = vector.extract_strided_slice %370 {offsets = [4, 1, 0], sizes = [7, 7, 128], strides = [1, 1, 1]} : vector<11x11x128xf32> to vector<7x7x128xf32>
    %519 = vector.extract_strided_slice %371 {offsets = [4, 1, 0], sizes = [1, 1, 128], strides = [1, 1, 1]} : vector<5x5x128xf32> to vector<1x1x128xf32>
    %520 = vector.shape_cast %519 : vector<1x1x128xf32> to vector<128xf32>
    %521 = vector.shape_cast %520 : vector<128xf32> to vector<1x1x128xf32>
    %522 = vector.broadcast %521 : vector<1x1x128xf32> to vector<7x7x128xf32>
    %523 = arith.mulf %518, %522 : vector<7x7x128xf32>
    %524 = arith.addf %517, %523 : vector<7x7x128xf32>
    %525 = vector.extract_strided_slice %370 {offsets = [4, 2, 0], sizes = [7, 7, 128], strides = [1, 1, 1]} : vector<11x11x128xf32> to vector<7x7x128xf32>
    %526 = vector.extract_strided_slice %371 {offsets = [4, 2, 0], sizes = [1, 1, 128], strides = [1, 1, 1]} : vector<5x5x128xf32> to vector<1x1x128xf32>
    %527 = vector.shape_cast %526 : vector<1x1x128xf32> to vector<128xf32>
    %528 = vector.shape_cast %527 : vector<128xf32> to vector<1x1x128xf32>
    %529 = vector.broadcast %528 : vector<1x1x128xf32> to vector<7x7x128xf32>
    %530 = arith.mulf %525, %529 : vector<7x7x128xf32>
    %531 = arith.addf %524, %530 : vector<7x7x128xf32>
    %532 = vector.extract_strided_slice %370 {offsets = [4, 3, 0], sizes = [7, 7, 128], strides = [1, 1, 1]} : vector<11x11x128xf32> to vector<7x7x128xf32>
    %533 = vector.extract_strided_slice %371 {offsets = [4, 3, 0], sizes = [1, 1, 128], strides = [1, 1, 1]} : vector<5x5x128xf32> to vector<1x1x128xf32>
    %534 = vector.shape_cast %533 : vector<1x1x128xf32> to vector<128xf32>
    %535 = vector.shape_cast %534 : vector<128xf32> to vector<1x1x128xf32>
    %536 = vector.broadcast %535 : vector<1x1x128xf32> to vector<7x7x128xf32>
    %537 = arith.mulf %532, %536 : vector<7x7x128xf32>
    %538 = arith.addf %531, %537 : vector<7x7x128xf32>
    %539 = vector.extract_strided_slice %370 {offsets = [4, 4, 0], sizes = [7, 7, 128], strides = [1, 1, 1]} : vector<11x11x128xf32> to vector<7x7x128xf32>
    %540 = vector.extract_strided_slice %371 {offsets = [4, 4, 0], sizes = [1, 1, 128], strides = [1, 1, 1]} : vector<5x5x128xf32> to vector<1x1x128xf32>
    %541 = vector.shape_cast %540 : vector<1x1x128xf32> to vector<128xf32>
    %542 = vector.shape_cast %541 : vector<128xf32> to vector<1x1x128xf32>
    %543 = vector.broadcast %542 : vector<1x1x128xf32> to vector<7x7x128xf32>
    %544 = arith.mulf %539, %543 : vector<7x7x128xf32>
    %545 = arith.addf %538, %544 : vector<7x7x128xf32>
    %c0_36 = arith.constant 0 : index
    %c0_37 = arith.constant 0 : index
    %c0_38 = arith.constant 0 : index
    %c256_39 = arith.constant 256 : index
    %546 = vector.load %arg4[%c0_36, %c0_37, %c0_38, %c256_39] : memref<1x7x7x1152xf32, #tpu.memory_space<vmem>>, vector<1x7x7x128xf32>
    %547 = vector.shape_cast %546 : vector<1x7x7x128xf32> to vector<7x7x128xf32>
    %548 = vector.shape_cast %545 : vector<7x7x128xf32> to vector<1x7x7x128xf32>
    tpu.vector_store %arg4[%c0_36, %c0_37, %c0_38, %c256_39], %548 {strides = array<i32>} : memref<1x7x7x1152xf32, #tpu.memory_space<vmem>>, vector<1x7x7x128xf32>,
    %c0_40 = arith.constant 0 : index
    %c0_41 = arith.constant 0 : index
    %c384 = arith.constant 384 : index
    %549 = vector.load %arg5[%c0_40, %c0_41, %c384] : memref<11x11x1152xf32, #tpu.memory_space<vmem>>, vector<11x11x128xf32>
    %550 = vector.extract_strided_slice %11 {offsets = [0, 0, 384], sizes = [5, 5, 128], strides = [1, 1, 1]} : vector<5x5x1152xf32> to vector<5x5x128xf32>
    %551 = vector.extract_strided_slice %549 {offsets = [0, 0, 0], sizes = [7, 7, 128], strides = [1, 1, 1]} : vector<11x11x128xf32> to vector<7x7x128xf32>
    %552 = vector.extract_strided_slice %550 {offsets = [0, 0, 0], sizes = [1, 1, 128], strides = [1, 1, 1]} : vector<5x5x128xf32> to vector<1x1x128xf32>
    %553 = vector.shape_cast %552 : vector<1x1x128xf32> to vector<128xf32>
    %554 = vector.shape_cast %553 : vector<128xf32> to vector<1x1x128xf32>
    %555 = vector.broadcast %554 : vector<1x1x128xf32> to vector<7x7x128xf32>
    %556 = arith.mulf %551, %555 : vector<7x7x128xf32>
    %557 = vector.extract_strided_slice %549 {offsets = [0, 1, 0], sizes = [7, 7, 128], strides = [1, 1, 1]} : vector<11x11x128xf32> to vector<7x7x128xf32>
    %558 = vector.extract_strided_slice %550 {offsets = [0, 1, 0], sizes = [1, 1, 128], strides = [1, 1, 1]} : vector<5x5x128xf32> to vector<1x1x128xf32>
    %559 = vector.shape_cast %558 : vector<1x1x128xf32> to vector<128xf32>
    %560 = vector.shape_cast %559 : vector<128xf32> to vector<1x1x128xf32>
    %561 = vector.broadcast %560 : vector<1x1x128xf32> to vector<7x7x128xf32>
    %562 = arith.mulf %557, %561 : vector<7x7x128xf32>
    %563 = arith.addf %556, %562 : vector<7x7x128xf32>
    %564 = vector.extract_strided_slice %549 {offsets = [0, 2, 0], sizes = [7, 7, 128], strides = [1, 1, 1]} : vector<11x11x128xf32> to vector<7x7x128xf32>
    %565 = vector.extract_strided_slice %550 {offsets = [0, 2, 0], sizes = [1, 1, 128], strides = [1, 1, 1]} : vector<5x5x128xf32> to vector<1x1x128xf32>
    %566 = vector.shape_cast %565 : vector<1x1x128xf32> to vector<128xf32>
    %567 = vector.shape_cast %566 : vector<128xf32> to vector<1x1x128xf32>
    %568 = vector.broadcast %567 : vector<1x1x128xf32> to vector<7x7x128xf32>
    %569 = arith.mulf %564, %568 : vector<7x7x128xf32>
    %570 = arith.addf %563, %569 : vector<7x7x128xf32>
    %571 = vector.extract_strided_slice %549 {offsets = [0, 3, 0], sizes = [7, 7, 128], strides = [1, 1, 1]} : vector<11x11x128xf32> to vector<7x7x128xf32>
    %572 = vector.extract_strided_slice %550 {offsets = [0, 3, 0], sizes = [1, 1, 128], strides = [1, 1, 1]} : vector<5x5x128xf32> to vector<1x1x128xf32>
    %573 = vector.shape_cast %572 : vector<1x1x128xf32> to vector<128xf32>
    %574 = vector.shape_cast %573 : vector<128xf32> to vector<1x1x128xf32>
    %575 = vector.broadcast %574 : vector<1x1x128xf32> to vector<7x7x128xf32>
    %576 = arith.mulf %571, %575 : vector<7x7x128xf32>
    %577 = arith.addf %570, %576 : vector<7x7x128xf32>
    %578 = vector.extract_strided_slice %549 {offsets = [0, 4, 0], sizes = [7, 7, 128], strides = [1, 1, 1]} : vector<11x11x128xf32> to vector<7x7x128xf32>
    %579 = vector.extract_strided_slice %550 {offsets = [0, 4, 0], sizes = [1, 1, 128], strides = [1, 1, 1]} : vector<5x5x128xf32> to vector<1x1x128xf32>
    %580 = vector.shape_cast %579 : vector<1x1x128xf32> to vector<128xf32>
    %581 = vector.shape_cast %580 : vector<128xf32> to vector<1x1x128xf32>
    %582 = vector.broadcast %581 : vector<1x1x128xf32> to vector<7x7x128xf32>
    %583 = arith.mulf %578, %582 : vector<7x7x128xf32>
    %584 = arith.addf %577, %583 : vector<7x7x128xf32>
    %585 = vector.extract_strided_slice %549 {offsets = [1, 0, 0], sizes = [7, 7, 128], strides = [1, 1, 1]} : vector<11x11x128xf32> to vector<7x7x128xf32>
    %586 = vector.extract_strided_slice %550 {offsets = [1, 0, 0], sizes = [1, 1, 128], strides = [1, 1, 1]} : vector<5x5x128xf32> to vector<1x1x128xf32>
    %587 = vector.shape_cast %586 : vector<1x1x128xf32> to vector<128xf32>
    %588 = vector.shape_cast %587 : vector<128xf32> to vector<1x1x128xf32>
    %589 = vector.broadcast %588 : vector<1x1x128xf32> to vector<7x7x128xf32>
    %590 = arith.mulf %585, %589 : vector<7x7x128xf32>
    %591 = arith.addf %584, %590 : vector<7x7x128xf32>
    %592 = vector.extract_strided_slice %549 {offsets = [1, 1, 0], sizes = [7, 7, 128], strides = [1, 1, 1]} : vector<11x11x128xf32> to vector<7x7x128xf32>
    %593 = vector.extract_strided_slice %550 {offsets = [1, 1, 0], sizes = [1, 1, 128], strides = [1, 1, 1]} : vector<5x5x128xf32> to vector<1x1x128xf32>
    %594 = vector.shape_cast %593 : vector<1x1x128xf32> to vector<128xf32>
    %595 = vector.shape_cast %594 : vector<128xf32> to vector<1x1x128xf32>
    %596 = vector.broadcast %595 : vector<1x1x128xf32> to vector<7x7x128xf32>
    %597 = arith.mulf %592, %596 : vector<7x7x128xf32>
    %598 = arith.addf %591, %597 : vector<7x7x128xf32>
    %599 = vector.extract_strided_slice %549 {offsets = [1, 2, 0], sizes = [7, 7, 128], strides = [1, 1, 1]} : vector<11x11x128xf32> to vector<7x7x128xf32>
    %600 = vector.extract_strided_slice %550 {offsets = [1, 2, 0], sizes = [1, 1, 128], strides = [1, 1, 1]} : vector<5x5x128xf32> to vector<1x1x128xf32>
    %601 = vector.shape_cast %600 : vector<1x1x128xf32> to vector<128xf32>
    %602 = vector.shape_cast %601 : vector<128xf32> to vector<1x1x128xf32>
    %603 = vector.broadcast %602 : vector<1x1x128xf32> to vector<7x7x128xf32>
    %604 = arith.mulf %599, %603 : vector<7x7x128xf32>
    %605 = arith.addf %598, %604 : vector<7x7x128xf32>
    %606 = vector.extract_strided_slice %549 {offsets = [1, 3, 0], sizes = [7, 7, 128], strides = [1, 1, 1]} : vector<11x11x128xf32> to vector<7x7x128xf32>
    %607 = vector.extract_strided_slice %550 {offsets = [1, 3, 0], sizes = [1, 1, 128], strides = [1, 1, 1]} : vector<5x5x128xf32> to vector<1x1x128xf32>
    %608 = vector.shape_cast %607 : vector<1x1x128xf32> to vector<128xf32>
    %609 = vector.shape_cast %608 : vector<128xf32> to vector<1x1x128xf32>
    %610 = vector.broadcast %609 : vector<1x1x128xf32> to vector<7x7x128xf32>
    %611 = arith.mulf %606, %610 : vector<7x7x128xf32>
    %612 = arith.addf %605, %611 : vector<7x7x128xf32>
    %613 = vector.extract_strided_slice %549 {offsets = [1, 4, 0], sizes = [7, 7, 128], strides = [1, 1, 1]} : vector<11x11x128xf32> to vector<7x7x128xf32>
    %614 = vector.extract_strided_slice %550 {offsets = [1, 4, 0], sizes = [1, 1, 128], strides = [1, 1, 1]} : vector<5x5x128xf32> to vector<1x1x128xf32>
    %615 = vector.shape_cast %614 : vector<1x1x128xf32> to vector<128xf32>
    %616 = vector.shape_cast %615 : vector<128xf32> to vector<1x1x128xf32>
    %617 = vector.broadcast %616 : vector<1x1x128xf32> to vector<7x7x128xf32>
    %618 = arith.mulf %613, %617 : vector<7x7x128xf32>
    %619 = arith.addf %612, %618 : vector<7x7x128xf32>
    %620 = vector.extract_strided_slice %549 {offsets = [2, 0, 0], sizes = [7, 7, 128], strides = [1, 1, 1]} : vector<11x11x128xf32> to vector<7x7x128xf32>
    %621 = vector.extract_strided_slice %550 {offsets = [2, 0, 0], sizes = [1, 1, 128], strides = [1, 1, 1]} : vector<5x5x128xf32> to vector<1x1x128xf32>
    %622 = vector.shape_cast %621 : vector<1x1x128xf32> to vector<128xf32>
    %623 = vector.shape_cast %622 : vector<128xf32> to vector<1x1x128xf32>
    %624 = vector.broadcast %623 : vector<1x1x128xf32> to vector<7x7x128xf32>
    %625 = arith.mulf %620, %624 : vector<7x7x128xf32>
    %626 = arith.addf %619, %625 : vector<7x7x128xf32>
    %627 = vector.extract_strided_slice %549 {offsets = [2, 1, 0], sizes = [7, 7, 128], strides = [1, 1, 1]} : vector<11x11x128xf32> to vector<7x7x128xf32>
    %628 = vector.extract_strided_slice %550 {offsets = [2, 1, 0], sizes = [1, 1, 128], strides = [1, 1, 1]} : vector<5x5x128xf32> to vector<1x1x128xf32>
    %629 = vector.shape_cast %628 : vector<1x1x128xf32> to vector<128xf32>
    %630 = vector.shape_cast %629 : vector<128xf32> to vector<1x1x128xf32>
    %631 = vector.broadcast %630 : vector<1x1x128xf32> to vector<7x7x128xf32>
    %632 = arith.mulf %627, %631 : vector<7x7x128xf32>
    %633 = arith.addf %626, %632 : vector<7x7x128xf32>
    %634 = vector.extract_strided_slice %549 {offsets = [2, 2, 0], sizes = [7, 7, 128], strides = [1, 1, 1]} : vector<11x11x128xf32> to vector<7x7x128xf32>
    %635 = vector.extract_strided_slice %550 {offsets = [2, 2, 0], sizes = [1, 1, 128], strides = [1, 1, 1]} : vector<5x5x128xf32> to vector<1x1x128xf32>
    %636 = vector.shape_cast %635 : vector<1x1x128xf32> to vector<128xf32>
    %637 = vector.shape_cast %636 : vector<128xf32> to vector<1x1x128xf32>
    %638 = vector.broadcast %637 : vector<1x1x128xf32> to vector<7x7x128xf32>
    %639 = arith.mulf %634, %638 : vector<7x7x128xf32>
    %640 = arith.addf %633, %639 : vector<7x7x128xf32>
    %641 = vector.extract_strided_slice %549 {offsets = [2, 3, 0], sizes = [7, 7, 128], strides = [1, 1, 1]} : vector<11x11x128xf32> to vector<7x7x128xf32>
    %642 = vector.extract_strided_slice %550 {offsets = [2, 3, 0], sizes = [1, 1, 128], strides = [1, 1, 1]} : vector<5x5x128xf32> to vector<1x1x128xf32>
    %643 = vector.shape_cast %642 : vector<1x1x128xf32> to vector<128xf32>
    %644 = vector.shape_cast %643 : vector<128xf32> to vector<1x1x128xf32>
    %645 = vector.broadcast %644 : vector<1x1x128xf32> to vector<7x7x128xf32>
    %646 = arith.mulf %641, %645 : vector<7x7x128xf32>
    %647 = arith.addf %640, %646 : vector<7x7x128xf32>
    %648 = vector.extract_strided_slice %549 {offsets = [2, 4, 0], sizes = [7, 7, 128], strides = [1, 1, 1]} : vector<11x11x128xf32> to vector<7x7x128xf32>
    %649 = vector.extract_strided_slice %550 {offsets = [2, 4, 0], sizes = [1, 1, 128], strides = [1, 1, 1]} : vector<5x5x128xf32> to vector<1x1x128xf32>
    %650 = vector.shape_cast %649 : vector<1x1x128xf32> to vector<128xf32>
    %651 = vector.shape_cast %650 : vector<128xf32> to vector<1x1x128xf32>
    %652 = vector.broadcast %651 : vector<1x1x128xf32> to vector<7x7x128xf32>
    %653 = arith.mulf %648, %652 : vector<7x7x128xf32>
    %654 = arith.addf %647, %653 : vector<7x7x128xf32>
    %655 = vector.extract_strided_slice %549 {offsets = [3, 0, 0], sizes = [7, 7, 128], strides = [1, 1, 1]} : vector<11x11x128xf32> to vector<7x7x128xf32>
    %656 = vector.extract_strided_slice %550 {offsets = [3, 0, 0], sizes = [1, 1, 128], strides = [1, 1, 1]} : vector<5x5x128xf32> to vector<1x1x128xf32>
    %657 = vector.shape_cast %656 : vector<1x1x128xf32> to vector<128xf32>
    %658 = vector.shape_cast %657 : vector<128xf32> to vector<1x1x128xf32>
    %659 = vector.broadcast %658 : vector<1x1x128xf32> to vector<7x7x128xf32>
    %660 = arith.mulf %655, %659 : vector<7x7x128xf32>
    %661 = arith.addf %654, %660 : vector<7x7x128xf32>
    %662 = vector.extract_strided_slice %549 {offsets = [3, 1, 0], sizes = [7, 7, 128], strides = [1, 1, 1]} : vector<11x11x128xf32> to vector<7x7x128xf32>
    %663 = vector.extract_strided_slice %550 {offsets = [3, 1, 0], sizes = [1, 1, 128], strides = [1, 1, 1]} : vector<5x5x128xf32> to vector<1x1x128xf32>
    %664 = vector.shape_cast %663 : vector<1x1x128xf32> to vector<128xf32>
    %665 = vector.shape_cast %664 : vector<128xf32> to vector<1x1x128xf32>
    %666 = vector.broadcast %665 : vector<1x1x128xf32> to vector<7x7x128xf32>
    %667 = arith.mulf %662, %666 : vector<7x7x128xf32>
    %668 = arith.addf %661, %667 : vector<7x7x128xf32>
    %669 = vector.extract_strided_slice %549 {offsets = [3, 2, 0], sizes = [7, 7, 128], strides = [1, 1, 1]} : vector<11x11x128xf32> to vector<7x7x128xf32>
    %670 = vector.extract_strided_slice %550 {offsets = [3, 2, 0], sizes = [1, 1, 128], strides = [1, 1, 1]} : vector<5x5x128xf32> to vector<1x1x128xf32>
    %671 = vector.shape_cast %670 : vector<1x1x128xf32> to vector<128xf32>
    %672 = vector.shape_cast %671 : vector<128xf32> to vector<1x1x128xf32>
    %673 = vector.broadcast %672 : vector<1x1x128xf32> to vector<7x7x128xf32>
    %674 = arith.mulf %669, %673 : vector<7x7x128xf32>
    %675 = arith.addf %668, %674 : vector<7x7x128xf32>
    %676 = vector.extract_strided_slice %549 {offsets = [3, 3, 0], sizes = [7, 7, 128], strides = [1, 1, 1]} : vector<11x11x128xf32> to vector<7x7x128xf32>
    %677 = vector.extract_strided_slice %550 {offsets = [3, 3, 0], sizes = [1, 1, 128], strides = [1, 1, 1]} : vector<5x5x128xf32> to vector<1x1x128xf32>
    %678 = vector.shape_cast %677 : vector<1x1x128xf32> to vector<128xf32>
    %679 = vector.shape_cast %678 : vector<128xf32> to vector<1x1x128xf32>
    %680 = vector.broadcast %679 : vector<1x1x128xf32> to vector<7x7x128xf32>
    %681 = arith.mulf %676, %680 : vector<7x7x128xf32>
    %682 = arith.addf %675, %681 : vector<7x7x128xf32>
    %683 = vector.extract_strided_slice %549 {offsets = [3, 4, 0], sizes = [7, 7, 128], strides = [1, 1, 1]} : vector<11x11x128xf32> to vector<7x7x128xf32>
    %684 = vector.extract_strided_slice %550 {offsets = [3, 4, 0], sizes = [1, 1, 128], strides = [1, 1, 1]} : vector<5x5x128xf32> to vector<1x1x128xf32>
    %685 = vector.shape_cast %684 : vector<1x1x128xf32> to vector<128xf32>
    %686 = vector.shape_cast %685 : vector<128xf32> to vector<1x1x128xf32>
    %687 = vector.broadcast %686 : vector<1x1x128xf32> to vector<7x7x128xf32>
    %688 = arith.mulf %683, %687 : vector<7x7x128xf32>
    %689 = arith.addf %682, %688 : vector<7x7x128xf32>
    %690 = vector.extract_strided_slice %549 {offsets = [4, 0, 0], sizes = [7, 7, 128], strides = [1, 1, 1]} : vector<11x11x128xf32> to vector<7x7x128xf32>
    %691 = vector.extract_strided_slice %550 {offsets = [4, 0, 0], sizes = [1, 1, 128], strides = [1, 1, 1]} : vector<5x5x128xf32> to vector<1x1x128xf32>
    %692 = vector.shape_cast %691 : vector<1x1x128xf32> to vector<128xf32>
    %693 = vector.shape_cast %692 : vector<128xf32> to vector<1x1x128xf32>
    %694 = vector.broadcast %693 : vector<1x1x128xf32> to vector<7x7x128xf32>
    %695 = arith.mulf %690, %694 : vector<7x7x128xf32>
    %696 = arith.addf %689, %695 : vector<7x7x128xf32>
    %697 = vector.extract_strided_slice %549 {offsets = [4, 1, 0], sizes = [7, 7, 128], strides = [1, 1, 1]} : vector<11x11x128xf32> to vector<7x7x128xf32>
    %698 = vector.extract_strided_slice %550 {offsets = [4, 1, 0], sizes = [1, 1, 128], strides = [1, 1, 1]} : vector<5x5x128xf32> to vector<1x1x128xf32>
    %699 = vector.shape_cast %698 : vector<1x1x128xf32> to vector<128xf32>
    %700 = vector.shape_cast %699 : vector<128xf32> to vector<1x1x128xf32>
    %701 = vector.broadcast %700 : vector<1x1x128xf32> to vector<7x7x128xf32>
    %702 = arith.mulf %697, %701 : vector<7x7x128xf32>
    %703 = arith.addf %696, %702 : vector<7x7x128xf32>
    %704 = vector.extract_strided_slice %549 {offsets = [4, 2, 0], sizes = [7, 7, 128], strides = [1, 1, 1]} : vector<11x11x128xf32> to vector<7x7x128xf32>
    %705 = vector.extract_strided_slice %550 {offsets = [4, 2, 0], sizes = [1, 1, 128], strides = [1, 1, 1]} : vector<5x5x128xf32> to vector<1x1x128xf32>
    %706 = vector.shape_cast %705 : vector<1x1x128xf32> to vector<128xf32>
    %707 = vector.shape_cast %706 : vector<128xf32> to vector<1x1x128xf32>
    %708 = vector.broadcast %707 : vector<1x1x128xf32> to vector<7x7x128xf32>
    %709 = arith.mulf %704, %708 : vector<7x7x128xf32>
    %710 = arith.addf %703, %709 : vector<7x7x128xf32>
    %711 = vector.extract_strided_slice %549 {offsets = [4, 3, 0], sizes = [7, 7, 128], strides = [1, 1, 1]} : vector<11x11x128xf32> to vector<7x7x128xf32>
    %712 = vector.extract_strided_slice %550 {offsets = [4, 3, 0], sizes = [1, 1, 128], strides = [1, 1, 1]} : vector<5x5x128xf32> to vector<1x1x128xf32>
    %713 = vector.shape_cast %712 : vector<1x1x128xf32> to vector<128xf32>
    %714 = vector.shape_cast %713 : vector<128xf32> to vector<1x1x128xf32>
    %715 = vector.broadcast %714 : vector<1x1x128xf32> to vector<7x7x128xf32>
    %716 = arith.mulf %711, %715 : vector<7x7x128xf32>
    %717 = arith.addf %710, %716 : vector<7x7x128xf32>
    %718 = vector.extract_strided_slice %549 {offsets = [4, 4, 0], sizes = [7, 7, 128], strides = [1, 1, 1]} : vector<11x11x128xf32> to vector<7x7x128xf32>
    %719 = vector.extract_strided_slice %550 {offsets = [4, 4, 0], sizes = [1, 1, 128], strides = [1, 1, 1]} : vector<5x5x128xf32> to vector<1x1x128xf32>
    %720 = vector.shape_cast %719 : vector<1x1x128xf32> to vector<128xf32>
    %721 = vector.shape_cast %720 : vector<128xf32> to vector<1x1x128xf32>
    %722 = vector.broadcast %721 : vector<1x1x128xf32> to vector<7x7x128xf32>
    %723 = arith.mulf %718, %722 : vector<7x7x128xf32>
    %724 = arith.addf %717, %723 : vector<7x7x128xf32>
    %c0_42 = arith.constant 0 : index
    %c0_43 = arith.constant 0 : index
    %c0_44 = arith.constant 0 : index
    %c384_45 = arith.constant 384 : index
    %725 = vector.load %arg4[%c0_42, %c0_43, %c0_44, %c384_45] : memref<1x7x7x1152xf32, #tpu.memory_space<vmem>>, vector<1x7x7x128xf32>
    %726 = vector.shape_cast %725 : vector<1x7x7x128xf32> to vector<7x7x128xf32>
    %727 = vector.shape_cast %724 : vector<7x7x128xf32> to vector<1x7x7x128xf32>
    tpu.vector_store %arg4[%c0_42, %c0_43, %c0_44, %c384_45], %727 {strides = array<i32>} : memref<1x7x7x1152xf32, #tpu.memory_space<vmem>>, vector<1x7x7x128xf32>,
    %c0_46 = arith.constant 0 : index
    %c0_47 = arith.constant 0 : index
    %c512 = arith.constant 512 : index
    %728 = vector.load %arg5[%c0_46, %c0_47, %c512] : memref<11x11x1152xf32, #tpu.memory_space<vmem>>, vector<11x11x128xf32>
    %729 = vector.extract_strided_slice %11 {offsets = [0, 0, 512], sizes = [5, 5, 128], strides = [1, 1, 1]} : vector<5x5x1152xf32> to vector<5x5x128xf32>
    %730 = vector.extract_strided_slice %728 {offsets = [0, 0, 0], sizes = [7, 7, 128], strides = [1, 1, 1]} : vector<11x11x128xf32> to vector<7x7x128xf32>
    %731 = vector.extract_strided_slice %729 {offsets = [0, 0, 0], sizes = [1, 1, 128], strides = [1, 1, 1]} : vector<5x5x128xf32> to vector<1x1x128xf32>
    %732 = vector.shape_cast %731 : vector<1x1x128xf32> to vector<128xf32>
    %733 = vector.shape_cast %732 : vector<128xf32> to vector<1x1x128xf32>
    %734 = vector.broadcast %733 : vector<1x1x128xf32> to vector<7x7x128xf32>
    %735 = arith.mulf %730, %734 : vector<7x7x128xf32>
    %736 = vector.extract_strided_slice %728 {offsets = [0, 1, 0], sizes = [7, 7, 128], strides = [1, 1, 1]} : vector<11x11x128xf32> to vector<7x7x128xf32>
    %737 = vector.extract_strided_slice %729 {offsets = [0, 1, 0], sizes = [1, 1, 128], strides = [1, 1, 1]} : vector<5x5x128xf32> to vector<1x1x128xf32>
    %738 = vector.shape_cast %737 : vector<1x1x128xf32> to vector<128xf32>
    %739 = vector.shape_cast %738 : vector<128xf32> to vector<1x1x128xf32>
    %740 = vector.broadcast %739 : vector<1x1x128xf32> to vector<7x7x128xf32>
    %741 = arith.mulf %736, %740 : vector<7x7x128xf32>
    %742 = arith.addf %735, %741 : vector<7x7x128xf32>
    %743 = vector.extract_strided_slice %728 {offsets = [0, 2, 0], sizes = [7, 7, 128], strides = [1, 1, 1]} : vector<11x11x128xf32> to vector<7x7x128xf32>
    %744 = vector.extract_strided_slice %729 {offsets = [0, 2, 0], sizes = [1, 1, 128], strides = [1, 1, 1]} : vector<5x5x128xf32> to vector<1x1x128xf32>
    %745 = vector.shape_cast %744 : vector<1x1x128xf32> to vector<128xf32>
    %746 = vector.shape_cast %745 : vector<128xf32> to vector<1x1x128xf32>
    %747 = vector.broadcast %746 : vector<1x1x128xf32> to vector<7x7x128xf32>
    %748 = arith.mulf %743, %747 : vector<7x7x128xf32>
    %749 = arith.addf %742, %748 : vector<7x7x128xf32>
    %750 = vector.extract_strided_slice %728 {offsets = [0, 3, 0], sizes = [7, 7, 128], strides = [1, 1, 1]} : vector<11x11x128xf32> to vector<7x7x128xf32>
    %751 = vector.extract_strided_slice %729 {offsets = [0, 3, 0], sizes = [1, 1, 128], strides = [1, 1, 1]} : vector<5x5x128xf32> to vector<1x1x128xf32>
    %752 = vector.shape_cast %751 : vector<1x1x128xf32> to vector<128xf32>
    %753 = vector.shape_cast %752 : vector<128xf32> to vector<1x1x128xf32>
    %754 = vector.broadcast %753 : vector<1x1x128xf32> to vector<7x7x128xf32>
    %755 = arith.mulf %750, %754 : vector<7x7x128xf32>
    %756 = arith.addf %749, %755 : vector<7x7x128xf32>
    %757 = vector.extract_strided_slice %728 {offsets = [0, 4, 0], sizes = [7, 7, 128], strides = [1, 1, 1]} : vector<11x11x128xf32> to vector<7x7x128xf32>
    %758 = vector.extract_strided_slice %729 {offsets = [0, 4, 0], sizes = [1, 1, 128], strides = [1, 1, 1]} : vector<5x5x128xf32> to vector<1x1x128xf32>
    %759 = vector.shape_cast %758 : vector<1x1x128xf32> to vector<128xf32>
    %760 = vector.shape_cast %759 : vector<128xf32> to vector<1x1x128xf32>
    %761 = vector.broadcast %760 : vector<1x1x128xf32> to vector<7x7x128xf32>
    %762 = arith.mulf %757, %761 : vector<7x7x128xf32>
    %763 = arith.addf %756, %762 : vector<7x7x128xf32>
    %764 = vector.extract_strided_slice %728 {offsets = [1, 0, 0], sizes = [7, 7, 128], strides = [1, 1, 1]} : vector<11x11x128xf32> to vector<7x7x128xf32>
    %765 = vector.extract_strided_slice %729 {offsets = [1, 0, 0], sizes = [1, 1, 128], strides = [1, 1, 1]} : vector<5x5x128xf32> to vector<1x1x128xf32>
    %766 = vector.shape_cast %765 : vector<1x1x128xf32> to vector<128xf32>
    %767 = vector.shape_cast %766 : vector<128xf32> to vector<1x1x128xf32>
    %768 = vector.broadcast %767 : vector<1x1x128xf32> to vector<7x7x128xf32>
    %769 = arith.mulf %764, %768 : vector<7x7x128xf32>
    %770 = arith.addf %763, %769 : vector<7x7x128xf32>
    %771 = vector.extract_strided_slice %728 {offsets = [1, 1, 0], sizes = [7, 7, 128], strides = [1, 1, 1]} : vector<11x11x128xf32> to vector<7x7x128xf32>
    %772 = vector.extract_strided_slice %729 {offsets = [1, 1, 0], sizes = [1, 1, 128], strides = [1, 1, 1]} : vector<5x5x128xf32> to vector<1x1x128xf32>
    %773 = vector.shape_cast %772 : vector<1x1x128xf32> to vector<128xf32>
    %774 = vector.shape_cast %773 : vector<128xf32> to vector<1x1x128xf32>
    %775 = vector.broadcast %774 : vector<1x1x128xf32> to vector<7x7x128xf32>
    %776 = arith.mulf %771, %775 : vector<7x7x128xf32>
    %777 = arith.addf %770, %776 : vector<7x7x128xf32>
    %778 = vector.extract_strided_slice %728 {offsets = [1, 2, 0], sizes = [7, 7, 128], strides = [1, 1, 1]} : vector<11x11x128xf32> to vector<7x7x128xf32>
    %779 = vector.extract_strided_slice %729 {offsets = [1, 2, 0], sizes = [1, 1, 128], strides = [1, 1, 1]} : vector<5x5x128xf32> to vector<1x1x128xf32>
    %780 = vector.shape_cast %779 : vector<1x1x128xf32> to vector<128xf32>
    %781 = vector.shape_cast %780 : vector<128xf32> to vector<1x1x128xf32>
    %782 = vector.broadcast %781 : vector<1x1x128xf32> to vector<7x7x128xf32>
    %783 = arith.mulf %778, %782 : vector<7x7x128xf32>
    %784 = arith.addf %777, %783 : vector<7x7x128xf32>
    %785 = vector.extract_strided_slice %728 {offsets = [1, 3, 0], sizes = [7, 7, 128], strides = [1, 1, 1]} : vector<11x11x128xf32> to vector<7x7x128xf32>
    %786 = vector.extract_strided_slice %729 {offsets = [1, 3, 0], sizes = [1, 1, 128], strides = [1, 1, 1]} : vector<5x5x128xf32> to vector<1x1x128xf32>
    %787 = vector.shape_cast %786 : vector<1x1x128xf32> to vector<128xf32>
    %788 = vector.shape_cast %787 : vector<128xf32> to vector<1x1x128xf32>
    %789 = vector.broadcast %788 : vector<1x1x128xf32> to vector<7x7x128xf32>
    %790 = arith.mulf %785, %789 : vector<7x7x128xf32>
    %791 = arith.addf %784, %790 : vector<7x7x128xf32>
    %792 = vector.extract_strided_slice %728 {offsets = [1, 4, 0], sizes = [7, 7, 128], strides = [1, 1, 1]} : vector<11x11x128xf32> to vector<7x7x128xf32>
    %793 = vector.extract_strided_slice %729 {offsets = [1, 4, 0], sizes = [1, 1, 128], strides = [1, 1, 1]} : vector<5x5x128xf32> to vector<1x1x128xf32>
    %794 = vector.shape_cast %793 : vector<1x1x128xf32> to vector<128xf32>
    %795 = vector.shape_cast %794 : vector<128xf32> to vector<1x1x128xf32>
    %796 = vector.broadcast %795 : vector<1x1x128xf32> to vector<7x7x128xf32>
    %797 = arith.mulf %792, %796 : vector<7x7x128xf32>
    %798 = arith.addf %791, %797 : vector<7x7x128xf32>
    %799 = vector.extract_strided_slice %728 {offsets = [2, 0, 0], sizes = [7, 7, 128], strides = [1, 1, 1]} : vector<11x11x128xf32> to vector<7x7x128xf32>
    %800 = vector.extract_strided_slice %729 {offsets = [2, 0, 0], sizes = [1, 1, 128], strides = [1, 1, 1]} : vector<5x5x128xf32> to vector<1x1x128xf32>
    %801 = vector.shape_cast %800 : vector<1x1x128xf32> to vector<128xf32>
    %802 = vector.shape_cast %801 : vector<128xf32> to vector<1x1x128xf32>
    %803 = vector.broadcast %802 : vector<1x1x128xf32> to vector<7x7x128xf32>
    %804 = arith.mulf %799, %803 : vector<7x7x128xf32>
    %805 = arith.addf %798, %804 : vector<7x7x128xf32>
    %806 = vector.extract_strided_slice %728 {offsets = [2, 1, 0], sizes = [7, 7, 128], strides = [1, 1, 1]} : vector<11x11x128xf32> to vector<7x7x128xf32>
    %807 = vector.extract_strided_slice %729 {offsets = [2, 1, 0], sizes = [1, 1, 128], strides = [1, 1, 1]} : vector<5x5x128xf32> to vector<1x1x128xf32>
    %808 = vector.shape_cast %807 : vector<1x1x128xf32> to vector<128xf32>
    %809 = vector.shape_cast %808 : vector<128xf32> to vector<1x1x128xf32>
    %810 = vector.broadcast %809 : vector<1x1x128xf32> to vector<7x7x128xf32>
    %811 = arith.mulf %806, %810 : vector<7x7x128xf32>
    %812 = arith.addf %805, %811 : vector<7x7x128xf32>
    %813 = vector.extract_strided_slice %728 {offsets = [2, 2, 0], sizes = [7, 7, 128], strides = [1, 1, 1]} : vector<11x11x128xf32> to vector<7x7x128xf32>
    %814 = vector.extract_strided_slice %729 {offsets = [2, 2, 0], sizes = [1, 1, 128], strides = [1, 1, 1]} : vector<5x5x128xf32> to vector<1x1x128xf32>
    %815 = vector.shape_cast %814 : vector<1x1x128xf32> to vector<128xf32>
    %816 = vector.shape_cast %815 : vector<128xf32> to vector<1x1x128xf32>
    %817 = vector.broadcast %816 : vector<1x1x128xf32> to vector<7x7x128xf32>
    %818 = arith.mulf %813, %817 : vector<7x7x128xf32>
    %819 = arith.addf %812, %818 : vector<7x7x128xf32>
    %820 = vector.extract_strided_slice %728 {offsets = [2, 3, 0], sizes = [7, 7, 128], strides = [1, 1, 1]} : vector<11x11x128xf32> to vector<7x7x128xf32>
    %821 = vector.extract_strided_slice %729 {offsets = [2, 3, 0], sizes = [1, 1, 128], strides = [1, 1, 1]} : vector<5x5x128xf32> to vector<1x1x128xf32>
    %822 = vector.shape_cast %821 : vector<1x1x128xf32> to vector<128xf32>
    %823 = vector.shape_cast %822 : vector<128xf32> to vector<1x1x128xf32>
    %824 = vector.broadcast %823 : vector<1x1x128xf32> to vector<7x7x128xf32>
    %825 = arith.mulf %820, %824 : vector<7x7x128xf32>
    %826 = arith.addf %819, %825 : vector<7x7x128xf32>
    %827 = vector.extract_strided_slice %728 {offsets = [2, 4, 0], sizes = [7, 7, 128], strides = [1, 1, 1]} : vector<11x11x128xf32> to vector<7x7x128xf32>
    %828 = vector.extract_strided_slice %729 {offsets = [2, 4, 0], sizes = [1, 1, 128], strides = [1, 1, 1]} : vector<5x5x128xf32> to vector<1x1x128xf32>
    %829 = vector.shape_cast %828 : vector<1x1x128xf32> to vector<128xf32>
    %830 = vector.shape_cast %829 : vector<128xf32> to vector<1x1x128xf32>
    %831 = vector.broadcast %830 : vector<1x1x128xf32> to vector<7x7x128xf32>
    %832 = arith.mulf %827, %831 : vector<7x7x128xf32>
    %833 = arith.addf %826, %832 : vector<7x7x128xf32>
    %834 = vector.extract_strided_slice %728 {offsets = [3, 0, 0], sizes = [7, 7, 128], strides = [1, 1, 1]} : vector<11x11x128xf32> to vector<7x7x128xf32>
    %835 = vector.extract_strided_slice %729 {offsets = [3, 0, 0], sizes = [1, 1, 128], strides = [1, 1, 1]} : vector<5x5x128xf32> to vector<1x1x128xf32>
    %836 = vector.shape_cast %835 : vector<1x1x128xf32> to vector<128xf32>
    %837 = vector.shape_cast %836 : vector<128xf32> to vector<1x1x128xf32>
    %838 = vector.broadcast %837 : vector<1x1x128xf32> to vector<7x7x128xf32>
    %839 = arith.mulf %834, %838 : vector<7x7x128xf32>
    %840 = arith.addf %833, %839 : vector<7x7x128xf32>
    %841 = vector.extract_strided_slice %728 {offsets = [3, 1, 0], sizes = [7, 7, 128], strides = [1, 1, 1]} : vector<11x11x128xf32> to vector<7x7x128xf32>
    %842 = vector.extract_strided_slice %729 {offsets = [3, 1, 0], sizes = [1, 1, 128], strides = [1, 1, 1]} : vector<5x5x128xf32> to vector<1x1x128xf32>
    %843 = vector.shape_cast %842 : vector<1x1x128xf32> to vector<128xf32>
    %844 = vector.shape_cast %843 : vector<128xf32> to vector<1x1x128xf32>
    %845 = vector.broadcast %844 : vector<1x1x128xf32> to vector<7x7x128xf32>
    %846 = arith.mulf %841, %845 : vector<7x7x128xf32>
    %847 = arith.addf %840, %846 : vector<7x7x128xf32>
    %848 = vector.extract_strided_slice %728 {offsets = [3, 2, 0], sizes = [7, 7, 128], strides = [1, 1, 1]} : vector<11x11x128xf32> to vector<7x7x128xf32>
    %849 = vector.extract_strided_slice %729 {offsets = [3, 2, 0], sizes = [1, 1, 128], strides = [1, 1, 1]} : vector<5x5x128xf32> to vector<1x1x128xf32>
    %850 = vector.shape_cast %849 : vector<1x1x128xf32> to vector<128xf32>
    %851 = vector.shape_cast %850 : vector<128xf32> to vector<1x1x128xf32>
    %852 = vector.broadcast %851 : vector<1x1x128xf32> to vector<7x7x128xf32>
    %853 = arith.mulf %848, %852 : vector<7x7x128xf32>
    %854 = arith.addf %847, %853 : vector<7x7x128xf32>
    %855 = vector.extract_strided_slice %728 {offsets = [3, 3, 0], sizes = [7, 7, 128], strides = [1, 1, 1]} : vector<11x11x128xf32> to vector<7x7x128xf32>
    %856 = vector.extract_strided_slice %729 {offsets = [3, 3, 0], sizes = [1, 1, 128], strides = [1, 1, 1]} : vector<5x5x128xf32> to vector<1x1x128xf32>
    %857 = vector.shape_cast %856 : vector<1x1x128xf32> to vector<128xf32>
    %858 = vector.shape_cast %857 : vector<128xf32> to vector<1x1x128xf32>
    %859 = vector.broadcast %858 : vector<1x1x128xf32> to vector<7x7x128xf32>
    %860 = arith.mulf %855, %859 : vector<7x7x128xf32>
    %861 = arith.addf %854, %860 : vector<7x7x128xf32>
    %862 = vector.extract_strided_slice %728 {offsets = [3, 4, 0], sizes = [7, 7, 128], strides = [1, 1, 1]} : vector<11x11x128xf32> to vector<7x7x128xf32>
    %863 = vector.extract_strided_slice %729 {offsets = [3, 4, 0], sizes = [1, 1, 128], strides = [1, 1, 1]} : vector<5x5x128xf32> to vector<1x1x128xf32>
    %864 = vector.shape_cast %863 : vector<1x1x128xf32> to vector<128xf32>
    %865 = vector.shape_cast %864 : vector<128xf32> to vector<1x1x128xf32>
    %866 = vector.broadcast %865 : vector<1x1x128xf32> to vector<7x7x128xf32>
    %867 = arith.mulf %862, %866 : vector<7x7x128xf32>
    %868 = arith.addf %861, %867 : vector<7x7x128xf32>
    %869 = vector.extract_strided_slice %728 {offsets = [4, 0, 0], sizes = [7, 7, 128], strides = [1, 1, 1]} : vector<11x11x128xf32> to vector<7x7x128xf32>
    %870 = vector.extract_strided_slice %729 {offsets = [4, 0, 0], sizes = [1, 1, 128], strides = [1, 1, 1]} : vector<5x5x128xf32> to vector<1x1x128xf32>
    %871 = vector.shape_cast %870 : vector<1x1x128xf32> to vector<128xf32>
    %872 = vector.shape_cast %871 : vector<128xf32> to vector<1x1x128xf32>
    %873 = vector.broadcast %872 : vector<1x1x128xf32> to vector<7x7x128xf32>
    %874 = arith.mulf %869, %873 : vector<7x7x128xf32>
    %875 = arith.addf %868, %874 : vector<7x7x128xf32>
    %876 = vector.extract_strided_slice %728 {offsets = [4, 1, 0], sizes = [7, 7, 128], strides = [1, 1, 1]} : vector<11x11x128xf32> to vector<7x7x128xf32>
    %877 = vector.extract_strided_slice %729 {offsets = [4, 1, 0], sizes = [1, 1, 128], strides = [1, 1, 1]} : vector<5x5x128xf32> to vector<1x1x128xf32>
    %878 = vector.shape_cast %877 : vector<1x1x128xf32> to vector<128xf32>
    %879 = vector.shape_cast %878 : vector<128xf32> to vector<1x1x128xf32>
    %880 = vector.broadcast %879 : vector<1x1x128xf32> to vector<7x7x128xf32>
    %881 = arith.mulf %876, %880 : vector<7x7x128xf32>
    %882 = arith.addf %875, %881 : vector<7x7x128xf32>
    %883 = vector.extract_strided_slice %728 {offsets = [4, 2, 0], sizes = [7, 7, 128], strides = [1, 1, 1]} : vector<11x11x128xf32> to vector<7x7x128xf32>
    %884 = vector.extract_strided_slice %729 {offsets = [4, 2, 0], sizes = [1, 1, 128], strides = [1, 1, 1]} : vector<5x5x128xf32> to vector<1x1x128xf32>
    %885 = vector.shape_cast %884 : vector<1x1x128xf32> to vector<128xf32>
    %886 = vector.shape_cast %885 : vector<128xf32> to vector<1x1x128xf32>
    %887 = vector.broadcast %886 : vector<1x1x128xf32> to vector<7x7x128xf32>
    %888 = arith.mulf %883, %887 : vector<7x7x128xf32>
    %889 = arith.addf %882, %888 : vector<7x7x128xf32>
    %890 = vector.extract_strided_slice %728 {offsets = [4, 3, 0], sizes = [7, 7, 128], strides = [1, 1, 1]} : vector<11x11x128xf32> to vector<7x7x128xf32>
    %891 = vector.extract_strided_slice %729 {offsets = [4, 3, 0], sizes = [1, 1, 128], strides = [1, 1, 1]} : vector<5x5x128xf32> to vector<1x1x128xf32>
    %892 = vector.shape_cast %891 : vector<1x1x128xf32> to vector<128xf32>
    %893 = vector.shape_cast %892 : vector<128xf32> to vector<1x1x128xf32>
    %894 = vector.broadcast %893 : vector<1x1x128xf32> to vector<7x7x128xf32>
    %895 = arith.mulf %890, %894 : vector<7x7x128xf32>
    %896 = arith.addf %889, %895 : vector<7x7x128xf32>
    %897 = vector.extract_strided_slice %728 {offsets = [4, 4, 0], sizes = [7, 7, 128], strides = [1, 1, 1]} : vector<11x11x128xf32> to vector<7x7x128xf32>
    %898 = vector.extract_strided_slice %729 {offsets = [4, 4, 0], sizes = [1, 1, 128], strides = [1, 1, 1]} : vector<5x5x128xf32> to vector<1x1x128xf32>
    %899 = vector.shape_cast %898 : vector<1x1x128xf32> to vector<128xf32>
    %900 = vector.shape_cast %899 : vector<128xf32> to vector<1x1x128xf32>
    %901 = vector.broadcast %900 : vector<1x1x128xf32> to vector<7x7x128xf32>
    %902 = arith.mulf %897, %901 : vector<7x7x128xf32>
    %903 = arith.addf %896, %902 : vector<7x7x128xf32>
    %c0_48 = arith.constant 0 : index
    %c0_49 = arith.constant 0 : index
    %c0_50 = arith.constant 0 : index
    %c512_51 = arith.constant 512 : index
    %904 = vector.load %arg4[%c0_48, %c0_49, %c0_50, %c512_51] : memref<1x7x7x1152xf32, #tpu.memory_space<vmem>>, vector<1x7x7x128xf32>
    %905 = vector.shape_cast %904 : vector<1x7x7x128xf32> to vector<7x7x128xf32>
    %906 = vector.shape_cast %903 : vector<7x7x128xf32> to vector<1x7x7x128xf32>
    tpu.vector_store %arg4[%c0_48, %c0_49, %c0_50, %c512_51], %906 {strides = array<i32>} : memref<1x7x7x1152xf32, #tpu.memory_space<vmem>>, vector<1x7x7x128xf32>,
    %c0_52 = arith.constant 0 : index
    %c0_53 = arith.constant 0 : index
    %c640 = arith.constant 640 : index
    %907 = vector.load %arg5[%c0_52, %c0_53, %c640] : memref<11x11x1152xf32, #tpu.memory_space<vmem>>, vector<11x11x128xf32>
    %908 = vector.extract_strided_slice %11 {offsets = [0, 0, 640], sizes = [5, 5, 128], strides = [1, 1, 1]} : vector<5x5x1152xf32> to vector<5x5x128xf32>
    %909 = vector.extract_strided_slice %907 {offsets = [0, 0, 0], sizes = [7, 7, 128], strides = [1, 1, 1]} : vector<11x11x128xf32> to vector<7x7x128xf32>
    %910 = vector.extract_strided_slice %908 {offsets = [0, 0, 0], sizes = [1, 1, 128], strides = [1, 1, 1]} : vector<5x5x128xf32> to vector<1x1x128xf32>
    %911 = vector.shape_cast %910 : vector<1x1x128xf32> to vector<128xf32>
    %912 = vector.shape_cast %911 : vector<128xf32> to vector<1x1x128xf32>
    %913 = vector.broadcast %912 : vector<1x1x128xf32> to vector<7x7x128xf32>
    %914 = arith.mulf %909, %913 : vector<7x7x128xf32>
    %915 = vector.extract_strided_slice %907 {offsets = [0, 1, 0], sizes = [7, 7, 128], strides = [1, 1, 1]} : vector<11x11x128xf32> to vector<7x7x128xf32>
    %916 = vector.extract_strided_slice %908 {offsets = [0, 1, 0], sizes = [1, 1, 128], strides = [1, 1, 1]} : vector<5x5x128xf32> to vector<1x1x128xf32>
    %917 = vector.shape_cast %916 : vector<1x1x128xf32> to vector<128xf32>
    %918 = vector.shape_cast %917 : vector<128xf32> to vector<1x1x128xf32>
    %919 = vector.broadcast %918 : vector<1x1x128xf32> to vector<7x7x128xf32>
    %920 = arith.mulf %915, %919 : vector<7x7x128xf32>
    %921 = arith.addf %914, %920 : vector<7x7x128xf32>
    %922 = vector.extract_strided_slice %907 {offsets = [0, 2, 0], sizes = [7, 7, 128], strides = [1, 1, 1]} : vector<11x11x128xf32> to vector<7x7x128xf32>
    %923 = vector.extract_strided_slice %908 {offsets = [0, 2, 0], sizes = [1, 1, 128], strides = [1, 1, 1]} : vector<5x5x128xf32> to vector<1x1x128xf32>
    %924 = vector.shape_cast %923 : vector<1x1x128xf32> to vector<128xf32>
    %925 = vector.shape_cast %924 : vector<128xf32> to vector<1x1x128xf32>
    %926 = vector.broadcast %925 : vector<1x1x128xf32> to vector<7x7x128xf32>
    %927 = arith.mulf %922, %926 : vector<7x7x128xf32>
    %928 = arith.addf %921, %927 : vector<7x7x128xf32>
    %929 = vector.extract_strided_slice %907 {offsets = [0, 3, 0], sizes = [7, 7, 128], strides = [1, 1, 1]} : vector<11x11x128xf32> to vector<7x7x128xf32>
    %930 = vector.extract_strided_slice %908 {offsets = [0, 3, 0], sizes = [1, 1, 128], strides = [1, 1, 1]} : vector<5x5x128xf32> to vector<1x1x128xf32>
    %931 = vector.shape_cast %930 : vector<1x1x128xf32> to vector<128xf32>
    %932 = vector.shape_cast %931 : vector<128xf32> to vector<1x1x128xf32>
    %933 = vector.broadcast %932 : vector<1x1x128xf32> to vector<7x7x128xf32>
    %934 = arith.mulf %929, %933 : vector<7x7x128xf32>
    %935 = arith.addf %928, %934 : vector<7x7x128xf32>
    %936 = vector.extract_strided_slice %907 {offsets = [0, 4, 0], sizes = [7, 7, 128], strides = [1, 1, 1]} : vector<11x11x128xf32> to vector<7x7x128xf32>
    %937 = vector.extract_strided_slice %908 {offsets = [0, 4, 0], sizes = [1, 1, 128], strides = [1, 1, 1]} : vector<5x5x128xf32> to vector<1x1x128xf32>
    %938 = vector.shape_cast %937 : vector<1x1x128xf32> to vector<128xf32>
    %939 = vector.shape_cast %938 : vector<128xf32> to vector<1x1x128xf32>
    %940 = vector.broadcast %939 : vector<1x1x128xf32> to vector<7x7x128xf32>
    %941 = arith.mulf %936, %940 : vector<7x7x128xf32>
    %942 = arith.addf %935, %941 : vector<7x7x128xf32>
    %943 = vector.extract_strided_slice %907 {offsets = [1, 0, 0], sizes = [7, 7, 128], strides = [1, 1, 1]} : vector<11x11x128xf32> to vector<7x7x128xf32>
    %944 = vector.extract_strided_slice %908 {offsets = [1, 0, 0], sizes = [1, 1, 128], strides = [1, 1, 1]} : vector<5x5x128xf32> to vector<1x1x128xf32>
    %945 = vector.shape_cast %944 : vector<1x1x128xf32> to vector<128xf32>
    %946 = vector.shape_cast %945 : vector<128xf32> to vector<1x1x128xf32>
    %947 = vector.broadcast %946 : vector<1x1x128xf32> to vector<7x7x128xf32>
    %948 = arith.mulf %943, %947 : vector<7x7x128xf32>
    %949 = arith.addf %942, %948 : vector<7x7x128xf32>
    %950 = vector.extract_strided_slice %907 {offsets = [1, 1, 0], sizes = [7, 7, 128], strides = [1, 1, 1]} : vector<11x11x128xf32> to vector<7x7x128xf32>
    %951 = vector.extract_strided_slice %908 {offsets = [1, 1, 0], sizes = [1, 1, 128], strides = [1, 1, 1]} : vector<5x5x128xf32> to vector<1x1x128xf32>
    %952 = vector.shape_cast %951 : vector<1x1x128xf32> to vector<128xf32>
    %953 = vector.shape_cast %952 : vector<128xf32> to vector<1x1x128xf32>
    %954 = vector.broadcast %953 : vector<1x1x128xf32> to vector<7x7x128xf32>
    %955 = arith.mulf %950, %954 : vector<7x7x128xf32>
    %956 = arith.addf %949, %955 : vector<7x7x128xf32>
    %957 = vector.extract_strided_slice %907 {offsets = [1, 2, 0], sizes = [7, 7, 128], strides = [1, 1, 1]} : vector<11x11x128xf32> to vector<7x7x128xf32>
    %958 = vector.extract_strided_slice %908 {offsets = [1, 2, 0], sizes = [1, 1, 128], strides = [1, 1, 1]} : vector<5x5x128xf32> to vector<1x1x128xf32>
    %959 = vector.shape_cast %958 : vector<1x1x128xf32> to vector<128xf32>
    %960 = vector.shape_cast %959 : vector<128xf32> to vector<1x1x128xf32>
    %961 = vector.broadcast %960 : vector<1x1x128xf32> to vector<7x7x128xf32>
    %962 = arith.mulf %957, %961 : vector<7x7x128xf32>
    %963 = arith.addf %956, %962 : vector<7x7x128xf32>
    %964 = vector.extract_strided_slice %907 {offsets = [1, 3, 0], sizes = [7, 7, 128], strides = [1, 1, 1]} : vector<11x11x128xf32> to vector<7x7x128xf32>
    %965 = vector.extract_strided_slice %908 {offsets = [1, 3, 0], sizes = [1, 1, 128], strides = [1, 1, 1]} : vector<5x5x128xf32> to vector<1x1x128xf32>
    %966 = vector.shape_cast %965 : vector<1x1x128xf32> to vector<128xf32>
    %967 = vector.shape_cast %966 : vector<128xf32> to vector<1x1x128xf32>
    %968 = vector.broadcast %967 : vector<1x1x128xf32> to vector<7x7x128xf32>
    %969 = arith.mulf %964, %968 : vector<7x7x128xf32>
    %970 = arith.addf %963, %969 : vector<7x7x128xf32>
    %971 = vector.extract_strided_slice %907 {offsets = [1, 4, 0], sizes = [7, 7, 128], strides = [1, 1, 1]} : vector<11x11x128xf32> to vector<7x7x128xf32>
    %972 = vector.extract_strided_slice %908 {offsets = [1, 4, 0], sizes = [1, 1, 128], strides = [1, 1, 1]} : vector<5x5x128xf32> to vector<1x1x128xf32>
    %973 = vector.shape_cast %972 : vector<1x1x128xf32> to vector<128xf32>
    %974 = vector.shape_cast %973 : vector<128xf32> to vector<1x1x128xf32>
    %975 = vector.broadcast %974 : vector<1x1x128xf32> to vector<7x7x128xf32>
    %976 = arith.mulf %971, %975 : vector<7x7x128xf32>
    %977 = arith.addf %970, %976 : vector<7x7x128xf32>
    %978 = vector.extract_strided_slice %907 {offsets = [2, 0, 0], sizes = [7, 7, 128], strides = [1, 1, 1]} : vector<11x11x128xf32> to vector<7x7x128xf32>
    %979 = vector.extract_strided_slice %908 {offsets = [2, 0, 0], sizes = [1, 1, 128], strides = [1, 1, 1]} : vector<5x5x128xf32> to vector<1x1x128xf32>
    %980 = vector.shape_cast %979 : vector<1x1x128xf32> to vector<128xf32>
    %981 = vector.shape_cast %980 : vector<128xf32> to vector<1x1x128xf32>
    %982 = vector.broadcast %981 : vector<1x1x128xf32> to vector<7x7x128xf32>
    %983 = arith.mulf %978, %982 : vector<7x7x128xf32>
    %984 = arith.addf %977, %983 : vector<7x7x128xf32>
    %985 = vector.extract_strided_slice %907 {offsets = [2, 1, 0], sizes = [7, 7, 128], strides = [1, 1, 1]} : vector<11x11x128xf32> to vector<7x7x128xf32>
    %986 = vector.extract_strided_slice %908 {offsets = [2, 1, 0], sizes = [1, 1, 128], strides = [1, 1, 1]} : vector<5x5x128xf32> to vector<1x1x128xf32>
    %987 = vector.shape_cast %986 : vector<1x1x128xf32> to vector<128xf32>
    %988 = vector.shape_cast %987 : vector<128xf32> to vector<1x1x128xf32>
    %989 = vector.broadcast %988 : vector<1x1x128xf32> to vector<7x7x128xf32>
    %990 = arith.mulf %985, %989 : vector<7x7x128xf32>
    %991 = arith.addf %984, %990 : vector<7x7x128xf32>
    %992 = vector.extract_strided_slice %907 {offsets = [2, 2, 0], sizes = [7, 7, 128], strides = [1, 1, 1]} : vector<11x11x128xf32> to vector<7x7x128xf32>
    %993 = vector.extract_strided_slice %908 {offsets = [2, 2, 0], sizes = [1, 1, 128], strides = [1, 1, 1]} : vector<5x5x128xf32> to vector<1x1x128xf32>
    %994 = vector.shape_cast %993 : vector<1x1x128xf32> to vector<128xf32>
    %995 = vector.shape_cast %994 : vector<128xf32> to vector<1x1x128xf32>
    %996 = vector.broadcast %995 : vector<1x1x128xf32> to vector<7x7x128xf32>
    %997 = arith.mulf %992, %996 : vector<7x7x128xf32>
    %998 = arith.addf %991, %997 : vector<7x7x128xf32>
    %999 = vector.extract_strided_slice %907 {offsets = [2, 3, 0], sizes = [7, 7, 128], strides = [1, 1, 1]} : vector<11x11x128xf32> to vector<7x7x128xf32>
    %1000 = vector.extract_strided_slice %908 {offsets = [2, 3, 0], sizes = [1, 1, 128], strides = [1, 1, 1]} : vector<5x5x128xf32> to vector<1x1x128xf32>
    %1001 = vector.shape_cast %1000 : vector<1x1x128xf32> to vector<128xf32>
    %1002 = vector.shape_cast %1001 : vector<128xf32> to vector<1x1x128xf32>
    %1003 = vector.broadcast %1002 : vector<1x1x128xf32> to vector<7x7x128xf32>
    %1004 = arith.mulf %999, %1003 : vector<7x7x128xf32>
    %1005 = arith.addf %998, %1004 : vector<7x7x128xf32>
    %1006 = vector.extract_strided_slice %907 {offsets = [2, 4, 0], sizes = [7, 7, 128], strides = [1, 1, 1]} : vector<11x11x128xf32> to vector<7x7x128xf32>
    %1007 = vector.extract_strided_slice %908 {offsets = [2, 4, 0], sizes = [1, 1, 128], strides = [1, 1, 1]} : vector<5x5x128xf32> to vector<1x1x128xf32>
    %1008 = vector.shape_cast %1007 : vector<1x1x128xf32> to vector<128xf32>
    %1009 = vector.shape_cast %1008 : vector<128xf32> to vector<1x1x128xf32>
    %1010 = vector.broadcast %1009 : vector<1x1x128xf32> to vector<7x7x128xf32>
    %1011 = arith.mulf %1006, %1010 : vector<7x7x128xf32>
    %1012 = arith.addf %1005, %1011 : vector<7x7x128xf32>
    %1013 = vector.extract_strided_slice %907 {offsets = [3, 0, 0], sizes = [7, 7, 128], strides = [1, 1, 1]} : vector<11x11x128xf32> to vector<7x7x128xf32>
    %1014 = vector.extract_strided_slice %908 {offsets = [3, 0, 0], sizes = [1, 1, 128], strides = [1, 1, 1]} : vector<5x5x128xf32> to vector<1x1x128xf32>
    %1015 = vector.shape_cast %1014 : vector<1x1x128xf32> to vector<128xf32>
    %1016 = vector.shape_cast %1015 : vector<128xf32> to vector<1x1x128xf32>
    %1017 = vector.broadcast %1016 : vector<1x1x128xf32> to vector<7x7x128xf32>
    %1018 = arith.mulf %1013, %1017 : vector<7x7x128xf32>
    %1019 = arith.addf %1012, %1018 : vector<7x7x128xf32>
    %1020 = vector.extract_strided_slice %907 {offsets = [3, 1, 0], sizes = [7, 7, 128], strides = [1, 1, 1]} : vector<11x11x128xf32> to vector<7x7x128xf32>
    %1021 = vector.extract_strided_slice %908 {offsets = [3, 1, 0], sizes = [1, 1, 128], strides = [1, 1, 1]} : vector<5x5x128xf32> to vector<1x1x128xf32>
    %1022 = vector.shape_cast %1021 : vector<1x1x128xf32> to vector<128xf32>
    %1023 = vector.shape_cast %1022 : vector<128xf32> to vector<1x1x128xf32>
    %1024 = vector.broadcast %1023 : vector<1x1x128xf32> to vector<7x7x128xf32>
    %1025 = arith.mulf %1020, %1024 : vector<7x7x128xf32>
    %1026 = arith.addf %1019, %1025 : vector<7x7x128xf32>
    %1027 = vector.extract_strided_slice %907 {offsets = [3, 2, 0], sizes = [7, 7, 128], strides = [1, 1, 1]} : vector<11x11x128xf32> to vector<7x7x128xf32>
    %1028 = vector.extract_strided_slice %908 {offsets = [3, 2, 0], sizes = [1, 1, 128], strides = [1, 1, 1]} : vector<5x5x128xf32> to vector<1x1x128xf32>
    %1029 = vector.shape_cast %1028 : vector<1x1x128xf32> to vector<128xf32>
    %1030 = vector.shape_cast %1029 : vector<128xf32> to vector<1x1x128xf32>
    %1031 = vector.broadcast %1030 : vector<1x1x128xf32> to vector<7x7x128xf32>
    %1032 = arith.mulf %1027, %1031 : vector<7x7x128xf32>
    %1033 = arith.addf %1026, %1032 : vector<7x7x128xf32>
    %1034 = vector.extract_strided_slice %907 {offsets = [3, 3, 0], sizes = [7, 7, 128], strides = [1, 1, 1]} : vector<11x11x128xf32> to vector<7x7x128xf32>
    %1035 = vector.extract_strided_slice %908 {offsets = [3, 3, 0], sizes = [1, 1, 128], strides = [1, 1, 1]} : vector<5x5x128xf32> to vector<1x1x128xf32>
    %1036 = vector.shape_cast %1035 : vector<1x1x128xf32> to vector<128xf32>
    %1037 = vector.shape_cast %1036 : vector<128xf32> to vector<1x1x128xf32>
    %1038 = vector.broadcast %1037 : vector<1x1x128xf32> to vector<7x7x128xf32>
    %1039 = arith.mulf %1034, %1038 : vector<7x7x128xf32>
    %1040 = arith.addf %1033, %1039 : vector<7x7x128xf32>
    %1041 = vector.extract_strided_slice %907 {offsets = [3, 4, 0], sizes = [7, 7, 128], strides = [1, 1, 1]} : vector<11x11x128xf32> to vector<7x7x128xf32>
    %1042 = vector.extract_strided_slice %908 {offsets = [3, 4, 0], sizes = [1, 1, 128], strides = [1, 1, 1]} : vector<5x5x128xf32> to vector<1x1x128xf32>
    %1043 = vector.shape_cast %1042 : vector<1x1x128xf32> to vector<128xf32>
    %1044 = vector.shape_cast %1043 : vector<128xf32> to vector<1x1x128xf32>
    %1045 = vector.broadcast %1044 : vector<1x1x128xf32> to vector<7x7x128xf32>
    %1046 = arith.mulf %1041, %1045 : vector<7x7x128xf32>
    %1047 = arith.addf %1040, %1046 : vector<7x7x128xf32>
    %1048 = vector.extract_strided_slice %907 {offsets = [4, 0, 0], sizes = [7, 7, 128], strides = [1, 1, 1]} : vector<11x11x128xf32> to vector<7x7x128xf32>
    %1049 = vector.extract_strided_slice %908 {offsets = [4, 0, 0], sizes = [1, 1, 128], strides = [1, 1, 1]} : vector<5x5x128xf32> to vector<1x1x128xf32>
    %1050 = vector.shape_cast %1049 : vector<1x1x128xf32> to vector<128xf32>
    %1051 = vector.shape_cast %1050 : vector<128xf32> to vector<1x1x128xf32>
    %1052 = vector.broadcast %1051 : vector<1x1x128xf32> to vector<7x7x128xf32>
    %1053 = arith.mulf %1048, %1052 : vector<7x7x128xf32>
    %1054 = arith.addf %1047, %1053 : vector<7x7x128xf32>
    %1055 = vector.extract_strided_slice %907 {offsets = [4, 1, 0], sizes = [7, 7, 128], strides = [1, 1, 1]} : vector<11x11x128xf32> to vector<7x7x128xf32>
    %1056 = vector.extract_strided_slice %908 {offsets = [4, 1, 0], sizes = [1, 1, 128], strides = [1, 1, 1]} : vector<5x5x128xf32> to vector<1x1x128xf32>
    %1057 = vector.shape_cast %1056 : vector<1x1x128xf32> to vector<128xf32>
    %1058 = vector.shape_cast %1057 : vector<128xf32> to vector<1x1x128xf32>
    %1059 = vector.broadcast %1058 : vector<1x1x128xf32> to vector<7x7x128xf32>
    %1060 = arith.mulf %1055, %1059 : vector<7x7x128xf32>
    %1061 = arith.addf %1054, %1060 : vector<7x7x128xf32>
    %1062 = vector.extract_strided_slice %907 {offsets = [4, 2, 0], sizes = [7, 7, 128], strides = [1, 1, 1]} : vector<11x11x128xf32> to vector<7x7x128xf32>
    %1063 = vector.extract_strided_slice %908 {offsets = [4, 2, 0], sizes = [1, 1, 128], strides = [1, 1, 1]} : vector<5x5x128xf32> to vector<1x1x128xf32>
    %1064 = vector.shape_cast %1063 : vector<1x1x128xf32> to vector<128xf32>
    %1065 = vector.shape_cast %1064 : vector<128xf32> to vector<1x1x128xf32>
    %1066 = vector.broadcast %1065 : vector<1x1x128xf32> to vector<7x7x128xf32>
    %1067 = arith.mulf %1062, %1066 : vector<7x7x128xf32>
    %1068 = arith.addf %1061, %1067 : vector<7x7x128xf32>
    %1069 = vector.extract_strided_slice %907 {offsets = [4, 3, 0], sizes = [7, 7, 128], strides = [1, 1, 1]} : vector<11x11x128xf32> to vector<7x7x128xf32>
    %1070 = vector.extract_strided_slice %908 {offsets = [4, 3, 0], sizes = [1, 1, 128], strides = [1, 1, 1]} : vector<5x5x128xf32> to vector<1x1x128xf32>
    %1071 = vector.shape_cast %1070 : vector<1x1x128xf32> to vector<128xf32>
    %1072 = vector.shape_cast %1071 : vector<128xf32> to vector<1x1x128xf32>
    %1073 = vector.broadcast %1072 : vector<1x1x128xf32> to vector<7x7x128xf32>
    %1074 = arith.mulf %1069, %1073 : vector<7x7x128xf32>
    %1075 = arith.addf %1068, %1074 : vector<7x7x128xf32>
    %1076 = vector.extract_strided_slice %907 {offsets = [4, 4, 0], sizes = [7, 7, 128], strides = [1, 1, 1]} : vector<11x11x128xf32> to vector<7x7x128xf32>
    %1077 = vector.extract_strided_slice %908 {offsets = [4, 4, 0], sizes = [1, 1, 128], strides = [1, 1, 1]} : vector<5x5x128xf32> to vector<1x1x128xf32>
    %1078 = vector.shape_cast %1077 : vector<1x1x128xf32> to vector<128xf32>
    %1079 = vector.shape_cast %1078 : vector<128xf32> to vector<1x1x128xf32>
    %1080 = vector.broadcast %1079 : vector<1x1x128xf32> to vector<7x7x128xf32>
    %1081 = arith.mulf %1076, %1080 : vector<7x7x128xf32>
    %1082 = arith.addf %1075, %1081 : vector<7x7x128xf32>
    %c0_54 = arith.constant 0 : index
    %c0_55 = arith.constant 0 : index
    %c0_56 = arith.constant 0 : index
    %c640_57 = arith.constant 640 : index
    %1083 = vector.load %arg4[%c0_54, %c0_55, %c0_56, %c640_57] : memref<1x7x7x1152xf32, #tpu.memory_space<vmem>>, vector<1x7x7x128xf32>
    %1084 = vector.shape_cast %1083 : vector<1x7x7x128xf32> to vector<7x7x128xf32>
    %1085 = vector.shape_cast %1082 : vector<7x7x128xf32> to vector<1x7x7x128xf32>
    tpu.vector_store %arg4[%c0_54, %c0_55, %c0_56, %c640_57], %1085 {strides = array<i32>} : memref<1x7x7x1152xf32, #tpu.memory_space<vmem>>, vector<1x7x7x128xf32>,
    %c0_58 = arith.constant 0 : index
    %c0_59 = arith.constant 0 : index
    %c768 = arith.constant 768 : index
    %1086 = vector.load %arg5[%c0_58, %c0_59, %c768] : memref<11x11x1152xf32, #tpu.memory_space<vmem>>, vector<11x11x128xf32>
    %1087 = vector.extract_strided_slice %11 {offsets = [0, 0, 768], sizes = [5, 5, 128], strides = [1, 1, 1]} : vector<5x5x1152xf32> to vector<5x5x128xf32>
    %1088 = vector.extract_strided_slice %1086 {offsets = [0, 0, 0], sizes = [7, 7, 128], strides = [1, 1, 1]} : vector<11x11x128xf32> to vector<7x7x128xf32>
    %1089 = vector.extract_strided_slice %1087 {offsets = [0, 0, 0], sizes = [1, 1, 128], strides = [1, 1, 1]} : vector<5x5x128xf32> to vector<1x1x128xf32>
    %1090 = vector.shape_cast %1089 : vector<1x1x128xf32> to vector<128xf32>
    %1091 = vector.shape_cast %1090 : vector<128xf32> to vector<1x1x128xf32>
    %1092 = vector.broadcast %1091 : vector<1x1x128xf32> to vector<7x7x128xf32>
    %1093 = arith.mulf %1088, %1092 : vector<7x7x128xf32>
    %1094 = vector.extract_strided_slice %1086 {offsets = [0, 1, 0], sizes = [7, 7, 128], strides = [1, 1, 1]} : vector<11x11x128xf32> to vector<7x7x128xf32>
    %1095 = vector.extract_strided_slice %1087 {offsets = [0, 1, 0], sizes = [1, 1, 128], strides = [1, 1, 1]} : vector<5x5x128xf32> to vector<1x1x128xf32>
    %1096 = vector.shape_cast %1095 : vector<1x1x128xf32> to vector<128xf32>
    %1097 = vector.shape_cast %1096 : vector<128xf32> to vector<1x1x128xf32>
    %1098 = vector.broadcast %1097 : vector<1x1x128xf32> to vector<7x7x128xf32>
    %1099 = arith.mulf %1094, %1098 : vector<7x7x128xf32>
    %1100 = arith.addf %1093, %1099 : vector<7x7x128xf32>
    %1101 = vector.extract_strided_slice %1086 {offsets = [0, 2, 0], sizes = [7, 7, 128], strides = [1, 1, 1]} : vector<11x11x128xf32> to vector<7x7x128xf32>
    %1102 = vector.extract_strided_slice %1087 {offsets = [0, 2, 0], sizes = [1, 1, 128], strides = [1, 1, 1]} : vector<5x5x128xf32> to vector<1x1x128xf32>
    %1103 = vector.shape_cast %1102 : vector<1x1x128xf32> to vector<128xf32>
    %1104 = vector.shape_cast %1103 : vector<128xf32> to vector<1x1x128xf32>
    %1105 = vector.broadcast %1104 : vector<1x1x128xf32> to vector<7x7x128xf32>
    %1106 = arith.mulf %1101, %1105 : vector<7x7x128xf32>
    %1107 = arith.addf %1100, %1106 : vector<7x7x128xf32>
    %1108 = vector.extract_strided_slice %1086 {offsets = [0, 3, 0], sizes = [7, 7, 128], strides = [1, 1, 1]} : vector<11x11x128xf32> to vector<7x7x128xf32>
    %1109 = vector.extract_strided_slice %1087 {offsets = [0, 3, 0], sizes = [1, 1, 128], strides = [1, 1, 1]} : vector<5x5x128xf32> to vector<1x1x128xf32>
    %1110 = vector.shape_cast %1109 : vector<1x1x128xf32> to vector<128xf32>
    %1111 = vector.shape_cast %1110 : vector<128xf32> to vector<1x1x128xf32>
    %1112 = vector.broadcast %1111 : vector<1x1x128xf32> to vector<7x7x128xf32>
    %1113 = arith.mulf %1108, %1112 : vector<7x7x128xf32>
    %1114 = arith.addf %1107, %1113 : vector<7x7x128xf32>
    %1115 = vector.extract_strided_slice %1086 {offsets = [0, 4, 0], sizes = [7, 7, 128], strides = [1, 1, 1]} : vector<11x11x128xf32> to vector<7x7x128xf32>
    %1116 = vector.extract_strided_slice %1087 {offsets = [0, 4, 0], sizes = [1, 1, 128], strides = [1, 1, 1]} : vector<5x5x128xf32> to vector<1x1x128xf32>
    %1117 = vector.shape_cast %1116 : vector<1x1x128xf32> to vector<128xf32>
    %1118 = vector.shape_cast %1117 : vector<128xf32> to vector<1x1x128xf32>
    %1119 = vector.broadcast %1118 : vector<1x1x128xf32> to vector<7x7x128xf32>
    %1120 = arith.mulf %1115, %1119 : vector<7x7x128xf32>
    %1121 = arith.addf %1114, %1120 : vector<7x7x128xf32>
    %1122 = vector.extract_strided_slice %1086 {offsets = [1, 0, 0], sizes = [7, 7, 128], strides = [1, 1, 1]} : vector<11x11x128xf32> to vector<7x7x128xf32>
    %1123 = vector.extract_strided_slice %1087 {offsets = [1, 0, 0], sizes = [1, 1, 128], strides = [1, 1, 1]} : vector<5x5x128xf32> to vector<1x1x128xf32>
    %1124 = vector.shape_cast %1123 : vector<1x1x128xf32> to vector<128xf32>
    %1125 = vector.shape_cast %1124 : vector<128xf32> to vector<1x1x128xf32>
    %1126 = vector.broadcast %1125 : vector<1x1x128xf32> to vector<7x7x128xf32>
    %1127 = arith.mulf %1122, %1126 : vector<7x7x128xf32>
    %1128 = arith.addf %1121, %1127 : vector<7x7x128xf32>
    %1129 = vector.extract_strided_slice %1086 {offsets = [1, 1, 0], sizes = [7, 7, 128], strides = [1, 1, 1]} : vector<11x11x128xf32> to vector<7x7x128xf32>
    %1130 = vector.extract_strided_slice %1087 {offsets = [1, 1, 0], sizes = [1, 1, 128], strides = [1, 1, 1]} : vector<5x5x128xf32> to vector<1x1x128xf32>
    %1131 = vector.shape_cast %1130 : vector<1x1x128xf32> to vector<128xf32>
    %1132 = vector.shape_cast %1131 : vector<128xf32> to vector<1x1x128xf32>
    %1133 = vector.broadcast %1132 : vector<1x1x128xf32> to vector<7x7x128xf32>
    %1134 = arith.mulf %1129, %1133 : vector<7x7x128xf32>
    %1135 = arith.addf %1128, %1134 : vector<7x7x128xf32>
    %1136 = vector.extract_strided_slice %1086 {offsets = [1, 2, 0], sizes = [7, 7, 128], strides = [1, 1, 1]} : vector<11x11x128xf32> to vector<7x7x128xf32>
    %1137 = vector.extract_strided_slice %1087 {offsets = [1, 2, 0], sizes = [1, 1, 128], strides = [1, 1, 1]} : vector<5x5x128xf32> to vector<1x1x128xf32>
    %1138 = vector.shape_cast %1137 : vector<1x1x128xf32> to vector<128xf32>
    %1139 = vector.shape_cast %1138 : vector<128xf32> to vector<1x1x128xf32>
    %1140 = vector.broadcast %1139 : vector<1x1x128xf32> to vector<7x7x128xf32>
    %1141 = arith.mulf %1136, %1140 : vector<7x7x128xf32>
    %1142 = arith.addf %1135, %1141 : vector<7x7x128xf32>
    %1143 = vector.extract_strided_slice %1086 {offsets = [1, 3, 0], sizes = [7, 7, 128], strides = [1, 1, 1]} : vector<11x11x128xf32> to vector<7x7x128xf32>
    %1144 = vector.extract_strided_slice %1087 {offsets = [1, 3, 0], sizes = [1, 1, 128], strides = [1, 1, 1]} : vector<5x5x128xf32> to vector<1x1x128xf32>
    %1145 = vector.shape_cast %1144 : vector<1x1x128xf32> to vector<128xf32>
    %1146 = vector.shape_cast %1145 : vector<128xf32> to vector<1x1x128xf32>
    %1147 = vector.broadcast %1146 : vector<1x1x128xf32> to vector<7x7x128xf32>
    %1148 = arith.mulf %1143, %1147 : vector<7x7x128xf32>
    %1149 = arith.addf %1142, %1148 : vector<7x7x128xf32>
    %1150 = vector.extract_strided_slice %1086 {offsets = [1, 4, 0], sizes = [7, 7, 128], strides = [1, 1, 1]} : vector<11x11x128xf32> to vector<7x7x128xf32>
    %1151 = vector.extract_strided_slice %1087 {offsets = [1, 4, 0], sizes = [1, 1, 128], strides = [1, 1, 1]} : vector<5x5x128xf32> to vector<1x1x128xf32>
    %1152 = vector.shape_cast %1151 : vector<1x1x128xf32> to vector<128xf32>
    %1153 = vector.shape_cast %1152 : vector<128xf32> to vector<1x1x128xf32>
    %1154 = vector.broadcast %1153 : vector<1x1x128xf32> to vector<7x7x128xf32>
    %1155 = arith.mulf %1150, %1154 : vector<7x7x128xf32>
    %1156 = arith.addf %1149, %1155 : vector<7x7x128xf32>
    %1157 = vector.extract_strided_slice %1086 {offsets = [2, 0, 0], sizes = [7, 7, 128], strides = [1, 1, 1]} : vector<11x11x128xf32> to vector<7x7x128xf32>
    %1158 = vector.extract_strided_slice %1087 {offsets = [2, 0, 0], sizes = [1, 1, 128], strides = [1, 1, 1]} : vector<5x5x128xf32> to vector<1x1x128xf32>
    %1159 = vector.shape_cast %1158 : vector<1x1x128xf32> to vector<128xf32>
    %1160 = vector.shape_cast %1159 : vector<128xf32> to vector<1x1x128xf32>
    %1161 = vector.broadcast %1160 : vector<1x1x128xf32> to vector<7x7x128xf32>
    %1162 = arith.mulf %1157, %1161 : vector<7x7x128xf32>
    %1163 = arith.addf %1156, %1162 : vector<7x7x128xf32>
    %1164 = vector.extract_strided_slice %1086 {offsets = [2, 1, 0], sizes = [7, 7, 128], strides = [1, 1, 1]} : vector<11x11x128xf32> to vector<7x7x128xf32>
    %1165 = vector.extract_strided_slice %1087 {offsets = [2, 1, 0], sizes = [1, 1, 128], strides = [1, 1, 1]} : vector<5x5x128xf32> to vector<1x1x128xf32>
    %1166 = vector.shape_cast %1165 : vector<1x1x128xf32> to vector<128xf32>
    %1167 = vector.shape_cast %1166 : vector<128xf32> to vector<1x1x128xf32>
    %1168 = vector.broadcast %1167 : vector<1x1x128xf32> to vector<7x7x128xf32>
    %1169 = arith.mulf %1164, %1168 : vector<7x7x128xf32>
    %1170 = arith.addf %1163, %1169 : vector<7x7x128xf32>
    %1171 = vector.extract_strided_slice %1086 {offsets = [2, 2, 0], sizes = [7, 7, 128], strides = [1, 1, 1]} : vector<11x11x128xf32> to vector<7x7x128xf32>
    %1172 = vector.extract_strided_slice %1087 {offsets = [2, 2, 0], sizes = [1, 1, 128], strides = [1, 1, 1]} : vector<5x5x128xf32> to vector<1x1x128xf32>
    %1173 = vector.shape_cast %1172 : vector<1x1x128xf32> to vector<128xf32>
    %1174 = vector.shape_cast %1173 : vector<128xf32> to vector<1x1x128xf32>
    %1175 = vector.broadcast %1174 : vector<1x1x128xf32> to vector<7x7x128xf32>
    %1176 = arith.mulf %1171, %1175 : vector<7x7x128xf32>
    %1177 = arith.addf %1170, %1176 : vector<7x7x128xf32>
    %1178 = vector.extract_strided_slice %1086 {offsets = [2, 3, 0], sizes = [7, 7, 128], strides = [1, 1, 1]} : vector<11x11x128xf32> to vector<7x7x128xf32>
    %1179 = vector.extract_strided_slice %1087 {offsets = [2, 3, 0], sizes = [1, 1, 128], strides = [1, 1, 1]} : vector<5x5x128xf32> to vector<1x1x128xf32>
    %1180 = vector.shape_cast %1179 : vector<1x1x128xf32> to vector<128xf32>
    %1181 = vector.shape_cast %1180 : vector<128xf32> to vector<1x1x128xf32>
    %1182 = vector.broadcast %1181 : vector<1x1x128xf32> to vector<7x7x128xf32>
    %1183 = arith.mulf %1178, %1182 : vector<7x7x128xf32>
    %1184 = arith.addf %1177, %1183 : vector<7x7x128xf32>
    %1185 = vector.extract_strided_slice %1086 {offsets = [2, 4, 0], sizes = [7, 7, 128], strides = [1, 1, 1]} : vector<11x11x128xf32> to vector<7x7x128xf32>
    %1186 = vector.extract_strided_slice %1087 {offsets = [2, 4, 0], sizes = [1, 1, 128], strides = [1, 1, 1]} : vector<5x5x128xf32> to vector<1x1x128xf32>
    %1187 = vector.shape_cast %1186 : vector<1x1x128xf32> to vector<128xf32>
    %1188 = vector.shape_cast %1187 : vector<128xf32> to vector<1x1x128xf32>
    %1189 = vector.broadcast %1188 : vector<1x1x128xf32> to vector<7x7x128xf32>
    %1190 = arith.mulf %1185, %1189 : vector<7x7x128xf32>
    %1191 = arith.addf %1184, %1190 : vector<7x7x128xf32>
    %1192 = vector.extract_strided_slice %1086 {offsets = [3, 0, 0], sizes = [7, 7, 128], strides = [1, 1, 1]} : vector<11x11x128xf32> to vector<7x7x128xf32>
    %1193 = vector.extract_strided_slice %1087 {offsets = [3, 0, 0], sizes = [1, 1, 128], strides = [1, 1, 1]} : vector<5x5x128xf32> to vector<1x1x128xf32>
    %1194 = vector.shape_cast %1193 : vector<1x1x128xf32> to vector<128xf32>
    %1195 = vector.shape_cast %1194 : vector<128xf32> to vector<1x1x128xf32>
    %1196 = vector.broadcast %1195 : vector<1x1x128xf32> to vector<7x7x128xf32>
    %1197 = arith.mulf %1192, %1196 : vector<7x7x128xf32>
    %1198 = arith.addf %1191, %1197 : vector<7x7x128xf32>
    %1199 = vector.extract_strided_slice %1086 {offsets = [3, 1, 0], sizes = [7, 7, 128], strides = [1, 1, 1]} : vector<11x11x128xf32> to vector<7x7x128xf32>
    %1200 = vector.extract_strided_slice %1087 {offsets = [3, 1, 0], sizes = [1, 1, 128], strides = [1, 1, 1]} : vector<5x5x128xf32> to vector<1x1x128xf32>
    %1201 = vector.shape_cast %1200 : vector<1x1x128xf32> to vector<128xf32>
    %1202 = vector.shape_cast %1201 : vector<128xf32> to vector<1x1x128xf32>
    %1203 = vector.broadcast %1202 : vector<1x1x128xf32> to vector<7x7x128xf32>
    %1204 = arith.mulf %1199, %1203 : vector<7x7x128xf32>
    %1205 = arith.addf %1198, %1204 : vector<7x7x128xf32>
    %1206 = vector.extract_strided_slice %1086 {offsets = [3, 2, 0], sizes = [7, 7, 128], strides = [1, 1, 1]} : vector<11x11x128xf32> to vector<7x7x128xf32>
    %1207 = vector.extract_strided_slice %1087 {offsets = [3, 2, 0], sizes = [1, 1, 128], strides = [1, 1, 1]} : vector<5x5x128xf32> to vector<1x1x128xf32>
    %1208 = vector.shape_cast %1207 : vector<1x1x128xf32> to vector<128xf32>
    %1209 = vector.shape_cast %1208 : vector<128xf32> to vector<1x1x128xf32>
    %1210 = vector.broadcast %1209 : vector<1x1x128xf32> to vector<7x7x128xf32>
    %1211 = arith.mulf %1206, %1210 : vector<7x7x128xf32>
    %1212 = arith.addf %1205, %1211 : vector<7x7x128xf32>
    %1213 = vector.extract_strided_slice %1086 {offsets = [3, 3, 0], sizes = [7, 7, 128], strides = [1, 1, 1]} : vector<11x11x128xf32> to vector<7x7x128xf32>
    %1214 = vector.extract_strided_slice %1087 {offsets = [3, 3, 0], sizes = [1, 1, 128], strides = [1, 1, 1]} : vector<5x5x128xf32> to vector<1x1x128xf32>
    %1215 = vector.shape_cast %1214 : vector<1x1x128xf32> to vector<128xf32>
    %1216 = vector.shape_cast %1215 : vector<128xf32> to vector<1x1x128xf32>
    %1217 = vector.broadcast %1216 : vector<1x1x128xf32> to vector<7x7x128xf32>
    %1218 = arith.mulf %1213, %1217 : vector<7x7x128xf32>
    %1219 = arith.addf %1212, %1218 : vector<7x7x128xf32>
    %1220 = vector.extract_strided_slice %1086 {offsets = [3, 4, 0], sizes = [7, 7, 128], strides = [1, 1, 1]} : vector<11x11x128xf32> to vector<7x7x128xf32>
    %1221 = vector.extract_strided_slice %1087 {offsets = [3, 4, 0], sizes = [1, 1, 128], strides = [1, 1, 1]} : vector<5x5x128xf32> to vector<1x1x128xf32>
    %1222 = vector.shape_cast %1221 : vector<1x1x128xf32> to vector<128xf32>
    %1223 = vector.shape_cast %1222 : vector<128xf32> to vector<1x1x128xf32>
    %1224 = vector.broadcast %1223 : vector<1x1x128xf32> to vector<7x7x128xf32>
    %1225 = arith.mulf %1220, %1224 : vector<7x7x128xf32>
    %1226 = arith.addf %1219, %1225 : vector<7x7x128xf32>
    %1227 = vector.extract_strided_slice %1086 {offsets = [4, 0, 0], sizes = [7, 7, 128], strides = [1, 1, 1]} : vector<11x11x128xf32> to vector<7x7x128xf32>
    %1228 = vector.extract_strided_slice %1087 {offsets = [4, 0, 0], sizes = [1, 1, 128], strides = [1, 1, 1]} : vector<5x5x128xf32> to vector<1x1x128xf32>
    %1229 = vector.shape_cast %1228 : vector<1x1x128xf32> to vector<128xf32>
    %1230 = vector.shape_cast %1229 : vector<128xf32> to vector<1x1x128xf32>
    %1231 = vector.broadcast %1230 : vector<1x1x128xf32> to vector<7x7x128xf32>
    %1232 = arith.mulf %1227, %1231 : vector<7x7x128xf32>
    %1233 = arith.addf %1226, %1232 : vector<7x7x128xf32>
    %1234 = vector.extract_strided_slice %1086 {offsets = [4, 1, 0], sizes = [7, 7, 128], strides = [1, 1, 1]} : vector<11x11x128xf32> to vector<7x7x128xf32>
    %1235 = vector.extract_strided_slice %1087 {offsets = [4, 1, 0], sizes = [1, 1, 128], strides = [1, 1, 1]} : vector<5x5x128xf32> to vector<1x1x128xf32>
    %1236 = vector.shape_cast %1235 : vector<1x1x128xf32> to vector<128xf32>
    %1237 = vector.shape_cast %1236 : vector<128xf32> to vector<1x1x128xf32>
    %1238 = vector.broadcast %1237 : vector<1x1x128xf32> to vector<7x7x128xf32>
    %1239 = arith.mulf %1234, %1238 : vector<7x7x128xf32>
    %1240 = arith.addf %1233, %1239 : vector<7x7x128xf32>
    %1241 = vector.extract_strided_slice %1086 {offsets = [4, 2, 0], sizes = [7, 7, 128], strides = [1, 1, 1]} : vector<11x11x128xf32> to vector<7x7x128xf32>
    %1242 = vector.extract_strided_slice %1087 {offsets = [4, 2, 0], sizes = [1, 1, 128], strides = [1, 1, 1]} : vector<5x5x128xf32> to vector<1x1x128xf32>
    %1243 = vector.shape_cast %1242 : vector<1x1x128xf32> to vector<128xf32>
    %1244 = vector.shape_cast %1243 : vector<128xf32> to vector<1x1x128xf32>
    %1245 = vector.broadcast %1244 : vector<1x1x128xf32> to vector<7x7x128xf32>
    %1246 = arith.mulf %1241, %1245 : vector<7x7x128xf32>
    %1247 = arith.addf %1240, %1246 : vector<7x7x128xf32>
    %1248 = vector.extract_strided_slice %1086 {offsets = [4, 3, 0], sizes = [7, 7, 128], strides = [1, 1, 1]} : vector<11x11x128xf32> to vector<7x7x128xf32>
    %1249 = vector.extract_strided_slice %1087 {offsets = [4, 3, 0], sizes = [1, 1, 128], strides = [1, 1, 1]} : vector<5x5x128xf32> to vector<1x1x128xf32>
    %1250 = vector.shape_cast %1249 : vector<1x1x128xf32> to vector<128xf32>
    %1251 = vector.shape_cast %1250 : vector<128xf32> to vector<1x1x128xf32>
    %1252 = vector.broadcast %1251 : vector<1x1x128xf32> to vector<7x7x128xf32>
    %1253 = arith.mulf %1248, %1252 : vector<7x7x128xf32>
    %1254 = arith.addf %1247, %1253 : vector<7x7x128xf32>
    %1255 = vector.extract_strided_slice %1086 {offsets = [4, 4, 0], sizes = [7, 7, 128], strides = [1, 1, 1]} : vector<11x11x128xf32> to vector<7x7x128xf32>
    %1256 = vector.extract_strided_slice %1087 {offsets = [4, 4, 0], sizes = [1, 1, 128], strides = [1, 1, 1]} : vector<5x5x128xf32> to vector<1x1x128xf32>
    %1257 = vector.shape_cast %1256 : vector<1x1x128xf32> to vector<128xf32>
    %1258 = vector.shape_cast %1257 : vector<128xf32> to vector<1x1x128xf32>
    %1259 = vector.broadcast %1258 : vector<1x1x128xf32> to vector<7x7x128xf32>
    %1260 = arith.mulf %1255, %1259 : vector<7x7x128xf32>
    %1261 = arith.addf %1254, %1260 : vector<7x7x128xf32>
    %c0_60 = arith.constant 0 : index
    %c0_61 = arith.constant 0 : index
    %c0_62 = arith.constant 0 : index
    %c768_63 = arith.constant 768 : index
    %1262 = vector.load %arg4[%c0_60, %c0_61, %c0_62, %c768_63] : memref<1x7x7x1152xf32, #tpu.memory_space<vmem>>, vector<1x7x7x128xf32>
    %1263 = vector.shape_cast %1262 : vector<1x7x7x128xf32> to vector<7x7x128xf32>
    %1264 = vector.shape_cast %1261 : vector<7x7x128xf32> to vector<1x7x7x128xf32>
    tpu.vector_store %arg4[%c0_60, %c0_61, %c0_62, %c768_63], %1264 {strides = array<i32>} : memref<1x7x7x1152xf32, #tpu.memory_space<vmem>>, vector<1x7x7x128xf32>,
    %c0_64 = arith.constant 0 : index
    %c0_65 = arith.constant 0 : index
    %c896 = arith.constant 896 : index
    %1265 = vector.load %arg5[%c0_64, %c0_65, %c896] : memref<11x11x1152xf32, #tpu.memory_space<vmem>>, vector<11x11x128xf32>
    %1266 = vector.extract_strided_slice %11 {offsets = [0, 0, 896], sizes = [5, 5, 128], strides = [1, 1, 1]} : vector<5x5x1152xf32> to vector<5x5x128xf32>
    %1267 = vector.extract_strided_slice %1265 {offsets = [0, 0, 0], sizes = [7, 7, 128], strides = [1, 1, 1]} : vector<11x11x128xf32> to vector<7x7x128xf32>
    %1268 = vector.extract_strided_slice %1266 {offsets = [0, 0, 0], sizes = [1, 1, 128], strides = [1, 1, 1]} : vector<5x5x128xf32> to vector<1x1x128xf32>
    %1269 = vector.shape_cast %1268 : vector<1x1x128xf32> to vector<128xf32>
    %1270 = vector.shape_cast %1269 : vector<128xf32> to vector<1x1x128xf32>
    %1271 = vector.broadcast %1270 : vector<1x1x128xf32> to vector<7x7x128xf32>
    %1272 = arith.mulf %1267, %1271 : vector<7x7x128xf32>
    %1273 = vector.extract_strided_slice %1265 {offsets = [0, 1, 0], sizes = [7, 7, 128], strides = [1, 1, 1]} : vector<11x11x128xf32> to vector<7x7x128xf32>
    %1274 = vector.extract_strided_slice %1266 {offsets = [0, 1, 0], sizes = [1, 1, 128], strides = [1, 1, 1]} : vector<5x5x128xf32> to vector<1x1x128xf32>
    %1275 = vector.shape_cast %1274 : vector<1x1x128xf32> to vector<128xf32>
    %1276 = vector.shape_cast %1275 : vector<128xf32> to vector<1x1x128xf32>
    %1277 = vector.broadcast %1276 : vector<1x1x128xf32> to vector<7x7x128xf32>
    %1278 = arith.mulf %1273, %1277 : vector<7x7x128xf32>
    %1279 = arith.addf %1272, %1278 : vector<7x7x128xf32>
    %1280 = vector.extract_strided_slice %1265 {offsets = [0, 2, 0], sizes = [7, 7, 128], strides = [1, 1, 1]} : vector<11x11x128xf32> to vector<7x7x128xf32>
    %1281 = vector.extract_strided_slice %1266 {offsets = [0, 2, 0], sizes = [1, 1, 128], strides = [1, 1, 1]} : vector<5x5x128xf32> to vector<1x1x128xf32>
    %1282 = vector.shape_cast %1281 : vector<1x1x128xf32> to vector<128xf32>
    %1283 = vector.shape_cast %1282 : vector<128xf32> to vector<1x1x128xf32>
    %1284 = vector.broadcast %1283 : vector<1x1x128xf32> to vector<7x7x128xf32>
    %1285 = arith.mulf %1280, %1284 : vector<7x7x128xf32>
    %1286 = arith.addf %1279, %1285 : vector<7x7x128xf32>
    %1287 = vector.extract_strided_slice %1265 {offsets = [0, 3, 0], sizes = [7, 7, 128], strides = [1, 1, 1]} : vector<11x11x128xf32> to vector<7x7x128xf32>
    %1288 = vector.extract_strided_slice %1266 {offsets = [0, 3, 0], sizes = [1, 1, 128], strides = [1, 1, 1]} : vector<5x5x128xf32> to vector<1x1x128xf32>
    %1289 = vector.shape_cast %1288 : vector<1x1x128xf32> to vector<128xf32>
    %1290 = vector.shape_cast %1289 : vector<128xf32> to vector<1x1x128xf32>
    %1291 = vector.broadcast %1290 : vector<1x1x128xf32> to vector<7x7x128xf32>
    %1292 = arith.mulf %1287, %1291 : vector<7x7x128xf32>
    %1293 = arith.addf %1286, %1292 : vector<7x7x128xf32>
    %1294 = vector.extract_strided_slice %1265 {offsets = [0, 4, 0], sizes = [7, 7, 128], strides = [1, 1, 1]} : vector<11x11x128xf32> to vector<7x7x128xf32>
    %1295 = vector.extract_strided_slice %1266 {offsets = [0, 4, 0], sizes = [1, 1, 128], strides = [1, 1, 1]} : vector<5x5x128xf32> to vector<1x1x128xf32>
    %1296 = vector.shape_cast %1295 : vector<1x1x128xf32> to vector<128xf32>
    %1297 = vector.shape_cast %1296 : vector<128xf32> to vector<1x1x128xf32>
    %1298 = vector.broadcast %1297 : vector<1x1x128xf32> to vector<7x7x128xf32>
    %1299 = arith.mulf %1294, %1298 : vector<7x7x128xf32>
    %1300 = arith.addf %1293, %1299 : vector<7x7x128xf32>
    %1301 = vector.extract_strided_slice %1265 {offsets = [1, 0, 0], sizes = [7, 7, 128], strides = [1, 1, 1]} : vector<11x11x128xf32> to vector<7x7x128xf32>
    %1302 = vector.extract_strided_slice %1266 {offsets = [1, 0, 0], sizes = [1, 1, 128], strides = [1, 1, 1]} : vector<5x5x128xf32> to vector<1x1x128xf32>
    %1303 = vector.shape_cast %1302 : vector<1x1x128xf32> to vector<128xf32>
    %1304 = vector.shape_cast %1303 : vector<128xf32> to vector<1x1x128xf32>
    %1305 = vector.broadcast %1304 : vector<1x1x128xf32> to vector<7x7x128xf32>
    %1306 = arith.mulf %1301, %1305 : vector<7x7x128xf32>
    %1307 = arith.addf %1300, %1306 : vector<7x7x128xf32>
    %1308 = vector.extract_strided_slice %1265 {offsets = [1, 1, 0], sizes = [7, 7, 128], strides = [1, 1, 1]} : vector<11x11x128xf32> to vector<7x7x128xf32>
    %1309 = vector.extract_strided_slice %1266 {offsets = [1, 1, 0], sizes = [1, 1, 128], strides = [1, 1, 1]} : vector<5x5x128xf32> to vector<1x1x128xf32>
    %1310 = vector.shape_cast %1309 : vector<1x1x128xf32> to vector<128xf32>
    %1311 = vector.shape_cast %1310 : vector<128xf32> to vector<1x1x128xf32>
    %1312 = vector.broadcast %1311 : vector<1x1x128xf32> to vector<7x7x128xf32>
    %1313 = arith.mulf %1308, %1312 : vector<7x7x128xf32>
    %1314 = arith.addf %1307, %1313 : vector<7x7x128xf32>
    %1315 = vector.extract_strided_slice %1265 {offsets = [1, 2, 0], sizes = [7, 7, 128], strides = [1, 1, 1]} : vector<11x11x128xf32> to vector<7x7x128xf32>
    %1316 = vector.extract_strided_slice %1266 {offsets = [1, 2, 0], sizes = [1, 1, 128], strides = [1, 1, 1]} : vector<5x5x128xf32> to vector<1x1x128xf32>
    %1317 = vector.shape_cast %1316 : vector<1x1x128xf32> to vector<128xf32>
    %1318 = vector.shape_cast %1317 : vector<128xf32> to vector<1x1x128xf32>
    %1319 = vector.broadcast %1318 : vector<1x1x128xf32> to vector<7x7x128xf32>
    %1320 = arith.mulf %1315, %1319 : vector<7x7x128xf32>
    %1321 = arith.addf %1314, %1320 : vector<7x7x128xf32>
    %1322 = vector.extract_strided_slice %1265 {offsets = [1, 3, 0], sizes = [7, 7, 128], strides = [1, 1, 1]} : vector<11x11x128xf32> to vector<7x7x128xf32>
    %1323 = vector.extract_strided_slice %1266 {offsets = [1, 3, 0], sizes = [1, 1, 128], strides = [1, 1, 1]} : vector<5x5x128xf32> to vector<1x1x128xf32>
    %1324 = vector.shape_cast %1323 : vector<1x1x128xf32> to vector<128xf32>
    %1325 = vector.shape_cast %1324 : vector<128xf32> to vector<1x1x128xf32>
    %1326 = vector.broadcast %1325 : vector<1x1x128xf32> to vector<7x7x128xf32>
    %1327 = arith.mulf %1322, %1326 : vector<7x7x128xf32>
    %1328 = arith.addf %1321, %1327 : vector<7x7x128xf32>
    %1329 = vector.extract_strided_slice %1265 {offsets = [1, 4, 0], sizes = [7, 7, 128], strides = [1, 1, 1]} : vector<11x11x128xf32> to vector<7x7x128xf32>
    %1330 = vector.extract_strided_slice %1266 {offsets = [1, 4, 0], sizes = [1, 1, 128], strides = [1, 1, 1]} : vector<5x5x128xf32> to vector<1x1x128xf32>
    %1331 = vector.shape_cast %1330 : vector<1x1x128xf32> to vector<128xf32>
    %1332 = vector.shape_cast %1331 : vector<128xf32> to vector<1x1x128xf32>
    %1333 = vector.broadcast %1332 : vector<1x1x128xf32> to vector<7x7x128xf32>
    %1334 = arith.mulf %1329, %1333 : vector<7x7x128xf32>
    %1335 = arith.addf %1328, %1334 : vector<7x7x128xf32>
    %1336 = vector.extract_strided_slice %1265 {offsets = [2, 0, 0], sizes = [7, 7, 128], strides = [1, 1, 1]} : vector<11x11x128xf32> to vector<7x7x128xf32>
    %1337 = vector.extract_strided_slice %1266 {offsets = [2, 0, 0], sizes = [1, 1, 128], strides = [1, 1, 1]} : vector<5x5x128xf32> to vector<1x1x128xf32>
    %1338 = vector.shape_cast %1337 : vector<1x1x128xf32> to vector<128xf32>
    %1339 = vector.shape_cast %1338 : vector<128xf32> to vector<1x1x128xf32>
    %1340 = vector.broadcast %1339 : vector<1x1x128xf32> to vector<7x7x128xf32>
    %1341 = arith.mulf %1336, %1340 : vector<7x7x128xf32>
    %1342 = arith.addf %1335, %1341 : vector<7x7x128xf32>
    %1343 = vector.extract_strided_slice %1265 {offsets = [2, 1, 0], sizes = [7, 7, 128], strides = [1, 1, 1]} : vector<11x11x128xf32> to vector<7x7x128xf32>
    %1344 = vector.extract_strided_slice %1266 {offsets = [2, 1, 0], sizes = [1, 1, 128], strides = [1, 1, 1]} : vector<5x5x128xf32> to vector<1x1x128xf32>
    %1345 = vector.shape_cast %1344 : vector<1x1x128xf32> to vector<128xf32>
    %1346 = vector.shape_cast %1345 : vector<128xf32> to vector<1x1x128xf32>
    %1347 = vector.broadcast %1346 : vector<1x1x128xf32> to vector<7x7x128xf32>
    %1348 = arith.mulf %1343, %1347 : vector<7x7x128xf32>
    %1349 = arith.addf %1342, %1348 : vector<7x7x128xf32>
    %1350 = vector.extract_strided_slice %1265 {offsets = [2, 2, 0], sizes = [7, 7, 128], strides = [1, 1, 1]} : vector<11x11x128xf32> to vector<7x7x128xf32>
    %1351 = vector.extract_strided_slice %1266 {offsets = [2, 2, 0], sizes = [1, 1, 128], strides = [1, 1, 1]} : vector<5x5x128xf32> to vector<1x1x128xf32>
    %1352 = vector.shape_cast %1351 : vector<1x1x128xf32> to vector<128xf32>
    %1353 = vector.shape_cast %1352 : vector<128xf32> to vector<1x1x128xf32>
    %1354 = vector.broadcast %1353 : vector<1x1x128xf32> to vector<7x7x128xf32>
    %1355 = arith.mulf %1350, %1354 : vector<7x7x128xf32>
    %1356 = arith.addf %1349, %1355 : vector<7x7x128xf32>
    %1357 = vector.extract_strided_slice %1265 {offsets = [2, 3, 0], sizes = [7, 7, 128], strides = [1, 1, 1]} : vector<11x11x128xf32> to vector<7x7x128xf32>
    %1358 = vector.extract_strided_slice %1266 {offsets = [2, 3, 0], sizes = [1, 1, 128], strides = [1, 1, 1]} : vector<5x5x128xf32> to vector<1x1x128xf32>
    %1359 = vector.shape_cast %1358 : vector<1x1x128xf32> to vector<128xf32>
    %1360 = vector.shape_cast %1359 : vector<128xf32> to vector<1x1x128xf32>
    %1361 = vector.broadcast %1360 : vector<1x1x128xf32> to vector<7x7x128xf32>
    %1362 = arith.mulf %1357, %1361 : vector<7x7x128xf32>
    %1363 = arith.addf %1356, %1362 : vector<7x7x128xf32>
    %1364 = vector.extract_strided_slice %1265 {offsets = [2, 4, 0], sizes = [7, 7, 128], strides = [1, 1, 1]} : vector<11x11x128xf32> to vector<7x7x128xf32>
    %1365 = vector.extract_strided_slice %1266 {offsets = [2, 4, 0], sizes = [1, 1, 128], strides = [1, 1, 1]} : vector<5x5x128xf32> to vector<1x1x128xf32>
    %1366 = vector.shape_cast %1365 : vector<1x1x128xf32> to vector<128xf32>
    %1367 = vector.shape_cast %1366 : vector<128xf32> to vector<1x1x128xf32>
    %1368 = vector.broadcast %1367 : vector<1x1x128xf32> to vector<7x7x128xf32>
    %1369 = arith.mulf %1364, %1368 : vector<7x7x128xf32>
    %1370 = arith.addf %1363, %1369 : vector<7x7x128xf32>
    %1371 = vector.extract_strided_slice %1265 {offsets = [3, 0, 0], sizes = [7, 7, 128], strides = [1, 1, 1]} : vector<11x11x128xf32> to vector<7x7x128xf32>
    %1372 = vector.extract_strided_slice %1266 {offsets = [3, 0, 0], sizes = [1, 1, 128], strides = [1, 1, 1]} : vector<5x5x128xf32> to vector<1x1x128xf32>
    %1373 = vector.shape_cast %1372 : vector<1x1x128xf32> to vector<128xf32>
    %1374 = vector.shape_cast %1373 : vector<128xf32> to vector<1x1x128xf32>
    %1375 = vector.broadcast %1374 : vector<1x1x128xf32> to vector<7x7x128xf32>
    %1376 = arith.mulf %1371, %1375 : vector<7x7x128xf32>
    %1377 = arith.addf %1370, %1376 : vector<7x7x128xf32>
    %1378 = vector.extract_strided_slice %1265 {offsets = [3, 1, 0], sizes = [7, 7, 128], strides = [1, 1, 1]} : vector<11x11x128xf32> to vector<7x7x128xf32>
    %1379 = vector.extract_strided_slice %1266 {offsets = [3, 1, 0], sizes = [1, 1, 128], strides = [1, 1, 1]} : vector<5x5x128xf32> to vector<1x1x128xf32>
    %1380 = vector.shape_cast %1379 : vector<1x1x128xf32> to vector<128xf32>
    %1381 = vector.shape_cast %1380 : vector<128xf32> to vector<1x1x128xf32>
    %1382 = vector.broadcast %1381 : vector<1x1x128xf32> to vector<7x7x128xf32>
    %1383 = arith.mulf %1378, %1382 : vector<7x7x128xf32>
    %1384 = arith.addf %1377, %1383 : vector<7x7x128xf32>
    %1385 = vector.extract_strided_slice %1265 {offsets = [3, 2, 0], sizes = [7, 7, 128], strides = [1, 1, 1]} : vector<11x11x128xf32> to vector<7x7x128xf32>
    %1386 = vector.extract_strided_slice %1266 {offsets = [3, 2, 0], sizes = [1, 1, 128], strides = [1, 1, 1]} : vector<5x5x128xf32> to vector<1x1x128xf32>
    %1387 = vector.shape_cast %1386 : vector<1x1x128xf32> to vector<128xf32>
    %1388 = vector.shape_cast %1387 : vector<128xf32> to vector<1x1x128xf32>
    %1389 = vector.broadcast %1388 : vector<1x1x128xf32> to vector<7x7x128xf32>
    %1390 = arith.mulf %1385, %1389 : vector<7x7x128xf32>
    %1391 = arith.addf %1384, %1390 : vector<7x7x128xf32>
    %1392 = vector.extract_strided_slice %1265 {offsets = [3, 3, 0], sizes = [7, 7, 128], strides = [1, 1, 1]} : vector<11x11x128xf32> to vector<7x7x128xf32>
    %1393 = vector.extract_strided_slice %1266 {offsets = [3, 3, 0], sizes = [1, 1, 128], strides = [1, 1, 1]} : vector<5x5x128xf32> to vector<1x1x128xf32>
    %1394 = vector.shape_cast %1393 : vector<1x1x128xf32> to vector<128xf32>
    %1395 = vector.shape_cast %1394 : vector<128xf32> to vector<1x1x128xf32>
    %1396 = vector.broadcast %1395 : vector<1x1x128xf32> to vector<7x7x128xf32>
    %1397 = arith.mulf %1392, %1396 : vector<7x7x128xf32>
    %1398 = arith.addf %1391, %1397 : vector<7x7x128xf32>
    %1399 = vector.extract_strided_slice %1265 {offsets = [3, 4, 0], sizes = [7, 7, 128], strides = [1, 1, 1]} : vector<11x11x128xf32> to vector<7x7x128xf32>
    %1400 = vector.extract_strided_slice %1266 {offsets = [3, 4, 0], sizes = [1, 1, 128], strides = [1, 1, 1]} : vector<5x5x128xf32> to vector<1x1x128xf32>
    %1401 = vector.shape_cast %1400 : vector<1x1x128xf32> to vector<128xf32>
    %1402 = vector.shape_cast %1401 : vector<128xf32> to vector<1x1x128xf32>
    %1403 = vector.broadcast %1402 : vector<1x1x128xf32> to vector<7x7x128xf32>
    %1404 = arith.mulf %1399, %1403 : vector<7x7x128xf32>
    %1405 = arith.addf %1398, %1404 : vector<7x7x128xf32>
    %1406 = vector.extract_strided_slice %1265 {offsets = [4, 0, 0], sizes = [7, 7, 128], strides = [1, 1, 1]} : vector<11x11x128xf32> to vector<7x7x128xf32>
    %1407 = vector.extract_strided_slice %1266 {offsets = [4, 0, 0], sizes = [1, 1, 128], strides = [1, 1, 1]} : vector<5x5x128xf32> to vector<1x1x128xf32>
    %1408 = vector.shape_cast %1407 : vector<1x1x128xf32> to vector<128xf32>
    %1409 = vector.shape_cast %1408 : vector<128xf32> to vector<1x1x128xf32>
    %1410 = vector.broadcast %1409 : vector<1x1x128xf32> to vector<7x7x128xf32>
    %1411 = arith.mulf %1406, %1410 : vector<7x7x128xf32>
    %1412 = arith.addf %1405, %1411 : vector<7x7x128xf32>
    %1413 = vector.extract_strided_slice %1265 {offsets = [4, 1, 0], sizes = [7, 7, 128], strides = [1, 1, 1]} : vector<11x11x128xf32> to vector<7x7x128xf32>
    %1414 = vector.extract_strided_slice %1266 {offsets = [4, 1, 0], sizes = [1, 1, 128], strides = [1, 1, 1]} : vector<5x5x128xf32> to vector<1x1x128xf32>
    %1415 = vector.shape_cast %1414 : vector<1x1x128xf32> to vector<128xf32>
    %1416 = vector.shape_cast %1415 : vector<128xf32> to vector<1x1x128xf32>
    %1417 = vector.broadcast %1416 : vector<1x1x128xf32> to vector<7x7x128xf32>
    %1418 = arith.mulf %1413, %1417 : vector<7x7x128xf32>
    %1419 = arith.addf %1412, %1418 : vector<7x7x128xf32>
    %1420 = vector.extract_strided_slice %1265 {offsets = [4, 2, 0], sizes = [7, 7, 128], strides = [1, 1, 1]} : vector<11x11x128xf32> to vector<7x7x128xf32>
    %1421 = vector.extract_strided_slice %1266 {offsets = [4, 2, 0], sizes = [1, 1, 128], strides = [1, 1, 1]} : vector<5x5x128xf32> to vector<1x1x128xf32>
    %1422 = vector.shape_cast %1421 : vector<1x1x128xf32> to vector<128xf32>
    %1423 = vector.shape_cast %1422 : vector<128xf32> to vector<1x1x128xf32>
    %1424 = vector.broadcast %1423 : vector<1x1x128xf32> to vector<7x7x128xf32>
    %1425 = arith.mulf %1420, %1424 : vector<7x7x128xf32>
    %1426 = arith.addf %1419, %1425 : vector<7x7x128xf32>
    %1427 = vector.extract_strided_slice %1265 {offsets = [4, 3, 0], sizes = [7, 7, 128], strides = [1, 1, 1]} : vector<11x11x128xf32> to vector<7x7x128xf32>
    %1428 = vector.extract_strided_slice %1266 {offsets = [4, 3, 0], sizes = [1, 1, 128], strides = [1, 1, 1]} : vector<5x5x128xf32> to vector<1x1x128xf32>
    %1429 = vector.shape_cast %1428 : vector<1x1x128xf32> to vector<128xf32>
    %1430 = vector.shape_cast %1429 : vector<128xf32> to vector<1x1x128xf32>
    %1431 = vector.broadcast %1430 : vector<1x1x128xf32> to vector<7x7x128xf32>
    %1432 = arith.mulf %1427, %1431 : vector<7x7x128xf32>
    %1433 = arith.addf %1426, %1432 : vector<7x7x128xf32>
    %1434 = vector.extract_strided_slice %1265 {offsets = [4, 4, 0], sizes = [7, 7, 128], strides = [1, 1, 1]} : vector<11x11x128xf32> to vector<7x7x128xf32>
    %1435 = vector.extract_strided_slice %1266 {offsets = [4, 4, 0], sizes = [1, 1, 128], strides = [1, 1, 1]} : vector<5x5x128xf32> to vector<1x1x128xf32>
    %1436 = vector.shape_cast %1435 : vector<1x1x128xf32> to vector<128xf32>
    %1437 = vector.shape_cast %1436 : vector<128xf32> to vector<1x1x128xf32>
    %1438 = vector.broadcast %1437 : vector<1x1x128xf32> to vector<7x7x128xf32>
    %1439 = arith.mulf %1434, %1438 : vector<7x7x128xf32>
    %1440 = arith.addf %1433, %1439 : vector<7x7x128xf32>
    %c0_66 = arith.constant 0 : index
    %c0_67 = arith.constant 0 : index
    %c0_68 = arith.constant 0 : index
    %c896_69 = arith.constant 896 : index
    %1441 = vector.load %arg4[%c0_66, %c0_67, %c0_68, %c896_69] : memref<1x7x7x1152xf32, #tpu.memory_space<vmem>>, vector<1x7x7x128xf32>
    %1442 = vector.shape_cast %1441 : vector<1x7x7x128xf32> to vector<7x7x128xf32>
    %1443 = vector.shape_cast %1440 : vector<7x7x128xf32> to vector<1x7x7x128xf32>
    tpu.vector_store %arg4[%c0_66, %c0_67, %c0_68, %c896_69], %1443 {strides = array<i32>} : memref<1x7x7x1152xf32, #tpu.memory_space<vmem>>, vector<1x7x7x128xf32>,
    %c0_70 = arith.constant 0 : index
    %c0_71 = arith.constant 0 : index
    %c1024 = arith.constant 1024 : index
    %1444 = vector.load %arg5[%c0_70, %c0_71, %c1024] : memref<11x11x1152xf32, #tpu.memory_space<vmem>>, vector<11x11x128xf32>
    %1445 = vector.extract_strided_slice %11 {offsets = [0, 0, 1024], sizes = [5, 5, 128], strides = [1, 1, 1]} : vector<5x5x1152xf32> to vector<5x5x128xf32>
    %1446 = vector.extract_strided_slice %1444 {offsets = [0, 0, 0], sizes = [7, 7, 128], strides = [1, 1, 1]} : vector<11x11x128xf32> to vector<7x7x128xf32>
    %1447 = vector.extract_strided_slice %1445 {offsets = [0, 0, 0], sizes = [1, 1, 128], strides = [1, 1, 1]} : vector<5x5x128xf32> to vector<1x1x128xf32>
    %1448 = vector.shape_cast %1447 : vector<1x1x128xf32> to vector<128xf32>
    %1449 = vector.shape_cast %1448 : vector<128xf32> to vector<1x1x128xf32>
    %1450 = vector.broadcast %1449 : vector<1x1x128xf32> to vector<7x7x128xf32>
    %1451 = arith.mulf %1446, %1450 : vector<7x7x128xf32>
    %1452 = vector.extract_strided_slice %1444 {offsets = [0, 1, 0], sizes = [7, 7, 128], strides = [1, 1, 1]} : vector<11x11x128xf32> to vector<7x7x128xf32>
    %1453 = vector.extract_strided_slice %1445 {offsets = [0, 1, 0], sizes = [1, 1, 128], strides = [1, 1, 1]} : vector<5x5x128xf32> to vector<1x1x128xf32>
    %1454 = vector.shape_cast %1453 : vector<1x1x128xf32> to vector<128xf32>
    %1455 = vector.shape_cast %1454 : vector<128xf32> to vector<1x1x128xf32>
    %1456 = vector.broadcast %1455 : vector<1x1x128xf32> to vector<7x7x128xf32>
    %1457 = arith.mulf %1452, %1456 : vector<7x7x128xf32>
    %1458 = arith.addf %1451, %1457 : vector<7x7x128xf32>
    %1459 = vector.extract_strided_slice %1444 {offsets = [0, 2, 0], sizes = [7, 7, 128], strides = [1, 1, 1]} : vector<11x11x128xf32> to vector<7x7x128xf32>
    %1460 = vector.extract_strided_slice %1445 {offsets = [0, 2, 0], sizes = [1, 1, 128], strides = [1, 1, 1]} : vector<5x5x128xf32> to vector<1x1x128xf32>
    %1461 = vector.shape_cast %1460 : vector<1x1x128xf32> to vector<128xf32>
    %1462 = vector.shape_cast %1461 : vector<128xf32> to vector<1x1x128xf32>
    %1463 = vector.broadcast %1462 : vector<1x1x128xf32> to vector<7x7x128xf32>
    %1464 = arith.mulf %1459, %1463 : vector<7x7x128xf32>
    %1465 = arith.addf %1458, %1464 : vector<7x7x128xf32>
    %1466 = vector.extract_strided_slice %1444 {offsets = [0, 3, 0], sizes = [7, 7, 128], strides = [1, 1, 1]} : vector<11x11x128xf32> to vector<7x7x128xf32>
    %1467 = vector.extract_strided_slice %1445 {offsets = [0, 3, 0], sizes = [1, 1, 128], strides = [1, 1, 1]} : vector<5x5x128xf32> to vector<1x1x128xf32>
    %1468 = vector.shape_cast %1467 : vector<1x1x128xf32> to vector<128xf32>
    %1469 = vector.shape_cast %1468 : vector<128xf32> to vector<1x1x128xf32>
    %1470 = vector.broadcast %1469 : vector<1x1x128xf32> to vector<7x7x128xf32>
    %1471 = arith.mulf %1466, %1470 : vector<7x7x128xf32>
    %1472 = arith.addf %1465, %1471 : vector<7x7x128xf32>
    %1473 = vector.extract_strided_slice %1444 {offsets = [0, 4, 0], sizes = [7, 7, 128], strides = [1, 1, 1]} : vector<11x11x128xf32> to vector<7x7x128xf32>
    %1474 = vector.extract_strided_slice %1445 {offsets = [0, 4, 0], sizes = [1, 1, 128], strides = [1, 1, 1]} : vector<5x5x128xf32> to vector<1x1x128xf32>
    %1475 = vector.shape_cast %1474 : vector<1x1x128xf32> to vector<128xf32>
    %1476 = vector.shape_cast %1475 : vector<128xf32> to vector<1x1x128xf32>
    %1477 = vector.broadcast %1476 : vector<1x1x128xf32> to vector<7x7x128xf32>
    %1478 = arith.mulf %1473, %1477 : vector<7x7x128xf32>
    %1479 = arith.addf %1472, %1478 : vector<7x7x128xf32>
    %1480 = vector.extract_strided_slice %1444 {offsets = [1, 0, 0], sizes = [7, 7, 128], strides = [1, 1, 1]} : vector<11x11x128xf32> to vector<7x7x128xf32>
    %1481 = vector.extract_strided_slice %1445 {offsets = [1, 0, 0], sizes = [1, 1, 128], strides = [1, 1, 1]} : vector<5x5x128xf32> to vector<1x1x128xf32>
    %1482 = vector.shape_cast %1481 : vector<1x1x128xf32> to vector<128xf32>
    %1483 = vector.shape_cast %1482 : vector<128xf32> to vector<1x1x128xf32>
    %1484 = vector.broadcast %1483 : vector<1x1x128xf32> to vector<7x7x128xf32>
    %1485 = arith.mulf %1480, %1484 : vector<7x7x128xf32>
    %1486 = arith.addf %1479, %1485 : vector<7x7x128xf32>
    %1487 = vector.extract_strided_slice %1444 {offsets = [1, 1, 0], sizes = [7, 7, 128], strides = [1, 1, 1]} : vector<11x11x128xf32> to vector<7x7x128xf32>
    %1488 = vector.extract_strided_slice %1445 {offsets = [1, 1, 0], sizes = [1, 1, 128], strides = [1, 1, 1]} : vector<5x5x128xf32> to vector<1x1x128xf32>
    %1489 = vector.shape_cast %1488 : vector<1x1x128xf32> to vector<128xf32>
    %1490 = vector.shape_cast %1489 : vector<128xf32> to vector<1x1x128xf32>
    %1491 = vector.broadcast %1490 : vector<1x1x128xf32> to vector<7x7x128xf32>
    %1492 = arith.mulf %1487, %1491 : vector<7x7x128xf32>
    %1493 = arith.addf %1486, %1492 : vector<7x7x128xf32>
    %1494 = vector.extract_strided_slice %1444 {offsets = [1, 2, 0], sizes = [7, 7, 128], strides = [1, 1, 1]} : vector<11x11x128xf32> to vector<7x7x128xf32>
    %1495 = vector.extract_strided_slice %1445 {offsets = [1, 2, 0], sizes = [1, 1, 128], strides = [1, 1, 1]} : vector<5x5x128xf32> to vector<1x1x128xf32>
    %1496 = vector.shape_cast %1495 : vector<1x1x128xf32> to vector<128xf32>
    %1497 = vector.shape_cast %1496 : vector<128xf32> to vector<1x1x128xf32>
    %1498 = vector.broadcast %1497 : vector<1x1x128xf32> to vector<7x7x128xf32>
    %1499 = arith.mulf %1494, %1498 : vector<7x7x128xf32>
    %1500 = arith.addf %1493, %1499 : vector<7x7x128xf32>
    %1501 = vector.extract_strided_slice %1444 {offsets = [1, 3, 0], sizes = [7, 7, 128], strides = [1, 1, 1]} : vector<11x11x128xf32> to vector<7x7x128xf32>
    %1502 = vector.extract_strided_slice %1445 {offsets = [1, 3, 0], sizes = [1, 1, 128], strides = [1, 1, 1]} : vector<5x5x128xf32> to vector<1x1x128xf32>
    %1503 = vector.shape_cast %1502 : vector<1x1x128xf32> to vector<128xf32>
    %1504 = vector.shape_cast %1503 : vector<128xf32> to vector<1x1x128xf32>
    %1505 = vector.broadcast %1504 : vector<1x1x128xf32> to vector<7x7x128xf32>
    %1506 = arith.mulf %1501, %1505 : vector<7x7x128xf32>
    %1507 = arith.addf %1500, %1506 : vector<7x7x128xf32>
    %1508 = vector.extract_strided_slice %1444 {offsets = [1, 4, 0], sizes = [7, 7, 128], strides = [1, 1, 1]} : vector<11x11x128xf32> to vector<7x7x128xf32>
    %1509 = vector.extract_strided_slice %1445 {offsets = [1, 4, 0], sizes = [1, 1, 128], strides = [1, 1, 1]} : vector<5x5x128xf32> to vector<1x1x128xf32>
    %1510 = vector.shape_cast %1509 : vector<1x1x128xf32> to vector<128xf32>
    %1511 = vector.shape_cast %1510 : vector<128xf32> to vector<1x1x128xf32>
    %1512 = vector.broadcast %1511 : vector<1x1x128xf32> to vector<7x7x128xf32>
    %1513 = arith.mulf %1508, %1512 : vector<7x7x128xf32>
    %1514 = arith.addf %1507, %1513 : vector<7x7x128xf32>
    %1515 = vector.extract_strided_slice %1444 {offsets = [2, 0, 0], sizes = [7, 7, 128], strides = [1, 1, 1]} : vector<11x11x128xf32> to vector<7x7x128xf32>
    %1516 = vector.extract_strided_slice %1445 {offsets = [2, 0, 0], sizes = [1, 1, 128], strides = [1, 1, 1]} : vector<5x5x128xf32> to vector<1x1x128xf32>
    %1517 = vector.shape_cast %1516 : vector<1x1x128xf32> to vector<128xf32>
    %1518 = vector.shape_cast %1517 : vector<128xf32> to vector<1x1x128xf32>
    %1519 = vector.broadcast %1518 : vector<1x1x128xf32> to vector<7x7x128xf32>
    %1520 = arith.mulf %1515, %1519 : vector<7x7x128xf32>
    %1521 = arith.addf %1514, %1520 : vector<7x7x128xf32>
    %1522 = vector.extract_strided_slice %1444 {offsets = [2, 1, 0], sizes = [7, 7, 128], strides = [1, 1, 1]} : vector<11x11x128xf32> to vector<7x7x128xf32>
    %1523 = vector.extract_strided_slice %1445 {offsets = [2, 1, 0], sizes = [1, 1, 128], strides = [1, 1, 1]} : vector<5x5x128xf32> to vector<1x1x128xf32>
    %1524 = vector.shape_cast %1523 : vector<1x1x128xf32> to vector<128xf32>
    %1525 = vector.shape_cast %1524 : vector<128xf32> to vector<1x1x128xf32>
    %1526 = vector.broadcast %1525 : vector<1x1x128xf32> to vector<7x7x128xf32>
    %1527 = arith.mulf %1522, %1526 : vector<7x7x128xf32>
    %1528 = arith.addf %1521, %1527 : vector<7x7x128xf32>
    %1529 = vector.extract_strided_slice %1444 {offsets = [2, 2, 0], sizes = [7, 7, 128], strides = [1, 1, 1]} : vector<11x11x128xf32> to vector<7x7x128xf32>
    %1530 = vector.extract_strided_slice %1445 {offsets = [2, 2, 0], sizes = [1, 1, 128], strides = [1, 1, 1]} : vector<5x5x128xf32> to vector<1x1x128xf32>
    %1531 = vector.shape_cast %1530 : vector<1x1x128xf32> to vector<128xf32>
    %1532 = vector.shape_cast %1531 : vector<128xf32> to vector<1x1x128xf32>
    %1533 = vector.broadcast %1532 : vector<1x1x128xf32> to vector<7x7x128xf32>
    %1534 = arith.mulf %1529, %1533 : vector<7x7x128xf32>
    %1535 = arith.addf %1528, %1534 : vector<7x7x128xf32>
    %1536 = vector.extract_strided_slice %1444 {offsets = [2, 3, 0], sizes = [7, 7, 128], strides = [1, 1, 1]} : vector<11x11x128xf32> to vector<7x7x128xf32>
    %1537 = vector.extract_strided_slice %1445 {offsets = [2, 3, 0], sizes = [1, 1, 128], strides = [1, 1, 1]} : vector<5x5x128xf32> to vector<1x1x128xf32>
    %1538 = vector.shape_cast %1537 : vector<1x1x128xf32> to vector<128xf32>
    %1539 = vector.shape_cast %1538 : vector<128xf32> to vector<1x1x128xf32>
    %1540 = vector.broadcast %1539 : vector<1x1x128xf32> to vector<7x7x128xf32>
    %1541 = arith.mulf %1536, %1540 : vector<7x7x128xf32>
    %1542 = arith.addf %1535, %1541 : vector<7x7x128xf32>
    %1543 = vector.extract_strided_slice %1444 {offsets = [2, 4, 0], sizes = [7, 7, 128], strides = [1, 1, 1]} : vector<11x11x128xf32> to vector<7x7x128xf32>
    %1544 = vector.extract_strided_slice %1445 {offsets = [2, 4, 0], sizes = [1, 1, 128], strides = [1, 1, 1]} : vector<5x5x128xf32> to vector<1x1x128xf32>
    %1545 = vector.shape_cast %1544 : vector<1x1x128xf32> to vector<128xf32>
    %1546 = vector.shape_cast %1545 : vector<128xf32> to vector<1x1x128xf32>
    %1547 = vector.broadcast %1546 : vector<1x1x128xf32> to vector<7x7x128xf32>
    %1548 = arith.mulf %1543, %1547 : vector<7x7x128xf32>
    %1549 = arith.addf %1542, %1548 : vector<7x7x128xf32>
    %1550 = vector.extract_strided_slice %1444 {offsets = [3, 0, 0], sizes = [7, 7, 128], strides = [1, 1, 1]} : vector<11x11x128xf32> to vector<7x7x128xf32>
    %1551 = vector.extract_strided_slice %1445 {offsets = [3, 0, 0], sizes = [1, 1, 128], strides = [1, 1, 1]} : vector<5x5x128xf32> to vector<1x1x128xf32>
    %1552 = vector.shape_cast %1551 : vector<1x1x128xf32> to vector<128xf32>
    %1553 = vector.shape_cast %1552 : vector<128xf32> to vector<1x1x128xf32>
    %1554 = vector.broadcast %1553 : vector<1x1x128xf32> to vector<7x7x128xf32>
    %1555 = arith.mulf %1550, %1554 : vector<7x7x128xf32>
    %1556 = arith.addf %1549, %1555 : vector<7x7x128xf32>
    %1557 = vector.extract_strided_slice %1444 {offsets = [3, 1, 0], sizes = [7, 7, 128], strides = [1, 1, 1]} : vector<11x11x128xf32> to vector<7x7x128xf32>
    %1558 = vector.extract_strided_slice %1445 {offsets = [3, 1, 0], sizes = [1, 1, 128], strides = [1, 1, 1]} : vector<5x5x128xf32> to vector<1x1x128xf32>
    %1559 = vector.shape_cast %1558 : vector<1x1x128xf32> to vector<128xf32>
    %1560 = vector.shape_cast %1559 : vector<128xf32> to vector<1x1x128xf32>
    %1561 = vector.broadcast %1560 : vector<1x1x128xf32> to vector<7x7x128xf32>
    %1562 = arith.mulf %1557, %1561 : vector<7x7x128xf32>
    %1563 = arith.addf %1556, %1562 : vector<7x7x128xf32>
    %1564 = vector.extract_strided_slice %1444 {offsets = [3, 2, 0], sizes = [7, 7, 128], strides = [1, 1, 1]} : vector<11x11x128xf32> to vector<7x7x128xf32>
    %1565 = vector.extract_strided_slice %1445 {offsets = [3, 2, 0], sizes = [1, 1, 128], strides = [1, 1, 1]} : vector<5x5x128xf32> to vector<1x1x128xf32>
    %1566 = vector.shape_cast %1565 : vector<1x1x128xf32> to vector<128xf32>
    %1567 = vector.shape_cast %1566 : vector<128xf32> to vector<1x1x128xf32>
    %1568 = vector.broadcast %1567 : vector<1x1x128xf32> to vector<7x7x128xf32>
    %1569 = arith.mulf %1564, %1568 : vector<7x7x128xf32>
    %1570 = arith.addf %1563, %1569 : vector<7x7x128xf32>
    %1571 = vector.extract_strided_slice %1444 {offsets = [3, 3, 0], sizes = [7, 7, 128], strides = [1, 1, 1]} : vector<11x11x128xf32> to vector<7x7x128xf32>
    %1572 = vector.extract_strided_slice %1445 {offsets = [3, 3, 0], sizes = [1, 1, 128], strides = [1, 1, 1]} : vector<5x5x128xf32> to vector<1x1x128xf32>
    %1573 = vector.shape_cast %1572 : vector<1x1x128xf32> to vector<128xf32>
    %1574 = vector.shape_cast %1573 : vector<128xf32> to vector<1x1x128xf32>
    %1575 = vector.broadcast %1574 : vector<1x1x128xf32> to vector<7x7x128xf32>
    %1576 = arith.mulf %1571, %1575 : vector<7x7x128xf32>
    %1577 = arith.addf %1570, %1576 : vector<7x7x128xf32>
    %1578 = vector.extract_strided_slice %1444 {offsets = [3, 4, 0], sizes = [7, 7, 128], strides = [1, 1, 1]} : vector<11x11x128xf32> to vector<7x7x128xf32>
    %1579 = vector.extract_strided_slice %1445 {offsets = [3, 4, 0], sizes = [1, 1, 128], strides = [1, 1, 1]} : vector<5x5x128xf32> to vector<1x1x128xf32>
    %1580 = vector.shape_cast %1579 : vector<1x1x128xf32> to vector<128xf32>
    %1581 = vector.shape_cast %1580 : vector<128xf32> to vector<1x1x128xf32>
    %1582 = vector.broadcast %1581 : vector<1x1x128xf32> to vector<7x7x128xf32>
    %1583 = arith.mulf %1578, %1582 : vector<7x7x128xf32>
    %1584 = arith.addf %1577, %1583 : vector<7x7x128xf32>
    %1585 = vector.extract_strided_slice %1444 {offsets = [4, 0, 0], sizes = [7, 7, 128], strides = [1, 1, 1]} : vector<11x11x128xf32> to vector<7x7x128xf32>
    %1586 = vector.extract_strided_slice %1445 {offsets = [4, 0, 0], sizes = [1, 1, 128], strides = [1, 1, 1]} : vector<5x5x128xf32> to vector<1x1x128xf32>
    %1587 = vector.shape_cast %1586 : vector<1x1x128xf32> to vector<128xf32>
    %1588 = vector.shape_cast %1587 : vector<128xf32> to vector<1x1x128xf32>
    %1589 = vector.broadcast %1588 : vector<1x1x128xf32> to vector<7x7x128xf32>
    %1590 = arith.mulf %1585, %1589 : vector<7x7x128xf32>
    %1591 = arith.addf %1584, %1590 : vector<7x7x128xf32>
    %1592 = vector.extract_strided_slice %1444 {offsets = [4, 1, 0], sizes = [7, 7, 128], strides = [1, 1, 1]} : vector<11x11x128xf32> to vector<7x7x128xf32>
    %1593 = vector.extract_strided_slice %1445 {offsets = [4, 1, 0], sizes = [1, 1, 128], strides = [1, 1, 1]} : vector<5x5x128xf32> to vector<1x1x128xf32>
    %1594 = vector.shape_cast %1593 : vector<1x1x128xf32> to vector<128xf32>
    %1595 = vector.shape_cast %1594 : vector<128xf32> to vector<1x1x128xf32>
    %1596 = vector.broadcast %1595 : vector<1x1x128xf32> to vector<7x7x128xf32>
    %1597 = arith.mulf %1592, %1596 : vector<7x7x128xf32>
    %1598 = arith.addf %1591, %1597 : vector<7x7x128xf32>
    %1599 = vector.extract_strided_slice %1444 {offsets = [4, 2, 0], sizes = [7, 7, 128], strides = [1, 1, 1]} : vector<11x11x128xf32> to vector<7x7x128xf32>
    %1600 = vector.extract_strided_slice %1445 {offsets = [4, 2, 0], sizes = [1, 1, 128], strides = [1, 1, 1]} : vector<5x5x128xf32> to vector<1x1x128xf32>
    %1601 = vector.shape_cast %1600 : vector<1x1x128xf32> to vector<128xf32>
    %1602 = vector.shape_cast %1601 : vector<128xf32> to vector<1x1x128xf32>
    %1603 = vector.broadcast %1602 : vector<1x1x128xf32> to vector<7x7x128xf32>
    %1604 = arith.mulf %1599, %1603 : vector<7x7x128xf32>
    %1605 = arith.addf %1598, %1604 : vector<7x7x128xf32>
    %1606 = vector.extract_strided_slice %1444 {offsets = [4, 3, 0], sizes = [7, 7, 128], strides = [1, 1, 1]} : vector<11x11x128xf32> to vector<7x7x128xf32>
    %1607 = vector.extract_strided_slice %1445 {offsets = [4, 3, 0], sizes = [1, 1, 128], strides = [1, 1, 1]} : vector<5x5x128xf32> to vector<1x1x128xf32>
    %1608 = vector.shape_cast %1607 : vector<1x1x128xf32> to vector<128xf32>
    %1609 = vector.shape_cast %1608 : vector<128xf32> to vector<1x1x128xf32>
    %1610 = vector.broadcast %1609 : vector<1x1x128xf32> to vector<7x7x128xf32>
    %1611 = arith.mulf %1606, %1610 : vector<7x7x128xf32>
    %1612 = arith.addf %1605, %1611 : vector<7x7x128xf32>
    %1613 = vector.extract_strided_slice %1444 {offsets = [4, 4, 0], sizes = [7, 7, 128], strides = [1, 1, 1]} : vector<11x11x128xf32> to vector<7x7x128xf32>
    %1614 = vector.extract_strided_slice %1445 {offsets = [4, 4, 0], sizes = [1, 1, 128], strides = [1, 1, 1]} : vector<5x5x128xf32> to vector<1x1x128xf32>
    %1615 = vector.shape_cast %1614 : vector<1x1x128xf32> to vector<128xf32>
    %1616 = vector.shape_cast %1615 : vector<128xf32> to vector<1x1x128xf32>
    %1617 = vector.broadcast %1616 : vector<1x1x128xf32> to vector<7x7x128xf32>
    %1618 = arith.mulf %1613, %1617 : vector<7x7x128xf32>
    %1619 = arith.addf %1612, %1618 : vector<7x7x128xf32>
    %c0_72 = arith.constant 0 : index
    %c0_73 = arith.constant 0 : index
    %c0_74 = arith.constant 0 : index
    %c1024_75 = arith.constant 1024 : index
    %1620 = vector.load %arg4[%c0_72, %c0_73, %c0_74, %c1024_75] : memref<1x7x7x1152xf32, #tpu.memory_space<vmem>>, vector<1x7x7x128xf32>
    %1621 = vector.shape_cast %1620 : vector<1x7x7x128xf32> to vector<7x7x128xf32>
    %1622 = vector.shape_cast %1619 : vector<7x7x128xf32> to vector<1x7x7x128xf32>
    tpu.vector_store %arg4[%c0_72, %c0_73, %c0_74, %c1024_75], %1622 {strides = array<i32>} : memref<1x7x7x1152xf32, #tpu.memory_space<vmem>>, vector<1x7x7x128xf32>,
    return
  }
  func.func @transform_0(%arg0: i32, %arg1: i32) -> (i32, i32, i32, i32) {
    %c0_i32 = arith.constant 0 : i32
    %c0_i32_0 = arith.constant 0 : i32
    %c0_i32_1 = arith.constant 0 : i32
    return %arg0, %c0_i32, %c0_i32_0, %arg1 : i32, i32, i32, i32
  }
  func.func @transform_1(%arg0: i32, %arg1: i32) -> (i32, i32, i32) {
    %c0_i32 = arith.constant 0 : i32
    %c0_i32_0 = arith.constant 0 : i32
    %c0_i32_1 = arith.constant 0 : i32
    return %c0_i32, %c0_i32_0, %arg1 : i32, i32, i32
  }
  func.func @transform_2(%arg0: i32, %arg1: i32) -> (i32, i32, i32, i32) {
    %c0_i32 = arith.constant 0 : i32
    %c0_i32_0 = arith.constant 0 : i32
    %c0_i32_1 = arith.constant 0 : i32
    return %arg0, %c0_i32, %c0_i32_0, %arg1 : i32, i32, i32, i32
  }
}

</mosaic_0001>

<llo_original>
// kernel: tpu_custom_call.1
$region0: #{tpu_custom_call.1}
  #allocation0 [shape = 'u32[]', space=smem, size = 0x4, offset = 0x4, fixed_abs, tag = 'smem constant byte address 0x4 - core index']
  #allocation1 [shape = 'u32[144,128]{1,0:T(1,128)}', space=vmem, size = 0x12000, scoped, tag = 'internal scratch']
  #allocation2 [shape = 'f32[11,11,1152]{2,1,0:T(8,128)}', space=vmem, size = 0xc6000, scoped, tag = 'scratch operand']
  %s0 = inlined_call_operand.vmem [shape: f32[1,7,7,1152], index: 0, kind: input, shape index: {}]
  %s1 = inlined_call_operand.vmem [shape: f32[5,5,1152], index: 1, kind: input, shape index: {}]
  %s2 = inlined_call_operand.vmem [shape: f32[1,7,7,1152], index: 2, kind: output, shape index: {}]
  %s3 = sld [smem:[#allocation0]]
  $region18: #{tpu_custom_call.1} parent=0
    _
  %s5 = ssub.s32 1, %s3
  %s6 = scalar_select 0, %s5, %s3
  // Predicated region
  $region2: #{tpu_custom_call.1} parent=0 // pred_check
    _
  $region3: #{tpu_custom_call.1} parent=0 // pred_check_branch
    %8 = sbr.rel (0) target = $region5
  $region4: #{tpu_custom_call.1} parent=0 // pred_region
    _
  $region5: #{tpu_custom_call.1} parent=0 // pred_fallthru
    _
  // Predicated region
  $region6: #{tpu_custom_call.1} parent=0 // pred_check
    _
  $region7: #{tpu_custom_call.1} parent=0 // pred_check_branch
    %10 = sbr.rel (0) target = $region9
  $region8: #{tpu_custom_call.1} parent=0 // pred_region
    _
  $region9: #{tpu_custom_call.1} parent=0 // pred_fallthru
    _
  %11 = vst [vmem:[#allocation2] sm:$0xff] 0.0
  %12 = vst [vmem:[#allocation2 + $0x8] sm:$0xff] 0.0
  %13 = vst [vmem:[#allocation2 + $0x10] sm:$0xff] 0.0
  %14 = vst [vmem:[#allocation2 + $0x18] sm:$0xff] 0.0
  %15 = vst [vmem:[#allocation2 + $0x20] sm:$0xff] 0.0
  %16 = vst [vmem:[#allocation2 + $0x28] sm:$0xff] 0.0
  %17 = vst [vmem:[#allocation2 + $0x30] sm:$0xff] 0.0
  %18 = vst [vmem:[#allocation2 + $0x38] sm:$0xff] 0.0
  %19 = vst [vmem:[#allocation2 + $0x40] sm:$0xff] 0.0
  %20 = vst [vmem:[#allocation2 + $0x48] sm:$0x7] 0.0
  %21 = vst [vmem:[#allocation2 + $0x50] sm:$0x7] 0.0
  %22 = vst [vmem:[#allocation2 + $0x58] sm:$0x7] 0.0
  %23 = vst [vmem:[#allocation2 + $0x60] sm:$0x7] 0.0
  %24 = vst [vmem:[#allocation2 + $0x68] sm:$0x7] 0.0
  %25 = vst [vmem:[#allocation2 + $0x70] sm:$0x7] 0.0
  %26 = vst [vmem:[#allocation2 + $0x78] sm:$0x7] 0.0
  %27 = vst [vmem:[#allocation2 + $0x80] sm:$0x7] 0.0
  %28 = vst [vmem:[#allocation2 + $0x88] sm:$0x7] 0.0
  %29 = vst [vmem:[#allocation2 + $0x90] sm:$0xff] 0.0
  %30 = vst [vmem:[#allocation2 + $0x98] sm:$0xff] 0.0
  %31 = vst [vmem:[#allocation2 + $0xa0] sm:$0xff] 0.0
  %32 = vst [vmem:[#allocation2 + $0xa8] sm:$0xff] 0.0
  %33 = vst [vmem:[#allocation2 + $0xb0] sm:$0xff] 0.0
  %34 = vst [vmem:[#allocation2 + $0xb8] sm:$0xff] 0.0
  %35 = vst [vmem:[#allocation2 + $0xc0] sm:$0xff] 0.0
  %36 = vst [vmem:[#allocation2 + $0xc8] sm:$0xff] 0.0
  %37 = vst [vmem:[#allocation2 + $0xd0] sm:$0xff] 0.0
  %38 = vst [vmem:[#allocation2 + $0xd8] sm:$0x7] 0.0
  %39 = vst [vmem:[#allocation2 + $0xe0] sm:$0x7] 0.0
  %40 = vst [vmem:[#allocation2 + $0xe8] sm:$0x7] 0.0
  %41 = vst [vmem:[#allocation2 + $0xf0] sm:$0x7] 0.0
  %42 = vst [vmem:[#allocation2 + $0xf8] sm:$0x7] 0.0
  %43 = vst [vmem:[#allocation2 + $0x100] sm:$0x7] 0.0
  %44 = vst [vmem:[#allocation2 + $0x108] sm:$0x7] 0.0
  %45 = vst [vmem:[#allocation2 + $0x110] sm:$0x7] 0.0
  %46 = vst [vmem:[#allocation2 + $0x118] sm:$0x7] 0.0
  %s47 = scalar_lea.vmem [#allocation2], 1296
  %48 = vst [vmem:[%s47] sm:$0xff] 0.0
  %49 = vst [vmem:[%s47 + $0x8] sm:$0xff] 0.0
  %50 = vst [vmem:[%s47 + $0x10] sm:$0xff] 0.0
  %51 = vst [vmem:[%s47 + $0x18] sm:$0xff] 0.0
  %52 = vst [vmem:[%s47 + $0x20] sm:$0xff] 0.0
  %53 = vst [vmem:[%s47 + $0x28] sm:$0xff] 0.0
  %54 = vst [vmem:[%s47 + $0x30] sm:$0xff] 0.0
  %55 = vst [vmem:[%s47 + $0x38] sm:$0xff] 0.0
  %56 = vst [vmem:[%s47 + $0x40] sm:$0xff] 0.0
  %57 = vst [vmem:[%s47 + $0x48] sm:$0x7] 0.0
  %58 = vst [vmem:[%s47 + $0x50] sm:$0x7] 0.0
  %59 = vst [vmem:[%s47 + $0x58] sm:$0x7] 0.0
  %60 = vst [vmem:[%s47 + $0x60] sm:$0x7] 0.0
  %61 = vst [vmem:[%s47 + $0x68] sm:$0x7] 0.0
  %62 = vst [vmem:[%s47 + $0x70] sm:$0x7] 0.0
  %63 = vst [vmem:[%s47 + $0x78] sm:$0x7] 0.0
  %64 = vst [vmem:[%s47 + $0x80] sm:$0x7] 0.0
  %65 = vst [vmem:[%s47 + $0x88] sm:$0x7] 0.0
  %66 = vst [vmem:[%s47 + $0x90] sm:$0xff] 0.0
  %67 = vst [vmem:[%s47 + $0x98] sm:$0xff] 0.0
  %68 = vst [vmem:[%s47 + $0xa0] sm:$0xff] 0.0
  %69 = vst [vmem:[%s47 + $0xa8] sm:$0xff] 0.0
  %70 = vst [vmem:[%s47 + $0xb0] sm:$0xff] 0.0
  %71 = vst [vmem:[%s47 + $0xb8] sm:$0xff] 0.0
  %72 = vst [vmem:[%s47 + $0xc0] sm:$0xff] 0.0
  %73 = vst [vmem:[%s47 + $0xc8] sm:$0xff] 0.0
  %74 = vst [vmem:[%s47 + $0xd0] sm:$0xff] 0.0
  %75 = vst [vmem:[%s47 + $0xd8] sm:$0x7] 0.0
  %76 = vst [vmem:[%s47 + $0xe0] sm:$0x7] 0.0
  %77 = vst [vmem:[%s47 + $0xe8] sm:$0x7] 0.0
  %78 = vst [vmem:[%s47 + $0xf0] sm:$0x7] 0.0
  %79 = vst [vmem:[%s47 + $0xf8] sm:$0x7] 0.0
  %80 = vst [vmem:[%s47 + $0x100] sm:$0x7] 0.0
  %81 = vst [vmem:[%s47 + $0x108] sm:$0x7] 0.0
  %82 = vst [vmem:[%s47 + $0x110] sm:$0x7] 0.0
  %83 = vst [vmem:[%s47 + $0x118] sm:$0x7] 0.0
  %s84 = scalar_lea.vmem [#allocation2], 288
  %85 = vst [vmem:[%s84] sm:$0x3] 0.0
  %86 = vst [vmem:[%s84 + $0x8] sm:$0x3] 0.0
  %87 = vst [vmem:[%s84 + $0x10] sm:$0x3] 0.0
  %88 = vst [vmem:[%s84 + $0x18] sm:$0x3] 0.0
  %89 = vst [vmem:[%s84 + $0x20] sm:$0x3] 0.0
  %90 = vst [vmem:[%s84 + $0x28] sm:$0x3] 0.0
  %91 = vst [vmem:[%s84 + $0x30] sm:$0x3] 0.0
  %92 = vst [vmem:[%s84 + $0x38] sm:$0x3] 0.0
  %93 = vst [vmem:[%s84 + $0x40] sm:$0x3] 0.0
  %94 = vst [vmem:[%s84 + $0x90] sm:$0x3] 0.0
  %95 = vst [vmem:[%s84 + $0x98] sm:$0x3] 0.0
  %96 = vst [vmem:[%s84 + $0xa0] sm:$0x3] 0.0
  %97 = vst [vmem:[%s84 + $0xa8] sm:$0x3] 0.0
  %98 = vst [vmem:[%s84 + $0xb0] sm:$0x3] 0.0
  %99 = vst [vmem:[%s84 + $0xb8] sm:$0x3] 0.0
  %100 = vst [vmem:[%s84 + $0xc0] sm:$0x3] 0.0
  %101 = vst [vmem:[%s84 + $0xc8] sm:$0x3] 0.0
  %102 = vst [vmem:[%s84 + $0xd0] sm:$0x3] 0.0
  %103 = vst [vmem:[%s84 + $0x120] sm:$0x3] 0.0
  %104 = vst [vmem:[%s84 + $0x128] sm:$0x3] 0.0
  %105 = vst [vmem:[%s84 + $0x130] sm:$0x3] 0.0
  %106 = vst [vmem:[%s84 + $0x138] sm:$0x3] 0.0
  %107 = vst [vmem:[%s84 + $0x140] sm:$0x3] 0.0
  %108 = vst [vmem:[%s84 + $0x148] sm:$0x3] 0.0
  %109 = vst [vmem:[%s84 + $0x150] sm:$0x3] 0.0
  %110 = vst [vmem:[%s84 + $0x158] sm:$0x3] 0.0
  %111 = vst [vmem:[%s84 + $0x160] sm:$0x3] 0.0
  %112 = vst [vmem:[%s84 + $0x1b0] sm:$0x3] 0.0
  %113 = vst [vmem:[%s84 + $0x1b8] sm:$0x3] 0.0
  %114 = vst [vmem:[%s84 + $0x1c0] sm:$0x3] 0.0
  %115 = vst [vmem:[%s84 + $0x1c8] sm:$0x3] 0.0
  %116 = vst [vmem:[%s84 + $0x1d0] sm:$0x3] 0.0
  %117 = vst [vmem:[%s84 + $0x1d8] sm:$0x3] 0.0
  %118 = vst [vmem:[%s84 + $0x1e0] sm:$0x3] 0.0
  %119 = vst [vmem:[%s84 + $0x1e8] sm:$0x3] 0.0
  %120 = vst [vmem:[%s84 + $0x1f0] sm:$0x3] 0.0
  %121 = vst [vmem:[%s84 + $0x240] sm:$0x3] 0.0
  %122 = vst [vmem:[%s84 + $0x248] sm:$0x3] 0.0
  %123 = vst [vmem:[%s84 + $0x250] sm:$0x3] 0.0
  %124 = vst [vmem:[%s84 + $0x258] sm:$0x3] 0.0
  %125 = vst [vmem:[%s84 + $0x260] sm:$0x3] 0.0
  %126 = vst [vmem:[%s84 + $0x268] sm:$0x3] 0.0
  %127 = vst [vmem:[%s84 + $0x270] sm:$0x3] 0.0
  %128 = vst [vmem:[%s84 + $0x278] sm:$0x3] 0.0
  %129 = vst [vmem:[%s84 + $0x280] sm:$0x3] 0.0
  %130 = vst [vmem:[%s84 + $0x2d0] sm:$0x3] 0.0
  %131 = vst [vmem:[%s84 + $0x2d8] sm:$0x3] 0.0
  %132 = vst [vmem:[%s84 + $0x2e0] sm:$0x3] 0.0
  %133 = vst [vmem:[%s84 + $0x2e8] sm:$0x3] 0.0
  %134 = vst [vmem:[%s84 + $0x2f0] sm:$0x3] 0.0
  %135 = vst [vmem:[%s84 + $0x2f8] sm:$0x3] 0.0
  %136 = vst [vmem:[%s84 + $0x300] sm:$0x3] 0.0
  %137 = vst [vmem:[%s84 + $0x308] sm:$0x3] 0.0
  %138 = vst [vmem:[%s84 + $0x310] sm:$0x3] 0.0
  %139 = vst [vmem:[%s84 + $0x360] sm:$0x3] 0.0
  %140 = vst [vmem:[%s84 + $0x368] sm:$0x3] 0.0
  %141 = vst [vmem:[%s84 + $0x370] sm:$0x3] 0.0
  %142 = vst [vmem:[%s84 + $0x378] sm:$0x3] 0.0
  %143 = vst [vmem:[%s84 + $0x380] sm:$0x3] 0.0
  %144 = vst [vmem:[%s84 + $0x388] sm:$0x3] 0.0
  %145 = vst [vmem:[%s84 + $0x390] sm:$0x3] 0.0
  %146 = vst [vmem:[%s84 + $0x398] sm:$0x3] 0.0
  %147 = vst [vmem:[%s84 + $0x3a0] sm:$0x3] 0.0
  %148 = vst [vmem:[%s84 + $0x48] sm:$0x6] 0.0
  %149 = vst [vmem:[%s84 + $0x50] sm:$0x6] 0.0
  %150 = vst [vmem:[%s84 + $0x58] sm:$0x6] 0.0
  %151 = vst [vmem:[%s84 + $0x60] sm:$0x6] 0.0
  %152 = vst [vmem:[%s84 + $0x68] sm:$0x6] 0.0
  %153 = vst [vmem:[%s84 + $0x70] sm:$0x6] 0.0
  %154 = vst [vmem:[%s84 + $0x78] sm:$0x6] 0.0
  %155 = vst [vmem:[%s84 + $0x80] sm:$0x6] 0.0
  %156 = vst [vmem:[%s84 + $0x88] sm:$0x6] 0.0
  %157 = vst [vmem:[%s84 + $0xd8] sm:$0x6] 0.0
  %158 = vst [vmem:[%s84 + $0xe0] sm:$0x6] 0.0
  %159 = vst [vmem:[%s84 + $0xe8] sm:$0x6] 0.0
  %160 = vst [vmem:[%s84 + $0xf0] sm:$0x6] 0.0
  %161 = vst [vmem:[%s84 + $0xf8] sm:$0x6] 0.0
  %162 = vst [vmem:[%s84 + $0x100] sm:$0x6] 0.0
  %163 = vst [vmem:[%s84 + $0x108] sm:$0x6] 0.0
  %164 = vst [vmem:[%s84 + $0x110] sm:$0x6] 0.0
  %165 = vst [vmem:[%s84 + $0x118] sm:$0x6] 0.0
  %166 = vst [vmem:[%s84 + $0x168] sm:$0x6] 0.0
  %167 = vst [vmem:[%s84 + $0x170] sm:$0x6] 0.0
  %168 = vst [vmem:[%s84 + $0x178] sm:$0x6] 0.0
  %169 = vst [vmem:[%s84 + $0x180] sm:$0x6] 0.0
  %170 = vst [vmem:[%s84 + $0x188] sm:$0x6] 0.0
  %171 = vst [vmem:[%s84 + $0x190] sm:$0x6] 0.0
  %172 = vst [vmem:[%s84 + $0x198] sm:$0x6] 0.0
  %173 = vst [vmem:[%s84 + $0x1a0] sm:$0x6] 0.0
  %174 = vst [vmem:[%s84 + $0x1a8] sm:$0x6] 0.0
  %175 = vst [vmem:[%s84 + $0x1f8] sm:$0x6] 0.0
  %176 = vst [vmem:[%s84 + $0x200] sm:$0x6] 0.0
  %177 = vst [vmem:[%s84 + $0x208] sm:$0x6] 0.0
  %178 = vst [vmem:[%s84 + $0x210] sm:$0x6] 0.0
  %179 = vst [vmem:[%s84 + $0x218] sm:$0x6] 0.0
  %180 = vst [vmem:[%s84 + $0x220] sm:$0x6] 0.0
  %181 = vst [vmem:[%s84 + $0x228] sm:$0x6] 0.0
  %182 = vst [vmem:[%s84 + $0x230] sm:$0x6] 0.0
  %183 = vst [vmem:[%s84 + $0x238] sm:$0x6] 0.0
  %184 = vst [vmem:[%s84 + $0x288] sm:$0x6] 0.0
  %185 = vst [vmem:[%s84 + $0x290] sm:$0x6] 0.0
  %186 = vst [vmem:[%s84 + $0x298] sm:$0x6] 0.0
  %187 = vst [vmem:[%s84 + $0x2a0] sm:$0x6] 0.0
  %188 = vst [vmem:[%s84 + $0x2a8] sm:$0x6] 0.0
  %189 = vst [vmem:[%s84 + $0x2b0] sm:$0x6] 0.0
  %190 = vst [vmem:[%s84 + $0x2b8] sm:$0x6] 0.0
  %191 = vst [vmem:[%s84 + $0x2c0] sm:$0x6] 0.0
  %192 = vst [vmem:[%s84 + $0x2c8] sm:$0x6] 0.0
  %193 = vst [vmem:[%s84 + $0x318] sm:$0x6] 0.0
  %194 = vst [vmem:[%s84 + $0x320] sm:$0x6] 0.0
  %195 = vst [vmem:[%s84 + $0x328] sm:$0x6] 0.0
  %196 = vst [vmem:[%s84 + $0x330] sm:$0x6] 0.0
  %197 = vst [vmem:[%s84 + $0x338] sm:$0x6] 0.0
  %198 = vst [vmem:[%s84 + $0x340] sm:$0x6] 0.0
  %199 = vst [vmem:[%s84 + $0x348] sm:$0x6] 0.0
  %200 = vst [vmem:[%s84 + $0x350] sm:$0x6] 0.0
  %201 = vst [vmem:[%s84 + $0x358] sm:$0x6] 0.0
  %202 = vst [vmem:[%s84 + $0x3a8] sm:$0x6] 0.0
  %203 = vst [vmem:[%s84 + $0x3b0] sm:$0x6] 0.0
  %204 = vst [vmem:[%s84 + $0x3b8] sm:$0x6] 0.0
  %205 = vst [vmem:[%s84 + $0x3c0] sm:$0x6] 0.0
  %206 = vst [vmem:[%s84 + $0x3c8] sm:$0x6] 0.0
  %207 = vst [vmem:[%s84 + $0x3d0] sm:$0x6] 0.0
  %208 = vst [vmem:[%s84 + $0x3d8] sm:$0x6] 0.0
  %209 = vst [vmem:[%s84 + $0x3e0] sm:$0x6] 0.0
  %210 = vst [vmem:[%s84 + $0x3e8] sm:$0x6] 0.0
  %v211 = vld [vmem:[%s0] sm:$0x7f]
  %v212 = vld [vmem:[%s0 + $0x8] sm:$0x7f]
  %v213 = vld [vmem:[%s0 + $0x10] sm:$0x7f]
  %v214 = vld [vmem:[%s0 + $0x18] sm:$0x7f]
  %v215 = vld [vmem:[%s0 + $0x20] sm:$0x7f]
  %v216 = vld [vmem:[%s0 + $0x28] sm:$0x7f]
  %v217 = vld [vmem:[%s0 + $0x30] sm:$0x7f]
  %v218 = vld [vmem:[%s0 + $0x38] sm:$0x7f]
  %v219 = vld [vmem:[%s0 + $0x40] sm:$0x7f]
  %v220 = vld [vmem:[%s0 + $0x48] sm:$0x7f]
  %v221 = vld [vmem:[%s0 + $0x50] sm:$0x7f]
  %v222 = vld [vmem:[%s0 + $0x58] sm:$0x7f]
  %v223 = vld [vmem:[%s0 + $0x60] sm:$0x7f]
  %v224 = vld [vmem:[%s0 + $0x68] sm:$0x7f]
  %v225 = vld [vmem:[%s0 + $0x70] sm:$0x7f]
  %v226 = vld [vmem:[%s0 + $0x78] sm:$0x7f]
  %v227 = vld [vmem:[%s0 + $0x80] sm:$0x7f]
  %v228 = vld [vmem:[%s0 + $0x88] sm:$0x7f]
  %v229 = vld [vmem:[%s0 + $0x90] sm:$0x7f]
  %v230 = vld [vmem:[%s0 + $0x98] sm:$0x7f]
  %v231 = vld [vmem:[%s0 + $0xa0] sm:$0x7f]
  %v232 = vld [vmem:[%s0 + $0xa8] sm:$0x7f]
  %v233 = vld [vmem:[%s0 + $0xb0] sm:$0x7f]
  %v234 = vld [vmem:[%s0 + $0xb8] sm:$0x7f]
  %v235 = vld [vmem:[%s0 + $0xc0] sm:$0x7f]
  %v236 = vld [vmem:[%s0 + $0xc8] sm:$0x7f]
  %v237 = vld [vmem:[%s0 + $0xd0] sm:$0x7f]
  %v238 = vld [vmem:[%s0 + $0xd8] sm:$0x7f]
  %v239 = vld [vmem:[%s0 + $0xe0] sm:$0x7f]
  %v240 = vld [vmem:[%s0 + $0xe8] sm:$0x7f]
  %v241 = vld [vmem:[%s0 + $0xf0] sm:$0x7f]
  %v242 = vld [vmem:[%s0 + $0xf8] sm:$0x7f]
  %v243 = vld [vmem:[%s0 + $0x100] sm:$0x7f]
  %v244 = vld [vmem:[%s0 + $0x108] sm:$0x7f]
  %v245 = vld [vmem:[%s0 + $0x110] sm:$0x7f]
  %v246 = vld [vmem:[%s0 + $0x118] sm:$0x7f]
  %v247 = vld [vmem:[%s0 + $0x120] sm:$0x7f]
  %v248 = vld [vmem:[%s0 + $0x128] sm:$0x7f]
  %v249 = vld [vmem:[%s0 + $0x130] sm:$0x7f]
  %v250 = vld [vmem:[%s0 + $0x138] sm:$0x7f]
  %v251 = vld [vmem:[%s0 + $0x140] sm:$0x7f]
  %v252 = vld [vmem:[%s0 + $0x148] sm:$0x7f]
  %v253 = vld [vmem:[%s0 + $0x150] sm:$0x7f]
  %v254 = vld [vmem:[%s0 + $0x158] sm:$0x7f]
  %v255 = vld [vmem:[%s0 + $0x160] sm:$0x7f]
  %v256 = vld [vmem:[%s0 + $0x168] sm:$0x7f]
  %v257 = vld [vmem:[%s0 + $0x170] sm:$0x7f]
  %v258 = vld [vmem:[%s0 + $0x178] sm:$0x7f]
  %v259 = vld [vmem:[%s0 + $0x180] sm:$0x7f]
  %v260 = vld [vmem:[%s0 + $0x188] sm:$0x7f]
  %v261 = vld [vmem:[%s0 + $0x190] sm:$0x7f]
  %v262 = vld [vmem:[%s0 + $0x198] sm:$0x7f]
  %v263 = vld [vmem:[%s0 + $0x1a0] sm:$0x7f]
  %v264 = vld [vmem:[%s0 + $0x1a8] sm:$0x7f]
  %v265 = vld [vmem:[%s0 + $0x1b0] sm:$0x7f]
  %v266 = vld [vmem:[%s0 + $0x1b8] sm:$0x7f]
  %v267 = vld [vmem:[%s0 + $0x1c0] sm:$0x7f]
  %v268 = vld [vmem:[%s0 + $0x1c8] sm:$0x7f]
  %v269 = vld [vmem:[%s0 + $0x1d0] sm:$0x7f]
  %v270 = vld [vmem:[%s0 + $0x1d8] sm:$0x7f]
  %v271 = vld [vmem:[%s0 + $0x1e0] sm:$0x7f]
  %v272 = vld [vmem:[%s0 + $0x1e8] sm:$0x7f]
  %v273 = vld [vmem:[%s0 + $0x1f0] sm:$0x7f]
  %v274 = vmax.f32 %v211, 0.0
  %v275 = vmax.f32 %v212, 0.0
  %v276 = vmax.f32 %v213, 0.0
  %v277 = vmax.f32 %v214, 0.0
  %v278 = vmax.f32 %v215, 0.0
  %v279 = vmax.f32 %v216, 0.0
  %v280 = vmax.f32 %v217, 0.0
  %v281 = vmax.f32 %v218, 0.0
  %v282 = vmax.f32 %v219, 0.0
  %v283 = vmax.f32 %v220, 0.0
  %v284 = vmax.f32 %v221, 0.0
  %v285 = vmax.f32 %v222, 0.0
  %v286 = vmax.f32 %v223, 0.0
  %v287 = vmax.f32 %v224, 0.0
  %v288 = vmax.f32 %v225, 0.0
  %v289 = vmax.f32 %v226, 0.0
  %v290 = vmax.f32 %v227, 0.0
  %v291 = vmax.f32 %v228, 0.0
  %v292 = vmax.f32 %v229, 0.0
  %v293 = vmax.f32 %v230, 0.0
  %v294 = vmax.f32 %v231, 0.0
  %v295 = vmax.f32 %v232, 0.0
  %v296 = vmax.f32 %v233, 0.0
  %v297 = vmax.f32 %v234, 0.0
  %v298 = vmax.f32 %v235, 0.0
  %v299 = vmax.f32 %v236, 0.0
  %v300 = vmax.f32 %v237, 0.0
  %v301 = vmax.f32 %v238, 0.0
  %v302 = vmax.f32 %v239, 0.0
  %v303 = vmax.f32 %v240, 0.0
  %v304 = vmax.f32 %v241, 0.0
  %v305 = vmax.f32 %v242, 0.0
  %v306 = vmax.f32 %v243, 0.0
  %v307 = vmax.f32 %v244, 0.0
  %v308 = vmax.f32 %v245, 0.0
  %v309 = vmax.f32 %v246, 0.0
  %v310 = vmax.f32 %v247, 0.0
  %v311 = vmax.f32 %v248, 0.0
  %v312 = vmax.f32 %v249, 0.0
  %v313 = vmax.f32 %v250, 0.0
  %v314 = vmax.f32 %v251, 0.0
  %v315 = vmax.f32 %v252, 0.0
  %v316 = vmax.f32 %v253, 0.0
  %v317 = vmax.f32 %v254, 0.0
  %v318 = vmax.f32 %v255, 0.0
  %v319 = vmax.f32 %v256, 0.0
  %v320 = vmax.f32 %v257, 0.0
  %v321 = vmax.f32 %v258, 0.0
  %v322 = vmax.f32 %v259, 0.0
  %v323 = vmax.f32 %v260, 0.0
  %v324 = vmax.f32 %v261, 0.0
  %v325 = vmax.f32 %v262, 0.0
  %v326 = vmax.f32 %v263, 0.0
  %v327 = vmax.f32 %v264, 0.0
  %v328 = vmax.f32 %v265, 0.0
  %v329 = vmax.f32 %v266, 0.0
  %v330 = vmax.f32 %v267, 0.0
  %v331 = vmax.f32 %v268, 0.0
  %v332 = vmax.f32 %v269, 0.0
  %v333 = vmax.f32 %v270, 0.0
  %v334 = vmax.f32 %v271, 0.0
  %v335 = vmax.f32 %v272, 0.0
  %v336 = vmax.f32 %v273, 0.0
  %v400 = vrot.slane %v274, 6
  %v401 = vrot.slane %v275, 6
  %v402 = vrot.slane %v276, 6
  %v403 = vrot.slane %v277, 6
  %v404 = vrot.slane %v278, 6
  %v405 = vrot.slane %v279, 6
  %v406 = vrot.slane %v280, 6
  %v407 = vrot.slane %v281, 6
  %v408 = vrot.slane %v282, 6
  %v409 = vrot.slane %v283, 6
  %v410 = vrot.slane %v284, 6
  %v411 = vrot.slane %v285, 6
  %v412 = vrot.slane %v286, 6
  %v413 = vrot.slane %v287, 6
  %v414 = vrot.slane %v288, 6
  %v415 = vrot.slane %v289, 6
  %v416 = vrot.slane %v290, 6
  %v417 = vrot.slane %v291, 6
  %v418 = vrot.slane %v292, 6
  %v419 = vrot.slane %v293, 6
  %v420 = vrot.slane %v294, 6
  %v421 = vrot.slane %v295, 6
  %v422 = vrot.slane %v296, 6
  %v423 = vrot.slane %v297, 6
  %v424 = vrot.slane %v298, 6
  %v425 = vrot.slane %v299, 6
  %v426 = vrot.slane %v300, 6
  %v427 = vrot.slane %v301, 6
  %v428 = vrot.slane %v302, 6
  %v429 = vrot.slane %v303, 6
  %v430 = vrot.slane %v304, 6
  %v431 = vrot.slane %v305, 6
  %v432 = vrot.slane %v306, 6
  %v433 = vrot.slane %v307, 6
  %v434 = vrot.slane %v308, 6
  %v435 = vrot.slane %v309, 6
  %v436 = vrot.slane %v310, 6
  %v437 = vrot.slane %v311, 6
  %v438 = vrot.slane %v312, 6
  %v439 = vrot.slane %v313, 6
  %v440 = vrot.slane %v314, 6
  %v441 = vrot.slane %v315, 6
  %v442 = vrot.slane %v316, 6
  %v443 = vrot.slane %v317, 6
  %v444 = vrot.slane %v318, 6
  %v445 = vrot.slane %v319, 6
  %v446 = vrot.slane %v320, 6
  %v447 = vrot.slane %v321, 6
  %v448 = vrot.slane %v322, 6
  %v449 = vrot.slane %v323, 6
  %v450 = vrot.slane %v324, 6
  %v451 = vrot.slane %v325, 6
  %v452 = vrot.slane %v326, 6
  %v453 = vrot.slane %v327, 6
  %v454 = vrot.slane %v328, 6
  %v455 = vrot.slane %v329, 6
  %v456 = vrot.slane %v330, 6
  %v457 = vrot.slane %v331, 6
  %v458 = vrot.slane %v332, 6
  %v459 = vrot.slane %v333, 6
  %v460 = vrot.slane %v334, 6
  %v461 = vrot.slane %v335, 6
  %v462 = vrot.slane %v336, 6
  %526 = vst [vmem:[%s84] sm:$0xfc] %v400
  %527 = vst [vmem:[%s84 + $0x8] sm:$0xfc] %v401
  %528 = vst [vmem:[%s84 + $0x10] sm:$0xfc] %v402
  %529 = vst [vmem:[%s84 + $0x18] sm:$0xfc] %v403
  %530 = vst [vmem:[%s84 + $0x20] sm:$0xfc] %v404
  %531 = vst [vmem:[%s84 + $0x28] sm:$0xfc] %v405
  %532 = vst [vmem:[%s84 + $0x30] sm:$0xfc] %v406
  %533 = vst [vmem:[%s84 + $0x38] sm:$0xfc] %v407
  %534 = vst [vmem:[%s84 + $0x40] sm:$0xfc] %v408
  %535 = vst [vmem:[%s84 + $0x48] sm:$0x1] %v400
  %536 = vst [vmem:[%s84 + $0x50] sm:$0x1] %v401
  %537 = vst [vmem:[%s84 + $0x58] sm:$0x1] %v402
  %538 = vst [vmem:[%s84 + $0x60] sm:$0x1] %v403
  %539 = vst [vmem:[%s84 + $0x68] sm:$0x1] %v404
  %540 = vst [vmem:[%s84 + $0x70] sm:$0x1] %v405
  %541 = vst [vmem:[%s84 + $0x78] sm:$0x1] %v406
  %542 = vst [vmem:[%s84 + $0x80] sm:$0x1] %v407
  %543 = vst [vmem:[%s84 + $0x88] sm:$0x1] %v408
  %544 = vst [vmem:[%s84 + $0x90] sm:$0xfc] %v409
  %545 = vst [vmem:[%s84 + $0x98] sm:$0xfc] %v410
  %546 = vst [vmem:[%s84 + $0xa0] sm:$0xfc] %v411
  %547 = vst [vmem:[%s84 + $0xa8] sm:$0xfc] %v412
  %548 = vst [vmem:[%s84 + $0xb0] sm:$0xfc] %v413
  %549 = vst [vmem:[%s84 + $0xb8] sm:$0xfc] %v414
  %550 = vst [vmem:[%s84 + $0xc0] sm:$0xfc] %v415
  %551 = vst [vmem:[%s84 + $0xc8] sm:$0xfc] %v416
  %552 = vst [vmem:[%s84 + $0xd0] sm:$0xfc] %v417
  %553 = vst [vmem:[%s84 + $0xd8] sm:$0x1] %v409
  %554 = vst [vmem:[%s84 + $0xe0] sm:$0x1] %v410
  %555 = vst [vmem:[%s84 + $0xe8] sm:$0x1] %v411
  %556 = vst [vmem:[%s84 + $0xf0] sm:$0x1] %v412
  %557 = vst [vmem:[%s84 + $0xf8] sm:$0x1] %v413
  %558 = vst [vmem:[%s84 + $0x100] sm:$0x1] %v414
  %559 = vst [vmem:[%s84 + $0x108] sm:$0x1] %v415
  %560 = vst [vmem:[%s84 + $0x110] sm:$0x1] %v416
  %561 = vst [vmem:[%s84 + $0x118] sm:$0x1] %v417
  %562 = vst [vmem:[%s84 + $0x120] sm:$0xfc] %v418
  %563 = vst [vmem:[%s84 + $0x128] sm:$0xfc] %v419
  %564 = vst [vmem:[%s84 + $0x130] sm:$0xfc] %v420
  %565 = vst [vmem:[%s84 + $0x138] sm:$0xfc] %v421
  %566 = vst [vmem:[%s84 + $0x140] sm:$0xfc] %v422
  %567 = vst [vmem:[%s84 + $0x148] sm:$0xfc] %v423
  %568 = vst [vmem:[%s84 + $0x150] sm:$0xfc] %v424
  %569 = vst [vmem:[%s84 + $0x158] sm:$0xfc] %v425
  %570 = vst [vmem:[%s84 + $0x160] sm:$0xfc] %v426
  %571 = vst [vmem:[%s84 + $0x168] sm:$0x1] %v418
  %572 = vst [vmem:[%s84 + $0x170] sm:$0x1] %v419
  %573 = vst [vmem:[%s84 + $0x178] sm:$0x1] %v420
  %574 = vst [vmem:[%s84 + $0x180] sm:$0x1] %v421
  %575 = vst [vmem:[%s84 + $0x188] sm:$0x1] %v422
  %576 = vst [vmem:[%s84 + $0x190] sm:$0x1] %v423
  %577 = vst [vmem:[%s84 + $0x198] sm:$0x1] %v424
  %578 = vst [vmem:[%s84 + $0x1a0] sm:$0x1] %v425
  %579 = vst [vmem:[%s84 + $0x1a8] sm:$0x1] %v426
  %580 = vst [vmem:[%s84 + $0x1b0] sm:$0xfc] %v427
  %581 = vst [vmem:[%s84 + $0x1b8] sm:$0xfc] %v428
  %582 = vst [vmem:[%s84 + $0x1c0] sm:$0xfc] %v429
  %583 = vst [vmem:[%s84 + $0x1c8] sm:$0xfc] %v430
  %584 = vst [vmem:[%s84 + $0x1d0] sm:$0xfc] %v431
  %585 = vst [vmem:[%s84 + $0x1d8] sm:$0xfc] %v432
  %586 = vst [vmem:[%s84 + $0x1e0] sm:$0xfc] %v433
  %587 = vst [vmem:[%s84 + $0x1e8] sm:$0xfc] %v434
  %588 = vst [vmem:[%s84 + $0x1f0] sm:$0xfc] %v435
  %589 = vst [vmem:[%s84 + $0x1f8] sm:$0x1] %v427
  %590 = vst [vmem:[%s84 + $0x200] sm:$0x1] %v428
  %591 = vst [vmem:[%s84 + $0x208] sm:$0x1] %v429
  %592 = vst [vmem:[%s84 + $0x210] sm:$0x1] %v430
  %593 = vst [vmem:[%s84 + $0x218] sm:$0x1] %v431
  %594 = vst [vmem:[%s84 + $0x220] sm:$0x1] %v432
  %595 = vst [vmem:[%s84 + $0x228] sm:$0x1] %v433
  %596 = vst [vmem:[%s84 + $0x230] sm:$0x1] %v434
  %597 = vst [vmem:[%s84 + $0x238] sm:$0x1] %v435
  %598 = vst [vmem:[%s84 + $0x240] sm:$0xfc] %v436
  %599 = vst [vmem:[%s84 + $0x248] sm:$0xfc] %v437
  %600 = vst [vmem:[%s84 + $0x250] sm:$0xfc] %v438
  %601 = vst [vmem:[%s84 + $0x258] sm:$0xfc] %v439
  %602 = vst [vmem:[%s84 + $0x260] sm:$0xfc] %v440
  %603 = vst [vmem:[%s84 + $0x268] sm:$0xfc] %v441
  %604 = vst [vmem:[%s84 + $0x270] sm:$0xfc] %v442
  %605 = vst [vmem:[%s84 + $0x278] sm:$0xfc] %v443
  %606 = vst [vmem:[%s84 + $0x280] sm:$0xfc] %v444
  %607 = vst [vmem:[%s84 + $0x288] sm:$0x1] %v436
  %608 = vst [vmem:[%s84 + $0x290] sm:$0x1] %v437
  %609 = vst [vmem:[%s84 + $0x298] sm:$0x1] %v438
  %610 = vst [vmem:[%s84 + $0x2a0] sm:$0x1] %v439
  %611 = vst [vmem:[%s84 + $0x2a8] sm:$0x1] %v440
  %612 = vst [vmem:[%s84 + $0x2b0] sm:$0x1] %v441
  %613 = vst [vmem:[%s84 + $0x2b8] sm:$0x1] %v442
  %614 = vst [vmem:[%s84 + $0x2c0] sm:$0x1] %v443
  %615 = vst [vmem:[%s84 + $0x2c8] sm:$0x1] %v444
  %616 = vst [vmem:[%s84 + $0x2d0] sm:$0xfc] %v445
  %617 = vst [vmem:[%s84 + $0x2d8] sm:$0xfc] %v446
  %618 = vst [vmem:[%s84 + $0x2e0] sm:$0xfc] %v447
  %619 = vst [vmem:[%s84 + $0x2e8] sm:$0xfc] %v448
  %620 = vst [vmem:[%s84 + $0x2f0] sm:$0xfc] %v449
  %621 = vst [vmem:[%s84 + $0x2f8] sm:$0xfc] %v450
  %622 = vst [vmem:[%s84 + $0x300] sm:$0xfc] %v451
  %623 = vst [vmem:[%s84 + $0x308] sm:$0xfc] %v452
  %624 = vst [vmem:[%s84 + $0x310] sm:$0xfc] %v453
  %625 = vst [vmem:[%s84 + $0x318] sm:$0x1] %v445
  %626 = vst [vmem:[%s84 + $0x320] sm:$0x1] %v446
  %627 = vst [vmem:[%s84 + $0x328] sm:$0x1] %v447
  %628 = vst [vmem:[%s84 + $0x330] sm:$0x1] %v448
  %629 = vst [vmem:[%s84 + $0x338] sm:$0x1] %v449
  %630 = vst [vmem:[%s84 + $0x340] sm:$0x1] %v450
  %631 = vst [vmem:[%s84 + $0x348] sm:$0x1] %v451
  %632 = vst [vmem:[%s84 + $0x350] sm:$0x1] %v452
  %633 = vst [vmem:[%s84 + $0x358] sm:$0x1] %v453
  %634 = vst [vmem:[%s84 + $0x360] sm:$0xfc] %v454
  %635 = vst [vmem:[%s84 + $0x368] sm:$0xfc] %v455
  %636 = vst [vmem:[%s84 + $0x370] sm:$0xfc] %v456
  %637 = vst [vmem:[%s84 + $0x378] sm:$0xfc] %v457
  %638 = vst [vmem:[%s84 + $0x380] sm:$0xfc] %v458
  %639 = vst [vmem:[%s84 + $0x388] sm:$0xfc] %v459
  %640 = vst [vmem:[%s84 + $0x390] sm:$0xfc] %v460
  %641 = vst [vmem:[%s84 + $0x398] sm:$0xfc] %v461
  %642 = vst [vmem:[%s84 + $0x3a0] sm:$0xfc] %v462
  %643 = vst [vmem:[%s84 + $0x3a8] sm:$0x1] %v454
  %644 = vst [vmem:[%s84 + $0x3b0] sm:$0x1] %v455
  %645 = vst [vmem:[%s84 + $0x3b8] sm:$0x1] %v456
  %646 = vst [vmem:[%s84 + $0x3c0] sm:$0x1] %v457
  %647 = vst [vmem:[%s84 + $0x3c8] sm:$0x1] %v458
  %648 = vst [vmem:[%s84 + $0x3d0] sm:$0x1] %v459
  %649 = vst [vmem:[%s84 + $0x3d8] sm:$0x1] %v460
  %650 = vst [vmem:[%s84 + $0x3e0] sm:$0x1] %v461
  %651 = vst [vmem:[%s84 + $0x3e8] sm:$0x1] %v462
  %v652 = vld [vmem:[%s1] sm:$0x1f]
  %v653 = vld [vmem:[%s1 + $0x8] sm:$0x1f]
  %v654 = vld [vmem:[%s1 + $0x10] sm:$0x1f]
  %v655 = vld [vmem:[%s1 + $0x18] sm:$0x1f]
  %v656 = vld [vmem:[%s1 + $0x20] sm:$0x1f]
  %v657 = vld [vmem:[%s1 + $0x28] sm:$0x1f]
  %v658 = vld [vmem:[%s1 + $0x30] sm:$0x1f]
  %v659 = vld [vmem:[%s1 + $0x38] sm:$0x1f]
  %v660 = vld [vmem:[%s1 + $0x40] sm:$0x1f]
  %v661 = vld [vmem:[%s1 + $0x48] sm:$0x1f]
  %v662 = vld [vmem:[%s1 + $0x50] sm:$0x1f]
  %v663 = vld [vmem:[%s1 + $0x58] sm:$0x1f]
  %v664 = vld [vmem:[%s1 + $0x60] sm:$0x1f]
  %v665 = vld [vmem:[%s1 + $0x68] sm:$0x1f]
  %v666 = vld [vmem:[%s1 + $0x70] sm:$0x1f]
  %v667 = vld [vmem:[%s1 + $0x78] sm:$0x1f]
  %v668 = vld [vmem:[%s1 + $0x80] sm:$0x1f]
  %v669 = vld [vmem:[%s1 + $0x88] sm:$0x1f]
  %v670 = vld [vmem:[%s1 + $0x90] sm:$0x1f]
  %v671 = vld [vmem:[%s1 + $0x98] sm:$0x1f]
  %v672 = vld [vmem:[%s1 + $0xa0] sm:$0x1f]
  %v673 = vld [vmem:[%s1 + $0xa8] sm:$0x1f]
  %v674 = vld [vmem:[%s1 + $0xb0] sm:$0x1f]
  %v675 = vld [vmem:[%s1 + $0xb8] sm:$0x1f]
  %v676 = vld [vmem:[%s1 + $0xc0] sm:$0x1f]
  %v677 = vld [vmem:[%s1 + $0xc8] sm:$0x1f]
  %v678 = vld [vmem:[%s1 + $0xd0] sm:$0x1f]
  %v679 = vld [vmem:[%s1 + $0xd8] sm:$0x1f]
  %v680 = vld [vmem:[%s1 + $0xe0] sm:$0x1f]
  %v681 = vld [vmem:[%s1 + $0xe8] sm:$0x1f]
  %v682 = vld [vmem:[%s1 + $0xf0] sm:$0x1f]
  %v683 = vld [vmem:[%s1 + $0xf8] sm:$0x1f]
  %v684 = vld [vmem:[%s1 + $0x100] sm:$0x1f]
  %v685 = vld [vmem:[%s1 + $0x108] sm:$0x1f]
  %v686 = vld [vmem:[%s1 + $0x110] sm:$0x1f]
  %v687 = vld [vmem:[%s1 + $0x118] sm:$0x1f]
  %v688 = vld [vmem:[%s1 + $0x120] sm:$0x1f]
  %v689 = vld [vmem:[%s1 + $0x128] sm:$0x1f]
  %v690 = vld [vmem:[%s1 + $0x130] sm:$0x1f]
  %v691 = vld [vmem:[%s1 + $0x138] sm:$0x1f]
  %v692 = vld [vmem:[%s1 + $0x140] sm:$0x1f]
  %v693 = vld [vmem:[%s1 + $0x148] sm:$0x1f]
  %v694 = vld [vmem:[%s1 + $0x150] sm:$0x1f]
  %v695 = vld [vmem:[%s1 + $0x158] sm:$0x1f]
  %v696 = vld [vmem:[%s1 + $0x160] sm:$0x1f]
  %v697 = vld [vmem:[#allocation2] sm:$0xff]
  %v698 = vld [vmem:[#allocation2 + $0x48] sm:$0x7]
  %v699 = vld [vmem:[#allocation2 + $0x90] sm:$0xff]
  %v700 = vld [vmem:[#allocation2 + $0xd8] sm:$0x7]
  %v701 = vld [vmem:[#allocation2 + $0x120] sm:$0xff]
  %v702 = vld [vmem:[#allocation2 + $0x168] sm:$0x7]
  %v703 = vld [vmem:[#allocation2 + $0x1b0] sm:$0xff]
  %v704 = vld [vmem:[#allocation2 + $0x1f8] sm:$0x7]
  %v705 = vld [vmem:[#allocation2 + $0x240] sm:$0xff]
  %v706 = vld [vmem:[#allocation2 + $0x288] sm:$0x7]
  %v707 = vld [vmem:[#allocation2 + $0x2d0] sm:$0xff]
  %v708 = vld [vmem:[#allocation2 + $0x318] sm:$0x7]
  %v709 = vld [vmem:[#allocation2 + $0x360] sm:$0xff]
  %v710 = vld [vmem:[#allocation2 + $0x3a8] sm:$0x7]
  %v711 = vld [vmem:[#allocation2 + $0x3f0] sm:$0xff]
  %v712 = vld [vmem:[#allocation2 + $0x438] sm:$0x7]
  %v713 = vld [vmem:[#allocation2 + $0x480] sm:$0xff]
  %v714 = vld [vmem:[#allocation2 + $0x4c8] sm:$0x7]
  %v715 = vld [vmem:[#allocation2 + $0x510] sm:$0xff]
  %v716 = vld [vmem:[#allocation2 + $0x558] sm:$0x7]
  %v717 = vld [vmem:[#allocation2 + $0x5a0] sm:$0xff]
  %v718 = vld [vmem:[#allocation2 + $0x5e8] sm:$0x7]
  %v719 = vlaneseq
  %v720 = vshrl.u32 %v719, 7
  %v721 = vsub.s32 0, %v720
  %v722 = vrot.slane %v652, %v721
  %v723 = vmul.f32 %v697, %v722
  %v724 = vmul.f32 %v699, %v722
  %v725 = vmul.f32 %v701, %v722
  %v726 = vmul.f32 %v703, %v722
  %v727 = vmul.f32 %v705, %v722
  %v728 = vmul.f32 %v707, %v722
  %v729 = vmul.f32 %v709, %v722
  %v730 = vlaneseq
  %v731 = vshrl.u32 %v730, 7
  %v732 = vsub.s32 1, %v731
  %v733 = vrot.slane %v652, %v732
  %v734 = vmul.f32 %v697, %v733
  %v735 = vmul.f32 %v699, %v733
  %v736 = vmul.f32 %v701, %v733
  %v737 = vmul.f32 %v703, %v733
  %v738 = vmul.f32 %v705, %v733
  %v739 = vmul.f32 %v707, %v733
  %v740 = vmul.f32 %v709, %v733
  %v748 = vrot.slane %v734, 1
  %v749 = vrot.slane %v735, 1
  %v750 = vrot.slane %v736, 1
  %v751 = vrot.slane %v737, 1
  %v752 = vrot.slane %v738, 1
  %v753 = vrot.slane %v739, 1
  %v754 = vrot.slane %v740, 1
  %v762 = vadd.f32 %v723, %v748
  %v763 = vadd.f32 %v724, %v749
  %v764 = vadd.f32 %v725, %v750
  %v765 = vadd.f32 %v726, %v751
  %v766 = vadd.f32 %v727, %v752
  %v767 = vadd.f32 %v728, %v753
  %v768 = vadd.f32 %v729, %v754
  %v769 = vlaneseq
  %v770 = vshrl.u32 %v769, 7
  %v771 = vsub.s32 2, %v770
  %v772 = vrot.slane %v652, %v771
  %v773 = vmul.f32 %v697, %v772
  %v774 = vmul.f32 %v698, %v772
  %v775 = vmul.f32 %v699, %v772
  %v776 = vmul.f32 %v700, %v772
  %v777 = vmul.f32 %v701, %v772
  %v778 = vmul.f32 %v702, %v772
  %v779 = vmul.f32 %v703, %v772
  %v780 = vmul.f32 %v704, %v772
  %v781 = vmul.f32 %v705, %v772
  %v782 = vmul.f32 %v706, %v772
  %v783 = vmul.f32 %v707, %v772
  %v784 = vmul.f32 %v708, %v772
  %v785 = vmul.f32 %v709, %v772
  %v786 = vmul.f32 %v710, %v772
  %vm801 = vcmask 1045504
  %v802 = vrot.slane %v773, 2
  %v803 = vrot.slane %v774, 2
  %v804 = vsel %vm801, %v802, %v803
  %v805 = vrot.slane %v775, 2
  %v806 = vrot.slane %v776, 2
  %v807 = vsel %vm801, %v805, %v806
  %v808 = vrot.slane %v777, 2
  %v809 = vrot.slane %v778, 2
  %v810 = vsel %vm801, %v808, %v809
  %v811 = vrot.slane %v779, 2
  %v812 = vrot.slane %v780, 2
  %v813 = vsel %vm801, %v811, %v812
  %v814 = vrot.slane %v781, 2
  %v815 = vrot.slane %v782, 2
  %v816 = vsel %vm801, %v814, %v815
  %v817 = vrot.slane %v783, 2
  %v818 = vrot.slane %v784, 2
  %v819 = vsel %vm801, %v817, %v818
  %v820 = vrot.slane %v785, 2
  %v821 = vrot.slane %v786, 2
  %v822 = vsel %vm801, %v820, %v821
  %v830 = vadd.f32 %v762, %v804
  %v831 = vadd.f32 %v763, %v807
  %v832 = vadd.f32 %v764, %v810
  %v833 = vadd.f32 %v765, %v813
  %v834 = vadd.f32 %v766, %v816
  %v835 = vadd.f32 %v767, %v819
  %v836 = vadd.f32 %v768, %v822
  %v837 = vlaneseq
  %v838 = vshrl.u32 %v837, 7
  %v839 = vsub.s32 3, %v838
  %v840 = vrot.slane %v652, %v839
  %v841 = vmul.f32 %v697, %v840
  %v842 = vmul.f32 %v698, %v840
  %v843 = vmul.f32 %v699, %v840
  %v844 = vmul.f32 %v700, %v840
  %v845 = vmul.f32 %v701, %v840
  %v846 = vmul.f32 %v702, %v840
  %v847 = vmul.f32 %v703, %v840
  %v848 = vmul.f32 %v704, %v840
  %v849 = vmul.f32 %v705, %v840
  %v850 = vmul.f32 %v706, %v840
  %v851 = vmul.f32 %v707, %v840
  %v852 = vmul.f32 %v708, %v840
  %v853 = vmul.f32 %v709, %v840
  %v854 = vmul.f32 %v710, %v840
  %vm869 = vcmask 1044480
  %v870 = vrot.slane %v841, 3
  %v871 = vrot.slane %v842, 3
  %v872 = vsel %vm869, %v870, %v871
  %v873 = vrot.slane %v843, 3
  %v874 = vrot.slane %v844, 3
  %v875 = vsel %vm869, %v873, %v874
  %v876 = vrot.slane %v845, 3
  %v877 = vrot.slane %v846, 3
  %v878 = vsel %vm869, %v876, %v877
  %v879 = vrot.slane %v847, 3
  %v880 = vrot.slane %v848, 3
  %v881 = vsel %vm869, %v879, %v880
  %v882 = vrot.slane %v849, 3
  %v883 = vrot.slane %v850, 3
  %v884 = vsel %vm869, %v882, %v883
  %v885 = vrot.slane %v851, 3
  %v886 = vrot.slane %v852, 3
  %v887 = vsel %vm869, %v885, %v886
  %v888 = vrot.slane %v853, 3
  %v889 = vrot.slane %v854, 3
  %v890 = vsel %vm869, %v888, %v889
  %v898 = vadd.f32 %v830, %v872
  %v899 = vadd.f32 %v831, %v875
  %v900 = vadd.f32 %v832, %v878
  %v901 = vadd.f32 %v833, %v881
  %v902 = vadd.f32 %v834, %v884
  %v903 = vadd.f32 %v835, %v887
  %v904 = vadd.f32 %v836, %v890
  %v905 = vlaneseq
  %v906 = vshrl.u32 %v905, 7
  %v907 = vsub.s32 4, %v906
  %v908 = vrot.slane %v652, %v907
  %v909 = vmul.f32 %v697, %v908
  %v910 = vmul.f32 %v698, %v908
  %v911 = vmul.f32 %v699, %v908
  %v912 = vmul.f32 %v700, %v908
  %v913 = vmul.f32 %v701, %v908
  %v914 = vmul.f32 %v702, %v908
  %v915 = vmul.f32 %v703, %v908
  %v916 = vmul.f32 %v704, %v908
  %v917 = vmul.f32 %v705, %v908
  %v918 = vmul.f32 %v706, %v908
  %v919 = vmul.f32 %v707, %v908
  %v920 = vmul.f32 %v708, %v908
  %v921 = vmul.f32 %v709, %v908
  %v922 = vmul.f32 %v710, %v908
  %vm937 = vcmask 1043456
  %v938 = vrot.slane %v909, 4
  %v939 = vrot.slane %v910, 4
  %v940 = vsel %vm937, %v938, %v939
  %v941 = vrot.slane %v911, 4
  %v942 = vrot.slane %v912, 4
  %v943 = vsel %vm937, %v941, %v942
  %v944 = vrot.slane %v913, 4
  %v945 = vrot.slane %v914, 4
  %v946 = vsel %vm937, %v944, %v945
  %v947 = vrot.slane %v915, 4
  %v948 = vrot.slane %v916, 4
  %v949 = vsel %vm937, %v947, %v948
  %v950 = vrot.slane %v917, 4
  %v951 = vrot.slane %v918, 4
  %v952 = vsel %vm937, %v950, %v951
  %v953 = vrot.slane %v919, 4
  %v954 = vrot.slane %v920, 4
  %v955 = vsel %vm937, %v953, %v954
  %v956 = vrot.slane %v921, 4
  %v957 = vrot.slane %v922, 4
  %v958 = vsel %vm937, %v956, %v957
  %v966 = vadd.f32 %v898, %v940
  %v967 = vadd.f32 %v899, %v943
  %v968 = vadd.f32 %v900, %v946
  %v969 = vadd.f32 %v901, %v949
  %v970 = vadd.f32 %v902, %v952
  %v971 = vadd.f32 %v903, %v955
  %v972 = vadd.f32 %v904, %v958
  %v973 = vlaneseq
  %v974 = vshrl.u32 %v973, 7
  %v975 = vsub.s32 0, %v974
  %v976 = vrot.slane %v661, %v975
  %v977 = vmul.f32 %v699, %v976
  %v978 = vmul.f32 %v701, %v976
  %v979 = vmul.f32 %v703, %v976
  %v980 = vmul.f32 %v705, %v976
  %v981 = vmul.f32 %v707, %v976
  %v982 = vmul.f32 %v709, %v976
  %v983 = vmul.f32 %v711, %v976
  %v984 = vadd.f32 %v966, %v977
  %v985 = vadd.f32 %v967, %v978
  %v986 = vadd.f32 %v968, %v979
  %v987 = vadd.f32 %v969, %v980
  %v988 = vadd.f32 %v970, %v981
  %v989 = vadd.f32 %v971, %v982
  %v990 = vadd.f32 %v972, %v983
  %v991 = vlaneseq
  %v992 = vshrl.u32 %v991, 7
  %v993 = vsub.s32 1, %v992
  %v994 = vrot.slane %v661, %v993
  %v995 = vmul.f32 %v699, %v994
  %v996 = vmul.f32 %v701, %v994
  %v997 = vmul.f32 %v703, %v994
  %v998 = vmul.f32 %v705, %v994
  %v999 = vmul.f32 %v707, %v994
  %v1000 = vmul.f32 %v709, %v994
  %v1001 = vmul.f32 %v711, %v994
  %v1009 = vrot.slane %v995, 1
  %v1010 = vrot.slane %v996, 1
  %v1011 = vrot.slane %v997, 1
  %v1012 = vrot.slane %v998, 1
  %v1013 = vrot.slane %v999, 1
  %v1014 = vrot.slane %v1000, 1
  %v1015 = vrot.slane %v1001, 1
  %v1023 = vadd.f32 %v984, %v1009
  %v1024 = vadd.f32 %v985, %v1010
  %v1025 = vadd.f32 %v986, %v1011
  %v1026 = vadd.f32 %v987, %v1012
  %v1027 = vadd.f32 %v988, %v1013
  %v1028 = vadd.f32 %v989, %v1014
  %v1029 = vadd.f32 %v990, %v1015
  %v1030 = vlaneseq
  %v1031 = vshrl.u32 %v1030, 7
  %v1032 = vsub.s32 2, %v1031
  %v1033 = vrot.slane %v661, %v1032
  %v1034 = vmul.f32 %v699, %v1033
  %v1035 = vmul.f32 %v700, %v1033
  %v1036 = vmul.f32 %v701, %v1033
  %v1037 = vmul.f32 %v702, %v1033
  %v1038 = vmul.f32 %v703, %v1033
  %v1039 = vmul.f32 %v704, %v1033
  %v1040 = vmul.f32 %v705, %v1033
  %v1041 = vmul.f32 %v706, %v1033
  %v1042 = vmul.f32 %v707, %v1033
  %v1043 = vmul.f32 %v708, %v1033
  %v1044 = vmul.f32 %v709, %v1033
  %v1045 = vmul.f32 %v710, %v1033
  %v1046 = vmul.f32 %v711, %v1033
  %v1047 = vmul.f32 %v712, %v1033
  %v1062 = vrot.slane %v1034, 2
  %v1063 = vrot.slane %v1035, 2
  %v1064 = vsel %vm801, %v1062, %v1063
  %v1065 = vrot.slane %v1036, 2
  %v1066 = vrot.slane %v1037, 2
  %v1067 = vsel %vm801, %v1065, %v1066
  %v1068 = vrot.slane %v1038, 2
  %v1069 = vrot.slane %v1039, 2
  %v1070 = vsel %vm801, %v1068, %v1069
  %v1071 = vrot.slane %v1040, 2
  %v1072 = vrot.slane %v1041, 2
  %v1073 = vsel %vm801, %v1071, %v1072
  %v1074 = vrot.slane %v1042, 2
  %v1075 = vrot.slane %v1043, 2
  %v1076 = vsel %vm801, %v1074, %v1075
  %v1077 = vrot.slane %v1044, 2
  %v1078 = vrot.slane %v1045, 2
  %v1079 = vsel %vm801, %v1077, %v1078
  %v1080 = vrot.slane %v1046, 2
  %v1081 = vrot.slane %v1047, 2
  %v1082 = vsel %vm801, %v1080, %v1081
  %v1090 = vadd.f32 %v1023, %v1064
  %v1091 = vadd.f32 %v1024, %v1067
  %v1092 = vadd.f32 %v1025, %v1070
  %v1093 = vadd.f32 %v1026, %v1073
  %v1094 = vadd.f32 %v1027, %v1076
  %v1095 = vadd.f32 %v1028, %v1079
  %v1096 = vadd.f32 %v1029, %v1082
  %v1097 = vlaneseq
  %v1098 = vshrl.u32 %v1097, 7
  %v1099 = vsub.s32 3, %v1098
  %v1100 = vrot.slane %v661, %v1099
  %v1101 = vmul.f32 %v699, %v1100
  %v1102 = vmul.f32 %v700, %v1100
  %v1103 = vmul.f32 %v701, %v1100
  %v1104 = vmul.f32 %v702, %v1100
  %v1105 = vmul.f32 %v703, %v1100
  %v1106 = vmul.f32 %v704, %v1100
  %v1107 = vmul.f32 %v705, %v1100
  %v1108 = vmul.f32 %v706, %v1100
  %v1109 = vmul.f32 %v707, %v1100
  %v1110 = vmul.f32 %v708, %v1100
  %v1111 = vmul.f32 %v709, %v1100
  %v1112 = vmul.f32 %v710, %v1100
  %v1113 = vmul.f32 %v711, %v1100
  %v1114 = vmul.f32 %v712, %v1100
  %v1129 = vrot.slane %v1101, 3
  %v1130 = vrot.slane %v1102, 3
  %v1131 = vsel %vm869, %v1129, %v1130
  %v1132 = vrot.slane %v1103, 3
  %v1133 = vrot.slane %v1104, 3
  %v1134 = vsel %vm869, %v1132, %v1133
  %v1135 = vrot.slane %v1105, 3
  %v1136 = vrot.slane %v1106, 3
  %v1137 = vsel %vm869, %v1135, %v1136
  %v1138 = vrot.slane %v1107, 3
  %v1139 = vrot.slane %v1108, 3
  %v1140 = vsel %vm869, %v1138, %v1139
  %v1141 = vrot.slane %v1109, 3
  %v1142 = vrot.slane %v1110, 3
  %v1143 = vsel %vm869, %v1141, %v1142
  %v1144 = vrot.slane %v1111, 3
  %v1145 = vrot.slane %v1112, 3
  %v1146 = vsel %vm869, %v1144, %v1145
  %v1147 = vrot.slane %v1113, 3
  %v1148 = vrot.slane %v1114, 3
  %v1149 = vsel %vm869, %v1147, %v1148
  %v1157 = vadd.f32 %v1090, %v1131
  %v1158 = vadd.f32 %v1091, %v1134
  %v1159 = vadd.f32 %v1092, %v1137
  %v1160 = vadd.f32 %v1093, %v1140
  %v1161 = vadd.f32 %v1094, %v1143
  %v1162 = vadd.f32 %v1095, %v1146
  %v1163 = vadd.f32 %v1096, %v1149
  %v1164 = vlaneseq
  %v1165 = vshrl.u32 %v1164, 7
  %v1166 = vsub.s32 4, %v1165
  %v1167 = vrot.slane %v661, %v1166
  %v1168 = vmul.f32 %v699, %v1167
  %v1169 = vmul.f32 %v700, %v1167
  %v1170 = vmul.f32 %v701, %v1167
  %v1171 = vmul.f32 %v702, %v1167
  %v1172 = vmul.f32 %v703, %v1167
  %v1173 = vmul.f32 %v704, %v1167
  %v1174 = vmul.f32 %v705, %v1167
  %v1175 = vmul.f32 %v706, %v1167
  %v1176 = vmul.f32 %v707, %v1167
  %v1177 = vmul.f32 %v708, %v1167
  %v1178 = vmul.f32 %v709, %v1167
  %v1179 = vmul.f32 %v710, %v1167
  %v1180 = vmul.f32 %v711, %v1167
  %v1181 = vmul.f32 %v712, %v1167
  %v1196 = vrot.slane %v1168, 4
  %v1197 = vrot.slane %v1169, 4
  %v1198 = vsel %vm937, %v1196, %v1197
  %v1199 = vrot.slane %v1170, 4
  %v1200 = vrot.slane %v1171, 4
  %v1201 = vsel %vm937, %v1199, %v1200
  %v1202 = vrot.slane %v1172, 4
  %v1203 = vrot.slane %v1173, 4
  %v1204 = vsel %vm937, %v1202, %v1203
  %v1205 = vrot.slane %v1174, 4
  %v1206 = vrot.slane %v1175, 4
  %v1207 = vsel %vm937, %v1205, %v1206
  %v1208 = vrot.slane %v1176, 4
  %v1209 = vrot.slane %v1177, 4
  %v1210 = vsel %vm937, %v1208, %v1209
  %v1211 = vrot.slane %v1178, 4
  %v1212 = vrot.slane %v1179, 4
  %v1213 = vsel %vm937, %v1211, %v1212
  %v1214 = vrot.slane %v1180, 4
  %v1215 = vrot.slane %v1181, 4
  %v1216 = vsel %vm937, %v1214, %v1215
  %v1224 = vadd.f32 %v1157, %v1198
  %v1225 = vadd.f32 %v1158, %v1201
  %v1226 = vadd.f32 %v1159, %v1204
  %v1227 = vadd.f32 %v1160, %v1207
  %v1228 = vadd.f32 %v1161, %v1210
  %v1229 = vadd.f32 %v1162, %v1213
  %v1230 = vadd.f32 %v1163, %v1216
  %v1231 = vlaneseq
  %v1232 = vshrl.u32 %v1231, 7
  %v1233 = vsub.s32 0, %v1232
  %v1234 = vrot.slane %v670, %v1233
  %v1235 = vmul.f32 %v701, %v1234
  %v1236 = vmul.f32 %v703, %v1234
  %v1237 = vmul.f32 %v705, %v1234
  %v1238 = vmul.f32 %v707, %v1234
  %v1239 = vmul.f32 %v709, %v1234
  %v1240 = vmul.f32 %v711, %v1234
  %v1241 = vmul.f32 %v713, %v1234
  %v1242 = vadd.f32 %v1224, %v1235
  %v1243 = vadd.f32 %v1225, %v1236
  %v1244 = vadd.f32 %v1226, %v1237
  %v1245 = vadd.f32 %v1227, %v1238
  %v1246 = vadd.f32 %v1228, %v1239
  %v1247 = vadd.f32 %v1229, %v1240
  %v1248 = vadd.f32 %v1230, %v1241
  %v1249 = vlaneseq
  %v1250 = vshrl.u32 %v1249, 7
  %v1251 = vsub.s32 1, %v1250
  %v1252 = vrot.slane %v670, %v1251
  %v1253 = vmul.f32 %v701, %v1252
  %v1254 = vmul.f32 %v703, %v1252
  %v1255 = vmul.f32 %v705, %v1252
  %v1256 = vmul.f32 %v707, %v1252
  %v1257 = vmul.f32 %v709, %v1252
  %v1258 = vmul.f32 %v711, %v1252
  %v1259 = vmul.f32 %v713, %v1252
  %v1267 = vrot.slane %v1253, 1
  %v1268 = vrot.slane %v1254, 1
  %v1269 = vrot.slane %v1255, 1
  %v1270 = vrot.slane %v1256, 1
  %v1271 = vrot.slane %v1257, 1
  %v1272 = vrot.slane %v1258, 1
  %v1273 = vrot.slane %v1259, 1
  %v1281 = vadd.f32 %v1242, %v1267
  %v1282 = vadd.f32 %v1243, %v1268
  %v1283 = vadd.f32 %v1244, %v1269
  %v1284 = vadd.f32 %v1245, %v1270
  %v1285 = vadd.f32 %v1246, %v1271
  %v1286 = vadd.f32 %v1247, %v1272
  %v1287 = vadd.f32 %v1248, %v1273
  %v1288 = vlaneseq
  %v1289 = vshrl.u32 %v1288, 7
  %v1290 = vsub.s32 2, %v1289
  %v1291 = vrot.slane %v670, %v1290
  %v1292 = vmul.f32 %v701, %v1291
  %v1293 = vmul.f32 %v702, %v1291
  %v1294 = vmul.f32 %v703, %v1291
  %v1295 = vmul.f32 %v704, %v1291
  %v1296 = vmul.f32 %v705, %v1291
  %v1297 = vmul.f32 %v706, %v1291
  %v1298 = vmul.f32 %v707, %v1291
  %v1299 = vmul.f32 %v708, %v1291
  %v1300 = vmul.f32 %v709, %v1291
  %v1301 = vmul.f32 %v710, %v1291
  %v1302 = vmul.f32 %v711, %v1291
  %v1303 = vmul.f32 %v712, %v1291
  %v1304 = vmul.f32 %v713, %v1291
  %v1305 = vmul.f32 %v714, %v1291
  %v1320 = vrot.slane %v1292, 2
  %v1321 = vrot.slane %v1293, 2
  %v1322 = vsel %vm801, %v1320, %v1321
  %v1323 = vrot.slane %v1294, 2
  %v1324 = vrot.slane %v1295, 2
  %v1325 = vsel %vm801, %v1323, %v1324
  %v1326 = vrot.slane %v1296, 2
  %v1327 = vrot.slane %v1297, 2
  %v1328 = vsel %vm801, %v1326, %v1327
  %v1329 = vrot.slane %v1298, 2
  %v1330 = vrot.slane %v1299, 2
  %v1331 = vsel %vm801, %v1329, %v1330
  %v1332 = vrot.slane %v1300, 2
  %v1333 = vrot.slane %v1301, 2
  %v1334 = vsel %vm801, %v1332, %v1333
  %v1335 = vrot.slane %v1302, 2
  %v1336 = vrot.slane %v1303, 2
  %v1337 = vsel %vm801, %v1335, %v1336
  %v1338 = vrot.slane %v1304, 2
  %v1339 = vrot.slane %v1305, 2
  %v1340 = vsel %vm801, %v1338, %v1339
  %v1348 = vadd.f32 %v1281, %v1322
  %v1349 = vadd.f32 %v1282, %v1325
  %v1350 = vadd.f32 %v1283, %v1328
  %v1351 = vadd.f32 %v1284, %v1331
  %v1352 = vadd.f32 %v1285, %v1334
  %v1353 = vadd.f32 %v1286, %v1337
  %v1354 = vadd.f32 %v1287, %v1340
  %v1355 = vlaneseq
  %v1356 = vshrl.u32 %v1355, 7
  %v1357 = vsub.s32 3, %v1356
  %v1358 = vrot.slane %v670, %v1357
  %v1359 = vmul.f32 %v701, %v1358
  %v1360 = vmul.f32 %v702, %v1358
  %v1361 = vmul.f32 %v703, %v1358
  %v1362 = vmul.f32 %v704, %v1358
  %v1363 = vmul.f32 %v705, %v1358
  %v1364 = vmul.f32 %v706, %v1358
  %v1365 = vmul.f32 %v707, %v1358
  %v1366 = vmul.f32 %v708, %v1358
  %v1367 = vmul.f32 %v709, %v1358
  %v1368 = vmul.f32 %v710, %v1358
  %v1369 = vmul.f32 %v711, %v1358
  %v1370 = vmul.f32 %v712, %v1358
  %v1371 = vmul.f32 %v713, %v1358
  %v1372 = vmul.f32 %v714, %v1358
  %v1387 = vrot.slane %v1359, 3
  %v1388 = vrot.slane %v1360, 3
  %v1389 = vsel %vm869, %v1387, %v1388
  %v1390 = vrot.slane %v1361, 3
  %v1391 = vrot.slane %v1362, 3
  %v1392 = vsel %vm869, %v1390, %v1391
  %v1393 = vrot.slane %v1363, 3
  %v1394 = vrot.slane %v1364, 3
  %v1395 = vsel %vm869, %v1393, %v1394
  %v1396 = vrot.slane %v1365, 3
  %v1397 = vrot.slane %v1366, 3
  %v1398 = vsel %vm869, %v1396, %v1397
  %v1399 = vrot.slane %v1367, 3
  %v1400 = vrot.slane %v1368, 3
  %v1401 = vsel %vm869, %v1399, %v1400
  %v1402 = vrot.slane %v1369, 3
  %v1403 = vrot.slane %v1370, 3
  %v1404 = vsel %vm869, %v1402, %v1403
  %v1405 = vrot.slane %v1371, 3
  %v1406 = vrot.slane %v1372, 3
  %v1407 = vsel %vm869, %v1405, %v1406
  %v1415 = vadd.f32 %v1348, %v1389
  %v1416 = vadd.f32 %v1349, %v1392
  %v1417 = vadd.f32 %v1350, %v1395
  %v1418 = vadd.f32 %v1351, %v1398
  %v1419 = vadd.f32 %v1352, %v1401
  %v1420 = vadd.f32 %v1353, %v1404
  %v1421 = vadd.f32 %v1354, %v1407
  %v1422 = vlaneseq
  %v1423 = vshrl.u32 %v1422, 7
  %v1424 = vsub.s32 4, %v1423
  %v1425 = vrot.slane %v670, %v1424
  %v1426 = vmul.f32 %v701, %v1425
  %v1427 = vmul.f32 %v702, %v1425
  %v1428 = vmul.f32 %v703, %v1425
  %v1429 = vmul.f32 %v704, %v1425
  %v1430 = vmul.f32 %v705, %v1425
  %v1431 = vmul.f32 %v706, %v1425
  %v1432 = vmul.f32 %v707, %v1425
  %v1433 = vmul.f32 %v708, %v1425
  %v1434 = vmul.f32 %v709, %v1425
  %v1435 = vmul.f32 %v710, %v1425
  %v1436 = vmul.f32 %v711, %v1425
  %v1437 = vmul.f32 %v712, %v1425
  %v1438 = vmul.f32 %v713, %v1425
  %v1439 = vmul.f32 %v714, %v1425
  %v1454 = vrot.slane %v1426, 4
  %v1455 = vrot.slane %v1427, 4
  %v1456 = vsel %vm937, %v1454, %v1455
  %v1457 = vrot.slane %v1428, 4
  %v1458 = vrot.slane %v1429, 4
  %v1459 = vsel %vm937, %v1457, %v1458
  %v1460 = vrot.slane %v1430, 4
  %v1461 = vrot.slane %v1431, 4
  %v1462 = vsel %vm937, %v1460, %v1461
  %v1463 = vrot.slane %v1432, 4
  %v1464 = vrot.slane %v1433, 4
  %v1465 = vsel %vm937, %v1463, %v1464
  %v1466 = vrot.slane %v1434, 4
  %v1467 = vrot.slane %v1435, 4
  %v1468 = vsel %vm937, %v1466, %v1467
  %v1469 = vrot.slane %v1436, 4
  %v1470 = vrot.slane %v1437, 4
  %v1471 = vsel %vm937, %v1469, %v1470
  %v1472 = vrot.slane %v1438, 4
  %v1473 = vrot.slane %v1439, 4
  %v1474 = vsel %vm937, %v1472, %v1473
  %v1482 = vadd.f32 %v1415, %v1456
  %v1483 = vadd.f32 %v1416, %v1459
  %v1484 = vadd.f32 %v1417, %v1462
  %v1485 = vadd.f32 %v1418, %v1465
  %v1486 = vadd.f32 %v1419, %v1468
  %v1487 = vadd.f32 %v1420, %v1471
  %v1488 = vadd.f32 %v1421, %v1474
  %v1489 = vlaneseq
  %v1490 = vshrl.u32 %v1489, 7
  %v1491 = vsub.s32 0, %v1490
  %v1492 = vrot.slane %v679, %v1491
  %v1493 = vmul.f32 %v703, %v1492
  %v1494 = vmul.f32 %v705, %v1492
  %v1495 = vmul.f32 %v707, %v1492
  %v1496 = vmul.f32 %v709, %v1492
  %v1497 = vmul.f32 %v711, %v1492
  %v1498 = vmul.f32 %v713, %v1492
  %v1499 = vmul.f32 %v715, %v1492
  %v1500 = vadd.f32 %v1482, %v1493
  %v1501 = vadd.f32 %v1483, %v1494
  %v1502 = vadd.f32 %v1484, %v1495
  %v1503 = vadd.f32 %v1485, %v1496
  %v1504 = vadd.f32 %v1486, %v1497
  %v1505 = vadd.f32 %v1487, %v1498
  %v1506 = vadd.f32 %v1488, %v1499
  %v1507 = vlaneseq
  %v1508 = vshrl.u32 %v1507, 7
  %v1509 = vsub.s32 1, %v1508
  %v1510 = vrot.slane %v679, %v1509
  %v1511 = vmul.f32 %v703, %v1510
  %v1512 = vmul.f32 %v705, %v1510
  %v1513 = vmul.f32 %v707, %v1510
  %v1514 = vmul.f32 %v709, %v1510
  %v1515 = vmul.f32 %v711, %v1510
  %v1516 = vmul.f32 %v713, %v1510
  %v1517 = vmul.f32 %v715, %v1510
  %v1525 = vrot.slane %v1511, 1
  %v1526 = vrot.slane %v1512, 1
  %v1527 = vrot.slane %v1513, 1
  %v1528 = vrot.slane %v1514, 1
  %v1529 = vrot.slane %v1515, 1
  %v1530 = vrot.slane %v1516, 1
  %v1531 = vrot.slane %v1517, 1
  %v1539 = vadd.f32 %v1500, %v1525
  %v1540 = vadd.f32 %v1501, %v1526
  %v1541 = vadd.f32 %v1502, %v1527
  %v1542 = vadd.f32 %v1503, %v1528
  %v1543 = vadd.f32 %v1504, %v1529
  %v1544 = vadd.f32 %v1505, %v1530
  %v1545 = vadd.f32 %v1506, %v1531
  %v1546 = vlaneseq
  %v1547 = vshrl.u32 %v1546, 7
  %v1548 = vsub.s32 2, %v1547
  %v1549 = vrot.slane %v679, %v1548
  %v1550 = vmul.f32 %v703, %v1549
  %v1551 = vmul.f32 %v704, %v1549
  %v1552 = vmul.f32 %v705, %v1549
  %v1553 = vmul.f32 %v706, %v1549
  %v1554 = vmul.f32 %v707, %v1549
  %v1555 = vmul.f32 %v708, %v1549
  %v1556 = vmul.f32 %v709, %v1549
  %v1557 = vmul.f32 %v710, %v1549
  %v1558 = vmul.f32 %v711, %v1549
  %v1559 = vmul.f32 %v712, %v1549
  %v1560 = vmul.f32 %v713, %v1549
  %v1561 = vmul.f32 %v714, %v1549
  %v1562 = vmul.f32 %v715, %v1549
  %v1563 = vmul.f32 %v716, %v1549
  %v1578 = vrot.slane %v1550, 2
  %v1579 = vrot.slane %v1551, 2
  %v1580 = vsel %vm801, %v1578, %v1579
  %v1581 = vrot.slane %v1552, 2
  %v1582 = vrot.slane %v1553, 2
  %v1583 = vsel %vm801, %v1581, %v1582
  %v1584 = vrot.slane %v1554, 2
  %v1585 = vrot.slane %v1555, 2
  %v1586 = vsel %vm801, %v1584, %v1585
  %v1587 = vrot.slane %v1556, 2
  %v1588 = vrot.slane %v1557, 2
  %v1589 = vsel %vm801, %v1587, %v1588
  %v1590 = vrot.slane %v1558, 2
  %v1591 = vrot.slane %v1559, 2
  %v1592 = vsel %vm801, %v1590, %v1591
  %v1593 = vrot.slane %v1560, 2
  %v1594 = vrot.slane %v1561, 2
  %v1595 = vsel %vm801, %v1593, %v1594
  %v1596 = vrot.slane %v1562, 2
  %v1597 = vrot.slane %v1563, 2
  %v1598 = vsel %vm801, %v1596, %v1597
  %v1606 = vadd.f32 %v1539, %v1580
  %v1607 = vadd.f32 %v1540, %v1583
  %v1608 = vadd.f32 %v1541, %v1586
  %v1609 = vadd.f32 %v1542, %v1589
  %v1610 = vadd.f32 %v1543, %v1592
  %v1611 = vadd.f32 %v1544, %v1595
  %v1612 = vadd.f32 %v1545, %v1598
  %v1613 = vlaneseq
  %v1614 = vshrl.u32 %v1613, 7
  %v1615 = vsub.s32 3, %v1614
  %v1616 = vrot.slane %v679, %v1615
  %v1617 = vmul.f32 %v703, %v1616
  %v1618 = vmul.f32 %v704, %v1616
  %v1619 = vmul.f32 %v705, %v1616
  %v1620 = vmul.f32 %v706, %v1616
  %v1621 = vmul.f32 %v707, %v1616
  %v1622 = vmul.f32 %v708, %v1616
  %v1623 = vmul.f32 %v709, %v1616
  %v1624 = vmul.f32 %v710, %v1616
  %v1625 = vmul.f32 %v711, %v1616
  %v1626 = vmul.f32 %v712, %v1616
  %v1627 = vmul.f32 %v713, %v1616
  %v1628 = vmul.f32 %v714, %v1616
  %v1629 = vmul.f32 %v715, %v1616
  %v1630 = vmul.f32 %v716, %v1616
  %v1645 = vrot.slane %v1617, 3
  %v1646 = vrot.slane %v1618, 3
  %v1647 = vsel %vm869, %v1645, %v1646
  %v1648 = vrot.slane %v1619, 3
  %v1649 = vrot.slane %v1620, 3
  %v1650 = vsel %vm869, %v1648, %v1649
  %v1651 = vrot.slane %v1621, 3
  %v1652 = vrot.slane %v1622, 3
  %v1653 = vsel %vm869, %v1651, %v1652
  %v1654 = vrot.slane %v1623, 3
  %v1655 = vrot.slane %v1624, 3
  %v1656 = vsel %vm869, %v1654, %v1655
  %v1657 = vrot.slane %v1625, 3
  %v1658 = vrot.slane %v1626, 3
  %v1659 = vsel %vm869, %v1657, %v1658
  %v1660 = vrot.slane %v1627, 3
  %v1661 = vrot.slane %v1628, 3
  %v1662 = vsel %vm869, %v1660, %v1661
  %v1663 = vrot.slane %v1629, 3
  %v1664 = vrot.slane %v1630, 3
  %v1665 = vsel %vm869, %v1663, %v1664
  %v1673 = vadd.f32 %v1606, %v1647
  %v1674 = vadd.f32 %v1607, %v1650
  %v1675 = vadd.f32 %v1608, %v1653
  %v1676 = vadd.f32 %v1609, %v1656
  %v1677 = vadd.f32 %v1610, %v1659
  %v1678 = vadd.f32 %v1611, %v1662
  %v1679 = vadd.f32 %v1612, %v1665
  %v1680 = vlaneseq
  %v1681 = vshrl.u32 %v1680, 7
  %v1682 = vsub.s32 4, %v1681
  %v1683 = vrot.slane %v679, %v1682
  %v1684 = vmul.f32 %v703, %v1683
  %v1685 = vmul.f32 %v704, %v1683
  %v1686 = vmul.f32 %v705, %v1683
  %v1687 = vmul.f32 %v706, %v1683
  %v1688 = vmul.f32 %v707, %v1683
  %v1689 = vmul.f32 %v708, %v1683
  %v1690 = vmul.f32 %v709, %v1683
  %v1691 = vmul.f32 %v710, %v1683
  %v1692 = vmul.f32 %v711, %v1683
  %v1693 = vmul.f32 %v712, %v1683
  %v1694 = vmul.f32 %v713, %v1683
  %v1695 = vmul.f32 %v714, %v1683
  %v1696 = vmul.f32 %v715, %v1683
  %v1697 = vmul.f32 %v716, %v1683
  %v1712 = vrot.slane %v1684, 4
  %v1713 = vrot.slane %v1685, 4
  %v1714 = vsel %vm937, %v1712, %v1713
  %v1715 = vrot.slane %v1686, 4
  %v1716 = vrot.slane %v1687, 4
  %v1717 = vsel %vm937, %v1715, %v1716
  %v1718 = vrot.slane %v1688, 4
  %v1719 = vrot.slane %v1689, 4
  %v1720 = vsel %vm937, %v1718, %v1719
  %v1721 = vrot.slane %v1690, 4
  %v1722 = vrot.slane %v1691, 4
  %v1723 = vsel %vm937, %v1721, %v1722
  %v1724 = vrot.slane %v1692, 4
  %v1725 = vrot.slane %v1693, 4
  %v1726 = vsel %vm937, %v1724, %v1725
  %v1727 = vrot.slane %v1694, 4
  %v1728 = vrot.slane %v1695, 4
  %v1729 = vsel %vm937, %v1727, %v1728
  %v1730 = vrot.slane %v1696, 4
  %v1731 = vrot.slane %v1697, 4
  %v1732 = vsel %vm937, %v1730, %v1731
  %v1740 = vadd.f32 %v1673, %v1714
  %v1741 = vadd.f32 %v1674, %v1717
  %v1742 = vadd.f32 %v1675, %v1720
  %v1743 = vadd.f32 %v1676, %v1723
  %v1744 = vadd.f32 %v1677, %v1726
  %v1745 = vadd.f32 %v1678, %v1729
  %v1746 = vadd.f32 %v1679, %v1732
  %v1747 = vlaneseq
  %v1748 = vshrl.u32 %v1747, 7
  %v1749 = vsub.s32 0, %v1748
  %v1750 = vrot.slane %v688, %v1749
  %v1751 = vmul.f32 %v705, %v1750
  %v1752 = vmul.f32 %v707, %v1750
  %v1753 = vmul.f32 %v709, %v1750
  %v1754 = vmul.f32 %v711, %v1750
  %v1755 = vmul.f32 %v713, %v1750
  %v1756 = vmul.f32 %v715, %v1750
  %v1757 = vmul.f32 %v717, %v1750
  %v1758 = vadd.f32 %v1740, %v1751
  %v1759 = vadd.f32 %v1741, %v1752
  %v1760 = vadd.f32 %v1742, %v1753
  %v1761 = vadd.f32 %v1743, %v1754
  %v1762 = vadd.f32 %v1744, %v1755
  %v1763 = vadd.f32 %v1745, %v1756
  %v1764 = vadd.f32 %v1746, %v1757
  %v1765 = vlaneseq
  %v1766 = vshrl.u32 %v1765, 7
  %v1767 = vsub.s32 1, %v1766
  %v1768 = vrot.slane %v688, %v1767
  %v1769 = vmul.f32 %v705, %v1768
  %v1770 = vmul.f32 %v707, %v1768
  %v1771 = vmul.f32 %v709, %v1768
  %v1772 = vmul.f32 %v711, %v1768
  %v1773 = vmul.f32 %v713, %v1768
  %v1774 = vmul.f32 %v715, %v1768
  %v1775 = vmul.f32 %v717, %v1768
  %v1783 = vrot.slane %v1769, 1
  %v1784 = vrot.slane %v1770, 1
  %v1785 = vrot.slane %v1771, 1
  %v1786 = vrot.slane %v1772, 1
  %v1787 = vrot.slane %v1773, 1
  %v1788 = vrot.slane %v1774, 1
  %v1789 = vrot.slane %v1775, 1
  %v1797 = vadd.f32 %v1758, %v1783
  %v1798 = vadd.f32 %v1759, %v1784
  %v1799 = vadd.f32 %v1760, %v1785
  %v1800 = vadd.f32 %v1761, %v1786
  %v1801 = vadd.f32 %v1762, %v1787
  %v1802 = vadd.f32 %v1763, %v1788
  %v1803 = vadd.f32 %v1764, %v1789
  %v1804 = vlaneseq
  %v1805 = vshrl.u32 %v1804, 7
  %v1806 = vsub.s32 2, %v1805
  %v1807 = vrot.slane %v688, %v1806
  %v1808 = vmul.f32 %v705, %v1807
  %v1809 = vmul.f32 %v706, %v1807
  %v1810 = vmul.f32 %v707, %v1807
  %v1811 = vmul.f32 %v708, %v1807
  %v1812 = vmul.f32 %v709, %v1807
  %v1813 = vmul.f32 %v710, %v1807
  %v1814 = vmul.f32 %v711, %v1807
  %v1815 = vmul.f32 %v712, %v1807
  %v1816 = vmul.f32 %v713, %v1807
  %v1817 = vmul.f32 %v714, %v1807
  %v1818 = vmul.f32 %v715, %v1807
  %v1819 = vmul.f32 %v716, %v1807
  %v1820 = vmul.f32 %v717, %v1807
  %v1821 = vmul.f32 %v718, %v1807
  %v1836 = vrot.slane %v1808, 2
  %v1837 = vrot.slane %v1809, 2
  %v1838 = vsel %vm801, %v1836, %v1837
  %v1839 = vrot.slane %v1810, 2
  %v1840 = vrot.slane %v1811, 2
  %v1841 = vsel %vm801, %v1839, %v1840
  %v1842 = vrot.slane %v1812, 2
  %v1843 = vrot.slane %v1813, 2
  %v1844 = vsel %vm801, %v1842, %v1843
  %v1845 = vrot.slane %v1814, 2
  %v1846 = vrot.slane %v1815, 2
  %v1847 = vsel %vm801, %v1845, %v1846
  %v1848 = vrot.slane %v1816, 2
  %v1849 = vrot.slane %v1817, 2
  %v1850 = vsel %vm801, %v1848, %v1849
  %v1851 = vrot.slane %v1818, 2
  %v1852 = vrot.slane %v1819, 2
  %v1853 = vsel %vm801, %v1851, %v1852
  %v1854 = vrot.slane %v1820, 2
  %v1855 = vrot.slane %v1821, 2
  %v1856 = vsel %vm801, %v1854, %v1855
  %v1864 = vadd.f32 %v1797, %v1838
  %v1865 = vadd.f32 %v1798, %v1841
  %v1866 = vadd.f32 %v1799, %v1844
  %v1867 = vadd.f32 %v1800, %v1847
  %v1868 = vadd.f32 %v1801, %v1850
  %v1869 = vadd.f32 %v1802, %v1853
  %v1870 = vadd.f32 %v1803, %v1856
  %v1871 = vlaneseq
  %v1872 = vshrl.u32 %v1871, 7
  %v1873 = vsub.s32 3, %v1872
  %v1874 = vrot.slane %v688, %v1873
  %v1875 = vmul.f32 %v705, %v1874
  %v1876 = vmul.f32 %v706, %v1874
  %v1877 = vmul.f32 %v707, %v1874
  %v1878 = vmul.f32 %v708, %v1874
  %v1879 = vmul.f32 %v709, %v1874
  %v1880 = vmul.f32 %v710, %v1874
  %v1881 = vmul.f32 %v711, %v1874
  %v1882 = vmul.f32 %v712, %v1874
  %v1883 = vmul.f32 %v713, %v1874
  %v1884 = vmul.f32 %v714, %v1874
  %v1885 = vmul.f32 %v715, %v1874
  %v1886 = vmul.f32 %v716, %v1874
  %v1887 = vmul.f32 %v717, %v1874
  %v1888 = vmul.f32 %v718, %v1874
  %v1903 = vrot.slane %v1875, 3
  %v1904 = vrot.slane %v1876, 3
  %v1905 = vsel %vm869, %v1903, %v1904
  %v1906 = vrot.slane %v1877, 3
  %v1907 = vrot.slane %v1878, 3
  %v1908 = vsel %vm869, %v1906, %v1907
  %v1909 = vrot.slane %v1879, 3
  %v1910 = vrot.slane %v1880, 3
  %v1911 = vsel %vm869, %v1909, %v1910
  %v1912 = vrot.slane %v1881, 3
  %v1913 = vrot.slane %v1882, 3
  %v1914 = vsel %vm869, %v1912, %v1913
  %v1915 = vrot.slane %v1883, 3
  %v1916 = vrot.slane %v1884, 3
  %v1917 = vsel %vm869, %v1915, %v1916
  %v1918 = vrot.slane %v1885, 3
  %v1919 = vrot.slane %v1886, 3
  %v1920 = vsel %vm869, %v1918, %v1919
  %v1921 = vrot.slane %v1887, 3
  %v1922 = vrot.slane %v1888, 3
  %v1923 = vsel %vm869, %v1921, %v1922
  %v1931 = vadd.f32 %v1864, %v1905
  %v1932 = vadd.f32 %v1865, %v1908
  %v1933 = vadd.f32 %v1866, %v1911
  %v1934 = vadd.f32 %v1867, %v1914
  %v1935 = vadd.f32 %v1868, %v1917
  %v1936 = vadd.f32 %v1869, %v1920
  %v1937 = vadd.f32 %v1870, %v1923
  %v1938 = vlaneseq
  %v1939 = vshrl.u32 %v1938, 7
  %v1940 = vsub.s32 4, %v1939
  %v1941 = vrot.slane %v688, %v1940
  %v1942 = vmul.f32 %v705, %v1941
  %v1943 = vmul.f32 %v706, %v1941
  %v1944 = vmul.f32 %v707, %v1941
  %v1945 = vmul.f32 %v708, %v1941
  %v1946 = vmul.f32 %v709, %v1941
  %v1947 = vmul.f32 %v710, %v1941
  %v1948 = vmul.f32 %v711, %v1941
  %v1949 = vmul.f32 %v712, %v1941
  %v1950 = vmul.f32 %v713, %v1941
  %v1951 = vmul.f32 %v714, %v1941
  %v1952 = vmul.f32 %v715, %v1941
  %v1953 = vmul.f32 %v716, %v1941
  %v1954 = vmul.f32 %v717, %v1941
  %v1955 = vmul.f32 %v718, %v1941
  %v1970 = vrot.slane %v1942, 4
  %v1971 = vrot.slane %v1943, 4
  %v1972 = vsel %vm937, %v1970, %v1971
  %v1973 = vrot.slane %v1944, 4
  %v1974 = vrot.slane %v1945, 4
  %v1975 = vsel %vm937, %v1973, %v1974
  %v1976 = vrot.slane %v1946, 4
  %v1977 = vrot.slane %v1947, 4
  %v1978 = vsel %vm937, %v1976, %v1977
  %v1979 = vrot.slane %v1948, 4
  %v1980 = vrot.slane %v1949, 4
  %v1981 = vsel %vm937, %v1979, %v1980
  %v1982 = vrot.slane %v1950, 4
  %v1983 = vrot.slane %v1951, 4
  %v1984 = vsel %vm937, %v1982, %v1983
  %v1985 = vrot.slane %v1952, 4
  %v1986 = vrot.slane %v1953, 4
  %v1987 = vsel %vm937, %v1985, %v1986
  %v1988 = vrot.slane %v1954, 4
  %v1989 = vrot.slane %v1955, 4
  %v1990 = vsel %vm937, %v1988, %v1989
  %v1998 = vadd.f32 %v1931, %v1972
  %v1999 = vadd.f32 %v1932, %v1975
  %v2000 = vadd.f32 %v1933, %v1978
  %v2001 = vadd.f32 %v1934, %v1981
  %v2002 = vadd.f32 %v1935, %v1984
  %v2003 = vadd.f32 %v1936, %v1987
  %v2004 = vadd.f32 %v1937, %v1990
  %2005 = vst [vmem:[%s2] sm:$0x7f] %v1998
  %2006 = vst [vmem:[%s2 + $0x48] sm:$0x7f] %v1999
  %2007 = vst [vmem:[%s2 + $0x90] sm:$0x7f] %v2000
  %2008 = vst [vmem:[%s2 + $0xd8] sm:$0x7f] %v2001
  %2009 = vst [vmem:[%s2 + $0x120] sm:$0x7f] %v2002
  %2010 = vst [vmem:[%s2 + $0x168] sm:$0x7f] %v2003
  %2011 = vst [vmem:[%s2 + $0x1b0] sm:$0x7f] %v2004
  %v2012 = vld [vmem:[#allocation2 + $0x8] sm:$0xff]
  %v2013 = vld [vmem:[#allocation2 + $0x50] sm:$0x7]
  %v2014 = vld [vmem:[#allocation2 + $0x98] sm:$0xff]
  %v2015 = vld [vmem:[#allocation2 + $0xe0] sm:$0x7]
  %v2016 = vld [vmem:[#allocation2 + $0x128] sm:$0xff]
  %v2017 = vld [vmem:[#allocation2 + $0x170] sm:$0x7]
  %v2018 = vld [vmem:[#allocation2 + $0x1b8] sm:$0xff]
  %v2019 = vld [vmem:[#allocation2 + $0x200] sm:$0x7]
  %v2020 = vld [vmem:[#allocation2 + $0x248] sm:$0xff]
  %v2021 = vld [vmem:[#allocation2 + $0x290] sm:$0x7]
  %v2022 = vld [vmem:[#allocation2 + $0x2d8] sm:$0xff]
  %v2023 = vld [vmem:[#allocation2 + $0x320] sm:$0x7]
  %v2024 = vld [vmem:[#allocation2 + $0x368] sm:$0xff]
  %v2025 = vld [vmem:[#allocation2 + $0x3b0] sm:$0x7]
  %v2026 = vld [vmem:[#allocation2 + $0x3f8] sm:$0xff]
  %v2027 = vld [vmem:[#allocation2 + $0x440] sm:$0x7]
  %v2028 = vld [vmem:[#allocation2 + $0x488] sm:$0xff]
  %v2029 = vld [vmem:[#allocation2 + $0x4d0] sm:$0x7]
  %v2030 = vld [vmem:[#allocation2 + $0x518] sm:$0xff]
  %v2031 = vld [vmem:[#allocation2 + $0x560] sm:$0x7]
  %v2032 = vld [vmem:[#allocation2 + $0x5a8] sm:$0xff]
  %v2033 = vld [vmem:[#allocation2 + $0x5f0] sm:$0x7]
  %v2034 = vlaneseq
  %v2035 = vshrl.u32 %v2034, 7
  %v2036 = vsub.s32 0, %v2035
  %v2037 = vrot.slane %v653, %v2036
  %v2038 = vmul.f32 %v2012, %v2037
  %v2039 = vmul.f32 %v2014, %v2037
  %v2040 = vmul.f32 %v2016, %v2037
  %v2041 = vmul.f32 %v2018, %v2037
  %v2042 = vmul.f32 %v2020, %v2037
  %v2043 = vmul.f32 %v2022, %v2037
  %v2044 = vmul.f32 %v2024, %v2037
  %v2045 = vlaneseq
  %v2046 = vshrl.u32 %v2045, 7
  %v2047 = vsub.s32 1, %v2046
  %v2048 = vrot.slane %v653, %v2047
  %v2049 = vmul.f32 %v2012, %v2048
  %v2050 = vmul.f32 %v2014, %v2048
  %v2051 = vmul.f32 %v2016, %v2048
  %v2052 = vmul.f32 %v2018, %v2048
  %v2053 = vmul.f32 %v2020, %v2048
  %v2054 = vmul.f32 %v2022, %v2048
  %v2055 = vmul.f32 %v2024, %v2048
  %v2063 = vrot.slane %v2049, 1
  %v2064 = vrot.slane %v2050, 1
  %v2065 = vrot.slane %v2051, 1
  %v2066 = vrot.slane %v2052, 1
  %v2067 = vrot.slane %v2053, 1
  %v2068 = vrot.slane %v2054, 1
  %v2069 = vrot.slane %v2055, 1
  %v2077 = vadd.f32 %v2038, %v2063
  %v2078 = vadd.f32 %v2039, %v2064
  %v2079 = vadd.f32 %v2040, %v2065
  %v2080 = vadd.f32 %v2041, %v2066
  %v2081 = vadd.f32 %v2042, %v2067
  %v2082 = vadd.f32 %v2043, %v2068
  %v2083 = vadd.f32 %v2044, %v2069
  %v2084 = vlaneseq
  %v2085 = vshrl.u32 %v2084, 7
  %v2086 = vsub.s32 2, %v2085
  %v2087 = vrot.slane %v653, %v2086
  %v2088 = vmul.f32 %v2012, %v2087
  %v2089 = vmul.f32 %v2013, %v2087
  %v2090 = vmul.f32 %v2014, %v2087
  %v2091 = vmul.f32 %v2015, %v2087
  %v2092 = vmul.f32 %v2016, %v2087
  %v2093 = vmul.f32 %v2017, %v2087
  %v2094 = vmul.f32 %v2018, %v2087
  %v2095 = vmul.f32 %v2019, %v2087
  %v2096 = vmul.f32 %v2020, %v2087
  %v2097 = vmul.f32 %v2021, %v2087
  %v2098 = vmul.f32 %v2022, %v2087
  %v2099 = vmul.f32 %v2023, %v2087
  %v2100 = vmul.f32 %v2024, %v2087
  %v2101 = vmul.f32 %v2025, %v2087
  %v2116 = vrot.slane %v2088, 2
  %v2117 = vrot.slane %v2089, 2
  %v2118 = vsel %vm801, %v2116, %v2117
  %v2119 = vrot.slane %v2090, 2
  %v2120 = vrot.slane %v2091, 2
  %v2121 = vsel %vm801, %v2119, %v2120
  %v2122 = vrot.slane %v2092, 2
  %v2123 = vrot.slane %v2093, 2
  %v2124 = vsel %vm801, %v2122, %v2123
  %v2125 = vrot.slane %v2094, 2
  %v2126 = vrot.slane %v2095, 2
  %v2127 = vsel %vm801, %v2125, %v2126
  %v2128 = vrot.slane %v2096, 2
  %v2129 = vrot.slane %v2097, 2
  %v2130 = vsel %vm801, %v2128, %v2129
  %v2131 = vrot.slane %v2098, 2
  %v2132 = vrot.slane %v2099, 2
  %v2133 = vsel %vm801, %v2131, %v2132
  %v2134 = vrot.slane %v2100, 2
  %v2135 = vrot.slane %v2101, 2
  %v2136 = vsel %vm801, %v2134, %v2135
  %v2144 = vadd.f32 %v2077, %v2118
  %v2145 = vadd.f32 %v2078, %v2121
  %v2146 = vadd.f32 %v2079, %v2124
  %v2147 = vadd.f32 %v2080, %v2127
  %v2148 = vadd.f32 %v2081, %v2130
  %v2149 = vadd.f32 %v2082, %v2133
  %v2150 = vadd.f32 %v2083, %v2136
  %v2151 = vlaneseq
  %v2152 = vshrl.u32 %v2151, 7
  %v2153 = vsub.s32 3, %v2152
  %v2154 = vrot.slane %v653, %v2153
  %v2155 = vmul.f32 %v2012, %v2154
  %v2156 = vmul.f32 %v2013, %v2154
  %v2157 = vmul.f32 %v2014, %v2154
  %v2158 = vmul.f32 %v2015, %v2154
  %v2159 = vmul.f32 %v2016, %v2154
  %v2160 = vmul.f32 %v2017, %v2154
  %v2161 = vmul.f32 %v2018, %v2154
  %v2162 = vmul.f32 %v2019, %v2154
  %v2163 = vmul.f32 %v2020, %v2154
  %v2164 = vmul.f32 %v2021, %v2154
  %v2165 = vmul.f32 %v2022, %v2154
  %v2166 = vmul.f32 %v2023, %v2154
  %v2167 = vmul.f32 %v2024, %v2154
  %v2168 = vmul.f32 %v2025, %v2154
  %v2183 = vrot.slane %v2155, 3
  %v2184 = vrot.slane %v2156, 3
  %v2185 = vsel %vm869, %v2183, %v2184
  %v2186 = vrot.slane %v2157, 3
  %v2187 = vrot.slane %v2158, 3
  %v2188 = vsel %vm869, %v2186, %v2187
  %v2189 = vrot.slane %v2159, 3
  %v2190 = vrot.slane %v2160, 3
  %v2191 = vsel %vm869, %v2189, %v2190
  %v2192 = vrot.slane %v2161, 3
  %v2193 = vrot.slane %v2162, 3
  %v2194 = vsel %vm869, %v2192, %v2193
  %v2195 = vrot.slane %v2163, 3
  %v2196 = vrot.slane %v2164, 3
  %v2197 = vsel %vm869, %v2195, %v2196
  %v2198 = vrot.slane %v2165, 3
  %v2199 = vrot.slane %v2166, 3
  %v2200 = vsel %vm869, %v2198, %v2199
  %v2201 = vrot.slane %v2167, 3
  %v2202 = vrot.slane %v2168, 3
  %v2203 = vsel %vm869, %v2201, %v2202
  %v2211 = vadd.f32 %v2144, %v2185
  %v2212 = vadd.f32 %v2145, %v2188
  %v2213 = vadd.f32 %v2146, %v2191
  %v2214 = vadd.f32 %v2147, %v2194
  %v2215 = vadd.f32 %v2148, %v2197
  %v2216 = vadd.f32 %v2149, %v2200
  %v2217 = vadd.f32 %v2150, %v2203
  %v2218 = vlaneseq
  %v2219 = vshrl.u32 %v2218, 7
  %v2220 = vsub.s32 4, %v2219
  %v2221 = vrot.slane %v653, %v2220
  %v2222 = vmul.f32 %v2012, %v2221
  %v2223 = vmul.f32 %v2013, %v2221
  %v2224 = vmul.f32 %v2014, %v2221
  %v2225 = vmul.f32 %v2015, %v2221
  %v2226 = vmul.f32 %v2016, %v2221
  %v2227 = vmul.f32 %v2017, %v2221
  %v2228 = vmul.f32 %v2018, %v2221
  %v2229 = vmul.f32 %v2019, %v2221
  %v2230 = vmul.f32 %v2020, %v2221
  %v2231 = vmul.f32 %v2021, %v2221
  %v2232 = vmul.f32 %v2022, %v2221
  %v2233 = vmul.f32 %v2023, %v2221
  %v2234 = vmul.f32 %v2024, %v2221
  %v2235 = vmul.f32 %v2025, %v2221
  %v2250 = vrot.slane %v2222, 4
  %v2251 = vrot.slane %v2223, 4
  %v2252 = vsel %vm937, %v2250, %v2251
  %v2253 = vrot.slane %v2224, 4
  %v2254 = vrot.slane %v2225, 4
  %v2255 = vsel %vm937, %v2253, %v2254
  %v2256 = vrot.slane %v2226, 4
  %v2257 = vrot.slane %v2227, 4
  %v2258 = vsel %vm937, %v2256, %v2257
  %v2259 = vrot.slane %v2228, 4
  %v2260 = vrot.slane %v2229, 4
  %v2261 = vsel %vm937, %v2259, %v2260
  %v2262 = vrot.slane %v2230, 4
  %v2263 = vrot.slane %v2231, 4
  %v2264 = vsel %vm937, %v2262, %v2263
  %v2265 = vrot.slane %v2232, 4
  %v2266 = vrot.slane %v2233, 4
  %v2267 = vsel %vm937, %v2265, %v2266
  %v2268 = vrot.slane %v2234, 4
  %v2269 = vrot.slane %v2235, 4
  %v2270 = vsel %vm937, %v2268, %v2269
  %v2278 = vadd.f32 %v2211, %v2252
  %v2279 = vadd.f32 %v2212, %v2255
  %v2280 = vadd.f32 %v2213, %v2258
  %v2281 = vadd.f32 %v2214, %v2261
  %v2282 = vadd.f32 %v2215, %v2264
  %v2283 = vadd.f32 %v2216, %v2267
  %v2284 = vadd.f32 %v2217, %v2270
  %v2285 = vlaneseq
  %v2286 = vshrl.u32 %v2285, 7
  %v2287 = vsub.s32 0, %v2286
  %v2288 = vrot.slane %v662, %v2287
  %v2289 = vmul.f32 %v2014, %v2288
  %v2290 = vmul.f32 %v2016, %v2288
  %v2291 = vmul.f32 %v2018, %v2288
  %v2292 = vmul.f32 %v2020, %v2288
  %v2293 = vmul.f32 %v2022, %v2288
  %v2294 = vmul.f32 %v2024, %v2288
  %v2295 = vmul.f32 %v2026, %v2288
  %v2296 = vadd.f32 %v2278, %v2289
  %v2297 = vadd.f32 %v2279, %v2290
  %v2298 = vadd.f32 %v2280, %v2291
  %v2299 = vadd.f32 %v2281, %v2292
  %v2300 = vadd.f32 %v2282, %v2293
  %v2301 = vadd.f32 %v2283, %v2294
  %v2302 = vadd.f32 %v2284, %v2295
  %v2303 = vlaneseq
  %v2304 = vshrl.u32 %v2303, 7
  %v2305 = vsub.s32 1, %v2304
  %v2306 = vrot.slane %v662, %v2305
  %v2307 = vmul.f32 %v2014, %v2306
  %v2308 = vmul.f32 %v2016, %v2306
  %v2309 = vmul.f32 %v2018, %v2306
  %v2310 = vmul.f32 %v2020, %v2306
  %v2311 = vmul.f32 %v2022, %v2306
  %v2312 = vmul.f32 %v2024, %v2306
  %v2313 = vmul.f32 %v2026, %v2306
  %v2321 = vrot.slane %v2307, 1
  %v2322 = vrot.slane %v2308, 1
  %v2323 = vrot.slane %v2309, 1
  %v2324 = vrot.slane %v2310, 1
  %v2325 = vrot.slane %v2311, 1
  %v2326 = vrot.slane %v2312, 1
  %v2327 = vrot.slane %v2313, 1
  %v2335 = vadd.f32 %v2296, %v2321
  %v2336 = vadd.f32 %v2297, %v2322
  %v2337 = vadd.f32 %v2298, %v2323
  %v2338 = vadd.f32 %v2299, %v2324
  %v2339 = vadd.f32 %v2300, %v2325
  %v2340 = vadd.f32 %v2301, %v2326
  %v2341 = vadd.f32 %v2302, %v2327
  %v2342 = vlaneseq
  %v2343 = vshrl.u32 %v2342, 7
  %v2344 = vsub.s32 2, %v2343
  %v2345 = vrot.slane %v662, %v2344
  %v2346 = vmul.f32 %v2014, %v2345
  %v2347 = vmul.f32 %v2015, %v2345
  %v2348 = vmul.f32 %v2016, %v2345
  %v2349 = vmul.f32 %v2017, %v2345
  %v2350 = vmul.f32 %v2018, %v2345
  %v2351 = vmul.f32 %v2019, %v2345
  %v2352 = vmul.f32 %v2020, %v2345
  %v2353 = vmul.f32 %v2021, %v2345
  %v2354 = vmul.f32 %v2022, %v2345
  %v2355 = vmul.f32 %v2023, %v2345
  %v2356 = vmul.f32 %v2024, %v2345
  %v2357 = vmul.f32 %v2025, %v2345
  %v2358 = vmul.f32 %v2026, %v2345
  %v2359 = vmul.f32 %v2027, %v2345
  %v2374 = vrot.slane %v2346, 2
  %v2375 = vrot.slane %v2347, 2
  %v2376 = vsel %vm801, %v2374, %v2375
  %v2377 = vrot.slane %v2348, 2
  %v2378 = vrot.slane %v2349, 2
  %v2379 = vsel %vm801, %v2377, %v2378
  %v2380 = vrot.slane %v2350, 2
  %v2381 = vrot.slane %v2351, 2
  %v2382 = vsel %vm801, %v2380, %v2381
  %v2383 = vrot.slane %v2352, 2
  %v2384 = vrot.slane %v2353, 2
  %v2385 = vsel %vm801, %v2383, %v2384
  %v2386 = vrot.slane %v2354, 2
  %v2387 = vrot.slane %v2355, 2
  %v2388 = vsel %vm801, %v2386, %v2387
  %v2389 = vrot.slane %v2356, 2
  %v2390 = vrot.slane %v2357, 2
  %v2391 = vsel %vm801, %v2389, %v2390
  %v2392 = vrot.slane %v2358, 2
  %v2393 = vrot.slane %v2359, 2
  %v2394 = vsel %vm801, %v2392, %v2393
  %v2402 = vadd.f32 %v2335, %v2376
  %v2403 = vadd.f32 %v2336, %v2379
  %v2404 = vadd.f32 %v2337, %v2382
  %v2405 = vadd.f32 %v2338, %v2385
  %v2406 = vadd.f32 %v2339, %v2388
  %v2407 = vadd.f32 %v2340, %v2391
  %v2408 = vadd.f32 %v2341, %v2394
  %v2409 = vlaneseq
  %v2410 = vshrl.u32 %v2409, 7
  %v2411 = vsub.s32 3, %v2410
  %v2412 = vrot.slane %v662, %v2411
  %v2413 = vmul.f32 %v2014, %v2412
  %v2414 = vmul.f32 %v2015, %v2412
  %v2415 = vmul.f32 %v2016, %v2412
  %v2416 = vmul.f32 %v2017, %v2412
  %v2417 = vmul.f32 %v2018, %v2412
  %v2418 = vmul.f32 %v2019, %v2412
  %v2419 = vmul.f32 %v2020, %v2412
  %v2420 = vmul.f32 %v2021, %v2412
  %v2421 = vmul.f32 %v2022, %v2412
  %v2422 = vmul.f32 %v2023, %v2412
  %v2423 = vmul.f32 %v2024, %v2412
  %v2424 = vmul.f32 %v2025, %v2412
  %v2425 = vmul.f32 %v2026, %v2412
  %v2426 = vmul.f32 %v2027, %v2412
  %v2441 = vrot.slane %v2413, 3
  %v2442 = vrot.slane %v2414, 3
  %v2443 = vsel %vm869, %v2441, %v2442
  %v2444 = vrot.slane %v2415, 3
  %v2445 = vrot.slane %v2416, 3
  %v2446 = vsel %vm869, %v2444, %v2445
  %v2447 = vrot.slane %v2417, 3
  %v2448 = vrot.slane %v2418, 3
  %v2449 = vsel %vm869, %v2447, %v2448
  %v2450 = vrot.slane %v2419, 3
  %v2451 = vrot.slane %v2420, 3
  %v2452 = vsel %vm869, %v2450, %v2451
  %v2453 = vrot.slane %v2421, 3
  %v2454 = vrot.slane %v2422, 3
  %v2455 = vsel %vm869, %v2453, %v2454
  %v2456 = vrot.slane %v2423, 3
  %v2457 = vrot.slane %v2424, 3
  %v2458 = vsel %vm869, %v2456, %v2457
  %v2459 = vrot.slane %v2425, 3
  %v2460 = vrot.slane %v2426, 3
  %v2461 = vsel %vm869, %v2459, %v2460
  %v2469 = vadd.f32 %v2402, %v2443
  %v2470 = vadd.f32 %v2403, %v2446
  %v2471 = vadd.f32 %v2404, %v2449
  %v2472 = vadd.f32 %v2405, %v2452
  %v2473 = vadd.f32 %v2406, %v2455
  %v2474 = vadd.f32 %v2407, %v2458
  %v2475 = vadd.f32 %v2408, %v2461
  %v2476 = vlaneseq
  %v2477 = vshrl.u32 %v2476, 7
  %v2478 = vsub.s32 4, %v2477
  %v2479 = vrot.slane %v662, %v2478
  %v2480 = vmul.f32 %v2014, %v2479
  %v2481 = vmul.f32 %v2015, %v2479
  %v2482 = vmul.f32 %v2016, %v2479
  %v2483 = vmul.f32 %v2017, %v2479
  %v2484 = vmul.f32 %v2018, %v2479
  %v2485 = vmul.f32 %v2019, %v2479
  %v2486 = vmul.f32 %v2020, %v2479
  %v2487 = vmul.f32 %v2021, %v2479
  %v2488 = vmul.f32 %v2022, %v2479
  %v2489 = vmul.f32 %v2023, %v2479
  %v2490 = vmul.f32 %v2024, %v2479
  %v2491 = vmul.f32 %v2025, %v2479
  %v2492 = vmul.f32 %v2026, %v2479
  %v2493 = vmul.f32 %v2027, %v2479
  %v2508 = vrot.slane %v2480, 4
  %v2509 = vrot.slane %v2481, 4
  %v2510 = vsel %vm937, %v2508, %v2509
  %v2511 = vrot.slane %v2482, 4
  %v2512 = vrot.slane %v2483, 4
  %v2513 = vsel %vm937, %v2511, %v2512
  %v2514 = vrot.slane %v2484, 4
  %v2515 = vrot.slane %v2485, 4
  %v2516 = vsel %vm937, %v2514, %v2515
  %v2517 = vrot.slane %v2486, 4
  %v2518 = vrot.slane %v2487, 4
  %v2519 = vsel %vm937, %v2517, %v2518
  %v2520 = vrot.slane %v2488, 4
  %v2521 = vrot.slane %v2489, 4
  %v2522 = vsel %vm937, %v2520, %v2521
  %v2523 = vrot.slane %v2490, 4
  %v2524 = vrot.slane %v2491, 4
  %v2525 = vsel %vm937, %v2523, %v2524
  %v2526 = vrot.slane %v2492, 4
  %v2527 = vrot.slane %v2493, 4
  %v2528 = vsel %vm937, %v2526, %v2527
  %v2536 = vadd.f32 %v2469, %v2510
  %v2537 = vadd.f32 %v2470, %v2513
  %v2538 = vadd.f32 %v2471, %v2516
  %v2539 = vadd.f32 %v2472, %v2519
  %v2540 = vadd.f32 %v2473, %v2522
  %v2541 = vadd.f32 %v2474, %v2525
  %v2542 = vadd.f32 %v2475, %v2528
  %v2543 = vlaneseq
  %v2544 = vshrl.u32 %v2543, 7
  %v2545 = vsub.s32 0, %v2544
  %v2546 = vrot.slane %v671, %v2545
  %v2547 = vmul.f32 %v2016, %v2546
  %v2548 = vmul.f32 %v2018, %v2546
  %v2549 = vmul.f32 %v2020, %v2546
  %v2550 = vmul.f32 %v2022, %v2546
  %v2551 = vmul.f32 %v2024, %v2546
  %v2552 = vmul.f32 %v2026, %v2546
  %v2553 = vmul.f32 %v2028, %v2546
  %v2554 = vadd.f32 %v2536, %v2547
  %v2555 = vadd.f32 %v2537, %v2548
  %v2556 = vadd.f32 %v2538, %v2549
  %v2557 = vadd.f32 %v2539, %v2550
  %v2558 = vadd.f32 %v2540, %v2551
  %v2559 = vadd.f32 %v2541, %v2552
  %v2560 = vadd.f32 %v2542, %v2553
  %v2561 = vlaneseq
  %v2562 = vshrl.u32 %v2561, 7
  %v2563 = vsub.s32 1, %v2562
  %v2564 = vrot.slane %v671, %v2563
  %v2565 = vmul.f32 %v2016, %v2564
  %v2566 = vmul.f32 %v2018, %v2564
  %v2567 = vmul.f32 %v2020, %v2564
  %v2568 = vmul.f32 %v2022, %v2564
  %v2569 = vmul.f32 %v2024, %v2564
  %v2570 = vmul.f32 %v2026, %v2564
  %v2571 = vmul.f32 %v2028, %v2564
  %v2579 = vrot.slane %v2565, 1
  %v2580 = vrot.slane %v2566, 1
  %v2581 = vrot.slane %v2567, 1
  %v2582 = vrot.slane %v2568, 1
  %v2583 = vrot.slane %v2569, 1
  %v2584 = vrot.slane %v2570, 1
  %v2585 = vrot.slane %v2571, 1
  %v2593 = vadd.f32 %v2554, %v2579
  %v2594 = vadd.f32 %v2555, %v2580
  %v2595 = vadd.f32 %v2556, %v2581
  %v2596 = vadd.f32 %v2557, %v2582
  %v2597 = vadd.f32 %v2558, %v2583
  %v2598 = vadd.f32 %v2559, %v2584
  %v2599 = vadd.f32 %v2560, %v2585
  %v2600 = vlaneseq
  %v2601 = vshrl.u32 %v2600, 7
  %v2602 = vsub.s32 2, %v2601
  %v2603 = vrot.slane %v671, %v2602
  %v2604 = vmul.f32 %v2016, %v2603
  %v2605 = vmul.f32 %v2017, %v2603
  %v2606 = vmul.f32 %v2018, %v2603
  %v2607 = vmul.f32 %v2019, %v2603
  %v2608 = vmul.f32 %v2020, %v2603
  %v2609 = vmul.f32 %v2021, %v2603
  %v2610 = vmul.f32 %v2022, %v2603
  %v2611 = vmul.f32 %v2023, %v2603
  %v2612 = vmul.f32 %v2024, %v2603
  %v2613 = vmul.f32 %v2025, %v2603
  %v2614 = vmul.f32 %v2026, %v2603
  %v2615 = vmul.f32 %v2027, %v2603
  %v2616 = vmul.f32 %v2028, %v2603
  %v2617 = vmul.f32 %v2029, %v2603
  %v2632 = vrot.slane %v2604, 2
  %v2633 = vrot.slane %v2605, 2
  %v2634 = vsel %vm801, %v2632, %v2633
  %v2635 = vrot.slane %v2606, 2
  %v2636 = vrot.slane %v2607, 2
  %v2637 = vsel %vm801, %v2635, %v2636
  %v2638 = vrot.slane %v2608, 2
  %v2639 = vrot.slane %v2609, 2
  %v2640 = vsel %vm801, %v2638, %v2639
  %v2641 = vrot.slane %v2610, 2
  %v2642 = vrot.slane %v2611, 2
  %v2643 = vsel %vm801, %v2641, %v2642
  %v2644 = vrot.slane %v2612, 2
  %v2645 = vrot.slane %v2613, 2
  %v2646 = vsel %vm801, %v2644, %v2645
  %v2647 = vrot.slane %v2614, 2
  %v2648 = vrot.slane %v2615, 2
  %v2649 = vsel %vm801, %v2647, %v2648
  %v2650 = vrot.slane %v2616, 2
  %v2651 = vrot.slane %v2617, 2
  %v2652 = vsel %vm801, %v2650, %v2651
  %v2660 = vadd.f32 %v2593, %v2634
  %v2661 = vadd.f32 %v2594, %v2637
  %v2662 = vadd.f32 %v2595, %v2640
  %v2663 = vadd.f32 %v2596, %v2643
  %v2664 = vadd.f32 %v2597, %v2646
  %v2665 = vadd.f32 %v2598, %v2649
  %v2666 = vadd.f32 %v2599, %v2652
  %v2667 = vlaneseq
  %v2668 = vshrl.u32 %v2667, 7
  %v2669 = vsub.s32 3, %v2668
  %v2670 = vrot.slane %v671, %v2669
  %v2671 = vmul.f32 %v2016, %v2670
  %v2672 = vmul.f32 %v2017, %v2670
  %v2673 = vmul.f32 %v2018, %v2670
  %v2674 = vmul.f32 %v2019, %v2670
  %v2675 = vmul.f32 %v2020, %v2670
  %v2676 = vmul.f32 %v2021, %v2670
  %v2677 = vmul.f32 %v2022, %v2670
  %v2678 = vmul.f32 %v2023, %v2670
  %v2679 = vmul.f32 %v2024, %v2670
  %v2680 = vmul.f32 %v2025, %v2670
  %v2681 = vmul.f32 %v2026, %v2670
  %v2682 = vmul.f32 %v2027, %v2670
  %v2683 = vmul.f32 %v2028, %v2670
  %v2684 = vmul.f32 %v2029, %v2670
  %v2699 = vrot.slane %v2671, 3
  %v2700 = vrot.slane %v2672, 3
  %v2701 = vsel %vm869, %v2699, %v2700
  %v2702 = vrot.slane %v2673, 3
  %v2703 = vrot.slane %v2674, 3
  %v2704 = vsel %vm869, %v2702, %v2703
  %v2705 = vrot.slane %v2675, 3
  %v2706 = vrot.slane %v2676, 3
  %v2707 = vsel %vm869, %v2705, %v2706
  %v2708 = vrot.slane %v2677, 3
  %v2709 = vrot.slane %v2678, 3
  %v2710 = vsel %vm869, %v2708, %v2709
  %v2711 = vrot.slane %v2679, 3
  %v2712 = vrot.slane %v2680, 3
  %v2713 = vsel %vm869, %v2711, %v2712
  %v2714 = vrot.slane %v2681, 3
  %v2715 = vrot.slane %v2682, 3
  %v2716 = vsel %vm869, %v2714, %v2715
  %v2717 = vrot.slane %v2683, 3
  %v2718 = vrot.slane %v2684, 3
  %v2719 = vsel %vm869, %v2717, %v2718
  %v2727 = vadd.f32 %v2660, %v2701
  %v2728 = vadd.f32 %v2661, %v2704
  %v2729 = vadd.f32 %v2662, %v2707
  %v2730 = vadd.f32 %v2663, %v2710
  %v2731 = vadd.f32 %v2664, %v2713
  %v2732 = vadd.f32 %v2665, %v2716
  %v2733 = vadd.f32 %v2666, %v2719
  %v2734 = vlaneseq
  %v2735 = vshrl.u32 %v2734, 7
  %v2736 = vsub.s32 4, %v2735
  %v2737 = vrot.slane %v671, %v2736
  %v2738 = vmul.f32 %v2016, %v2737
  %v2739 = vmul.f32 %v2017, %v2737
  %v2740 = vmul.f32 %v2018, %v2737
  %v2741 = vmul.f32 %v2019, %v2737
  %v2742 = vmul.f32 %v2020, %v2737
  %v2743 = vmul.f32 %v2021, %v2737
  %v2744 = vmul.f32 %v2022, %v2737
  %v2745 = vmul.f32 %v2023, %v2737
  %v2746 = vmul.f32 %v2024, %v2737
  %v2747 = vmul.f32 %v2025, %v2737
  %v2748 = vmul.f32 %v2026, %v2737
  %v2749 = vmul.f32 %v2027, %v2737
  %v2750 = vmul.f32 %v2028, %v2737
  %v2751 = vmul.f32 %v2029, %v2737
  %v2766 = vrot.slane %v2738, 4
  %v2767 = vrot.slane %v2739, 4
  %v2768 = vsel %vm937, %v2766, %v2767
  %v2769 = vrot.slane %v2740, 4
  %v2770 = vrot.slane %v2741, 4
  %v2771 = vsel %vm937, %v2769, %v2770
  %v2772 = vrot.slane %v2742, 4
  %v2773 = vrot.slane %v2743, 4
  %v2774 = vsel %vm937, %v2772, %v2773
  %v2775 = vrot.slane %v2744, 4
  %v2776 = vrot.slane %v2745, 4
  %v2777 = vsel %vm937, %v2775, %v2776
  %v2778 = vrot.slane %v2746, 4
  %v2779 = vrot.slane %v2747, 4
  %v2780 = vsel %vm937, %v2778, %v2779
  %v2781 = vrot.slane %v2748, 4
  %v2782 = vrot.slane %v2749, 4
  %v2783 = vsel %vm937, %v2781, %v2782
  %v2784 = vrot.slane %v2750, 4
  %v2785 = vrot.slane %v2751, 4
  %v2786 = vsel %vm937, %v2784, %v2785
  %v2794 = vadd.f32 %v2727, %v2768
  %v2795 = vadd.f32 %v2728, %v2771
  %v2796 = vadd.f32 %v2729, %v2774
  %v2797 = vadd.f32 %v2730, %v2777
  %v2798 = vadd.f32 %v2731, %v2780
  %v2799 = vadd.f32 %v2732, %v2783
  %v2800 = vadd.f32 %v2733, %v2786
  %v2801 = vlaneseq
  %v2802 = vshrl.u32 %v2801, 7
  %v2803 = vsub.s32 0, %v2802
  %v2804 = vrot.slane %v680, %v2803
  %v2805 = vmul.f32 %v2018, %v2804
  %v2806 = vmul.f32 %v2020, %v2804
  %v2807 = vmul.f32 %v2022, %v2804
  %v2808 = vmul.f32 %v2024, %v2804
  %v2809 = vmul.f32 %v2026, %v2804
  %v2810 = vmul.f32 %v2028, %v2804
  %v2811 = vmul.f32 %v2030, %v2804
  %v2812 = vadd.f32 %v2794, %v2805
  %v2813 = vadd.f32 %v2795, %v2806
  %v2814 = vadd.f32 %v2796, %v2807
  %v2815 = vadd.f32 %v2797, %v2808
  %v2816 = vadd.f32 %v2798, %v2809
  %v2817 = vadd.f32 %v2799, %v2810
  %v2818 = vadd.f32 %v2800, %v2811
  %v2819 = vlaneseq
  %v2820 = vshrl.u32 %v2819, 7
  %v2821 = vsub.s32 1, %v2820
  %v2822 = vrot.slane %v680, %v2821
  %v2823 = vmul.f32 %v2018, %v2822
  %v2824 = vmul.f32 %v2020, %v2822
  %v2825 = vmul.f32 %v2022, %v2822
  %v2826 = vmul.f32 %v2024, %v2822
  %v2827 = vmul.f32 %v2026, %v2822
  %v2828 = vmul.f32 %v2028, %v2822
  %v2829 = vmul.f32 %v2030, %v2822
  %v2837 = vrot.slane %v2823, 1
  %v2838 = vrot.slane %v2824, 1
  %v2839 = vrot.slane %v2825, 1
  %v2840 = vrot.slane %v2826, 1
  %v2841 = vrot.slane %v2827, 1
  %v2842 = vrot.slane %v2828, 1
  %v2843 = vrot.slane %v2829, 1
  %v2851 = vadd.f32 %v2812, %v2837
  %v2852 = vadd.f32 %v2813, %v2838
  %v2853 = vadd.f32 %v2814, %v2839
  %v2854 = vadd.f32 %v2815, %v2840
  %v2855 = vadd.f32 %v2816, %v2841
  %v2856 = vadd.f32 %v2817, %v2842
  %v2857 = vadd.f32 %v2818, %v2843
  %v2858 = vlaneseq
  %v2859 = vshrl.u32 %v2858, 7
  %v2860 = vsub.s32 2, %v2859
  %v2861 = vrot.slane %v680, %v2860
  %v2862 = vmul.f32 %v2018, %v2861
  %v2863 = vmul.f32 %v2019, %v2861
  %v2864 = vmul.f32 %v2020, %v2861
  %v2865 = vmul.f32 %v2021, %v2861
  %v2866 = vmul.f32 %v2022, %v2861
  %v2867 = vmul.f32 %v2023, %v2861
  %v2868 = vmul.f32 %v2024, %v2861
  %v2869 = vmul.f32 %v2025, %v2861
  %v2870 = vmul.f32 %v2026, %v2861
  %v2871 = vmul.f32 %v2027, %v2861
  %v2872 = vmul.f32 %v2028, %v2861
  %v2873 = vmul.f32 %v2029, %v2861
  %v2874 = vmul.f32 %v2030, %v2861
  %v2875 = vmul.f32 %v2031, %v2861
  %v2890 = vrot.slane %v2862, 2
  %v2891 = vrot.slane %v2863, 2
  %v2892 = vsel %vm801, %v2890, %v2891
  %v2893 = vrot.slane %v2864, 2
  %v2894 = vrot.slane %v2865, 2
  %v2895 = vsel %vm801, %v2893, %v2894
  %v2896 = vrot.slane %v2866, 2
  %v2897 = vrot.slane %v2867, 2
  %v2898 = vsel %vm801, %v2896, %v2897
  %v2899 = vrot.slane %v2868, 2
  %v2900 = vrot.slane %v2869, 2
  %v2901 = vsel %vm801, %v2899, %v2900
  %v2902 = vrot.slane %v2870, 2
  %v2903 = vrot.slane %v2871, 2
  %v2904 = vsel %vm801, %v2902, %v2903
  %v2905 = vrot.slane %v2872, 2
  %v2906 = vrot.slane %v2873, 2
  %v2907 = vsel %vm801, %v2905, %v2906
  %v2908 = vrot.slane %v2874, 2
  %v2909 = vrot.slane %v2875, 2
  %v2910 = vsel %vm801, %v2908, %v2909
  %v2918 = vadd.f32 %v2851, %v2892
  %v2919 = vadd.f32 %v2852, %v2895
  %v2920 = vadd.f32 %v2853, %v2898
  %v2921 = vadd.f32 %v2854, %v2901
  %v2922 = vadd.f32 %v2855, %v2904
  %v2923 = vadd.f32 %v2856, %v2907
  %v2924 = vadd.f32 %v2857, %v2910
  %v2925 = vlaneseq
  %v2926 = vshrl.u32 %v2925, 7
  %v2927 = vsub.s32 3, %v2926
  %v2928 = vrot.slane %v680, %v2927
  %v2929 = vmul.f32 %v2018, %v2928
  %v2930 = vmul.f32 %v2019, %v2928
  %v2931 = vmul.f32 %v2020, %v2928
  %v2932 = vmul.f32 %v2021, %v2928
  %v2933 = vmul.f32 %v2022, %v2928
  %v2934 = vmul.f32 %v2023, %v2928
  %v2935 = vmul.f32 %v2024, %v2928
  %v2936 = vmul.f32 %v2025, %v2928
  %v2937 = vmul.f32 %v2026, %v2928
  %v2938 = vmul.f32 %v2027, %v2928
  %v2939 = vmul.f32 %v2028, %v2928
  %v2940 = vmul.f32 %v2029, %v2928
  %v2941 = vmul.f32 %v2030, %v2928
  %v2942 = vmul.f32 %v2031, %v2928
  %v2957 = vrot.slane %v2929, 3
  %v2958 = vrot.slane %v2930, 3
  %v2959 = vsel %vm869, %v2957, %v2958
  %v2960 = vrot.slane %v2931, 3
  %v2961 = vrot.slane %v2932, 3
  %v2962 = vsel %vm869, %v2960, %v2961
  %v2963 = vrot.slane %v2933, 3
  %v2964 = vrot.slane %v2934, 3
  %v2965 = vsel %vm869, %v2963, %v2964
  %v2966 = vrot.slane %v2935, 3
  %v2967 = vrot.slane %v2936, 3
  %v2968 = vsel %vm869, %v2966, %v2967
  %v2969 = vrot.slane %v2937, 3
  %v2970 = vrot.slane %v2938, 3
  %v2971 = vsel %vm869, %v2969, %v2970
  %v2972 = vrot.slane %v2939, 3
  %v2973 = vrot.slane %v2940, 3
  %v2974 = vsel %vm869, %v2972, %v2973
  %v2975 = vrot.slane %v2941, 3
  %v2976 = vrot.slane %v2942, 3
  %v2977 = vsel %vm869, %v2975, %v2976
  %v2985 = vadd.f32 %v2918, %v2959
  %v2986 = vadd.f32 %v2919, %v2962
  %v2987 = vadd.f32 %v2920, %v2965
  %v2988 = vadd.f32 %v2921, %v2968
  %v2989 = vadd.f32 %v2922, %v2971
  %v2990 = vadd.f32 %v2923, %v2974
  %v2991 = vadd.f32 %v2924, %v2977
  %v2992 = vlaneseq
  %v2993 = vshrl.u32 %v2992, 7
  %v2994 = vsub.s32 4, %v2993
  %v2995 = vrot.slane %v680, %v2994
  %v2996 = vmul.f32 %v2018, %v2995
  %v2997 = vmul.f32 %v2019, %v2995
  %v2998 = vmul.f32 %v2020, %v2995
  %v2999 = vmul.f32 %v2021, %v2995
  %v3000 = vmul.f32 %v2022, %v2995
  %v3001 = vmul.f32 %v2023, %v2995
  %v3002 = vmul.f32 %v2024, %v2995
  %v3003 = vmul.f32 %v2025, %v2995
  %v3004 = vmul.f32 %v2026, %v2995
  %v3005 = vmul.f32 %v2027, %v2995
  %v3006 = vmul.f32 %v2028, %v2995
  %v3007 = vmul.f32 %v2029, %v2995
  %v3008 = vmul.f32 %v2030, %v2995
  %v3009 = vmul.f32 %v2031, %v2995
  %v3024 = vrot.slane %v2996, 4
  %v3025 = vrot.slane %v2997, 4
  %v3026 = vsel %vm937, %v3024, %v3025
  %v3027 = vrot.slane %v2998, 4
  %v3028 = vrot.slane %v2999, 4
  %v3029 = vsel %vm937, %v3027, %v3028
  %v3030 = vrot.slane %v3000, 4
  %v3031 = vrot.slane %v3001, 4
  %v3032 = vsel %vm937, %v3030, %v3031
  %v3033 = vrot.slane %v3002, 4
  %v3034 = vrot.slane %v3003, 4
  %v3035 = vsel %vm937, %v3033, %v3034
  %v3036 = vrot.slane %v3004, 4
  %v3037 = vrot.slane %v3005, 4
  %v3038 = vsel %vm937, %v3036, %v3037
  %v3039 = vrot.slane %v3006, 4
  %v3040 = vrot.slane %v3007, 4
  %v3041 = vsel %vm937, %v3039, %v3040
  %v3042 = vrot.slane %v3008, 4
  %v3043 = vrot.slane %v3009, 4
  %v3044 = vsel %vm937, %v3042, %v3043
  %v3052 = vadd.f32 %v2985, %v3026
  %v3053 = vadd.f32 %v2986, %v3029
  %v3054 = vadd.f32 %v2987, %v3032
  %v3055 = vadd.f32 %v2988, %v3035
  %v3056 = vadd.f32 %v2989, %v3038
  %v3057 = vadd.f32 %v2990, %v3041
  %v3058 = vadd.f32 %v2991, %v3044
  %v3059 = vlaneseq
  %v3060 = vshrl.u32 %v3059, 7
  %v3061 = vsub.s32 0, %v3060
  %v3062 = vrot.slane %v689, %v3061
  %v3063 = vmul.f32 %v2020, %v3062
  %v3064 = vmul.f32 %v2022, %v3062
  %v3065 = vmul.f32 %v2024, %v3062
  %v3066 = vmul.f32 %v2026, %v3062
  %v3067 = vmul.f32 %v2028, %v3062
  %v3068 = vmul.f32 %v2030, %v3062
  %v3069 = vmul.f32 %v2032, %v3062
  %v3070 = vadd.f32 %v3052, %v3063
  %v3071 = vadd.f32 %v3053, %v3064
  %v3072 = vadd.f32 %v3054, %v3065
  %v3073 = vadd.f32 %v3055, %v3066
  %v3074 = vadd.f32 %v3056, %v3067
  %v3075 = vadd.f32 %v3057, %v3068
  %v3076 = vadd.f32 %v3058, %v3069
  %v3077 = vlaneseq
  %v3078 = vshrl.u32 %v3077, 7
  %v3079 = vsub.s32 1, %v3078
  %v3080 = vrot.slane %v689, %v3079
  %v3081 = vmul.f32 %v2020, %v3080
  %v3082 = vmul.f32 %v2022, %v3080
  %v3083 = vmul.f32 %v2024, %v3080
  %v3084 = vmul.f32 %v2026, %v3080
  %v3085 = vmul.f32 %v2028, %v3080
  %v3086 = vmul.f32 %v2030, %v3080
  %v3087 = vmul.f32 %v2032, %v3080
  %v3095 = vrot.slane %v3081, 1
  %v3096 = vrot.slane %v3082, 1
  %v3097 = vrot.slane %v3083, 1
  %v3098 = vrot.slane %v3084, 1
  %v3099 = vrot.slane %v3085, 1
  %v3100 = vrot.slane %v3086, 1
  %v3101 = vrot.slane %v3087, 1
  %v3109 = vadd.f32 %v3070, %v3095
  %v3110 = vadd.f32 %v3071, %v3096
  %v3111 = vadd.f32 %v3072, %v3097
  %v3112 = vadd.f32 %v3073, %v3098
  %v3113 = vadd.f32 %v3074, %v3099
  %v3114 = vadd.f32 %v3075, %v3100
  %v3115 = vadd.f32 %v3076, %v3101
  %v3116 = vlaneseq
  %v3117 = vshrl.u32 %v3116, 7
  %v3118 = vsub.s32 2, %v3117
  %v3119 = vrot.slane %v689, %v3118
  %v3120 = vmul.f32 %v2020, %v3119
  %v3121 = vmul.f32 %v2021, %v3119
  %v3122 = vmul.f32 %v2022, %v3119
  %v3123 = vmul.f32 %v2023, %v3119
  %v3124 = vmul.f32 %v2024, %v3119
  %v3125 = vmul.f32 %v2025, %v3119
  %v3126 = vmul.f32 %v2026, %v3119
  %v3127 = vmul.f32 %v2027, %v3119
  %v3128 = vmul.f32 %v2028, %v3119
  %v3129 = vmul.f32 %v2029, %v3119
  %v3130 = vmul.f32 %v2030, %v3119
  %v3131 = vmul.f32 %v2031, %v3119
  %v3132 = vmul.f32 %v2032, %v3119
  %v3133 = vmul.f32 %v2033, %v3119
  %v3148 = vrot.slane %v3120, 2
  %v3149 = vrot.slane %v3121, 2
  %v3150 = vsel %vm801, %v3148, %v3149
  %v3151 = vrot.slane %v3122, 2
  %v3152 = vrot.slane %v3123, 2
  %v3153 = vsel %vm801, %v3151, %v3152
  %v3154 = vrot.slane %v3124, 2
  %v3155 = vrot.slane %v3125, 2
  %v3156 = vsel %vm801, %v3154, %v3155
  %v3157 = vrot.slane %v3126, 2
  %v3158 = vrot.slane %v3127, 2
  %v3159 = vsel %vm801, %v3157, %v3158
  %v3160 = vrot.slane %v3128, 2
  %v3161 = vrot.slane %v3129, 2
  %v3162 = vsel %vm801, %v3160, %v3161
  %v3163 = vrot.slane %v3130, 2
  %v3164 = vrot.slane %v3131, 2
  %v3165 = vsel %vm801, %v3163, %v3164
  %v3166 = vrot.slane %v3132, 2
  %v3167 = vrot.slane %v3133, 2
  %v3168 = vsel %vm801, %v3166, %v3167
  %v3176 = vadd.f32 %v3109, %v3150
  %v3177 = vadd.f32 %v3110, %v3153
  %v3178 = vadd.f32 %v3111, %v3156
  %v3179 = vadd.f32 %v3112, %v3159
  %v3180 = vadd.f32 %v3113, %v3162
  %v3181 = vadd.f32 %v3114, %v3165
  %v3182 = vadd.f32 %v3115, %v3168
  %v3183 = vlaneseq
  %v3184 = vshrl.u32 %v3183, 7
  %v3185 = vsub.s32 3, %v3184
  %v3186 = vrot.slane %v689, %v3185
  %v3187 = vmul.f32 %v2020, %v3186
  %v3188 = vmul.f32 %v2021, %v3186
  %v3189 = vmul.f32 %v2022, %v3186
  %v3190 = vmul.f32 %v2023, %v3186
  %v3191 = vmul.f32 %v2024, %v3186
  %v3192 = vmul.f32 %v2025, %v3186
  %v3193 = vmul.f32 %v2026, %v3186
  %v3194 = vmul.f32 %v2027, %v3186
  %v3195 = vmul.f32 %v2028, %v3186
  %v3196 = vmul.f32 %v2029, %v3186
  %v3197 = vmul.f32 %v2030, %v3186
  %v3198 = vmul.f32 %v2031, %v3186
  %v3199 = vmul.f32 %v2032, %v3186
  %v3200 = vmul.f32 %v2033, %v3186
  %v3215 = vrot.slane %v3187, 3
  %v3216 = vrot.slane %v3188, 3
  %v3217 = vsel %vm869, %v3215, %v3216
  %v3218 = vrot.slane %v3189, 3
  %v3219 = vrot.slane %v3190, 3
  %v3220 = vsel %vm869, %v3218, %v3219
  %v3221 = vrot.slane %v3191, 3
  %v3222 = vrot.slane %v3192, 3
  %v3223 = vsel %vm869, %v3221, %v3222
  %v3224 = vrot.slane %v3193, 3
  %v3225 = vrot.slane %v3194, 3
  %v3226 = vsel %vm869, %v3224, %v3225
  %v3227 = vrot.slane %v3195, 3
  %v3228 = vrot.slane %v3196, 3
  %v3229 = vsel %vm869, %v3227, %v3228
  %v3230 = vrot.slane %v3197, 3
  %v3231 = vrot.slane %v3198, 3
  %v3232 = vsel %vm869, %v3230, %v3231
  %v3233 = vrot.slane %v3199, 3
  %v3234 = vrot.slane %v3200, 3
  %v3235 = vsel %vm869, %v3233, %v3234
  %v3243 = vadd.f32 %v3176, %v3217
  %v3244 = vadd.f32 %v3177, %v3220
  %v3245 = vadd.f32 %v3178, %v3223
  %v3246 = vadd.f32 %v3179, %v3226
  %v3247 = vadd.f32 %v3180, %v3229
  %v3248 = vadd.f32 %v3181, %v3232
  %v3249 = vadd.f32 %v3182, %v3235
  %v3250 = vlaneseq
  %v3251 = vshrl.u32 %v3250, 7
  %v3252 = vsub.s32 4, %v3251
  %v3253 = vrot.slane %v689, %v3252
  %v3254 = vmul.f32 %v2020, %v3253
  %v3255 = vmul.f32 %v2021, %v3253
  %v3256 = vmul.f32 %v2022, %v3253
  %v3257 = vmul.f32 %v2023, %v3253
  %v3258 = vmul.f32 %v2024, %v3253
  %v3259 = vmul.f32 %v2025, %v3253
  %v3260 = vmul.f32 %v2026, %v3253
  %v3261 = vmul.f32 %v2027, %v3253
  %v3262 = vmul.f32 %v2028, %v3253
  %v3263 = vmul.f32 %v2029, %v3253
  %v3264 = vmul.f32 %v2030, %v3253
  %v3265 = vmul.f32 %v2031, %v3253
  %v3266 = vmul.f32 %v2032, %v3253
  %v3267 = vmul.f32 %v2033, %v3253
  %v3282 = vrot.slane %v3254, 4
  %v3283 = vrot.slane %v3255, 4
  %v3284 = vsel %vm937, %v3282, %v3283
  %v3285 = vrot.slane %v3256, 4
  %v3286 = vrot.slane %v3257, 4
  %v3287 = vsel %vm937, %v3285, %v3286
  %v3288 = vrot.slane %v3258, 4
  %v3289 = vrot.slane %v3259, 4
  %v3290 = vsel %vm937, %v3288, %v3289
  %v3291 = vrot.slane %v3260, 4
  %v3292 = vrot.slane %v3261, 4
  %v3293 = vsel %vm937, %v3291, %v3292
  %v3294 = vrot.slane %v3262, 4
  %v3295 = vrot.slane %v3263, 4
  %v3296 = vsel %vm937, %v3294, %v3295
  %v3297 = vrot.slane %v3264, 4
  %v3298 = vrot.slane %v3265, 4
  %v3299 = vsel %vm937, %v3297, %v3298
  %v3300 = vrot.slane %v3266, 4
  %v3301 = vrot.slane %v3267, 4
  %v3302 = vsel %vm937, %v3300, %v3301
  %v3310 = vadd.f32 %v3243, %v3284
  %v3311 = vadd.f32 %v3244, %v3287
  %v3312 = vadd.f32 %v3245, %v3290
  %v3313 = vadd.f32 %v3246, %v3293
  %v3314 = vadd.f32 %v3247, %v3296
  %v3315 = vadd.f32 %v3248, %v3299
  %v3316 = vadd.f32 %v3249, %v3302
  %3317 = vst [vmem:[%s2 + $0x8] sm:$0x7f] %v3310
  %3318 = vst [vmem:[%s2 + $0x50] sm:$0x7f] %v3311
  %3319 = vst [vmem:[%s2 + $0x98] sm:$0x7f] %v3312
  %3320 = vst [vmem:[%s2 + $0xe0] sm:$0x7f] %v3313
  %3321 = vst [vmem:[%s2 + $0x128] sm:$0x7f] %v3314
  %3322 = vst [vmem:[%s2 + $0x170] sm:$0x7f] %v3315
  %3323 = vst [vmem:[%s2 + $0x1b8] sm:$0x7f] %v3316
  %v3324 = vld [vmem:[#allocation2 + $0x10] sm:$0xff]
  %v3325 = vld [vmem:[#allocation2 + $0x58] sm:$0x7]
  %v3326 = vld [vmem:[#allocation2 + $0xa0] sm:$0xff]
  %v3327 = vld [vmem:[#allocation2 + $0xe8] sm:$0x7]
  %v3328 = vld [vmem:[#allocation2 + $0x130] sm:$0xff]
  %v3329 = vld [vmem:[#allocation2 + $0x178] sm:$0x7]
  %v3330 = vld [vmem:[#allocation2 + $0x1c0] sm:$0xff]
  %v3331 = vld [vmem:[#allocation2 + $0x208] sm:$0x7]
  %v3332 = vld [vmem:[#allocation2 + $0x250] sm:$0xff]
  %v3333 = vld [vmem:[#allocation2 + $0x298] sm:$0x7]
  %v3334 = vld [vmem:[#allocation2 + $0x2e0] sm:$0xff]
  %v3335 = vld [vmem:[#allocation2 + $0x328] sm:$0x7]
  %v3336 = vld [vmem:[#allocation2 + $0x370] sm:$0xff]
  %v3337 = vld [vmem:[#allocation2 + $0x3b8] sm:$0x7]
  %v3338 = vld [vmem:[#allocation2 + $0x400] sm:$0xff]
  %v3339 = vld [vmem:[#allocation2 + $0x448] sm:$0x7]
  %v3340 = vld [vmem:[#allocation2 + $0x490] sm:$0xff]
  %v3341 = vld [vmem:[#allocation2 + $0x4d8] sm:$0x7]
  %v3342 = vld [vmem:[#allocation2 + $0x520] sm:$0xff]
  %v3343 = vld [vmem:[#allocation2 + $0x568] sm:$0x7]
  %v3344 = vld [vmem:[#allocation2 + $0x5b0] sm:$0xff]
  %v3345 = vld [vmem:[#allocation2 + $0x5f8] sm:$0x7]
  %v3346 = vlaneseq
  %v3347 = vshrl.u32 %v3346, 7
  %v3348 = vsub.s32 0, %v3347
  %v3349 = vrot.slane %v654, %v3348
  %v3350 = vmul.f32 %v3324, %v3349
  %v3351 = vmul.f32 %v3326, %v3349
  %v3352 = vmul.f32 %v3328, %v3349
  %v3353 = vmul.f32 %v3330, %v3349
  %v3354 = vmul.f32 %v3332, %v3349
  %v3355 = vmul.f32 %v3334, %v3349
  %v3356 = vmul.f32 %v3336, %v3349
  %v3357 = vlaneseq
  %v3358 = vshrl.u32 %v3357, 7
  %v3359 = vsub.s32 1, %v3358
  %v3360 = vrot.slane %v654, %v3359
  %v3361 = vmul.f32 %v3324, %v3360
  %v3362 = vmul.f32 %v3326, %v3360
  %v3363 = vmul.f32 %v3328, %v3360
  %v3364 = vmul.f32 %v3330, %v3360
  %v3365 = vmul.f32 %v3332, %v3360
  %v3366 = vmul.f32 %v3334, %v3360
  %v3367 = vmul.f32 %v3336, %v3360
  %v3375 = vrot.slane %v3361, 1
  %v3376 = vrot.slane %v3362, 1
  %v3377 = vrot.slane %v3363, 1
  %v3378 = vrot.slane %v3364, 1
  %v3379 = vrot.slane %v3365, 1
  %v3380 = vrot.slane %v3366, 1
  %v3381 = vrot.slane %v3367, 1
  %v3389 = vadd.f32 %v3350, %v3375
  %v3390 = vadd.f32 %v3351, %v3376
  %v3391 = vadd.f32 %v3352, %v3377
  %v3392 = vadd.f32 %v3353, %v3378
  %v3393 = vadd.f32 %v3354, %v3379
  %v3394 = vadd.f32 %v3355, %v3380
  %v3395 = vadd.f32 %v3356, %v3381
  %v3396 = vlaneseq
  %v3397 = vshrl.u32 %v3396, 7
  %v3398 = vsub.s32 2, %v3397
  %v3399 = vrot.slane %v654, %v3398
  %v3400 = vmul.f32 %v3324, %v3399
  %v3401 = vmul.f32 %v3325, %v3399
  %v3402 = vmul.f32 %v3326, %v3399
  %v3403 = vmul.f32 %v3327, %v3399
  %v3404 = vmul.f32 %v3328, %v3399
  %v3405 = vmul.f32 %v3329, %v3399
  %v3406 = vmul.f32 %v3330, %v3399
  %v3407 = vmul.f32 %v3331, %v3399
  %v3408 = vmul.f32 %v3332, %v3399
  %v3409 = vmul.f32 %v3333, %v3399
  %v3410 = vmul.f32 %v3334, %v3399
  %v3411 = vmul.f32 %v3335, %v3399
  %v3412 = vmul.f32 %v3336, %v3399
  %v3413 = vmul.f32 %v3337, %v3399
  %v3428 = vrot.slane %v3400, 2
  %v3429 = vrot.slane %v3401, 2
  %v3430 = vsel %vm801, %v3428, %v3429
  %v3431 = vrot.slane %v3402, 2
  %v3432 = vrot.slane %v3403, 2
  %v3433 = vsel %vm801, %v3431, %v3432
  %v3434 = vrot.slane %v3404, 2
  %v3435 = vrot.slane %v3405, 2
  %v3436 = vsel %vm801, %v3434, %v3435
  %v3437 = vrot.slane %v3406, 2
  %v3438 = vrot.slane %v3407, 2
  %v3439 = vsel %vm801, %v3437, %v3438
  %v3440 = vrot.slane %v3408, 2
  %v3441 = vrot.slane %v3409, 2
  %v3442 = vsel %vm801, %v3440, %v3441
  %v3443 = vrot.slane %v3410, 2
  %v3444 = vrot.slane %v3411, 2
  %v3445 = vsel %vm801, %v3443, %v3444
  %v3446 = vrot.slane %v3412, 2
  %v3447 = vrot.slane %v3413, 2
  %v3448 = vsel %vm801, %v3446, %v3447
  %v3456 = vadd.f32 %v3389, %v3430
  %v3457 = vadd.f32 %v3390, %v3433
  %v3458 = vadd.f32 %v3391, %v3436
  %v3459 = vadd.f32 %v3392, %v3439
  %v3460 = vadd.f32 %v3393, %v3442
  %v3461 = vadd.f32 %v3394, %v3445
  %v3462 = vadd.f32 %v3395, %v3448
  %v3463 = vlaneseq
  %v3464 = vshrl.u32 %v3463, 7
  %v3465 = vsub.s32 3, %v3464
  %v3466 = vrot.slane %v654, %v3465
  %v3467 = vmul.f32 %v3324, %v3466
  %v3468 = vmul.f32 %v3325, %v3466
  %v3469 = vmul.f32 %v3326, %v3466
  %v3470 = vmul.f32 %v3327, %v3466
  %v3471 = vmul.f32 %v3328, %v3466
  %v3472 = vmul.f32 %v3329, %v3466
  %v3473 = vmul.f32 %v3330, %v3466
  %v3474 = vmul.f32 %v3331, %v3466
  %v3475 = vmul.f32 %v3332, %v3466
  %v3476 = vmul.f32 %v3333, %v3466
  %v3477 = vmul.f32 %v3334, %v3466
  %v3478 = vmul.f32 %v3335, %v3466
  %v3479 = vmul.f32 %v3336, %v3466
  %v3480 = vmul.f32 %v3337, %v3466
  %v3495 = vrot.slane %v3467, 3
  %v3496 = vrot.slane %v3468, 3
  %v3497 = vsel %vm869, %v3495, %v3496
  %v3498 = vrot.slane %v3469, 3
  %v3499 = vrot.slane %v3470, 3
  %v3500 = vsel %vm869, %v3498, %v3499
  %v3501 = vrot.slane %v3471, 3
  %v3502 = vrot.slane %v3472, 3
  %v3503 = vsel %vm869, %v3501, %v3502
  %v3504 = vrot.slane %v3473, 3
  %v3505 = vrot.slane %v3474, 3
  %v3506 = vsel %vm869, %v3504, %v3505
  %v3507 = vrot.slane %v3475, 3
  %v3508 = vrot.slane %v3476, 3
  %v3509 = vsel %vm869, %v3507, %v3508
  %v3510 = vrot.slane %v3477, 3
  %v3511 = vrot.slane %v3478, 3
  %v3512 = vsel %vm869, %v3510, %v3511
  %v3513 = vrot.slane %v3479, 3
  %v3514 = vrot.slane %v3480, 3
  %v3515 = vsel %vm869, %v3513, %v3514
  %v3523 = vadd.f32 %v3456, %v3497
  %v3524 = vadd.f32 %v3457, %v3500
  %v3525 = vadd.f32 %v3458, %v3503
  %v3526 = vadd.f32 %v3459, %v3506
  %v3527 = vadd.f32 %v3460, %v3509
  %v3528 = vadd.f32 %v3461, %v3512
  %v3529 = vadd.f32 %v3462, %v3515
  %v3530 = vlaneseq
  %v3531 = vshrl.u32 %v3530, 7
  %v3532 = vsub.s32 4, %v3531
  %v3533 = vrot.slane %v654, %v3532
  %v3534 = vmul.f32 %v3324, %v3533
  %v3535 = vmul.f32 %v3325, %v3533
  %v3536 = vmul.f32 %v3326, %v3533
  %v3537 = vmul.f32 %v3327, %v3533
  %v3538 = vmul.f32 %v3328, %v3533
  %v3539 = vmul.f32 %v3329, %v3533
  %v3540 = vmul.f32 %v3330, %v3533
  %v3541 = vmul.f32 %v3331, %v3533
  %v3542 = vmul.f32 %v3332, %v3533
  %v3543 = vmul.f32 %v3333, %v3533
  %v3544 = vmul.f32 %v3334, %v3533
  %v3545 = vmul.f32 %v3335, %v3533
  %v3546 = vmul.f32 %v3336, %v3533
  %v3547 = vmul.f32 %v3337, %v3533
  %v3562 = vrot.slane %v3534, 4
  %v3563 = vrot.slane %v3535, 4
  %v3564 = vsel %vm937, %v3562, %v3563
  %v3565 = vrot.slane %v3536, 4
  %v3566 = vrot.slane %v3537, 4
  %v3567 = vsel %vm937, %v3565, %v3566
  %v3568 = vrot.slane %v3538, 4
  %v3569 = vrot.slane %v3539, 4
  %v3570 = vsel %vm937, %v3568, %v3569
  %v3571 = vrot.slane %v3540, 4
  %v3572 = vrot.slane %v3541, 4
  %v3573 = vsel %vm937, %v3571, %v3572
  %v3574 = vrot.slane %v3542, 4
  %v3575 = vrot.slane %v3543, 4
  %v3576 = vsel %vm937, %v3574, %v3575
  %v3577 = vrot.slane %v3544, 4
  %v3578 = vrot.slane %v3545, 4
  %v3579 = vsel %vm937, %v3577, %v3578
  %v3580 = vrot.slane %v3546, 4
  %v3581 = vrot.slane %v3547, 4
  %v3582 = vsel %vm937, %v3580, %v3581
  %v3590 = vadd.f32 %v3523, %v3564
  %v3591 = vadd.f32 %v3524, %v3567
  %v3592 = vadd.f32 %v3525, %v3570
  %v3593 = vadd.f32 %v3526, %v3573
  %v3594 = vadd.f32 %v3527, %v3576
  %v3595 = vadd.f32 %v3528, %v3579
  %v3596 = vadd.f32 %v3529, %v3582
  %v3597 = vlaneseq
  %v3598 = vshrl.u32 %v3597, 7
  %v3599 = vsub.s32 0, %v3598
  %v3600 = vrot.slane %v663, %v3599
  %v3601 = vmul.f32 %v3326, %v3600
  %v3602 = vmul.f32 %v3328, %v3600
  %v3603 = vmul.f32 %v3330, %v3600
  %v3604 = vmul.f32 %v3332, %v3600
  %v3605 = vmul.f32 %v3334, %v3600
  %v3606 = vmul.f32 %v3336, %v3600
  %v3607 = vmul.f32 %v3338, %v3600
  %v3608 = vadd.f32 %v3590, %v3601
  %v3609 = vadd.f32 %v3591, %v3602
  %v3610 = vadd.f32 %v3592, %v3603
  %v3611 = vadd.f32 %v3593, %v3604
  %v3612 = vadd.f32 %v3594, %v3605
  %v3613 = vadd.f32 %v3595, %v3606
  %v3614 = vadd.f32 %v3596, %v3607
  %v3615 = vlaneseq
  %v3616 = vshrl.u32 %v3615, 7
  %v3617 = vsub.s32 1, %v3616
  %v3618 = vrot.slane %v663, %v3617
  %v3619 = vmul.f32 %v3326, %v3618
  %v3620 = vmul.f32 %v3328, %v3618
  %v3621 = vmul.f32 %v3330, %v3618
  %v3622 = vmul.f32 %v3332, %v3618
  %v3623 = vmul.f32 %v3334, %v3618
  %v3624 = vmul.f32 %v3336, %v3618
  %v3625 = vmul.f32 %v3338, %v3618
  %v3633 = vrot.slane %v3619, 1
  %v3634 = vrot.slane %v3620, 1
  %v3635 = vrot.slane %v3621, 1
  %v3636 = vrot.slane %v3622, 1
  %v3637 = vrot.slane %v3623, 1
  %v3638 = vrot.slane %v3624, 1
  %v3639 = vrot.slane %v3625, 1
  %v3647 = vadd.f32 %v3608, %v3633
  %v3648 = vadd.f32 %v3609, %v3634
  %v3649 = vadd.f32 %v3610, %v3635
  %v3650 = vadd.f32 %v3611, %v3636
  %v3651 = vadd.f32 %v3612, %v3637
  %v3652 = vadd.f32 %v3613, %v3638
  %v3653 = vadd.f32 %v3614, %v3639
  %v3654 = vlaneseq
  %v3655 = vshrl.u32 %v3654, 7
  %v3656 = vsub.s32 2, %v3655
  %v3657 = vrot.slane %v663, %v3656
  %v3658 = vmul.f32 %v3326, %v3657
  %v3659 = vmul.f32 %v3327, %v3657
  %v3660 = vmul.f32 %v3328, %v3657
  %v3661 = vmul.f32 %v3329, %v3657
  %v3662 = vmul.f32 %v3330, %v3657
  %v3663 = vmul.f32 %v3331, %v3657
  %v3664 = vmul.f32 %v3332, %v3657
  %v3665 = vmul.f32 %v3333, %v3657
  %v3666 = vmul.f32 %v3334, %v3657
  %v3667 = vmul.f32 %v3335, %v3657
  %v3668 = vmul.f32 %v3336, %v3657
  %v3669 = vmul.f32 %v3337, %v3657
  %v3670 = vmul.f32 %v3338, %v3657
  %v3671 = vmul.f32 %v3339, %v3657
  %v3686 = vrot.slane %v3658, 2
  %v3687 = vrot.slane %v3659, 2
  %v3688 = vsel %vm801, %v3686, %v3687
  %v3689 = vrot.slane %v3660, 2
  %v3690 = vrot.slane %v3661, 2
  %v3691 = vsel %vm801, %v3689, %v3690
  %v3692 = vrot.slane %v3662, 2
  %v3693 = vrot.slane %v3663, 2
  %v3694 = vsel %vm801, %v3692, %v3693
  %v3695 = vrot.slane %v3664, 2
  %v3696 = vrot.slane %v3665, 2
  %v3697 = vsel %vm801, %v3695, %v3696
  %v3698 = vrot.slane %v3666, 2
  %v3699 = vrot.slane %v3667, 2
  %v3700 = vsel %vm801, %v3698, %v3699
  %v3701 = vrot.slane %v3668, 2
  %v3702 = vrot.slane %v3669, 2
  %v3703 = vsel %vm801, %v3701, %v3702
  %v3704 = vrot.slane %v3670, 2
  %v3705 = vrot.slane %v3671, 2
  %v3706 = vsel %vm801, %v3704, %v3705
  %v3714 = vadd.f32 %v3647, %v3688
  %v3715 = vadd.f32 %v3648, %v3691
  %v3716 = vadd.f32 %v3649, %v3694
  %v3717 = vadd.f32 %v3650, %v3697
  %v3718 = vadd.f32 %v3651, %v3700
  %v3719 = vadd.f32 %v3652, %v3703
  %v3720 = vadd.f32 %v3653, %v3706
  %v3721 = vlaneseq
  %v3722 = vshrl.u32 %v3721, 7
  %v3723 = vsub.s32 3, %v3722
  %v3724 = vrot.slane %v663, %v3723
  %v3725 = vmul.f32 %v3326, %v3724
  %v3726 = vmul.f32 %v3327, %v3724
  %v3727 = vmul.f32 %v3328, %v3724
  %v3728 = vmul.f32 %v3329, %v3724
  %v3729 = vmul.f32 %v3330, %v3724
  %v3730 = vmul.f32 %v3331, %v3724
  %v3731 = vmul.f32 %v3332, %v3724
  %v3732 = vmul.f32 %v3333, %v3724
  %v3733 = vmul.f32 %v3334, %v3724
  %v3734 = vmul.f32 %v3335, %v3724
  %v3735 = vmul.f32 %v3336, %v3724
  %v3736 = vmul.f32 %v3337, %v3724
  %v3737 = vmul.f32 %v3338, %v3724
  %v3738 = vmul.f32 %v3339, %v3724
  %v3753 = vrot.slane %v3725, 3
  %v3754 = vrot.slane %v3726, 3
  %v3755 = vsel %vm869, %v3753, %v3754
  %v3756 = vrot.slane %v3727, 3
  %v3757 = vrot.slane %v3728, 3
  %v3758 = vsel %vm869, %v3756, %v3757
  %v3759 = vrot.slane %v3729, 3
  %v3760 = vrot.slane %v3730, 3
  %v3761 = vsel %vm869, %v3759, %v3760
  %v3762 = vrot.slane %v3731, 3
  %v3763 = vrot.slane %v3732, 3
  %v3764 = vsel %vm869, %v3762, %v3763
  %v3765 = vrot.slane %v3733, 3
  %v3766 = vrot.slane %v3734, 3
  %v3767 = vsel %vm869, %v3765, %v3766
  %v3768 = vrot.slane %v3735, 3
  %v3769 = vrot.slane %v3736, 3
  %v3770 = vsel %vm869, %v3768, %v3769
  %v3771 = vrot.slane %v3737, 3
  %v3772 = vrot.slane %v3738, 3
  %v3773 = vsel %vm869, %v3771, %v3772
  %v3781 = vadd.f32 %v3714, %v3755
  %v3782 = vadd.f32 %v3715, %v3758
  %v3783 = vadd.f32 %v3716, %v3761
  %v3784 = vadd.f32 %v3717, %v3764
  %v3785 = vadd.f32 %v3718, %v3767
  %v3786 = vadd.f32 %v3719, %v3770
  %v3787 = vadd.f32 %v3720, %v3773
  %v3788 = vlaneseq
  %v3789 = vshrl.u32 %v3788, 7
  %v3790 = vsub.s32 4, %v3789
  %v3791 = vrot.slane %v663, %v3790
  %v3792 = vmul.f32 %v3326, %v3791
  %v3793 = vmul.f32 %v3327, %v3791
  %v3794 = vmul.f32 %v3328, %v3791
  %v3795 = vmul.f32 %v3329, %v3791
  %v3796 = vmul.f32 %v3330, %v3791
  %v3797 = vmul.f32 %v3331, %v3791
  %v3798 = vmul.f32 %v3332, %v3791
  %v3799 = vmul.f32 %v3333, %v3791
  %v3800 = vmul.f32 %v3334, %v3791
  %v3801 = vmul.f32 %v3335, %v3791
  %v3802 = vmul.f32 %v3336, %v3791
  %v3803 = vmul.f32 %v3337, %v3791
  %v3804 = vmul.f32 %v3338, %v3791
  %v3805 = vmul.f32 %v3339, %v3791
  %v3820 = vrot.slane %v3792, 4
  %v3821 = vrot.slane %v3793, 4
  %v3822 = vsel %vm937, %v3820, %v3821
  %v3823 = vrot.slane %v3794, 4
  %v3824 = vrot.slane %v3795, 4
  %v3825 = vsel %vm937, %v3823, %v3824
  %v3826 = vrot.slane %v3796, 4
  %v3827 = vrot.slane %v3797, 4
  %v3828 = vsel %vm937, %v3826, %v3827
  %v3829 = vrot.slane %v3798, 4
  %v3830 = vrot.slane %v3799, 4
  %v3831 = vsel %vm937, %v3829, %v3830
  %v3832 = vrot.slane %v3800, 4
  %v3833 = vrot.slane %v3801, 4
  %v3834 = vsel %vm937, %v3832, %v3833
  %v3835 = vrot.slane %v3802, 4
  %v3836 = vrot.slane %v3803, 4
  %v3837 = vsel %vm937, %v3835, %v3836
  %v3838 = vrot.slane %v3804, 4
  %v3839 = vrot.slane %v3805, 4
  %v3840 = vsel %vm937, %v3838, %v3839
  %v3848 = vadd.f32 %v3781, %v3822
  %v3849 = vadd.f32 %v3782, %v3825
  %v3850 = vadd.f32 %v3783, %v3828
  %v3851 = vadd.f32 %v3784, %v3831
  %v3852 = vadd.f32 %v3785, %v3834
  %v3853 = vadd.f32 %v3786, %v3837
  %v3854 = vadd.f32 %v3787, %v3840
  %v3855 = vlaneseq
  %v3856 = vshrl.u32 %v3855, 7
  %v3857 = vsub.s32 0, %v3856
  %v3858 = vrot.slane %v672, %v3857
  %v3859 = vmul.f32 %v3328, %v3858
  %v3860 = vmul.f32 %v3330, %v3858
  %v3861 = vmul.f32 %v3332, %v3858
  %v3862 = vmul.f32 %v3334, %v3858
  %v3863 = vmul.f32 %v3336, %v3858
  %v3864 = vmul.f32 %v3338, %v3858
  %v3865 = vmul.f32 %v3340, %v3858
  %v3866 = vadd.f32 %v3848, %v3859
  %v3867 = vadd.f32 %v3849, %v3860
  %v3868 = vadd.f32 %v3850, %v3861
  %v3869 = vadd.f32 %v3851, %v3862
  %v3870 = vadd.f32 %v3852, %v3863
  %v3871 = vadd.f32 %v3853, %v3864
  %v3872 = vadd.f32 %v3854, %v3865
  %v3873 = vlaneseq
  %v3874 = vshrl.u32 %v3873, 7
  %v3875 = vsub.s32 1, %v3874
  %v3876 = vrot.slane %v672, %v3875
  %v3877 = vmul.f32 %v3328, %v3876
  %v3878 = vmul.f32 %v3330, %v3876
  %v3879 = vmul.f32 %v3332, %v3876
  %v3880 = vmul.f32 %v3334, %v3876
  %v3881 = vmul.f32 %v3336, %v3876
  %v3882 = vmul.f32 %v3338, %v3876
  %v3883 = vmul.f32 %v3340, %v3876
  %v3891 = vrot.slane %v3877, 1
  %v3892 = vrot.slane %v3878, 1
  %v3893 = vrot.slane %v3879, 1
  %v3894 = vrot.slane %v3880, 1
  %v3895 = vrot.slane %v3881, 1
  %v3896 = vrot.slane %v3882, 1
  %v3897 = vrot.slane %v3883, 1
  %v3905 = vadd.f32 %v3866, %v3891
  %v3906 = vadd.f32 %v3867, %v3892
  %v3907 = vadd.f32 %v3868, %v3893
  %v3908 = vadd.f32 %v3869, %v3894
  %v3909 = vadd.f32 %v3870, %v3895
  %v3910 = vadd.f32 %v3871, %v3896
  %v3911 = vadd.f32 %v3872, %v3897
  %v3912 = vlaneseq
  %v3913 = vshrl.u32 %v3912, 7
  %v3914 = vsub.s32 2, %v3913
  %v3915 = vrot.slane %v672, %v3914
  %v3916 = vmul.f32 %v3328, %v3915
  %v3917 = vmul.f32 %v3329, %v3915
  %v3918 = vmul.f32 %v3330, %v3915
  %v3919 = vmul.f32 %v3331, %v3915
  %v3920 = vmul.f32 %v3332, %v3915
  %v3921 = vmul.f32 %v3333, %v3915
  %v3922 = vmul.f32 %v3334, %v3915
  %v3923 = vmul.f32 %v3335, %v3915
  %v3924 = vmul.f32 %v3336, %v3915
  %v3925 = vmul.f32 %v3337, %v3915
  %v3926 = vmul.f32 %v3338, %v3915
  %v3927 = vmul.f32 %v3339, %v3915
  %v3928 = vmul.f32 %v3340, %v3915
  %v3929 = vmul.f32 %v3341, %v3915
  %v3944 = vrot.slane %v3916, 2
  %v3945 = vrot.slane %v3917, 2
  %v3946 = vsel %vm801, %v3944, %v3945
  %v3947 = vrot.slane %v3918, 2
  %v3948 = vrot.slane %v3919, 2
  %v3949 = vsel %vm801, %v3947, %v3948
  %v3950 = vrot.slane %v3920, 2
  %v3951 = vrot.slane %v3921, 2
  %v3952 = vsel %vm801, %v3950, %v3951
  %v3953 = vrot.slane %v3922, 2
  %v3954 = vrot.slane %v3923, 2
  %v3955 = vsel %vm801, %v3953, %v3954
  %v3956 = vrot.slane %v3924, 2
  %v3957 = vrot.slane %v3925, 2
  %v3958 = vsel %vm801, %v3956, %v3957
  %v3959 = vrot.slane %v3926, 2
  %v3960 = vrot.slane %v3927, 2
  %v3961 = vsel %vm801, %v3959, %v3960
  %v3962 = vrot.slane %v3928, 2
  %v3963 = vrot.slane %v3929, 2
  %v3964 = vsel %vm801, %v3962, %v3963
  %v3972 = vadd.f32 %v3905, %v3946
  %v3973 = vadd.f32 %v3906, %v3949
  %v3974 = vadd.f32 %v3907, %v3952
  %v3975 = vadd.f32 %v3908, %v3955
  %v3976 = vadd.f32 %v3909, %v3958
  %v3977 = vadd.f32 %v3910, %v3961
  %v3978 = vadd.f32 %v3911, %v3964
  %v3979 = vlaneseq
  %v3980 = vshrl.u32 %v3979, 7
  %v3981 = vsub.s32 3, %v3980
  %v3982 = vrot.slane %v672, %v3981
  %v3983 = vmul.f32 %v3328, %v3982
  %v3984 = vmul.f32 %v3329, %v3982
  %v3985 = vmul.f32 %v3330, %v3982
  %v3986 = vmul.f32 %v3331, %v3982
  %v3987 = vmul.f32 %v3332, %v3982
  %v3988 = vmul.f32 %v3333, %v3982
  %v3989 = vmul.f32 %v3334, %v3982
  %v3990 = vmul.f32 %v3335, %v3982
  %v3991 = vmul.f32 %v3336, %v3982
  %v3992 = vmul.f32 %v3337, %v3982
  %v3993 = vmul.f32 %v3338, %v3982
  %v3994 = vmul.f32 %v3339, %v3982
  %v3995 = vmul.f32 %v3340, %v3982
  %v3996 = vmul.f32 %v3341, %v3982
  %v4011 = vrot.slane %v3983, 3
  %v4012 = vrot.slane %v3984, 3
  %v4013 = vsel %vm869, %v4011, %v4012
  %v4014 = vrot.slane %v3985, 3
  %v4015 = vrot.slane %v3986, 3
  %v4016 = vsel %vm869, %v4014, %v4015
  %v4017 = vrot.slane %v3987, 3
  %v4018 = vrot.slane %v3988, 3
  %v4019 = vsel %vm869, %v4017, %v4018
  %v4020 = vrot.slane %v3989, 3
  %v4021 = vrot.slane %v3990, 3
  %v4022 = vsel %vm869, %v4020, %v4021
  %v4023 = vrot.slane %v3991, 3
  %v4024 = vrot.slane %v3992, 3
  %v4025 = vsel %vm869, %v4023, %v4024
  %v4026 = vrot.slane %v3993, 3
  %v4027 = vrot.slane %v3994, 3
  %v4028 = vsel %vm869, %v4026, %v4027
  %v4029 = vrot.slane %v3995, 3
  %v4030 = vrot.slane %v3996, 3
  %v4031 = vsel %vm869, %v4029, %v4030
  %v4039 = vadd.f32 %v3972, %v4013
  %v4040 = vadd.f32 %v3973, %v4016
  %v4041 = vadd.f32 %v3974, %v4019
  %v4042 = vadd.f32 %v3975, %v4022
  %v4043 = vadd.f32 %v3976, %v4025
  %v4044 = vadd.f32 %v3977, %v4028
  %v4045 = vadd.f32 %v3978, %v4031
  %v4046 = vlaneseq
  %v4047 = vshrl.u32 %v4046, 7
  %v4048 = vsub.s32 4, %v4047
  %v4049 = vrot.slane %v672, %v4048
  %v4050 = vmul.f32 %v3328, %v4049
  %v4051 = vmul.f32 %v3329, %v4049
  %v4052 = vmul.f32 %v3330, %v4049
  %v4053 = vmul.f32 %v3331, %v4049
  %v4054 = vmul.f32 %v3332, %v4049
  %v4055 = vmul.f32 %v3333, %v4049
  %v4056 = vmul.f32 %v3334, %v4049
  %v4057 = vmul.f32 %v3335, %v4049
  %v4058 = vmul.f32 %v3336, %v4049
  %v4059 = vmul.f32 %v3337, %v4049
  %v4060 = vmul.f32 %v3338, %v4049
  %v4061 = vmul.f32 %v3339, %v4049
  %v4062 = vmul.f32 %v3340, %v4049
  %v4063 = vmul.f32 %v3341, %v4049
  %v4078 = vrot.slane %v4050, 4
  %v4079 = vrot.slane %v4051, 4
  %v4080 = vsel %vm937, %v4078, %v4079
  %v4081 = vrot.slane %v4052, 4
  %v4082 = vrot.slane %v4053, 4
  %v4083 = vsel %vm937, %v4081, %v4082
  %v4084 = vrot.slane %v4054, 4
  %v4085 = vrot.slane %v4055, 4
  %v4086 = vsel %vm937, %v4084, %v4085
  %v4087 = vrot.slane %v4056, 4
  %v4088 = vrot.slane %v4057, 4
  %v4089 = vsel %vm937, %v4087, %v4088
  %v4090 = vrot.slane %v4058, 4
  %v4091 = vrot.slane %v4059, 4
  %v4092 = vsel %vm937, %v4090, %v4091
  %v4093 = vrot.slane %v4060, 4
  %v4094 = vrot.slane %v4061, 4
  %v4095 = vsel %vm937, %v4093, %v4094
  %v4096 = vrot.slane %v4062, 4
  %v4097 = vrot.slane %v4063, 4
  %v4098 = vsel %vm937, %v4096, %v4097
  %v4106 = vadd.f32 %v4039, %v4080
  %v4107 = vadd.f32 %v4040, %v4083
  %v4108 = vadd.f32 %v4041, %v4086
  %v4109 = vadd.f32 %v4042, %v4089
  %v4110 = vadd.f32 %v4043, %v4092
  %v4111 = vadd.f32 %v4044, %v4095
  %v4112 = vadd.f32 %v4045, %v4098
  %v4113 = vlaneseq
  %v4114 = vshrl.u32 %v4113, 7
  %v4115 = vsub.s32 0, %v4114
  %v4116 = vrot.slane %v681, %v4115
  %v4117 = vmul.f32 %v3330, %v4116
  %v4118 = vmul.f32 %v3332, %v4116
  %v4119 = vmul.f32 %v3334, %v4116
  %v4120 = vmul.f32 %v3336, %v4116
  %v4121 = vmul.f32 %v3338, %v4116
  %v4122 = vmul.f32 %v3340, %v4116
  %v4123 = vmul.f32 %v3342, %v4116
  %v4124 = vadd.f32 %v4106, %v4117
  %v4125 = vadd.f32 %v4107, %v4118
  %v4126 = vadd.f32 %v4108, %v4119
  %v4127 = vadd.f32 %v4109, %v4120
  %v4128 = vadd.f32 %v4110, %v4121
  %v4129 = vadd.f32 %v4111, %v4122
  %v4130 = vadd.f32 %v4112, %v4123
  %v4131 = vlaneseq
  %v4132 = vshrl.u32 %v4131, 7
  %v4133 = vsub.s32 1, %v4132
  %v4134 = vrot.slane %v681, %v4133
  %v4135 = vmul.f32 %v3330, %v4134
  %v4136 = vmul.f32 %v3332, %v4134
  %v4137 = vmul.f32 %v3334, %v4134
  %v4138 = vmul.f32 %v3336, %v4134
  %v4139 = vmul.f32 %v3338, %v4134
  %v4140 = vmul.f32 %v3340, %v4134
  %v4141 = vmul.f32 %v3342, %v4134
  %v4149 = vrot.slane %v4135, 1
  %v4150 = vrot.slane %v4136, 1
  %v4151 = vrot.slane %v4137, 1
  %v4152 = vrot.slane %v4138, 1
  %v4153 = vrot.slane %v4139, 1
  %v4154 = vrot.slane %v4140, 1
  %v4155 = vrot.slane %v4141, 1
  %v4163 = vadd.f32 %v4124, %v4149
  %v4164 = vadd.f32 %v4125, %v4150
  %v4165 = vadd.f32 %v4126, %v4151
  %v4166 = vadd.f32 %v4127, %v4152
  %v4167 = vadd.f32 %v4128, %v4153
  %v4168 = vadd.f32 %v4129, %v4154
  %v4169 = vadd.f32 %v4130, %v4155
  %v4170 = vlaneseq
  %v4171 = vshrl.u32 %v4170, 7
  %v4172 = vsub.s32 2, %v4171
  %v4173 = vrot.slane %v681, %v4172
  %v4174 = vmul.f32 %v3330, %v4173
  %v4175 = vmul.f32 %v3331, %v4173
  %v4176 = vmul.f32 %v3332, %v4173
  %v4177 = vmul.f32 %v3333, %v4173
  %v4178 = vmul.f32 %v3334, %v4173
  %v4179 = vmul.f32 %v3335, %v4173
  %v4180 = vmul.f32 %v3336, %v4173
  %v4181 = vmul.f32 %v3337, %v4173
  %v4182 = vmul.f32 %v3338, %v4173
  %v4183 = vmul.f32 %v3339, %v4173
  %v4184 = vmul.f32 %v3340, %v4173
  %v4185 = vmul.f32 %v3341, %v4173
  %v4186 = vmul.f32 %v3342, %v4173
  %v4187 = vmul.f32 %v3343, %v4173
  %v4202 = vrot.slane %v4174, 2
  %v4203 = vrot.slane %v4175, 2
  %v4204 = vsel %vm801, %v4202, %v4203
  %v4205 = vrot.slane %v4176, 2
  %v4206 = vrot.slane %v4177, 2
  %v4207 = vsel %vm801, %v4205, %v4206
  %v4208 = vrot.slane %v4178, 2
  %v4209 = vrot.slane %v4179, 2
  %v4210 = vsel %vm801, %v4208, %v4209
  %v4211 = vrot.slane %v4180, 2
  %v4212 = vrot.slane %v4181, 2
  %v4213 = vsel %vm801, %v4211, %v4212
  %v4214 = vrot.slane %v4182, 2
  %v4215 = vrot.slane %v4183, 2
  %v4216 = vsel %vm801, %v4214, %v4215
  %v4217 = vrot.slane %v4184, 2
  %v4218 = vrot.slane %v4185, 2
  %v4219 = vsel %vm801, %v4217, %v4218
  %v4220 = vrot.slane %v4186, 2
  %v4221 = vrot.slane %v4187, 2
  %v4222 = vsel %vm801, %v4220, %v4221
  %v4230 = vadd.f32 %v4163, %v4204
  %v4231 = vadd.f32 %v4164, %v4207
  %v4232 = vadd.f32 %v4165, %v4210
  %v4233 = vadd.f32 %v4166, %v4213
  %v4234 = vadd.f32 %v4167, %v4216
  %v4235 = vadd.f32 %v4168, %v4219
  %v4236 = vadd.f32 %v4169, %v4222
  %v4237 = vlaneseq
  %v4238 = vshrl.u32 %v4237, 7
  %v4239 = vsub.s32 3, %v4238
  %v4240 = vrot.slane %v681, %v4239
  %v4241 = vmul.f32 %v3330, %v4240
  %v4242 = vmul.f32 %v3331, %v4240
  %v4243 = vmul.f32 %v3332, %v4240
  %v4244 = vmul.f32 %v3333, %v4240
  %v4245 = vmul.f32 %v3334, %v4240
  %v4246 = vmul.f32 %v3335, %v4240
  %v4247 = vmul.f32 %v3336, %v4240
  %v4248 = vmul.f32 %v3337, %v4240
  %v4249 = vmul.f32 %v3338, %v4240
  %v4250 = vmul.f32 %v3339, %v4240
  %v4251 = vmul.f32 %v3340, %v4240
  %v4252 = vmul.f32 %v3341, %v4240
  %v4253 = vmul.f32 %v3342, %v4240
  %v4254 = vmul.f32 %v3343, %v4240
  %v4269 = vrot.slane %v4241, 3
  %v4270 = vrot.slane %v4242, 3
  %v4271 = vsel %vm869, %v4269, %v4270
  %v4272 = vrot.slane %v4243, 3
  %v4273 = vrot.slane %v4244, 3
  %v4274 = vsel %vm869, %v4272, %v4273
  %v4275 = vrot.slane %v4245, 3
  %v4276 = vrot.slane %v4246, 3
  %v4277 = vsel %vm869, %v4275, %v4276
  %v4278 = vrot.slane %v4247, 3
  %v4279 = vrot.slane %v4248, 3
  %v4280 = vsel %vm869, %v4278, %v4279
  %v4281 = vrot.slane %v4249, 3
  %v4282 = vrot.slane %v4250, 3
  %v4283 = vsel %vm869, %v4281, %v4282
  %v4284 = vrot.slane %v4251, 3
  %v4285 = vrot.slane %v4252, 3
  %v4286 = vsel %vm869, %v4284, %v4285
  %v4287 = vrot.slane %v4253, 3
  %v4288 = vrot.slane %v4254, 3
  %v4289 = vsel %vm869, %v4287, %v4288
  %v4297 = vadd.f32 %v4230, %v4271
  %v4298 = vadd.f32 %v4231, %v4274
  %v4299 = vadd.f32 %v4232, %v4277
  %v4300 = vadd.f32 %v4233, %v4280
  %v4301 = vadd.f32 %v4234, %v4283
  %v4302 = vadd.f32 %v4235, %v4286
  %v4303 = vadd.f32 %v4236, %v4289
  %v4304 = vlaneseq
  %v4305 = vshrl.u32 %v4304, 7
  %v4306 = vsub.s32 4, %v4305
  %v4307 = vrot.slane %v681, %v4306
  %v4308 = vmul.f32 %v3330, %v4307
  %v4309 = vmul.f32 %v3331, %v4307
  %v4310 = vmul.f32 %v3332, %v4307
  %v4311 = vmul.f32 %v3333, %v4307
  %v4312 = vmul.f32 %v3334, %v4307
  %v4313 = vmul.f32 %v3335, %v4307
  %v4314 = vmul.f32 %v3336, %v4307
  %v4315 = vmul.f32 %v3337, %v4307
  %v4316 = vmul.f32 %v3338, %v4307
  %v4317 = vmul.f32 %v3339, %v4307
  %v4318 = vmul.f32 %v3340, %v4307
  %v4319 = vmul.f32 %v3341, %v4307
  %v4320 = vmul.f32 %v3342, %v4307
  %v4321 = vmul.f32 %v3343, %v4307
  %v4336 = vrot.slane %v4308, 4
  %v4337 = vrot.slane %v4309, 4
  %v4338 = vsel %vm937, %v4336, %v4337
  %v4339 = vrot.slane %v4310, 4
  %v4340 = vrot.slane %v4311, 4
  %v4341 = vsel %vm937, %v4339, %v4340
  %v4342 = vrot.slane %v4312, 4
  %v4343 = vrot.slane %v4313, 4
  %v4344 = vsel %vm937, %v4342, %v4343
  %v4345 = vrot.slane %v4314, 4
  %v4346 = vrot.slane %v4315, 4
  %v4347 = vsel %vm937, %v4345, %v4346
  %v4348 = vrot.slane %v4316, 4
  %v4349 = vrot.slane %v4317, 4
  %v4350 = vsel %vm937, %v4348, %v4349
  %v4351 = vrot.slane %v4318, 4
  %v4352 = vrot.slane %v4319, 4
  %v4353 = vsel %vm937, %v4351, %v4352
  %v4354 = vrot.slane %v4320, 4
  %v4355 = vrot.slane %v4321, 4
  %v4356 = vsel %vm937, %v4354, %v4355
  %v4364 = vadd.f32 %v4297, %v4338
  %v4365 = vadd.f32 %v4298, %v4341
  %v4366 = vadd.f32 %v4299, %v4344
  %v4367 = vadd.f32 %v4300, %v4347
  %v4368 = vadd.f32 %v4301, %v4350
  %v4369 = vadd.f32 %v4302, %v4353
  %v4370 = vadd.f32 %v4303, %v4356
  %v4371 = vlaneseq
  %v4372 = vshrl.u32 %v4371, 7
  %v4373 = vsub.s32 0, %v4372
  %v4374 = vrot.slane %v690, %v4373
  %v4375 = vmul.f32 %v3332, %v4374
  %v4376 = vmul.f32 %v3334, %v4374
  %v4377 = vmul.f32 %v3336, %v4374
  %v4378 = vmul.f32 %v3338, %v4374
  %v4379 = vmul.f32 %v3340, %v4374
  %v4380 = vmul.f32 %v3342, %v4374
  %v4381 = vmul.f32 %v3344, %v4374
  %v4382 = vadd.f32 %v4364, %v4375
  %v4383 = vadd.f32 %v4365, %v4376
  %v4384 = vadd.f32 %v4366, %v4377
  %v4385 = vadd.f32 %v4367, %v4378
  %v4386 = vadd.f32 %v4368, %v4379
  %v4387 = vadd.f32 %v4369, %v4380
  %v4388 = vadd.f32 %v4370, %v4381
  %v4389 = vlaneseq
  %v4390 = vshrl.u32 %v4389, 7
  %v4391 = vsub.s32 1, %v4390
  %v4392 = vrot.slane %v690, %v4391
  %v4393 = vmul.f32 %v3332, %v4392
  %v4394 = vmul.f32 %v3334, %v4392
  %v4395 = vmul.f32 %v3336, %v4392
  %v4396 = vmul.f32 %v3338, %v4392
  %v4397 = vmul.f32 %v3340, %v4392
  %v4398 = vmul.f32 %v3342, %v4392
  %v4399 = vmul.f32 %v3344, %v4392
  %v4407 = vrot.slane %v4393, 1
  %v4408 = vrot.slane %v4394, 1
  %v4409 = vrot.slane %v4395, 1
  %v4410 = vrot.slane %v4396, 1
  %v4411 = vrot.slane %v4397, 1
  %v4412 = vrot.slane %v4398, 1
  %v4413 = vrot.slane %v4399, 1
  %v4421 = vadd.f32 %v4382, %v4407
  %v4422 = vadd.f32 %v4383, %v4408
  %v4423 = vadd.f32 %v4384, %v4409
  %v4424 = vadd.f32 %v4385, %v4410
  %v4425 = vadd.f32 %v4386, %v4411
  %v4426 = vadd.f32 %v4387, %v4412
  %v4427 = vadd.f32 %v4388, %v4413
  %v4428 = vlaneseq
  %v4429 = vshrl.u32 %v4428, 7
  %v4430 = vsub.s32 2, %v4429
  %v4431 = vrot.slane %v690, %v4430
  %v4432 = vmul.f32 %v3332, %v4431
  %v4433 = vmul.f32 %v3333, %v4431
  %v4434 = vmul.f32 %v3334, %v4431
  %v4435 = vmul.f32 %v3335, %v4431
  %v4436 = vmul.f32 %v3336, %v4431
  %v4437 = vmul.f32 %v3337, %v4431
  %v4438 = vmul.f32 %v3338, %v4431
  %v4439 = vmul.f32 %v3339, %v4431
  %v4440 = vmul.f32 %v3340, %v4431
  %v4441 = vmul.f32 %v3341, %v4431
  %v4442 = vmul.f32 %v3342, %v4431
  %v4443 = vmul.f32 %v3343, %v4431
  %v4444 = vmul.f32 %v3344, %v4431
  %v4445 = vmul.f32 %v3345, %v4431
  %v4460 = vrot.slane %v4432, 2
  %v4461 = vrot.slane %v4433, 2
  %v4462 = vsel %vm801, %v4460, %v4461
  %v4463 = vrot.slane %v4434, 2
  %v4464 = vrot.slane %v4435, 2
  %v4465 = vsel %vm801, %v4463, %v4464
  %v4466 = vrot.slane %v4436, 2
  %v4467 = vrot.slane %v4437, 2
  %v4468 = vsel %vm801, %v4466, %v4467
  %v4469 = vrot.slane %v4438, 2
  %v4470 = vrot.slane %v4439, 2
  %v4471 = vsel %vm801, %v4469, %v4470
  %v4472 = vrot.slane %v4440, 2
  %v4473 = vrot.slane %v4441, 2
  %v4474 = vsel %vm801, %v4472, %v4473
  %v4475 = vrot.slane %v4442, 2
  %v4476 = vrot.slane %v4443, 2
  %v4477 = vsel %vm801, %v4475, %v4476
  %v4478 = vrot.slane %v4444, 2
  %v4479 = vrot.slane %v4445, 2
  %v4480 = vsel %vm801, %v4478, %v4479
  %v4488 = vadd.f32 %v4421, %v4462
  %v4489 = vadd.f32 %v4422, %v4465
  %v4490 = vadd.f32 %v4423, %v4468
  %v4491 = vadd.f32 %v4424, %v4471
  %v4492 = vadd.f32 %v4425, %v4474
  %v4493 = vadd.f32 %v4426, %v4477
  %v4494 = vadd.f32 %v4427, %v4480
  %v4495 = vlaneseq
  %v4496 = vshrl.u32 %v4495, 7
  %v4497 = vsub.s32 3, %v4496
  %v4498 = vrot.slane %v690, %v4497
  %v4499 = vmul.f32 %v3332, %v4498
  %v4500 = vmul.f32 %v3333, %v4498
  %v4501 = vmul.f32 %v3334, %v4498
  %v4502 = vmul.f32 %v3335, %v4498
  %v4503 = vmul.f32 %v3336, %v4498
  %v4504 = vmul.f32 %v3337, %v4498
  %v4505 = vmul.f32 %v3338, %v4498
  %v4506 = vmul.f32 %v3339, %v4498
  %v4507 = vmul.f32 %v3340, %v4498
  %v4508 = vmul.f32 %v3341, %v4498
  %v4509 = vmul.f32 %v3342, %v4498
  %v4510 = vmul.f32 %v3343, %v4498
  %v4511 = vmul.f32 %v3344, %v4498
  %v4512 = vmul.f32 %v3345, %v4498
  %v4527 = vrot.slane %v4499, 3
  %v4528 = vrot.slane %v4500, 3
  %v4529 = vsel %vm869, %v4527, %v4528
  %v4530 = vrot.slane %v4501, 3
  %v4531 = vrot.slane %v4502, 3
  %v4532 = vsel %vm869, %v4530, %v4531
  %v4533 = vrot.slane %v4503, 3
  %v4534 = vrot.slane %v4504, 3
  %v4535 = vsel %vm869, %v4533, %v4534
  %v4536 = vrot.slane %v4505, 3
  %v4537 = vrot.slane %v4506, 3
  %v4538 = vsel %vm869, %v4536, %v4537
  %v4539 = vrot.slane %v4507, 3
  %v4540 = vrot.slane %v4508, 3
  %v4541 = vsel %vm869, %v4539, %v4540
  %v4542 = vrot.slane %v4509, 3
  %v4543 = vrot.slane %v4510, 3
  %v4544 = vsel %vm869, %v4542, %v4543
  %v4545 = vrot.slane %v4511, 3
  %v4546 = vrot.slane %v4512, 3
  %v4547 = vsel %vm869, %v4545, %v4546
  %v4555 = vadd.f32 %v4488, %v4529
  %v4556 = vadd.f32 %v4489, %v4532
  %v4557 = vadd.f32 %v4490, %v4535
  %v4558 = vadd.f32 %v4491, %v4538
  %v4559 = vadd.f32 %v4492, %v4541
  %v4560 = vadd.f32 %v4493, %v4544
  %v4561 = vadd.f32 %v4494, %v4547
  %v4562 = vlaneseq
  %v4563 = vshrl.u32 %v4562, 7
  %v4564 = vsub.s32 4, %v4563
  %v4565 = vrot.slane %v690, %v4564
  %v4566 = vmul.f32 %v3332, %v4565
  %v4567 = vmul.f32 %v3333, %v4565
  %v4568 = vmul.f32 %v3334, %v4565
  %v4569 = vmul.f32 %v3335, %v4565
  %v4570 = vmul.f32 %v3336, %v4565
  %v4571 = vmul.f32 %v3337, %v4565
  %v4572 = vmul.f32 %v3338, %v4565
  %v4573 = vmul.f32 %v3339, %v4565
  %v4574 = vmul.f32 %v3340, %v4565
  %v4575 = vmul.f32 %v3341, %v4565
  %v4576 = vmul.f32 %v3342, %v4565
  %v4577 = vmul.f32 %v3343, %v4565
  %v4578 = vmul.f32 %v3344, %v4565
  %v4579 = vmul.f32 %v3345, %v4565
  %v4594 = vrot.slane %v4566, 4
  %v4595 = vrot.slane %v4567, 4
  %v4596 = vsel %vm937, %v4594, %v4595
  %v4597 = vrot.slane %v4568, 4
  %v4598 = vrot.slane %v4569, 4
  %v4599 = vsel %vm937, %v4597, %v4598
  %v4600 = vrot.slane %v4570, 4
  %v4601 = vrot.slane %v4571, 4
  %v4602 = vsel %vm937, %v4600, %v4601
  %v4603 = vrot.slane %v4572, 4
  %v4604 = vrot.slane %v4573, 4
  %v4605 = vsel %vm937, %v4603, %v4604
  %v4606 = vrot.slane %v4574, 4
  %v4607 = vrot.slane %v4575, 4
  %v4608 = vsel %vm937, %v4606, %v4607
  %v4609 = vrot.slane %v4576, 4
  %v4610 = vrot.slane %v4577, 4
  %v4611 = vsel %vm937, %v4609, %v4610
  %v4612 = vrot.slane %v4578, 4
  %v4613 = vrot.slane %v4579, 4
  %v4614 = vsel %vm937, %v4612, %v4613
  %v4622 = vadd.f32 %v4555, %v4596
  %v4623 = vadd.f32 %v4556, %v4599
  %v4624 = vadd.f32 %v4557, %v4602
  %v4625 = vadd.f32 %v4558, %v4605
  %v4626 = vadd.f32 %v4559, %v4608
  %v4627 = vadd.f32 %v4560, %v4611
  %v4628 = vadd.f32 %v4561, %v4614
  %4629 = vst [vmem:[%s2 + $0x10] sm:$0x7f] %v4622
  %4630 = vst [vmem:[%s2 + $0x58] sm:$0x7f] %v4623
  %4631 = vst [vmem:[%s2 + $0xa0] sm:$0x7f] %v4624
  %4632 = vst [vmem:[%s2 + $0xe8] sm:$0x7f] %v4625
  %4633 = vst [vmem:[%s2 + $0x130] sm:$0x7f] %v4626
  %4634 = vst [vmem:[%s2 + $0x178] sm:$0x7f] %v4627
  %4635 = vst [vmem:[%s2 + $0x1c0] sm:$0x7f] %v4628
  %v4636 = vld [vmem:[#allocation2 + $0x18] sm:$0xff]
  %v4637 = vld [vmem:[#allocation2 + $0x60] sm:$0x7]
  %v4638 = vld [vmem:[#allocation2 + $0xa8] sm:$0xff]
  %v4639 = vld [vmem:[#allocation2 + $0xf0] sm:$0x7]
  %v4640 = vld [vmem:[#allocation2 + $0x138] sm:$0xff]
  %v4641 = vld [vmem:[#allocation2 + $0x180] sm:$0x7]
  %v4642 = vld [vmem:[#allocation2 + $0x1c8] sm:$0xff]
  %v4643 = vld [vmem:[#allocation2 + $0x210] sm:$0x7]
  %v4644 = vld [vmem:[#allocation2 + $0x258] sm:$0xff]
  %v4645 = vld [vmem:[#allocation2 + $0x2a0] sm:$0x7]
  %v4646 = vld [vmem:[#allocation2 + $0x2e8] sm:$0xff]
  %v4647 = vld [vmem:[#allocation2 + $0x330] sm:$0x7]
  %v4648 = vld [vmem:[#allocation2 + $0x378] sm:$0xff]
  %v4649 = vld [vmem:[#allocation2 + $0x3c0] sm:$0x7]
  %v4650 = vld [vmem:[#allocation2 + $0x408] sm:$0xff]
  %v4651 = vld [vmem:[#allocation2 + $0x450] sm:$0x7]
  %v4652 = vld [vmem:[#allocation2 + $0x498] sm:$0xff]
  %v4653 = vld [vmem:[#allocation2 + $0x4e0] sm:$0x7]
  %v4654 = vld [vmem:[#allocation2 + $0x528] sm:$0xff]
  %v4655 = vld [vmem:[#allocation2 + $0x570] sm:$0x7]
  %v4656 = vld [vmem:[#allocation2 + $0x5b8] sm:$0xff]
  %v4657 = vld [vmem:[#allocation2 + $0x600] sm:$0x7]
  %v4658 = vlaneseq
  %v4659 = vshrl.u32 %v4658, 7
  %v4660 = vsub.s32 0, %v4659
  %v4661 = vrot.slane %v655, %v4660
  %v4662 = vmul.f32 %v4636, %v4661
  %v4663 = vmul.f32 %v4638, %v4661
  %v4664 = vmul.f32 %v4640, %v4661
  %v4665 = vmul.f32 %v4642, %v4661
  %v4666 = vmul.f32 %v4644, %v4661
  %v4667 = vmul.f32 %v4646, %v4661
  %v4668 = vmul.f32 %v4648, %v4661
  %v4669 = vlaneseq
  %v4670 = vshrl.u32 %v4669, 7
  %v4671 = vsub.s32 1, %v4670
  %v4672 = vrot.slane %v655, %v4671
  %v4673 = vmul.f32 %v4636, %v4672
  %v4674 = vmul.f32 %v4638, %v4672
  %v4675 = vmul.f32 %v4640, %v4672
  %v4676 = vmul.f32 %v4642, %v4672
  %v4677 = vmul.f32 %v4644, %v4672
  %v4678 = vmul.f32 %v4646, %v4672
  %v4679 = vmul.f32 %v4648, %v4672
  %v4687 = vrot.slane %v4673, 1
  %v4688 = vrot.slane %v4674, 1
  %v4689 = vrot.slane %v4675, 1
  %v4690 = vrot.slane %v4676, 1
  %v4691 = vrot.slane %v4677, 1
  %v4692 = vrot.slane %v4678, 1
  %v4693 = vrot.slane %v4679, 1
  %v4701 = vadd.f32 %v4662, %v4687
  %v4702 = vadd.f32 %v4663, %v4688
  %v4703 = vadd.f32 %v4664, %v4689
  %v4704 = vadd.f32 %v4665, %v4690
  %v4705 = vadd.f32 %v4666, %v4691
  %v4706 = vadd.f32 %v4667, %v4692
  %v4707 = vadd.f32 %v4668, %v4693
  %v4708 = vlaneseq
  %v4709 = vshrl.u32 %v4708, 7
  %v4710 = vsub.s32 2, %v4709
  %v4711 = vrot.slane %v655, %v4710
  %v4712 = vmul.f32 %v4636, %v4711
  %v4713 = vmul.f32 %v4637, %v4711
  %v4714 = vmul.f32 %v4638, %v4711
  %v4715 = vmul.f32 %v4639, %v4711
  %v4716 = vmul.f32 %v4640, %v4711
  %v4717 = vmul.f32 %v4641, %v4711
  %v4718 = vmul.f32 %v4642, %v4711
  %v4719 = vmul.f32 %v4643, %v4711
  %v4720 = vmul.f32 %v4644, %v4711
  %v4721 = vmul.f32 %v4645, %v4711
  %v4722 = vmul.f32 %v4646, %v4711
  %v4723 = vmul.f32 %v4647, %v4711
  %v4724 = vmul.f32 %v4648, %v4711
  %v4725 = vmul.f32 %v4649, %v4711
  %v4740 = vrot.slane %v4712, 2
  %v4741 = vrot.slane %v4713, 2
  %v4742 = vsel %vm801, %v4740, %v4741
  %v4743 = vrot.slane %v4714, 2
  %v4744 = vrot.slane %v4715, 2
  %v4745 = vsel %vm801, %v4743, %v4744
  %v4746 = vrot.slane %v4716, 2
  %v4747 = vrot.slane %v4717, 2
  %v4748 = vsel %vm801, %v4746, %v4747
  %v4749 = vrot.slane %v4718, 2
  %v4750 = vrot.slane %v4719, 2
  %v4751 = vsel %vm801, %v4749, %v4750
  %v4752 = vrot.slane %v4720, 2
  %v4753 = vrot.slane %v4721, 2
  %v4754 = vsel %vm801, %v4752, %v4753
  %v4755 = vrot.slane %v4722, 2
  %v4756 = vrot.slane %v4723, 2
  %v4757 = vsel %vm801, %v4755, %v4756
  %v4758 = vrot.slane %v4724, 2
  %v4759 = vrot.slane %v4725, 2
  %v4760 = vsel %vm801, %v4758, %v4759
  %v4768 = vadd.f32 %v4701, %v4742
  %v4769 = vadd.f32 %v4702, %v4745
  %v4770 = vadd.f32 %v4703, %v4748
  %v4771 = vadd.f32 %v4704, %v4751
  %v4772 = vadd.f32 %v4705, %v4754
  %v4773 = vadd.f32 %v4706, %v4757
  %v4774 = vadd.f32 %v4707, %v4760
  %v4775 = vlaneseq
  %v4776 = vshrl.u32 %v4775, 7
  %v4777 = vsub.s32 3, %v4776
  %v4778 = vrot.slane %v655, %v4777
  %v4779 = vmul.f32 %v4636, %v4778
  %v4780 = vmul.f32 %v4637, %v4778
  %v4781 = vmul.f32 %v4638, %v4778
  %v4782 = vmul.f32 %v4639, %v4778
  %v4783 = vmul.f32 %v4640, %v4778
  %v4784 = vmul.f32 %v4641, %v4778
  %v4785 = vmul.f32 %v4642, %v4778
  %v4786 = vmul.f32 %v4643, %v4778
  %v4787 = vmul.f32 %v4644, %v4778
  %v4788 = vmul.f32 %v4645, %v4778
  %v4789 = vmul.f32 %v4646, %v4778
  %v4790 = vmul.f32 %v4647, %v4778
  %v4791 = vmul.f32 %v4648, %v4778
  %v4792 = vmul.f32 %v4649, %v4778
  %v4807 = vrot.slane %v4779, 3
  %v4808 = vrot.slane %v4780, 3
  %v4809 = vsel %vm869, %v4807, %v4808
  %v4810 = vrot.slane %v4781, 3
  %v4811 = vrot.slane %v4782, 3
  %v4812 = vsel %vm869, %v4810, %v4811
  %v4813 = vrot.slane %v4783, 3
  %v4814 = vrot.slane %v4784, 3
  %v4815 = vsel %vm869, %v4813, %v4814
  %v4816 = vrot.slane %v4785, 3
  %v4817 = vrot.slane %v4786, 3
  %v4818 = vsel %vm869, %v4816, %v4817
  %v4819 = vrot.slane %v4787, 3
  %v4820 = vrot.slane %v4788, 3
  %v4821 = vsel %vm869, %v4819, %v4820
  %v4822 = vrot.slane %v4789, 3
  %v4823 = vrot.slane %v4790, 3
  %v4824 = vsel %vm869, %v4822, %v4823
  %v4825 = vrot.slane %v4791, 3
  %v4826 = vrot.slane %v4792, 3
  %v4827 = vsel %vm869, %v4825, %v4826
  %v4835 = vadd.f32 %v4768, %v4809
  %v4836 = vadd.f32 %v4769, %v4812
  %v4837 = vadd.f32 %v4770, %v4815
  %v4838 = vadd.f32 %v4771, %v4818
  %v4839 = vadd.f32 %v4772, %v4821
  %v4840 = vadd.f32 %v4773, %v4824
  %v4841 = vadd.f32 %v4774, %v4827
  %v4842 = vlaneseq
  %v4843 = vshrl.u32 %v4842, 7
  %v4844 = vsub.s32 4, %v4843
  %v4845 = vrot.slane %v655, %v4844
  %v4846 = vmul.f32 %v4636, %v4845
  %v4847 = vmul.f32 %v4637, %v4845
  %v4848 = vmul.f32 %v4638, %v4845
  %v4849 = vmul.f32 %v4639, %v4845
  %v4850 = vmul.f32 %v4640, %v4845
  %v4851 = vmul.f32 %v4641, %v4845
  %v4852 = vmul.f32 %v4642, %v4845
  %v4853 = vmul.f32 %v4643, %v4845
  %v4854 = vmul.f32 %v4644, %v4845
  %v4855 = vmul.f32 %v4645, %v4845
  %v4856 = vmul.f32 %v4646, %v4845
  %v4857 = vmul.f32 %v4647, %v4845
  %v4858 = vmul.f32 %v4648, %v4845
  %v4859 = vmul.f32 %v4649, %v4845
  %v4874 = vrot.slane %v4846, 4
  %v4875 = vrot.slane %v4847, 4
  %v4876 = vsel %vm937, %v4874, %v4875
  %v4877 = vrot.slane %v4848, 4
  %v4878 = vrot.slane %v4849, 4
  %v4879 = vsel %vm937, %v4877, %v4878
  %v4880 = vrot.slane %v4850, 4
  %v4881 = vrot.slane %v4851, 4
  %v4882 = vsel %vm937, %v4880, %v4881
  %v4883 = vrot.slane %v4852, 4
  %v4884 = vrot.slane %v4853, 4
  %v4885 = vsel %vm937, %v4883, %v4884
  %v4886 = vrot.slane %v4854, 4
  %v4887 = vrot.slane %v4855, 4
  %v4888 = vsel %vm937, %v4886, %v4887
  %v4889 = vrot.slane %v4856, 4
  %v4890 = vrot.slane %v4857, 4
  %v4891 = vsel %vm937, %v4889, %v4890
  %v4892 = vrot.slane %v4858, 4
  %v4893 = vrot.slane %v4859, 4
  %v4894 = vsel %vm937, %v4892, %v4893
  %v4902 = vadd.f32 %v4835, %v4876
  %v4903 = vadd.f32 %v4836, %v4879
  %v4904 = vadd.f32 %v4837, %v4882
  %v4905 = vadd.f32 %v4838, %v4885
  %v4906 = vadd.f32 %v4839, %v4888
  %v4907 = vadd.f32 %v4840, %v4891
  %v4908 = vadd.f32 %v4841, %v4894
  %v4909 = vlaneseq
  %v4910 = vshrl.u32 %v4909, 7
  %v4911 = vsub.s32 0, %v4910
  %v4912 = vrot.slane %v664, %v4911
  %v4913 = vmul.f32 %v4638, %v4912
  %v4914 = vmul.f32 %v4640, %v4912
  %v4915 = vmul.f32 %v4642, %v4912
  %v4916 = vmul.f32 %v4644, %v4912
  %v4917 = vmul.f32 %v4646, %v4912
  %v4918 = vmul.f32 %v4648, %v4912
  %v4919 = vmul.f32 %v4650, %v4912
  %v4920 = vadd.f32 %v4902, %v4913
  %v4921 = vadd.f32 %v4903, %v4914
  %v4922 = vadd.f32 %v4904, %v4915
  %v4923 = vadd.f32 %v4905, %v4916
  %v4924 = vadd.f32 %v4906, %v4917
  %v4925 = vadd.f32 %v4907, %v4918
  %v4926 = vadd.f32 %v4908, %v4919
  %v4927 = vlaneseq
  %v4928 = vshrl.u32 %v4927, 7
  %v4929 = vsub.s32 1, %v4928
  %v4930 = vrot.slane %v664, %v4929
  %v4931 = vmul.f32 %v4638, %v4930
  %v4932 = vmul.f32 %v4640, %v4930
  %v4933 = vmul.f32 %v4642, %v4930
  %v4934 = vmul.f32 %v4644, %v4930
  %v4935 = vmul.f32 %v4646, %v4930
  %v4936 = vmul.f32 %v4648, %v4930
  %v4937 = vmul.f32 %v4650, %v4930
  %v4945 = vrot.slane %v4931, 1
  %v4946 = vrot.slane %v4932, 1
  %v4947 = vrot.slane %v4933, 1
  %v4948 = vrot.slane %v4934, 1
  %v4949 = vrot.slane %v4935, 1
  %v4950 = vrot.slane %v4936, 1
  %v4951 = vrot.slane %v4937, 1
  %v4959 = vadd.f32 %v4920, %v4945
  %v4960 = vadd.f32 %v4921, %v4946
  %v4961 = vadd.f32 %v4922, %v4947
  %v4962 = vadd.f32 %v4923, %v4948
  %v4963 = vadd.f32 %v4924, %v4949
  %v4964 = vadd.f32 %v4925, %v4950
  %v4965 = vadd.f32 %v4926, %v4951
  %v4966 = vlaneseq
  %v4967 = vshrl.u32 %v4966, 7
  %v4968 = vsub.s32 2, %v4967
  %v4969 = vrot.slane %v664, %v4968
  %v4970 = vmul.f32 %v4638, %v4969
  %v4971 = vmul.f32 %v4639, %v4969
  %v4972 = vmul.f32 %v4640, %v4969
  %v4973 = vmul.f32 %v4641, %v4969
  %v4974 = vmul.f32 %v4642, %v4969
  %v4975 = vmul.f32 %v4643, %v4969
  %v4976 = vmul.f32 %v4644, %v4969
  %v4977 = vmul.f32 %v4645, %v4969
  %v4978 = vmul.f32 %v4646, %v4969
  %v4979 = vmul.f32 %v4647, %v4969
  %v4980 = vmul.f32 %v4648, %v4969
  %v4981 = vmul.f32 %v4649, %v4969
  %v4982 = vmul.f32 %v4650, %v4969
  %v4983 = vmul.f32 %v4651, %v4969
  %v4998 = vrot.slane %v4970, 2
  %v4999 = vrot.slane %v4971, 2
  %v5000 = vsel %vm801, %v4998, %v4999
  %v5001 = vrot.slane %v4972, 2
  %v5002 = vrot.slane %v4973, 2
  %v5003 = vsel %vm801, %v5001, %v5002
  %v5004 = vrot.slane %v4974, 2
  %v5005 = vrot.slane %v4975, 2
  %v5006 = vsel %vm801, %v5004, %v5005
  %v5007 = vrot.slane %v4976, 2
  %v5008 = vrot.slane %v4977, 2
  %v5009 = vsel %vm801, %v5007, %v5008
  %v5010 = vrot.slane %v4978, 2
  %v5011 = vrot.slane %v4979, 2
  %v5012 = vsel %vm801, %v5010, %v5011
  %v5013 = vrot.slane %v4980, 2
  %v5014 = vrot.slane %v4981, 2
  %v5015 = vsel %vm801, %v5013, %v5014
  %v5016 = vrot.slane %v4982, 2
  %v5017 = vrot.slane %v4983, 2
  %v5018 = vsel %vm801, %v5016, %v5017
  %v5026 = vadd.f32 %v4959, %v5000
  %v5027 = vadd.f32 %v4960, %v5003
  %v5028 = vadd.f32 %v4961, %v5006
  %v5029 = vadd.f32 %v4962, %v5009
  %v5030 = vadd.f32 %v4963, %v5012
  %v5031 = vadd.f32 %v4964, %v5015
  %v5032 = vadd.f32 %v4965, %v5018
  %v5033 = vlaneseq
  %v5034 = vshrl.u32 %v5033, 7
  %v5035 = vsub.s32 3, %v5034
  %v5036 = vrot.slane %v664, %v5035
  %v5037 = vmul.f32 %v4638, %v5036
  %v5038 = vmul.f32 %v4639, %v5036
  %v5039 = vmul.f32 %v4640, %v5036
  %v5040 = vmul.f32 %v4641, %v5036
  %v5041 = vmul.f32 %v4642, %v5036
  %v5042 = vmul.f32 %v4643, %v5036
  %v5043 = vmul.f32 %v4644, %v5036
  %v5044 = vmul.f32 %v4645, %v5036
  %v5045 = vmul.f32 %v4646, %v5036
  %v5046 = vmul.f32 %v4647, %v5036
  %v5047 = vmul.f32 %v4648, %v5036
  %v5048 = vmul.f32 %v4649, %v5036
  %v5049 = vmul.f32 %v4650, %v5036
  %v5050 = vmul.f32 %v4651, %v5036
  %v5065 = vrot.slane %v5037, 3
  %v5066 = vrot.slane %v5038, 3
  %v5067 = vsel %vm869, %v5065, %v5066
  %v5068 = vrot.slane %v5039, 3
  %v5069 = vrot.slane %v5040, 3
  %v5070 = vsel %vm869, %v5068, %v5069
  %v5071 = vrot.slane %v5041, 3
  %v5072 = vrot.slane %v5042, 3
  %v5073 = vsel %vm869, %v5071, %v5072
  %v5074 = vrot.slane %v5043, 3
  %v5075 = vrot.slane %v5044, 3
  %v5076 = vsel %vm869, %v5074, %v5075
  %v5077 = vrot.slane %v5045, 3
  %v5078 = vrot.slane %v5046, 3
  %v5079 = vsel %vm869, %v5077, %v5078
  %v5080 = vrot.slane %v5047, 3
  %v5081 = vrot.slane %v5048, 3
  %v5082 = vsel %vm869, %v5080, %v5081
  %v5083 = vrot.slane %v5049, 3
  %v5084 = vrot.slane %v5050, 3
  %v5085 = vsel %vm869, %v5083, %v5084
  %v5093 = vadd.f32 %v5026, %v5067
  %v5094 = vadd.f32 %v5027, %v5070
  %v5095 = vadd.f32 %v5028, %v5073
  %v5096 = vadd.f32 %v5029, %v5076
  %v5097 = vadd.f32 %v5030, %v5079
  %v5098 = vadd.f32 %v5031, %v5082
  %v5099 = vadd.f32 %v5032, %v5085
  %v5100 = vlaneseq
  %v5101 = vshrl.u32 %v5100, 7
  %v5102 = vsub.s32 4, %v5101
  %v5103 = vrot.slane %v664, %v5102
  %v5104 = vmul.f32 %v4638, %v5103
  %v5105 = vmul.f32 %v4639, %v5103
  %v5106 = vmul.f32 %v4640, %v5103
  %v5107 = vmul.f32 %v4641, %v5103
  %v5108 = vmul.f32 %v4642, %v5103
  %v5109 = vmul.f32 %v4643, %v5103
  %v5110 = vmul.f32 %v4644, %v5103
  %v5111 = vmul.f32 %v4645, %v5103
  %v5112 = vmul.f32 %v4646, %v5103
  %v5113 = vmul.f32 %v4647, %v5103
  %v5114 = vmul.f32 %v4648, %v5103
  %v5115 = vmul.f32 %v4649, %v5103
  %v5116 = vmul.f32 %v4650, %v5103
  %v5117 = vmul.f32 %v4651, %v5103
  %v5132 = vrot.slane %v5104, 4
  %v5133 = vrot.slane %v5105, 4
  %v5134 = vsel %vm937, %v5132, %v5133
  %v5135 = vrot.slane %v5106, 4
  %v5136 = vrot.slane %v5107, 4
  %v5137 = vsel %vm937, %v5135, %v5136
  %v5138 = vrot.slane %v5108, 4
  %v5139 = vrot.slane %v5109, 4
  %v5140 = vsel %vm937, %v5138, %v5139
  %v5141 = vrot.slane %v5110, 4
  %v5142 = vrot.slane %v5111, 4
  %v5143 = vsel %vm937, %v5141, %v5142
  %v5144 = vrot.slane %v5112, 4
  %v5145 = vrot.slane %v5113, 4
  %v5146 = vsel %vm937, %v5144, %v5145
  %v5147 = vrot.slane %v5114, 4
  %v5148 = vrot.slane %v5115, 4
  %v5149 = vsel %vm937, %v5147, %v5148
  %v5150 = vrot.slane %v5116, 4
  %v5151 = vrot.slane %v5117, 4
  %v5152 = vsel %vm937, %v5150, %v5151
  %v5160 = vadd.f32 %v5093, %v5134
  %v5161 = vadd.f32 %v5094, %v5137
  %v5162 = vadd.f32 %v5095, %v5140
  %v5163 = vadd.f32 %v5096, %v5143
  %v5164 = vadd.f32 %v5097, %v5146
  %v5165 = vadd.f32 %v5098, %v5149
  %v5166 = vadd.f32 %v5099, %v5152
  %v5167 = vlaneseq
  %v5168 = vshrl.u32 %v5167, 7
  %v5169 = vsub.s32 0, %v5168
  %v5170 = vrot.slane %v673, %v5169
  %v5171 = vmul.f32 %v4640, %v5170
  %v5172 = vmul.f32 %v4642, %v5170
  %v5173 = vmul.f32 %v4644, %v5170
  %v5174 = vmul.f32 %v4646, %v5170
  %v5175 = vmul.f32 %v4648, %v5170
  %v5176 = vmul.f32 %v4650, %v5170
  %v5177 = vmul.f32 %v4652, %v5170
  %v5178 = vadd.f32 %v5160, %v5171
  %v5179 = vadd.f32 %v5161, %v5172
  %v5180 = vadd.f32 %v5162, %v5173
  %v5181 = vadd.f32 %v5163, %v5174
  %v5182 = vadd.f32 %v5164, %v5175
  %v5183 = vadd.f32 %v5165, %v5176
  %v5184 = vadd.f32 %v5166, %v5177
  %v5185 = vlaneseq
  %v5186 = vshrl.u32 %v5185, 7
  %v5187 = vsub.s32 1, %v5186
  %v5188 = vrot.slane %v673, %v5187
  %v5189 = vmul.f32 %v4640, %v5188
  %v5190 = vmul.f32 %v4642, %v5188
  %v5191 = vmul.f32 %v4644, %v5188
  %v5192 = vmul.f32 %v4646, %v5188
  %v5193 = vmul.f32 %v4648, %v5188
  %v5194 = vmul.f32 %v4650, %v5188
  %v5195 = vmul.f32 %v4652, %v5188
  %v5203 = vrot.slane %v5189, 1
  %v5204 = vrot.slane %v5190, 1
  %v5205 = vrot.slane %v5191, 1
  %v5206 = vrot.slane %v5192, 1
  %v5207 = vrot.slane %v5193, 1
  %v5208 = vrot.slane %v5194, 1
  %v5209 = vrot.slane %v5195, 1
  %v5217 = vadd.f32 %v5178, %v5203
  %v5218 = vadd.f32 %v5179, %v5204
  %v5219 = vadd.f32 %v5180, %v5205
  %v5220 = vadd.f32 %v5181, %v5206
  %v5221 = vadd.f32 %v5182, %v5207
  %v5222 = vadd.f32 %v5183, %v5208
  %v5223 = vadd.f32 %v5184, %v5209
  %v5224 = vlaneseq
  %v5225 = vshrl.u32 %v5224, 7
  %v5226 = vsub.s32 2, %v5225
  %v5227 = vrot.slane %v673, %v5226
  %v5228 = vmul.f32 %v4640, %v5227
  %v5229 = vmul.f32 %v4641, %v5227
  %v5230 = vmul.f32 %v4642, %v5227
  %v5231 = vmul.f32 %v4643, %v5227
  %v5232 = vmul.f32 %v4644, %v5227
  %v5233 = vmul.f32 %v4645, %v5227
  %v5234 = vmul.f32 %v4646, %v5227
  %v5235 = vmul.f32 %v4647, %v5227
  %v5236 = vmul.f32 %v4648, %v5227
  %v5237 = vmul.f32 %v4649, %v5227
  %v5238 = vmul.f32 %v4650, %v5227
  %v5239 = vmul.f32 %v4651, %v5227
  %v5240 = vmul.f32 %v4652, %v5227
  %v5241 = vmul.f32 %v4653, %v5227
  %v5256 = vrot.slane %v5228, 2
  %v5257 = vrot.slane %v5229, 2
  %v5258 = vsel %vm801, %v5256, %v5257
  %v5259 = vrot.slane %v5230, 2
  %v5260 = vrot.slane %v5231, 2
  %v5261 = vsel %vm801, %v5259, %v5260
  %v5262 = vrot.slane %v5232, 2
  %v5263 = vrot.slane %v5233, 2
  %v5264 = vsel %vm801, %v5262, %v5263
  %v5265 = vrot.slane %v5234, 2
  %v5266 = vrot.slane %v5235, 2
  %v5267 = vsel %vm801, %v5265, %v5266
  %v5268 = vrot.slane %v5236, 2
  %v5269 = vrot.slane %v5237, 2
  %v5270 = vsel %vm801, %v5268, %v5269
  %v5271 = vrot.slane %v5238, 2
  %v5272 = vrot.slane %v5239, 2
  %v5273 = vsel %vm801, %v5271, %v5272
  %v5274 = vrot.slane %v5240, 2
  %v5275 = vrot.slane %v5241, 2
  %v5276 = vsel %vm801, %v5274, %v5275
  %v5284 = vadd.f32 %v5217, %v5258
  %v5285 = vadd.f32 %v5218, %v5261
  %v5286 = vadd.f32 %v5219, %v5264
  %v5287 = vadd.f32 %v5220, %v5267
  %v5288 = vadd.f32 %v5221, %v5270
  %v5289 = vadd.f32 %v5222, %v5273
  %v5290 = vadd.f32 %v5223, %v5276
  %v5291 = vlaneseq
  %v5292 = vshrl.u32 %v5291, 7
  %v5293 = vsub.s32 3, %v5292
  %v5294 = vrot.slane %v673, %v5293
  %v5295 = vmul.f32 %v4640, %v5294
  %v5296 = vmul.f32 %v4641, %v5294
  %v5297 = vmul.f32 %v4642, %v5294
  %v5298 = vmul.f32 %v4643, %v5294
  %v5299 = vmul.f32 %v4644, %v5294
  %v5300 = vmul.f32 %v4645, %v5294
  %v5301 = vmul.f32 %v4646, %v5294
  %v5302 = vmul.f32 %v4647, %v5294
  %v5303 = vmul.f32 %v4648, %v5294
  %v5304 = vmul.f32 %v4649, %v5294
  %v5305 = vmul.f32 %v4650, %v5294
  %v5306 = vmul.f32 %v4651, %v5294
  %v5307 = vmul.f32 %v4652, %v5294
  %v5308 = vmul.f32 %v4653, %v5294
  %v5323 = vrot.slane %v5295, 3
  %v5324 = vrot.slane %v5296, 3
  %v5325 = vsel %vm869, %v5323, %v5324
  %v5326 = vrot.slane %v5297, 3
  %v5327 = vrot.slane %v5298, 3
  %v5328 = vsel %vm869, %v5326, %v5327
  %v5329 = vrot.slane %v5299, 3
  %v5330 = vrot.slane %v5300, 3
  %v5331 = vsel %vm869, %v5329, %v5330
  %v5332 = vrot.slane %v5301, 3
  %v5333 = vrot.slane %v5302, 3
  %v5334 = vsel %vm869, %v5332, %v5333
  %v5335 = vrot.slane %v5303, 3
  %v5336 = vrot.slane %v5304, 3
  %v5337 = vsel %vm869, %v5335, %v5336
  %v5338 = vrot.slane %v5305, 3
  %v5339 = vrot.slane %v5306, 3
  %v5340 = vsel %vm869, %v5338, %v5339
  %v5341 = vrot.slane %v5307, 3
  %v5342 = vrot.slane %v5308, 3
  %v5343 = vsel %vm869, %v5341, %v5342
  %v5351 = vadd.f32 %v5284, %v5325
  %v5352 = vadd.f32 %v5285, %v5328
  %v5353 = vadd.f32 %v5286, %v5331
  %v5354 = vadd.f32 %v5287, %v5334
  %v5355 = vadd.f32 %v5288, %v5337
  %v5356 = vadd.f32 %v5289, %v5340
  %v5357 = vadd.f32 %v5290, %v5343
  %v5358 = vlaneseq
  %v5359 = vshrl.u32 %v5358, 7
  %v5360 = vsub.s32 4, %v5359
  %v5361 = vrot.slane %v673, %v5360
  %v5362 = vmul.f32 %v4640, %v5361
  %v5363 = vmul.f32 %v4641, %v5361
  %v5364 = vmul.f32 %v4642, %v5361
  %v5365 = vmul.f32 %v4643, %v5361
  %v5366 = vmul.f32 %v4644, %v5361
  %v5367 = vmul.f32 %v4645, %v5361
  %v5368 = vmul.f32 %v4646, %v5361
  %v5369 = vmul.f32 %v4647, %v5361
  %v5370 = vmul.f32 %v4648, %v5361
  %v5371 = vmul.f32 %v4649, %v5361
  %v5372 = vmul.f32 %v4650, %v5361
  %v5373 = vmul.f32 %v4651, %v5361
  %v5374 = vmul.f32 %v4652, %v5361
  %v5375 = vmul.f32 %v4653, %v5361
  %v5390 = vrot.slane %v5362, 4
  %v5391 = vrot.slane %v5363, 4
  %v5392 = vsel %vm937, %v5390, %v5391
  %v5393 = vrot.slane %v5364, 4
  %v5394 = vrot.slane %v5365, 4
  %v5395 = vsel %vm937, %v5393, %v5394
  %v5396 = vrot.slane %v5366, 4
  %v5397 = vrot.slane %v5367, 4
  %v5398 = vsel %vm937, %v5396, %v5397
  %v5399 = vrot.slane %v5368, 4
  %v5400 = vrot.slane %v5369, 4
  %v5401 = vsel %vm937, %v5399, %v5400
  %v5402 = vrot.slane %v5370, 4
  %v5403 = vrot.slane %v5371, 4
  %v5404 = vsel %vm937, %v5402, %v5403
  %v5405 = vrot.slane %v5372, 4
  %v5406 = vrot.slane %v5373, 4
  %v5407 = vsel %vm937, %v5405, %v5406
  %v5408 = vrot.slane %v5374, 4
  %v5409 = vrot.slane %v5375, 4
  %v5410 = vsel %vm937, %v5408, %v5409
  %v5418 = vadd.f32 %v5351, %v5392
  %v5419 = vadd.f32 %v5352, %v5395
  %v5420 = vadd.f32 %v5353, %v5398
  %v5421 = vadd.f32 %v5354, %v5401
  %v5422 = vadd.f32 %v5355, %v5404
  %v5423 = vadd.f32 %v5356, %v5407
  %v5424 = vadd.f32 %v5357, %v5410
  %v5425 = vlaneseq
  %v5426 = vshrl.u32 %v5425, 7
  %v5427 = vsub.s32 0, %v5426
  %v5428 = vrot.slane %v682, %v5427
  %v5429 = vmul.f32 %v4642, %v5428
  %v5430 = vmul.f32 %v4644, %v5428
  %v5431 = vmul.f32 %v4646, %v5428
  %v5432 = vmul.f32 %v4648, %v5428
  %v5433 = vmul.f32 %v4650, %v5428
  %v5434 = vmul.f32 %v4652, %v5428
  %v5435 = vmul.f32 %v4654, %v5428
  %v5436 = vadd.f32 %v5418, %v5429
  %v5437 = vadd.f32 %v5419, %v5430
  %v5438 = vadd.f32 %v5420, %v5431
  %v5439 = vadd.f32 %v5421, %v5432
  %v5440 = vadd.f32 %v5422, %v5433
  %v5441 = vadd.f32 %v5423, %v5434
  %v5442 = vadd.f32 %v5424, %v5435
  %v5443 = vlaneseq
  %v5444 = vshrl.u32 %v5443, 7
  %v5445 = vsub.s32 1, %v5444
  %v5446 = vrot.slane %v682, %v5445
  %v5447 = vmul.f32 %v4642, %v5446
  %v5448 = vmul.f32 %v4644, %v5446
  %v5449 = vmul.f32 %v4646, %v5446
  %v5450 = vmul.f32 %v4648, %v5446
  %v5451 = vmul.f32 %v4650, %v5446
  %v5452 = vmul.f32 %v4652, %v5446
  %v5453 = vmul.f32 %v4654, %v5446
  %v5461 = vrot.slane %v5447, 1
  %v5462 = vrot.slane %v5448, 1
  %v5463 = vrot.slane %v5449, 1
  %v5464 = vrot.slane %v5450, 1
  %v5465 = vrot.slane %v5451, 1
  %v5466 = vrot.slane %v5452, 1
  %v5467 = vrot.slane %v5453, 1
  %v5475 = vadd.f32 %v5436, %v5461
  %v5476 = vadd.f32 %v5437, %v5462
  %v5477 = vadd.f32 %v5438, %v5463
  %v5478 = vadd.f32 %v5439, %v5464
  %v5479 = vadd.f32 %v5440, %v5465
  %v5480 = vadd.f32 %v5441, %v5466
  %v5481 = vadd.f32 %v5442, %v5467
  %v5482 = vlaneseq
  %v5483 = vshrl.u32 %v5482, 7
  %v5484 = vsub.s32 2, %v5483
  %v5485 = vrot.slane %v682, %v5484
  %v5486 = vmul.f32 %v4642, %v5485
  %v5487 = vmul.f32 %v4643, %v5485
  %v5488 = vmul.f32 %v4644, %v5485
  %v5489 = vmul.f32 %v4645, %v5485
  %v5490 = vmul.f32 %v4646, %v5485
  %v5491 = vmul.f32 %v4647, %v5485
  %v5492 = vmul.f32 %v4648, %v5485
  %v5493 = vmul.f32 %v4649, %v5485
  %v5494 = vmul.f32 %v4650, %v5485
  %v5495 = vmul.f32 %v4651, %v5485
  %v5496 = vmul.f32 %v4652, %v5485
  %v5497 = vmul.f32 %v4653, %v5485
  %v5498 = vmul.f32 %v4654, %v5485
  %v5499 = vmul.f32 %v4655, %v5485
  %v5514 = vrot.slane %v5486, 2
  %v5515 = vrot.slane %v5487, 2
  %v5516 = vsel %vm801, %v5514, %v5515
  %v5517 = vrot.slane %v5488, 2
  %v5518 = vrot.slane %v5489, 2
  %v5519 = vsel %vm801, %v5517, %v5518
  %v5520 = vrot.slane %v5490, 2
  %v5521 = vrot.slane %v5491, 2
  %v5522 = vsel %vm801, %v5520, %v5521
  %v5523 = vrot.slane %v5492, 2
  %v5524 = vrot.slane %v5493, 2
  %v5525 = vsel %vm801, %v5523, %v5524
  %v5526 = vrot.slane %v5494, 2
  %v5527 = vrot.slane %v5495, 2
  %v5528 = vsel %vm801, %v5526, %v5527
  %v5529 = vrot.slane %v5496, 2
  %v5530 = vrot.slane %v5497, 2
  %v5531 = vsel %vm801, %v5529, %v5530
  %v5532 = vrot.slane %v5498, 2
  %v5533 = vrot.slane %v5499, 2
  %v5534 = vsel %vm801, %v5532, %v5533
  %v5542 = vadd.f32 %v5475, %v5516
  %v5543 = vadd.f32 %v5476, %v5519
  %v5544 = vadd.f32 %v5477, %v5522
  %v5545 = vadd.f32 %v5478, %v5525
  %v5546 = vadd.f32 %v5479, %v5528
  %v5547 = vadd.f32 %v5480, %v5531
  %v5548 = vadd.f32 %v5481, %v5534
  %v5549 = vlaneseq
  %v5550 = vshrl.u32 %v5549, 7
  %v5551 = vsub.s32 3, %v5550
  %v5552 = vrot.slane %v682, %v5551
  %v5553 = vmul.f32 %v4642, %v5552
  %v5554 = vmul.f32 %v4643, %v5552
  %v5555 = vmul.f32 %v4644, %v5552
  %v5556 = vmul.f32 %v4645, %v5552
  %v5557 = vmul.f32 %v4646, %v5552
  %v5558 = vmul.f32 %v4647, %v5552
  %v5559 = vmul.f32 %v4648, %v5552
  %v5560 = vmul.f32 %v4649, %v5552
  %v5561 = vmul.f32 %v4650, %v5552
  %v5562 = vmul.f32 %v4651, %v5552
  %v5563 = vmul.f32 %v4652, %v5552
  %v5564 = vmul.f32 %v4653, %v5552
  %v5565 = vmul.f32 %v4654, %v5552
  %v5566 = vmul.f32 %v4655, %v5552
  %v5581 = vrot.slane %v5553, 3
  %v5582 = vrot.slane %v5554, 3
  %v5583 = vsel %vm869, %v5581, %v5582
  %v5584 = vrot.slane %v5555, 3
  %v5585 = vrot.slane %v5556, 3
  %v5586 = vsel %vm869, %v5584, %v5585
  %v5587 = vrot.slane %v5557, 3
  %v5588 = vrot.slane %v5558, 3
  %v5589 = vsel %vm869, %v5587, %v5588
  %v5590 = vrot.slane %v5559, 3
  %v5591 = vrot.slane %v5560, 3
  %v5592 = vsel %vm869, %v5590, %v5591
  %v5593 = vrot.slane %v5561, 3
  %v5594 = vrot.slane %v5562, 3
  %v5595 = vsel %vm869, %v5593, %v5594
  %v5596 = vrot.slane %v5563, 3
  %v5597 = vrot.slane %v5564, 3
  %v5598 = vsel %vm869, %v5596, %v5597
  %v5599 = vrot.slane %v5565, 3
  %v5600 = vrot.slane %v5566, 3
  %v5601 = vsel %vm869, %v5599, %v5600
  %v5609 = vadd.f32 %v5542, %v5583
  %v5610 = vadd.f32 %v5543, %v5586
  %v5611 = vadd.f32 %v5544, %v5589
  %v5612 = vadd.f32 %v5545, %v5592
  %v5613 = vadd.f32 %v5546, %v5595
  %v5614 = vadd.f32 %v5547, %v5598
  %v5615 = vadd.f32 %v5548, %v5601
  %v5616 = vlaneseq
  %v5617 = vshrl.u32 %v5616, 7
  %v5618 = vsub.s32 4, %v5617
  %v5619 = vrot.slane %v682, %v5618
  %v5620 = vmul.f32 %v4642, %v5619
  %v5621 = vmul.f32 %v4643, %v5619
  %v5622 = vmul.f32 %v4644, %v5619
  %v5623 = vmul.f32 %v4645, %v5619
  %v5624 = vmul.f32 %v4646, %v5619
  %v5625 = vmul.f32 %v4647, %v5619
  %v5626 = vmul.f32 %v4648, %v5619
  %v5627 = vmul.f32 %v4649, %v5619
  %v5628 = vmul.f32 %v4650, %v5619
  %v5629 = vmul.f32 %v4651, %v5619
  %v5630 = vmul.f32 %v4652, %v5619
  %v5631 = vmul.f32 %v4653, %v5619
  %v5632 = vmul.f32 %v4654, %v5619
  %v5633 = vmul.f32 %v4655, %v5619
  %v5648 = vrot.slane %v5620, 4
  %v5649 = vrot.slane %v5621, 4
  %v5650 = vsel %vm937, %v5648, %v5649
  %v5651 = vrot.slane %v5622, 4
  %v5652 = vrot.slane %v5623, 4
  %v5653 = vsel %vm937, %v5651, %v5652
  %v5654 = vrot.slane %v5624, 4
  %v5655 = vrot.slane %v5625, 4
  %v5656 = vsel %vm937, %v5654, %v5655
  %v5657 = vrot.slane %v5626, 4
  %v5658 = vrot.slane %v5627, 4
  %v5659 = vsel %vm937, %v5657, %v5658
  %v5660 = vrot.slane %v5628, 4
  %v5661 = vrot.slane %v5629, 4
  %v5662 = vsel %vm937, %v5660, %v5661
  %v5663 = vrot.slane %v5630, 4
  %v5664 = vrot.slane %v5631, 4
  %v5665 = vsel %vm937, %v5663, %v5664
  %v5666 = vrot.slane %v5632, 4
  %v5667 = vrot.slane %v5633, 4
  %v5668 = vsel %vm937, %v5666, %v5667
  %v5676 = vadd.f32 %v5609, %v5650
  %v5677 = vadd.f32 %v5610, %v5653
  %v5678 = vadd.f32 %v5611, %v5656
  %v5679 = vadd.f32 %v5612, %v5659
  %v5680 = vadd.f32 %v5613, %v5662
  %v5681 = vadd.f32 %v5614, %v5665
  %v5682 = vadd.f32 %v5615, %v5668
  %v5683 = vlaneseq
  %v5684 = vshrl.u32 %v5683, 7
  %v5685 = vsub.s32 0, %v5684
  %v5686 = vrot.slane %v691, %v5685
  %v5687 = vmul.f32 %v4644, %v5686
  %v5688 = vmul.f32 %v4646, %v5686
  %v5689 = vmul.f32 %v4648, %v5686
  %v5690 = vmul.f32 %v4650, %v5686
  %v5691 = vmul.f32 %v4652, %v5686
  %v5692 = vmul.f32 %v4654, %v5686
  %v5693 = vmul.f32 %v4656, %v5686
  %v5694 = vadd.f32 %v5676, %v5687
  %v5695 = vadd.f32 %v5677, %v5688
  %v5696 = vadd.f32 %v5678, %v5689
  %v5697 = vadd.f32 %v5679, %v5690
  %v5698 = vadd.f32 %v5680, %v5691
  %v5699 = vadd.f32 %v5681, %v5692
  %v5700 = vadd.f32 %v5682, %v5693
  %v5701 = vlaneseq
  %v5702 = vshrl.u32 %v5701, 7
  %v5703 = vsub.s32 1, %v5702
  %v5704 = vrot.slane %v691, %v5703
  %v5705 = vmul.f32 %v4644, %v5704
  %v5706 = vmul.f32 %v4646, %v5704
  %v5707 = vmul.f32 %v4648, %v5704
  %v5708 = vmul.f32 %v4650, %v5704
  %v5709 = vmul.f32 %v4652, %v5704
  %v5710 = vmul.f32 %v4654, %v5704
  %v5711 = vmul.f32 %v4656, %v5704
  %v5719 = vrot.slane %v5705, 1
  %v5720 = vrot.slane %v5706, 1
  %v5721 = vrot.slane %v5707, 1
  %v5722 = vrot.slane %v5708, 1
  %v5723 = vrot.slane %v5709, 1
  %v5724 = vrot.slane %v5710, 1
  %v5725 = vrot.slane %v5711, 1
  %v5733 = vadd.f32 %v5694, %v5719
  %v5734 = vadd.f32 %v5695, %v5720
  %v5735 = vadd.f32 %v5696, %v5721
  %v5736 = vadd.f32 %v5697, %v5722
  %v5737 = vadd.f32 %v5698, %v5723
  %v5738 = vadd.f32 %v5699, %v5724
  %v5739 = vadd.f32 %v5700, %v5725
  %v5740 = vlaneseq
  %v5741 = vshrl.u32 %v5740, 7
  %v5742 = vsub.s32 2, %v5741
  %v5743 = vrot.slane %v691, %v5742
  %v5744 = vmul.f32 %v4644, %v5743
  %v5745 = vmul.f32 %v4645, %v5743
  %v5746 = vmul.f32 %v4646, %v5743
  %v5747 = vmul.f32 %v4647, %v5743
  %v5748 = vmul.f32 %v4648, %v5743
  %v5749 = vmul.f32 %v4649, %v5743
  %v5750 = vmul.f32 %v4650, %v5743
  %v5751 = vmul.f32 %v4651, %v5743
  %v5752 = vmul.f32 %v4652, %v5743
  %v5753 = vmul.f32 %v4653, %v5743
  %v5754 = vmul.f32 %v4654, %v5743
  %v5755 = vmul.f32 %v4655, %v5743
  %v5756 = vmul.f32 %v4656, %v5743
  %v5757 = vmul.f32 %v4657, %v5743
  %v5772 = vrot.slane %v5744, 2
  %v5773 = vrot.slane %v5745, 2
  %v5774 = vsel %vm801, %v5772, %v5773
  %v5775 = vrot.slane %v5746, 2
  %v5776 = vrot.slane %v5747, 2
  %v5777 = vsel %vm801, %v5775, %v5776
  %v5778 = vrot.slane %v5748, 2
  %v5779 = vrot.slane %v5749, 2
  %v5780 = vsel %vm801, %v5778, %v5779
  %v5781 = vrot.slane %v5750, 2
  %v5782 = vrot.slane %v5751, 2
  %v5783 = vsel %vm801, %v5781, %v5782
  %v5784 = vrot.slane %v5752, 2
  %v5785 = vrot.slane %v5753, 2
  %v5786 = vsel %vm801, %v5784, %v5785
  %v5787 = vrot.slane %v5754, 2
  %v5788 = vrot.slane %v5755, 2
  %v5789 = vsel %vm801, %v5787, %v5788
  %v5790 = vrot.slane %v5756, 2
  %v5791 = vrot.slane %v5757, 2
  %v5792 = vsel %vm801, %v5790, %v5791
  %v5800 = vadd.f32 %v5733, %v5774
  %v5801 = vadd.f32 %v5734, %v5777
  %v5802 = vadd.f32 %v5735, %v5780
  %v5803 = vadd.f32 %v5736, %v5783
  %v5804 = vadd.f32 %v5737, %v5786
  %v5805 = vadd.f32 %v5738, %v5789
  %v5806 = vadd.f32 %v5739, %v5792
  %v5807 = vlaneseq
  %v5808 = vshrl.u32 %v5807, 7
  %v5809 = vsub.s32 3, %v5808
  %v5810 = vrot.slane %v691, %v5809
  %v5811 = vmul.f32 %v4644, %v5810
  %v5812 = vmul.f32 %v4645, %v5810
  %v5813 = vmul.f32 %v4646, %v5810
  %v5814 = vmul.f32 %v4647, %v5810
  %v5815 = vmul.f32 %v4648, %v5810
  %v5816 = vmul.f32 %v4649, %v5810
  %v5817 = vmul.f32 %v4650, %v5810
  %v5818 = vmul.f32 %v4651, %v5810
  %v5819 = vmul.f32 %v4652, %v5810
  %v5820 = vmul.f32 %v4653, %v5810
  %v5821 = vmul.f32 %v4654, %v5810
  %v5822 = vmul.f32 %v4655, %v5810
  %v5823 = vmul.f32 %v4656, %v5810
  %v5824 = vmul.f32 %v4657, %v5810
  %v5839 = vrot.slane %v5811, 3
  %v5840 = vrot.slane %v5812, 3
  %v5841 = vsel %vm869, %v5839, %v5840
  %v5842 = vrot.slane %v5813, 3
  %v5843 = vrot.slane %v5814, 3
  %v5844 = vsel %vm869, %v5842, %v5843
  %v5845 = vrot.slane %v5815, 3
  %v5846 = vrot.slane %v5816, 3
  %v5847 = vsel %vm869, %v5845, %v5846
  %v5848 = vrot.slane %v5817, 3
  %v5849 = vrot.slane %v5818, 3
  %v5850 = vsel %vm869, %v5848, %v5849
  %v5851 = vrot.slane %v5819, 3
  %v5852 = vrot.slane %v5820, 3
  %v5853 = vsel %vm869, %v5851, %v5852
  %v5854 = vrot.slane %v5821, 3
  %v5855 = vrot.slane %v5822, 3
  %v5856 = vsel %vm869, %v5854, %v5855
  %v5857 = vrot.slane %v5823, 3
  %v5858 = vrot.slane %v5824, 3
  %v5859 = vsel %vm869, %v5857, %v5858
  %v5867 = vadd.f32 %v5800, %v5841
  %v5868 = vadd.f32 %v5801, %v5844
  %v5869 = vadd.f32 %v5802, %v5847
  %v5870 = vadd.f32 %v5803, %v5850
  %v5871 = vadd.f32 %v5804, %v5853
  %v5872 = vadd.f32 %v5805, %v5856
  %v5873 = vadd.f32 %v5806, %v5859
  %v5874 = vlaneseq
  %v5875 = vshrl.u32 %v5874, 7
  %v5876 = vsub.s32 4, %v5875
  %v5877 = vrot.slane %v691, %v5876
  %v5878 = vmul.f32 %v4644, %v5877
  %v5879 = vmul.f32 %v4645, %v5877
  %v5880 = vmul.f32 %v4646, %v5877
  %v5881 = vmul.f32 %v4647, %v5877
  %v5882 = vmul.f32 %v4648, %v5877
  %v5883 = vmul.f32 %v4649, %v5877
  %v5884 = vmul.f32 %v4650, %v5877
  %v5885 = vmul.f32 %v4651, %v5877
  %v5886 = vmul.f32 %v4652, %v5877
  %v5887 = vmul.f32 %v4653, %v5877
  %v5888 = vmul.f32 %v4654, %v5877
  %v5889 = vmul.f32 %v4655, %v5877
  %v5890 = vmul.f32 %v4656, %v5877
  %v5891 = vmul.f32 %v4657, %v5877
  %v5906 = vrot.slane %v5878, 4
  %v5907 = vrot.slane %v5879, 4
  %v5908 = vsel %vm937, %v5906, %v5907
  %v5909 = vrot.slane %v5880, 4
  %v5910 = vrot.slane %v5881, 4
  %v5911 = vsel %vm937, %v5909, %v5910
  %v5912 = vrot.slane %v5882, 4
  %v5913 = vrot.slane %v5883, 4
  %v5914 = vsel %vm937, %v5912, %v5913
  %v5915 = vrot.slane %v5884, 4
  %v5916 = vrot.slane %v5885, 4
  %v5917 = vsel %vm937, %v5915, %v5916
  %v5918 = vrot.slane %v5886, 4
  %v5919 = vrot.slane %v5887, 4
  %v5920 = vsel %vm937, %v5918, %v5919
  %v5921 = vrot.slane %v5888, 4
  %v5922 = vrot.slane %v5889, 4
  %v5923 = vsel %vm937, %v5921, %v5922
  %v5924 = vrot.slane %v5890, 4
  %v5925 = vrot.slane %v5891, 4
  %v5926 = vsel %vm937, %v5924, %v5925
  %v5934 = vadd.f32 %v5867, %v5908
  %v5935 = vadd.f32 %v5868, %v5911
  %v5936 = vadd.f32 %v5869, %v5914
  %v5937 = vadd.f32 %v5870, %v5917
  %v5938 = vadd.f32 %v5871, %v5920
  %v5939 = vadd.f32 %v5872, %v5923
  %v5940 = vadd.f32 %v5873, %v5926
  %5941 = vst [vmem:[%s2 + $0x18] sm:$0x7f] %v5934
  %5942 = vst [vmem:[%s2 + $0x60] sm:$0x7f] %v5935
  %5943 = vst [vmem:[%s2 + $0xa8] sm:$0x7f] %v5936
  %5944 = vst [vmem:[%s2 + $0xf0] sm:$0x7f] %v5937
  %5945 = vst [vmem:[%s2 + $0x138] sm:$0x7f] %v5938
  %5946 = vst [vmem:[%s2 + $0x180] sm:$0x7f] %v5939
  %5947 = vst [vmem:[%s2 + $0x1c8] sm:$0x7f] %v5940
  %v5948 = vld [vmem:[#allocation2 + $0x20] sm:$0xff]
  %v5949 = vld [vmem:[#allocation2 + $0x68] sm:$0x7]
  %v5950 = vld [vmem:[#allocation2 + $0xb0] sm:$0xff]
  %v5951 = vld [vmem:[#allocation2 + $0xf8] sm:$0x7]
  %v5952 = vld [vmem:[#allocation2 + $0x140] sm:$0xff]
  %v5953 = vld [vmem:[#allocation2 + $0x188] sm:$0x7]
  %v5954 = vld [vmem:[#allocation2 + $0x1d0] sm:$0xff]
  %v5955 = vld [vmem:[#allocation2 + $0x218] sm:$0x7]
  %v5956 = vld [vmem:[#allocation2 + $0x260] sm:$0xff]
  %v5957 = vld [vmem:[#allocation2 + $0x2a8] sm:$0x7]
  %v5958 = vld [vmem:[#allocation2 + $0x2f0] sm:$0xff]
  %v5959 = vld [vmem:[#allocation2 + $0x338] sm:$0x7]
  %v5960 = vld [vmem:[#allocation2 + $0x380] sm:$0xff]
  %v5961 = vld [vmem:[#allocation2 + $0x3c8] sm:$0x7]
  %v5962 = vld [vmem:[#allocation2 + $0x410] sm:$0xff]
  %v5963 = vld [vmem:[#allocation2 + $0x458] sm:$0x7]
  %v5964 = vld [vmem:[#allocation2 + $0x4a0] sm:$0xff]
  %v5965 = vld [vmem:[#allocation2 + $0x4e8] sm:$0x7]
  %v5966 = vld [vmem:[#allocation2 + $0x530] sm:$0xff]
  %v5967 = vld [vmem:[#allocation2 + $0x578] sm:$0x7]
  %v5968 = vld [vmem:[#allocation2 + $0x5c0] sm:$0xff]
  %v5969 = vld [vmem:[#allocation2 + $0x608] sm:$0x7]
  %v5970 = vlaneseq
  %v5971 = vshrl.u32 %v5970, 7
  %v5972 = vsub.s32 0, %v5971
  %v5973 = vrot.slane %v656, %v5972
  %v5974 = vmul.f32 %v5948, %v5973
  %v5975 = vmul.f32 %v5950, %v5973
  %v5976 = vmul.f32 %v5952, %v5973
  %v5977 = vmul.f32 %v5954, %v5973
  %v5978 = vmul.f32 %v5956, %v5973
  %v5979 = vmul.f32 %v5958, %v5973
  %v5980 = vmul.f32 %v5960, %v5973
  %v5981 = vlaneseq
  %v5982 = vshrl.u32 %v5981, 7
  %v5983 = vsub.s32 1, %v5982
  %v5984 = vrot.slane %v656, %v5983
  %v5985 = vmul.f32 %v5948, %v5984
  %v5986 = vmul.f32 %v5950, %v5984
  %v5987 = vmul.f32 %v5952, %v5984
  %v5988 = vmul.f32 %v5954, %v5984
  %v5989 = vmul.f32 %v5956, %v5984
  %v5990 = vmul.f32 %v5958, %v5984
  %v5991 = vmul.f32 %v5960, %v5984
  %v5999 = vrot.slane %v5985, 1
  %v6000 = vrot.slane %v5986, 1
  %v6001 = vrot.slane %v5987, 1
  %v6002 = vrot.slane %v5988, 1
  %v6003 = vrot.slane %v5989, 1
  %v6004 = vrot.slane %v5990, 1
  %v6005 = vrot.slane %v5991, 1
  %v6013 = vadd.f32 %v5974, %v5999
  %v6014 = vadd.f32 %v5975, %v6000
  %v6015 = vadd.f32 %v5976, %v6001
  %v6016 = vadd.f32 %v5977, %v6002
  %v6017 = vadd.f32 %v5978, %v6003
  %v6018 = vadd.f32 %v5979, %v6004
  %v6019 = vadd.f32 %v5980, %v6005
  %v6020 = vlaneseq
  %v6021 = vshrl.u32 %v6020, 7
  %v6022 = vsub.s32 2, %v6021
  %v6023 = vrot.slane %v656, %v6022
  %v6024 = vmul.f32 %v5948, %v6023
  %v6025 = vmul.f32 %v5949, %v6023
  %v6026 = vmul.f32 %v5950, %v6023
  %v6027 = vmul.f32 %v5951, %v6023
  %v6028 = vmul.f32 %v5952, %v6023
  %v6029 = vmul.f32 %v5953, %v6023
  %v6030 = vmul.f32 %v5954, %v6023
  %v6031 = vmul.f32 %v5955, %v6023
  %v6032 = vmul.f32 %v5956, %v6023
  %v6033 = vmul.f32 %v5957, %v6023
  %v6034 = vmul.f32 %v5958, %v6023
  %v6035 = vmul.f32 %v5959, %v6023
  %v6036 = vmul.f32 %v5960, %v6023
  %v6037 = vmul.f32 %v5961, %v6023
  %v6052 = vrot.slane %v6024, 2
  %v6053 = vrot.slane %v6025, 2
  %v6054 = vsel %vm801, %v6052, %v6053
  %v6055 = vrot.slane %v6026, 2
  %v6056 = vrot.slane %v6027, 2
  %v6057 = vsel %vm801, %v6055, %v6056
  %v6058 = vrot.slane %v6028, 2
  %v6059 = vrot.slane %v6029, 2
  %v6060 = vsel %vm801, %v6058, %v6059
  %v6061 = vrot.slane %v6030, 2
  %v6062 = vrot.slane %v6031, 2
  %v6063 = vsel %vm801, %v6061, %v6062
  %v6064 = vrot.slane %v6032, 2
  %v6065 = vrot.slane %v6033, 2
  %v6066 = vsel %vm801, %v6064, %v6065
  %v6067 = vrot.slane %v6034, 2
  %v6068 = vrot.slane %v6035, 2
  %v6069 = vsel %vm801, %v6067, %v6068
  %v6070 = vrot.slane %v6036, 2
  %v6071 = vrot.slane %v6037, 2
  %v6072 = vsel %vm801, %v6070, %v6071
  %v6080 = vadd.f32 %v6013, %v6054
  %v6081 = vadd.f32 %v6014, %v6057
  %v6082 = vadd.f32 %v6015, %v6060
  %v6083 = vadd.f32 %v6016, %v6063
  %v6084 = vadd.f32 %v6017, %v6066
  %v6085 = vadd.f32 %v6018, %v6069
  %v6086 = vadd.f32 %v6019, %v6072
  %v6087 = vlaneseq
  %v6088 = vshrl.u32 %v6087, 7
  %v6089 = vsub.s32 3, %v6088
  %v6090 = vrot.slane %v656, %v6089
  %v6091 = vmul.f32 %v5948, %v6090
  %v6092 = vmul.f32 %v5949, %v6090
  %v6093 = vmul.f32 %v5950, %v6090
  %v6094 = vmul.f32 %v5951, %v6090
  %v6095 = vmul.f32 %v5952, %v6090
  %v6096 = vmul.f32 %v5953, %v6090
  %v6097 = vmul.f32 %v5954, %v6090
  %v6098 = vmul.f32 %v5955, %v6090
  %v6099 = vmul.f32 %v5956, %v6090
  %v6100 = vmul.f32 %v5957, %v6090
  %v6101 = vmul.f32 %v5958, %v6090
  %v6102 = vmul.f32 %v5959, %v6090
  %v6103 = vmul.f32 %v5960, %v6090
  %v6104 = vmul.f32 %v5961, %v6090
  %v6119 = vrot.slane %v6091, 3
  %v6120 = vrot.slane %v6092, 3
  %v6121 = vsel %vm869, %v6119, %v6120
  %v6122 = vrot.slane %v6093, 3
  %v6123 = vrot.slane %v6094, 3
  %v6124 = vsel %vm869, %v6122, %v6123
  %v6125 = vrot.slane %v6095, 3
  %v6126 = vrot.slane %v6096, 3
  %v6127 = vsel %vm869, %v6125, %v6126
  %v6128 = vrot.slane %v6097, 3
  %v6129 = vrot.slane %v6098, 3
  %v6130 = vsel %vm869, %v6128, %v6129
  %v6131 = vrot.slane %v6099, 3
  %v6132 = vrot.slane %v6100, 3
  %v6133 = vsel %vm869, %v6131, %v6132
  %v6134 = vrot.slane %v6101, 3
  %v6135 = vrot.slane %v6102, 3
  %v6136 = vsel %vm869, %v6134, %v6135
  %v6137 = vrot.slane %v6103, 3
  %v6138 = vrot.slane %v6104, 3
  %v6139 = vsel %vm869, %v6137, %v6138
  %v6147 = vadd.f32 %v6080, %v6121
  %v6148 = vadd.f32 %v6081, %v6124
  %v6149 = vadd.f32 %v6082, %v6127
  %v6150 = vadd.f32 %v6083, %v6130
  %v6151 = vadd.f32 %v6084, %v6133
  %v6152 = vadd.f32 %v6085, %v6136
  %v6153 = vadd.f32 %v6086, %v6139
  %v6154 = vlaneseq
  %v6155 = vshrl.u32 %v6154, 7
  %v6156 = vsub.s32 4, %v6155
  %v6157 = vrot.slane %v656, %v6156
  %v6158 = vmul.f32 %v5948, %v6157
  %v6159 = vmul.f32 %v5949, %v6157
  %v6160 = vmul.f32 %v5950, %v6157
  %v6161 = vmul.f32 %v5951, %v6157
  %v6162 = vmul.f32 %v5952, %v6157
  %v6163 = vmul.f32 %v5953, %v6157
  %v6164 = vmul.f32 %v5954, %v6157
  %v6165 = vmul.f32 %v5955, %v6157
  %v6166 = vmul.f32 %v5956, %v6157
  %v6167 = vmul.f32 %v5957, %v6157
  %v6168 = vmul.f32 %v5958, %v6157
  %v6169 = vmul.f32 %v5959, %v6157
  %v6170 = vmul.f32 %v5960, %v6157
  %v6171 = vmul.f32 %v5961, %v6157
  %v6186 = vrot.slane %v6158, 4
  %v6187 = vrot.slane %v6159, 4
  %v6188 = vsel %vm937, %v6186, %v6187
  %v6189 = vrot.slane %v6160, 4
  %v6190 = vrot.slane %v6161, 4
  %v6191 = vsel %vm937, %v6189, %v6190
  %v6192 = vrot.slane %v6162, 4
  %v6193 = vrot.slane %v6163, 4
  %v6194 = vsel %vm937, %v6192, %v6193
  %v6195 = vrot.slane %v6164, 4
  %v6196 = vrot.slane %v6165, 4
  %v6197 = vsel %vm937, %v6195, %v6196
  %v6198 = vrot.slane %v6166, 4
  %v6199 = vrot.slane %v6167, 4
  %v6200 = vsel %vm937, %v6198, %v6199
  %v6201 = vrot.slane %v6168, 4
  %v6202 = vrot.slane %v6169, 4
  %v6203 = vsel %vm937, %v6201, %v6202
  %v6204 = vrot.slane %v6170, 4
  %v6205 = vrot.slane %v6171, 4
  %v6206 = vsel %vm937, %v6204, %v6205
  %v6214 = vadd.f32 %v6147, %v6188
  %v6215 = vadd.f32 %v6148, %v6191
  %v6216 = vadd.f32 %v6149, %v6194
  %v6217 = vadd.f32 %v6150, %v6197
  %v6218 = vadd.f32 %v6151, %v6200
  %v6219 = vadd.f32 %v6152, %v6203
  %v6220 = vadd.f32 %v6153, %v6206
  %v6221 = vlaneseq
  %v6222 = vshrl.u32 %v6221, 7
  %v6223 = vsub.s32 0, %v6222
  %v6224 = vrot.slane %v665, %v6223
  %v6225 = vmul.f32 %v5950, %v6224
  %v6226 = vmul.f32 %v5952, %v6224
  %v6227 = vmul.f32 %v5954, %v6224
  %v6228 = vmul.f32 %v5956, %v6224
  %v6229 = vmul.f32 %v5958, %v6224
  %v6230 = vmul.f32 %v5960, %v6224
  %v6231 = vmul.f32 %v5962, %v6224
  %v6232 = vadd.f32 %v6214, %v6225
  %v6233 = vadd.f32 %v6215, %v6226
  %v6234 = vadd.f32 %v6216, %v6227
  %v6235 = vadd.f32 %v6217, %v6228
  %v6236 = vadd.f32 %v6218, %v6229
  %v6237 = vadd.f32 %v6219, %v6230
  %v6238 = vadd.f32 %v6220, %v6231
  %v6239 = vlaneseq
  %v6240 = vshrl.u32 %v6239, 7
  %v6241 = vsub.s32 1, %v6240
  %v6242 = vrot.slane %v665, %v6241
  %v6243 = vmul.f32 %v5950, %v6242
  %v6244 = vmul.f32 %v5952, %v6242
  %v6245 = vmul.f32 %v5954, %v6242
  %v6246 = vmul.f32 %v5956, %v6242
  %v6247 = vmul.f32 %v5958, %v6242
  %v6248 = vmul.f32 %v5960, %v6242
  %v6249 = vmul.f32 %v5962, %v6242
  %v6257 = vrot.slane %v6243, 1
  %v6258 = vrot.slane %v6244, 1
  %v6259 = vrot.slane %v6245, 1
  %v6260 = vrot.slane %v6246, 1
  %v6261 = vrot.slane %v6247, 1
  %v6262 = vrot.slane %v6248, 1
  %v6263 = vrot.slane %v6249, 1
  %v6271 = vadd.f32 %v6232, %v6257
  %v6272 = vadd.f32 %v6233, %v6258
  %v6273 = vadd.f32 %v6234, %v6259
  %v6274 = vadd.f32 %v6235, %v6260
  %v6275 = vadd.f32 %v6236, %v6261
  %v6276 = vadd.f32 %v6237, %v6262
  %v6277 = vadd.f32 %v6238, %v6263
  %v6278 = vlaneseq
  %v6279 = vshrl.u32 %v6278, 7
  %v6280 = vsub.s32 2, %v6279
  %v6281 = vrot.slane %v665, %v6280
  %v6282 = vmul.f32 %v5950, %v6281
  %v6283 = vmul.f32 %v5951, %v6281
  %v6284 = vmul.f32 %v5952, %v6281
  %v6285 = vmul.f32 %v5953, %v6281
  %v6286 = vmul.f32 %v5954, %v6281
  %v6287 = vmul.f32 %v5955, %v6281
  %v6288 = vmul.f32 %v5956, %v6281
  %v6289 = vmul.f32 %v5957, %v6281
  %v6290 = vmul.f32 %v5958, %v6281
  %v6291 = vmul.f32 %v5959, %v6281
  %v6292 = vmul.f32 %v5960, %v6281
  %v6293 = vmul.f32 %v5961, %v6281
  %v6294 = vmul.f32 %v5962, %v6281
  %v6295 = vmul.f32 %v5963, %v6281
  %v6310 = vrot.slane %v6282, 2
  %v6311 = vrot.slane %v6283, 2
  %v6312 = vsel %vm801, %v6310, %v6311
  %v6313 = vrot.slane %v6284, 2
  %v6314 = vrot.slane %v6285, 2
  %v6315 = vsel %vm801, %v6313, %v6314
  %v6316 = vrot.slane %v6286, 2
  %v6317 = vrot.slane %v6287, 2
  %v6318 = vsel %vm801, %v6316, %v6317
  %v6319 = vrot.slane %v6288, 2
  %v6320 = vrot.slane %v6289, 2
  %v6321 = vsel %vm801, %v6319, %v6320
  %v6322 = vrot.slane %v6290, 2
  %v6323 = vrot.slane %v6291, 2
  %v6324 = vsel %vm801, %v6322, %v6323
  %v6325 = vrot.slane %v6292, 2
  %v6326 = vrot.slane %v6293, 2
  %v6327 = vsel %vm801, %v6325, %v6326
  %v6328 = vrot.slane %v6294, 2
  %v6329 = vrot.slane %v6295, 2
  %v6330 = vsel %vm801, %v6328, %v6329
  %v6338 = vadd.f32 %v6271, %v6312
  %v6339 = vadd.f32 %v6272, %v6315
  %v6340 = vadd.f32 %v6273, %v6318
  %v6341 = vadd.f32 %v6274, %v6321
  %v6342 = vadd.f32 %v6275, %v6324
  %v6343 = vadd.f32 %v6276, %v6327
  %v6344 = vadd.f32 %v6277, %v6330
  %v6345 = vlaneseq
  %v6346 = vshrl.u32 %v6345, 7
  %v6347 = vsub.s32 3, %v6346
  %v6348 = vrot.slane %v665, %v6347
  %v6349 = vmul.f32 %v5950, %v6348
  %v6350 = vmul.f32 %v5951, %v6348
  %v6351 = vmul.f32 %v5952, %v6348
  %v6352 = vmul.f32 %v5953, %v6348
  %v6353 = vmul.f32 %v5954, %v6348
  %v6354 = vmul.f32 %v5955, %v6348
  %v6355 = vmul.f32 %v5956, %v6348
  %v6356 = vmul.f32 %v5957, %v6348
  %v6357 = vmul.f32 %v5958, %v6348
  %v6358 = vmul.f32 %v5959, %v6348
  %v6359 = vmul.f32 %v5960, %v6348
  %v6360 = vmul.f32 %v5961, %v6348
  %v6361 = vmul.f32 %v5962, %v6348
  %v6362 = vmul.f32 %v5963, %v6348
  %v6377 = vrot.slane %v6349, 3
  %v6378 = vrot.slane %v6350, 3
  %v6379 = vsel %vm869, %v6377, %v6378
  %v6380 = vrot.slane %v6351, 3
  %v6381 = vrot.slane %v6352, 3
  %v6382 = vsel %vm869, %v6380, %v6381
  %v6383 = vrot.slane %v6353, 3
  %v6384 = vrot.slane %v6354, 3
  %v6385 = vsel %vm869, %v6383, %v6384
  %v6386 = vrot.slane %v6355, 3
  %v6387 = vrot.slane %v6356, 3
  %v6388 = vsel %vm869, %v6386, %v6387
  %v6389 = vrot.slane %v6357, 3
  %v6390 = vrot.slane %v6358, 3
  %v6391 = vsel %vm869, %v6389, %v6390
  %v6392 = vrot.slane %v6359, 3
  %v6393 = vrot.slane %v6360, 3
  %v6394 = vsel %vm869, %v6392, %v6393
  %v6395 = vrot.slane %v6361, 3
  %v6396 = vrot.slane %v6362, 3
  %v6397 = vsel %vm869, %v6395, %v6396
  %v6405 = vadd.f32 %v6338, %v6379
  %v6406 = vadd.f32 %v6339, %v6382
  %v6407 = vadd.f32 %v6340, %v6385
  %v6408 = vadd.f32 %v6341, %v6388
  %v6409 = vadd.f32 %v6342, %v6391
  %v6410 = vadd.f32 %v6343, %v6394
  %v6411 = vadd.f32 %v6344, %v6397
  %v6412 = vlaneseq
  %v6413 = vshrl.u32 %v6412, 7
  %v6414 = vsub.s32 4, %v6413
  %v6415 = vrot.slane %v665, %v6414
  %v6416 = vmul.f32 %v5950, %v6415
  %v6417 = vmul.f32 %v5951, %v6415
  %v6418 = vmul.f32 %v5952, %v6415
  %v6419 = vmul.f32 %v5953, %v6415
  %v6420 = vmul.f32 %v5954, %v6415
  %v6421 = vmul.f32 %v5955, %v6415
  %v6422 = vmul.f32 %v5956, %v6415
  %v6423 = vmul.f32 %v5957, %v6415
  %v6424 = vmul.f32 %v5958, %v6415
  %v6425 = vmul.f32 %v5959, %v6415
  %v6426 = vmul.f32 %v5960, %v6415
  %v6427 = vmul.f32 %v5961, %v6415
  %v6428 = vmul.f32 %v5962, %v6415
  %v6429 = vmul.f32 %v5963, %v6415
  %v6444 = vrot.slane %v6416, 4
  %v6445 = vrot.slane %v6417, 4
  %v6446 = vsel %vm937, %v6444, %v6445
  %v6447 = vrot.slane %v6418, 4
  %v6448 = vrot.slane %v6419, 4
  %v6449 = vsel %vm937, %v6447, %v6448
  %v6450 = vrot.slane %v6420, 4
  %v6451 = vrot.slane %v6421, 4
  %v6452 = vsel %vm937, %v6450, %v6451
  %v6453 = vrot.slane %v6422, 4
  %v6454 = vrot.slane %v6423, 4
  %v6455 = vsel %vm937, %v6453, %v6454
  %v6456 = vrot.slane %v6424, 4
  %v6457 = vrot.slane %v6425, 4
  %v6458 = vsel %vm937, %v6456, %v6457
  %v6459 = vrot.slane %v6426, 4
  %v6460 = vrot.slane %v6427, 4
  %v6461 = vsel %vm937, %v6459, %v6460
  %v6462 = vrot.slane %v6428, 4
  %v6463 = vrot.slane %v6429, 4
  %v6464 = vsel %vm937, %v6462, %v6463
  %v6472 = vadd.f32 %v6405, %v6446
  %v6473 = vadd.f32 %v6406, %v6449
  %v6474 = vadd.f32 %v6407, %v6452
  %v6475 = vadd.f32 %v6408, %v6455
  %v6476 = vadd.f32 %v6409, %v6458
  %v6477 = vadd.f32 %v6410, %v6461
  %v6478 = vadd.f32 %v6411, %v6464
  %v6479 = vlaneseq
  %v6480 = vshrl.u32 %v6479, 7
  %v6481 = vsub.s32 0, %v6480
  %v6482 = vrot.slane %v674, %v6481
  %v6483 = vmul.f32 %v5952, %v6482
  %v6484 = vmul.f32 %v5954, %v6482
  %v6485 = vmul.f32 %v5956, %v6482
  %v6486 = vmul.f32 %v5958, %v6482
  %v6487 = vmul.f32 %v5960, %v6482
  %v6488 = vmul.f32 %v5962, %v6482
  %v6489 = vmul.f32 %v5964, %v6482
  %v6490 = vadd.f32 %v6472, %v6483
  %v6491 = vadd.f32 %v6473, %v6484
  %v6492 = vadd.f32 %v6474, %v6485
  %v6493 = vadd.f32 %v6475, %v6486
  %v6494 = vadd.f32 %v6476, %v6487
  %v6495 = vadd.f32 %v6477, %v6488
  %v6496 = vadd.f32 %v6478, %v6489
  %v6497 = vlaneseq
  %v6498 = vshrl.u32 %v6497, 7
  %v6499 = vsub.s32 1, %v6498
  %v6500 = vrot.slane %v674, %v6499
  %v6501 = vmul.f32 %v5952, %v6500
  %v6502 = vmul.f32 %v5954, %v6500
  %v6503 = vmul.f32 %v5956, %v6500
  %v6504 = vmul.f32 %v5958, %v6500
  %v6505 = vmul.f32 %v5960, %v6500
  %v6506 = vmul.f32 %v5962, %v6500
  %v6507 = vmul.f32 %v5964, %v6500
  %v6515 = vrot.slane %v6501, 1
  %v6516 = vrot.slane %v6502, 1
  %v6517 = vrot.slane %v6503, 1
  %v6518 = vrot.slane %v6504, 1
  %v6519 = vrot.slane %v6505, 1
  %v6520 = vrot.slane %v6506, 1
  %v6521 = vrot.slane %v6507, 1
  %v6529 = vadd.f32 %v6490, %v6515
  %v6530 = vadd.f32 %v6491, %v6516
  %v6531 = vadd.f32 %v6492, %v6517
  %v6532 = vadd.f32 %v6493, %v6518
  %v6533 = vadd.f32 %v6494, %v6519
  %v6534 = vadd.f32 %v6495, %v6520
  %v6535 = vadd.f32 %v6496, %v6521
  %v6536 = vlaneseq
  %v6537 = vshrl.u32 %v6536, 7
  %v6538 = vsub.s32 2, %v6537
  %v6539 = vrot.slane %v674, %v6538
  %v6540 = vmul.f32 %v5952, %v6539
  %v6541 = vmul.f32 %v5953, %v6539
  %v6542 = vmul.f32 %v5954, %v6539
  %v6543 = vmul.f32 %v5955, %v6539
  %v6544 = vmul.f32 %v5956, %v6539
  %v6545 = vmul.f32 %v5957, %v6539
  %v6546 = vmul.f32 %v5958, %v6539
  %v6547 = vmul.f32 %v5959, %v6539
  %v6548 = vmul.f32 %v5960, %v6539
  %v6549 = vmul.f32 %v5961, %v6539
  %v6550 = vmul.f32 %v5962, %v6539
  %v6551 = vmul.f32 %v5963, %v6539
  %v6552 = vmul.f32 %v5964, %v6539
  %v6553 = vmul.f32 %v5965, %v6539
  %v6568 = vrot.slane %v6540, 2
  %v6569 = vrot.slane %v6541, 2
  %v6570 = vsel %vm801, %v6568, %v6569
  %v6571 = vrot.slane %v6542, 2
  %v6572 = vrot.slane %v6543, 2
  %v6573 = vsel %vm801, %v6571, %v6572
  %v6574 = vrot.slane %v6544, 2
  %v6575 = vrot.slane %v6545, 2
  %v6576 = vsel %vm801, %v6574, %v6575
  %v6577 = vrot.slane %v6546, 2
  %v6578 = vrot.slane %v6547, 2
  %v6579 = vsel %vm801, %v6577, %v6578
  %v6580 = vrot.slane %v6548, 2
  %v6581 = vrot.slane %v6549, 2
  %v6582 = vsel %vm801, %v6580, %v6581
  %v6583 = vrot.slane %v6550, 2
  %v6584 = vrot.slane %v6551, 2
  %v6585 = vsel %vm801, %v6583, %v6584
  %v6586 = vrot.slane %v6552, 2
  %v6587 = vrot.slane %v6553, 2
  %v6588 = vsel %vm801, %v6586, %v6587
  %v6596 = vadd.f32 %v6529, %v6570
  %v6597 = vadd.f32 %v6530, %v6573
  %v6598 = vadd.f32 %v6531, %v6576
  %v6599 = vadd.f32 %v6532, %v6579
  %v6600 = vadd.f32 %v6533, %v6582
  %v6601 = vadd.f32 %v6534, %v6585
  %v6602 = vadd.f32 %v6535, %v6588
  %v6603 = vlaneseq
  %v6604 = vshrl.u32 %v6603, 7
  %v6605 = vsub.s32 3, %v6604
  %v6606 = vrot.slane %v674, %v6605
  %v6607 = vmul.f32 %v5952, %v6606
  %v6608 = vmul.f32 %v5953, %v6606
  %v6609 = vmul.f32 %v5954, %v6606
  %v6610 = vmul.f32 %v5955, %v6606
  %v6611 = vmul.f32 %v5956, %v6606
  %v6612 = vmul.f32 %v5957, %v6606
  %v6613 = vmul.f32 %v5958, %v6606
  %v6614 = vmul.f32 %v5959, %v6606
  %v6615 = vmul.f32 %v5960, %v6606
  %v6616 = vmul.f32 %v5961, %v6606
  %v6617 = vmul.f32 %v5962, %v6606
  %v6618 = vmul.f32 %v5963, %v6606
  %v6619 = vmul.f32 %v5964, %v6606
  %v6620 = vmul.f32 %v5965, %v6606
  %v6635 = vrot.slane %v6607, 3
  %v6636 = vrot.slane %v6608, 3
  %v6637 = vsel %vm869, %v6635, %v6636
  %v6638 = vrot.slane %v6609, 3
  %v6639 = vrot.slane %v6610, 3
  %v6640 = vsel %vm869, %v6638, %v6639
  %v6641 = vrot.slane %v6611, 3
  %v6642 = vrot.slane %v6612, 3
  %v6643 = vsel %vm869, %v6641, %v6642
  %v6644 = vrot.slane %v6613, 3
  %v6645 = vrot.slane %v6614, 3
  %v6646 = vsel %vm869, %v6644, %v6645
  %v6647 = vrot.slane %v6615, 3
  %v6648 = vrot.slane %v6616, 3
  %v6649 = vsel %vm869, %v6647, %v6648
  %v6650 = vrot.slane %v6617, 3
  %v6651 = vrot.slane %v6618, 3
  %v6652 = vsel %vm869, %v6650, %v6651
  %v6653 = vrot.slane %v6619, 3
  %v6654 = vrot.slane %v6620, 3
  %v6655 = vsel %vm869, %v6653, %v6654
  %v6663 = vadd.f32 %v6596, %v6637
  %v6664 = vadd.f32 %v6597, %v6640
  %v6665 = vadd.f32 %v6598, %v6643
  %v6666 = vadd.f32 %v6599, %v6646
  %v6667 = vadd.f32 %v6600, %v6649
  %v6668 = vadd.f32 %v6601, %v6652
  %v6669 = vadd.f32 %v6602, %v6655
  %v6670 = vlaneseq
  %v6671 = vshrl.u32 %v6670, 7
  %v6672 = vsub.s32 4, %v6671
  %v6673 = vrot.slane %v674, %v6672
  %v6674 = vmul.f32 %v5952, %v6673
  %v6675 = vmul.f32 %v5953, %v6673
  %v6676 = vmul.f32 %v5954, %v6673
  %v6677 = vmul.f32 %v5955, %v6673
  %v6678 = vmul.f32 %v5956, %v6673
  %v6679 = vmul.f32 %v5957, %v6673
  %v6680 = vmul.f32 %v5958, %v6673
  %v6681 = vmul.f32 %v5959, %v6673
  %v6682 = vmul.f32 %v5960, %v6673
  %v6683 = vmul.f32 %v5961, %v6673
  %v6684 = vmul.f32 %v5962, %v6673
  %v6685 = vmul.f32 %v5963, %v6673
  %v6686 = vmul.f32 %v5964, %v6673
  %v6687 = vmul.f32 %v5965, %v6673
  %v6702 = vrot.slane %v6674, 4
  %v6703 = vrot.slane %v6675, 4
  %v6704 = vsel %vm937, %v6702, %v6703
  %v6705 = vrot.slane %v6676, 4
  %v6706 = vrot.slane %v6677, 4
  %v6707 = vsel %vm937, %v6705, %v6706
  %v6708 = vrot.slane %v6678, 4
  %v6709 = vrot.slane %v6679, 4
  %v6710 = vsel %vm937, %v6708, %v6709
  %v6711 = vrot.slane %v6680, 4
  %v6712 = vrot.slane %v6681, 4
  %v6713 = vsel %vm937, %v6711, %v6712
  %v6714 = vrot.slane %v6682, 4
  %v6715 = vrot.slane %v6683, 4
  %v6716 = vsel %vm937, %v6714, %v6715
  %v6717 = vrot.slane %v6684, 4
  %v6718 = vrot.slane %v6685, 4
  %v6719 = vsel %vm937, %v6717, %v6718
  %v6720 = vrot.slane %v6686, 4
  %v6721 = vrot.slane %v6687, 4
  %v6722 = vsel %vm937, %v6720, %v6721
  %v6730 = vadd.f32 %v6663, %v6704
  %v6731 = vadd.f32 %v6664, %v6707
  %v6732 = vadd.f32 %v6665, %v6710
  %v6733 = vadd.f32 %v6666, %v6713
  %v6734 = vadd.f32 %v6667, %v6716
  %v6735 = vadd.f32 %v6668, %v6719
  %v6736 = vadd.f32 %v6669, %v6722
  %v6737 = vlaneseq
  %v6738 = vshrl.u32 %v6737, 7
  %v6739 = vsub.s32 0, %v6738
  %v6740 = vrot.slane %v683, %v6739
  %v6741 = vmul.f32 %v5954, %v6740
  %v6742 = vmul.f32 %v5956, %v6740
  %v6743 = vmul.f32 %v5958, %v6740
  %v6744 = vmul.f32 %v5960, %v6740
  %v6745 = vmul.f32 %v5962, %v6740
  %v6746 = vmul.f32 %v5964, %v6740
  %v6747 = vmul.f32 %v5966, %v6740
  %v6748 = vadd.f32 %v6730, %v6741
  %v6749 = vadd.f32 %v6731, %v6742
  %v6750 = vadd.f32 %v6732, %v6743
  %v6751 = vadd.f32 %v6733, %v6744
  %v6752 = vadd.f32 %v6734, %v6745
  %v6753 = vadd.f32 %v6735, %v6746
  %v6754 = vadd.f32 %v6736, %v6747
  %v6755 = vlaneseq
  %v6756 = vshrl.u32 %v6755, 7
  %v6757 = vsub.s32 1, %v6756
  %v6758 = vrot.slane %v683, %v6757
  %v6759 = vmul.f32 %v5954, %v6758
  %v6760 = vmul.f32 %v5956, %v6758
  %v6761 = vmul.f32 %v5958, %v6758
  %v6762 = vmul.f32 %v5960, %v6758
  %v6763 = vmul.f32 %v5962, %v6758
  %v6764 = vmul.f32 %v5964, %v6758
  %v6765 = vmul.f32 %v5966, %v6758
  %v6773 = vrot.slane %v6759, 1
  %v6774 = vrot.slane %v6760, 1
  %v6775 = vrot.slane %v6761, 1
  %v6776 = vrot.slane %v6762, 1
  %v6777 = vrot.slane %v6763, 1
  %v6778 = vrot.slane %v6764, 1
  %v6779 = vrot.slane %v6765, 1
  %v6787 = vadd.f32 %v6748, %v6773
  %v6788 = vadd.f32 %v6749, %v6774
  %v6789 = vadd.f32 %v6750, %v6775
  %v6790 = vadd.f32 %v6751, %v6776
  %v6791 = vadd.f32 %v6752, %v6777
  %v6792 = vadd.f32 %v6753, %v6778
  %v6793 = vadd.f32 %v6754, %v6779
  %v6794 = vlaneseq
  %v6795 = vshrl.u32 %v6794, 7
  %v6796 = vsub.s32 2, %v6795
  %v6797 = vrot.slane %v683, %v6796
  %v6798 = vmul.f32 %v5954, %v6797
  %v6799 = vmul.f32 %v5955, %v6797
  %v6800 = vmul.f32 %v5956, %v6797
  %v6801 = vmul.f32 %v5957, %v6797
  %v6802 = vmul.f32 %v5958, %v6797
  %v6803 = vmul.f32 %v5959, %v6797
  %v6804 = vmul.f32 %v5960, %v6797
  %v6805 = vmul.f32 %v5961, %v6797
  %v6806 = vmul.f32 %v5962, %v6797
  %v6807 = vmul.f32 %v5963, %v6797
  %v6808 = vmul.f32 %v5964, %v6797
  %v6809 = vmul.f32 %v5965, %v6797
  %v6810 = vmul.f32 %v5966, %v6797
  %v6811 = vmul.f32 %v5967, %v6797
  %v6826 = vrot.slane %v6798, 2
  %v6827 = vrot.slane %v6799, 2
  %v6828 = vsel %vm801, %v6826, %v6827
  %v6829 = vrot.slane %v6800, 2
  %v6830 = vrot.slane %v6801, 2
  %v6831 = vsel %vm801, %v6829, %v6830
  %v6832 = vrot.slane %v6802, 2
  %v6833 = vrot.slane %v6803, 2
  %v6834 = vsel %vm801, %v6832, %v6833
  %v6835 = vrot.slane %v6804, 2
  %v6836 = vrot.slane %v6805, 2
  %v6837 = vsel %vm801, %v6835, %v6836
  %v6838 = vrot.slane %v6806, 2
  %v6839 = vrot.slane %v6807, 2
  %v6840 = vsel %vm801, %v6838, %v6839
  %v6841 = vrot.slane %v6808, 2
  %v6842 = vrot.slane %v6809, 2
  %v6843 = vsel %vm801, %v6841, %v6842
  %v6844 = vrot.slane %v6810, 2
  %v6845 = vrot.slane %v6811, 2
  %v6846 = vsel %vm801, %v6844, %v6845
  %v6854 = vadd.f32 %v6787, %v6828
  %v6855 = vadd.f32 %v6788, %v6831
  %v6856 = vadd.f32 %v6789, %v6834
  %v6857 = vadd.f32 %v6790, %v6837
  %v6858 = vadd.f32 %v6791, %v6840
  %v6859 = vadd.f32 %v6792, %v6843
  %v6860 = vadd.f32 %v6793, %v6846
  %v6861 = vlaneseq
  %v6862 = vshrl.u32 %v6861, 7
  %v6863 = vsub.s32 3, %v6862
  %v6864 = vrot.slane %v683, %v6863
  %v6865 = vmul.f32 %v5954, %v6864
  %v6866 = vmul.f32 %v5955, %v6864
  %v6867 = vmul.f32 %v5956, %v6864
  %v6868 = vmul.f32 %v5957, %v6864
  %v6869 = vmul.f32 %v5958, %v6864
  %v6870 = vmul.f32 %v5959, %v6864
  %v6871 = vmul.f32 %v5960, %v6864
  %v6872 = vmul.f32 %v5961, %v6864
  %v6873 = vmul.f32 %v5962, %v6864
  %v6874 = vmul.f32 %v5963, %v6864
  %v6875 = vmul.f32 %v5964, %v6864
  %v6876 = vmul.f32 %v5965, %v6864
  %v6877 = vmul.f32 %v5966, %v6864
  %v6878 = vmul.f32 %v5967, %v6864
  %v6893 = vrot.slane %v6865, 3
  %v6894 = vrot.slane %v6866, 3
  %v6895 = vsel %vm869, %v6893, %v6894
  %v6896 = vrot.slane %v6867, 3
  %v6897 = vrot.slane %v6868, 3
  %v6898 = vsel %vm869, %v6896, %v6897
  %v6899 = vrot.slane %v6869, 3
  %v6900 = vrot.slane %v6870, 3
  %v6901 = vsel %vm869, %v6899, %v6900
  %v6902 = vrot.slane %v6871, 3
  %v6903 = vrot.slane %v6872, 3
  %v6904 = vsel %vm869, %v6902, %v6903
  %v6905 = vrot.slane %v6873, 3
  %v6906 = vrot.slane %v6874, 3
  %v6907 = vsel %vm869, %v6905, %v6906
  %v6908 = vrot.slane %v6875, 3
  %v6909 = vrot.slane %v6876, 3
  %v6910 = vsel %vm869, %v6908, %v6909
  %v6911 = vrot.slane %v6877, 3
  %v6912 = vrot.slane %v6878, 3
  %v6913 = vsel %vm869, %v6911, %v6912
  %v6921 = vadd.f32 %v6854, %v6895
  %v6922 = vadd.f32 %v6855, %v6898
  %v6923 = vadd.f32 %v6856, %v6901
  %v6924 = vadd.f32 %v6857, %v6904
  %v6925 = vadd.f32 %v6858, %v6907
  %v6926 = vadd.f32 %v6859, %v6910
  %v6927 = vadd.f32 %v6860, %v6913
  %v6928 = vlaneseq
  %v6929 = vshrl.u32 %v6928, 7
  %v6930 = vsub.s32 4, %v6929
  %v6931 = vrot.slane %v683, %v6930
  %v6932 = vmul.f32 %v5954, %v6931
  %v6933 = vmul.f32 %v5955, %v6931
  %v6934 = vmul.f32 %v5956, %v6931
  %v6935 = vmul.f32 %v5957, %v6931
  %v6936 = vmul.f32 %v5958, %v6931
  %v6937 = vmul.f32 %v5959, %v6931
  %v6938 = vmul.f32 %v5960, %v6931
  %v6939 = vmul.f32 %v5961, %v6931
  %v6940 = vmul.f32 %v5962, %v6931
  %v6941 = vmul.f32 %v5963, %v6931
  %v6942 = vmul.f32 %v5964, %v6931
  %v6943 = vmul.f32 %v5965, %v6931
  %v6944 = vmul.f32 %v5966, %v6931
  %v6945 = vmul.f32 %v5967, %v6931
  %v6960 = vrot.slane %v6932, 4
  %v6961 = vrot.slane %v6933, 4
  %v6962 = vsel %vm937, %v6960, %v6961
  %v6963 = vrot.slane %v6934, 4
  %v6964 = vrot.slane %v6935, 4
  %v6965 = vsel %vm937, %v6963, %v6964
  %v6966 = vrot.slane %v6936, 4
  %v6967 = vrot.slane %v6937, 4
  %v6968 = vsel %vm937, %v6966, %v6967
  %v6969 = vrot.slane %v6938, 4
  %v6970 = vrot.slane %v6939, 4
  %v6971 = vsel %vm937, %v6969, %v6970
  %v6972 = vrot.slane %v6940, 4
  %v6973 = vrot.slane %v6941, 4
  %v6974 = vsel %vm937, %v6972, %v6973
  %v6975 = vrot.slane %v6942, 4
  %v6976 = vrot.slane %v6943, 4
  %v6977 = vsel %vm937, %v6975, %v6976
  %v6978 = vrot.slane %v6944, 4
  %v6979 = vrot.slane %v6945, 4
  %v6980 = vsel %vm937, %v6978, %v6979
  %v6988 = vadd.f32 %v6921, %v6962
  %v6989 = vadd.f32 %v6922, %v6965
  %v6990 = vadd.f32 %v6923, %v6968
  %v6991 = vadd.f32 %v6924, %v6971
  %v6992 = vadd.f32 %v6925, %v6974
  %v6993 = vadd.f32 %v6926, %v6977
  %v6994 = vadd.f32 %v6927, %v6980
  %v6995 = vlaneseq
  %v6996 = vshrl.u32 %v6995, 7
  %v6997 = vsub.s32 0, %v6996
  %v6998 = vrot.slane %v692, %v6997
  %v6999 = vmul.f32 %v5956, %v6998
  %v7000 = vmul.f32 %v5958, %v6998
  %v7001 = vmul.f32 %v5960, %v6998
  %v7002 = vmul.f32 %v5962, %v6998
  %v7003 = vmul.f32 %v5964, %v6998
  %v7004 = vmul.f32 %v5966, %v6998
  %v7005 = vmul.f32 %v5968, %v6998
  %v7006 = vadd.f32 %v6988, %v6999
  %v7007 = vadd.f32 %v6989, %v7000
  %v7008 = vadd.f32 %v6990, %v7001
  %v7009 = vadd.f32 %v6991, %v7002
  %v7010 = vadd.f32 %v6992, %v7003
  %v7011 = vadd.f32 %v6993, %v7004
  %v7012 = vadd.f32 %v6994, %v7005
  %v7013 = vlaneseq
  %v7014 = vshrl.u32 %v7013, 7
  %v7015 = vsub.s32 1, %v7014
  %v7016 = vrot.slane %v692, %v7015
  %v7017 = vmul.f32 %v5956, %v7016
  %v7018 = vmul.f32 %v5958, %v7016
  %v7019 = vmul.f32 %v5960, %v7016
  %v7020 = vmul.f32 %v5962, %v7016
  %v7021 = vmul.f32 %v5964, %v7016
  %v7022 = vmul.f32 %v5966, %v7016
  %v7023 = vmul.f32 %v5968, %v7016
  %v7031 = vrot.slane %v7017, 1
  %v7032 = vrot.slane %v7018, 1
  %v7033 = vrot.slane %v7019, 1
  %v7034 = vrot.slane %v7020, 1
  %v7035 = vrot.slane %v7021, 1
  %v7036 = vrot.slane %v7022, 1
  %v7037 = vrot.slane %v7023, 1
  %v7045 = vadd.f32 %v7006, %v7031
  %v7046 = vadd.f32 %v7007, %v7032
  %v7047 = vadd.f32 %v7008, %v7033
  %v7048 = vadd.f32 %v7009, %v7034
  %v7049 = vadd.f32 %v7010, %v7035
  %v7050 = vadd.f32 %v7011, %v7036
  %v7051 = vadd.f32 %v7012, %v7037
  %v7052 = vlaneseq
  %v7053 = vshrl.u32 %v7052, 7
  %v7054 = vsub.s32 2, %v7053
  %v7055 = vrot.slane %v692, %v7054
  %v7056 = vmul.f32 %v5956, %v7055
  %v7057 = vmul.f32 %v5957, %v7055
  %v7058 = vmul.f32 %v5958, %v7055
  %v7059 = vmul.f32 %v5959, %v7055
  %v7060 = vmul.f32 %v5960, %v7055
  %v7061 = vmul.f32 %v5961, %v7055
  %v7062 = vmul.f32 %v5962, %v7055
  %v7063 = vmul.f32 %v5963, %v7055
  %v7064 = vmul.f32 %v5964, %v7055
  %v7065 = vmul.f32 %v5965, %v7055
  %v7066 = vmul.f32 %v5966, %v7055
  %v7067 = vmul.f32 %v5967, %v7055
  %v7068 = vmul.f32 %v5968, %v7055
  %v7069 = vmul.f32 %v5969, %v7055
  %v7084 = vrot.slane %v7056, 2
  %v7085 = vrot.slane %v7057, 2
  %v7086 = vsel %vm801, %v7084, %v7085
  %v7087 = vrot.slane %v7058, 2
  %v7088 = vrot.slane %v7059, 2
  %v7089 = vsel %vm801, %v7087, %v7088
  %v7090 = vrot.slane %v7060, 2
  %v7091 = vrot.slane %v7061, 2
  %v7092 = vsel %vm801, %v7090, %v7091
  %v7093 = vrot.slane %v7062, 2
  %v7094 = vrot.slane %v7063, 2
  %v7095 = vsel %vm801, %v7093, %v7094
  %v7096 = vrot.slane %v7064, 2
  %v7097 = vrot.slane %v7065, 2
  %v7098 = vsel %vm801, %v7096, %v7097
  %v7099 = vrot.slane %v7066, 2
  %v7100 = vrot.slane %v7067, 2
  %v7101 = vsel %vm801, %v7099, %v7100
  %v7102 = vrot.slane %v7068, 2
  %v7103 = vrot.slane %v7069, 2
  %v7104 = vsel %vm801, %v7102, %v7103
  %v7112 = vadd.f32 %v7045, %v7086
  %v7113 = vadd.f32 %v7046, %v7089
  %v7114 = vadd.f32 %v7047, %v7092
  %v7115 = vadd.f32 %v7048, %v7095
  %v7116 = vadd.f32 %v7049, %v7098
  %v7117 = vadd.f32 %v7050, %v7101
  %v7118 = vadd.f32 %v7051, %v7104
  %v7119 = vlaneseq
  %v7120 = vshrl.u32 %v7119, 7
  %v7121 = vsub.s32 3, %v7120
  %v7122 = vrot.slane %v692, %v7121
  %v7123 = vmul.f32 %v5956, %v7122
  %v7124 = vmul.f32 %v5957, %v7122
  %v7125 = vmul.f32 %v5958, %v7122
  %v7126 = vmul.f32 %v5959, %v7122
  %v7127 = vmul.f32 %v5960, %v7122
  %v7128 = vmul.f32 %v5961, %v7122
  %v7129 = vmul.f32 %v5962, %v7122
  %v7130 = vmul.f32 %v5963, %v7122
  %v7131 = vmul.f32 %v5964, %v7122
  %v7132 = vmul.f32 %v5965, %v7122
  %v7133 = vmul.f32 %v5966, %v7122
  %v7134 = vmul.f32 %v5967, %v7122
  %v7135 = vmul.f32 %v5968, %v7122
  %v7136 = vmul.f32 %v5969, %v7122
  %v7151 = vrot.slane %v7123, 3
  %v7152 = vrot.slane %v7124, 3
  %v7153 = vsel %vm869, %v7151, %v7152
  %v7154 = vrot.slane %v7125, 3
  %v7155 = vrot.slane %v7126, 3
  %v7156 = vsel %vm869, %v7154, %v7155
  %v7157 = vrot.slane %v7127, 3
  %v7158 = vrot.slane %v7128, 3
  %v7159 = vsel %vm869, %v7157, %v7158
  %v7160 = vrot.slane %v7129, 3
  %v7161 = vrot.slane %v7130, 3
  %v7162 = vsel %vm869, %v7160, %v7161
  %v7163 = vrot.slane %v7131, 3
  %v7164 = vrot.slane %v7132, 3
  %v7165 = vsel %vm869, %v7163, %v7164
  %v7166 = vrot.slane %v7133, 3
  %v7167 = vrot.slane %v7134, 3
  %v7168 = vsel %vm869, %v7166, %v7167
  %v7169 = vrot.slane %v7135, 3
  %v7170 = vrot.slane %v7136, 3
  %v7171 = vsel %vm869, %v7169, %v7170
  %v7179 = vadd.f32 %v7112, %v7153
  %v7180 = vadd.f32 %v7113, %v7156
  %v7181 = vadd.f32 %v7114, %v7159
  %v7182 = vadd.f32 %v7115, %v7162
  %v7183 = vadd.f32 %v7116, %v7165
  %v7184 = vadd.f32 %v7117, %v7168
  %v7185 = vadd.f32 %v7118, %v7171
  %v7186 = vlaneseq
  %v7187 = vshrl.u32 %v7186, 7
  %v7188 = vsub.s32 4, %v7187
  %v7189 = vrot.slane %v692, %v7188
  %v7190 = vmul.f32 %v5956, %v7189
  %v7191 = vmul.f32 %v5957, %v7189
  %v7192 = vmul.f32 %v5958, %v7189
  %v7193 = vmul.f32 %v5959, %v7189
  %v7194 = vmul.f32 %v5960, %v7189
  %v7195 = vmul.f32 %v5961, %v7189
  %v7196 = vmul.f32 %v5962, %v7189
  %v7197 = vmul.f32 %v5963, %v7189
  %v7198 = vmul.f32 %v5964, %v7189
  %v7199 = vmul.f32 %v5965, %v7189
  %v7200 = vmul.f32 %v5966, %v7189
  %v7201 = vmul.f32 %v5967, %v7189
  %v7202 = vmul.f32 %v5968, %v7189
  %v7203 = vmul.f32 %v5969, %v7189
  %v7218 = vrot.slane %v7190, 4
  %v7219 = vrot.slane %v7191, 4
  %v7220 = vsel %vm937, %v7218, %v7219
  %v7221 = vrot.slane %v7192, 4
  %v7222 = vrot.slane %v7193, 4
  %v7223 = vsel %vm937, %v7221, %v7222
  %v7224 = vrot.slane %v7194, 4
  %v7225 = vrot.slane %v7195, 4
  %v7226 = vsel %vm937, %v7224, %v7225
  %v7227 = vrot.slane %v7196, 4
  %v7228 = vrot.slane %v7197, 4
  %v7229 = vsel %vm937, %v7227, %v7228
  %v7230 = vrot.slane %v7198, 4
  %v7231 = vrot.slane %v7199, 4
  %v7232 = vsel %vm937, %v7230, %v7231
  %v7233 = vrot.slane %v7200, 4
  %v7234 = vrot.slane %v7201, 4
  %v7235 = vsel %vm937, %v7233, %v7234
  %v7236 = vrot.slane %v7202, 4
  %v7237 = vrot.slane %v7203, 4
  %v7238 = vsel %vm937, %v7236, %v7237
  %v7246 = vadd.f32 %v7179, %v7220
  %v7247 = vadd.f32 %v7180, %v7223
  %v7248 = vadd.f32 %v7181, %v7226
  %v7249 = vadd.f32 %v7182, %v7229
  %v7250 = vadd.f32 %v7183, %v7232
  %v7251 = vadd.f32 %v7184, %v7235
  %v7252 = vadd.f32 %v7185, %v7238
  %7253 = vst [vmem:[%s2 + $0x20] sm:$0x7f] %v7246
  %7254 = vst [vmem:[%s2 + $0x68] sm:$0x7f] %v7247
  %7255 = vst [vmem:[%s2 + $0xb0] sm:$0x7f] %v7248
  %7256 = vst [vmem:[%s2 + $0xf8] sm:$0x7f] %v7249
  %7257 = vst [vmem:[%s2 + $0x140] sm:$0x7f] %v7250
  %7258 = vst [vmem:[%s2 + $0x188] sm:$0x7f] %v7251
  %7259 = vst [vmem:[%s2 + $0x1d0] sm:$0x7f] %v7252
  %v7260 = vld [vmem:[#allocation2 + $0x28] sm:$0xff]
  %v7261 = vld [vmem:[#allocation2 + $0x70] sm:$0x7]
  %v7262 = vld [vmem:[#allocation2 + $0xb8] sm:$0xff]
  %v7263 = vld [vmem:[#allocation2 + $0x100] sm:$0x7]
  %v7264 = vld [vmem:[#allocation2 + $0x148] sm:$0xff]
  %v7265 = vld [vmem:[#allocation2 + $0x190] sm:$0x7]
  %v7266 = vld [vmem:[#allocation2 + $0x1d8] sm:$0xff]
  %v7267 = vld [vmem:[#allocation2 + $0x220] sm:$0x7]
  %v7268 = vld [vmem:[#allocation2 + $0x268] sm:$0xff]
  %v7269 = vld [vmem:[#allocation2 + $0x2b0] sm:$0x7]
  %v7270 = vld [vmem:[#allocation2 + $0x2f8] sm:$0xff]
  %v7271 = vld [vmem:[#allocation2 + $0x340] sm:$0x7]
  %v7272 = vld [vmem:[#allocation2 + $0x388] sm:$0xff]
  %v7273 = vld [vmem:[#allocation2 + $0x3d0] sm:$0x7]
  %v7274 = vld [vmem:[#allocation2 + $0x418] sm:$0xff]
  %v7275 = vld [vmem:[#allocation2 + $0x460] sm:$0x7]
  %v7276 = vld [vmem:[#allocation2 + $0x4a8] sm:$0xff]
  %v7277 = vld [vmem:[#allocation2 + $0x4f0] sm:$0x7]
  %v7278 = vld [vmem:[#allocation2 + $0x538] sm:$0xff]
  %v7279 = vld [vmem:[#allocation2 + $0x580] sm:$0x7]
  %v7280 = vld [vmem:[#allocation2 + $0x5c8] sm:$0xff]
  %v7281 = vld [vmem:[#allocation2 + $0x610] sm:$0x7]
  %v7282 = vlaneseq
  %v7283 = vshrl.u32 %v7282, 7
  %v7284 = vsub.s32 0, %v7283
  %v7285 = vrot.slane %v657, %v7284
  %v7286 = vmul.f32 %v7260, %v7285
  %v7287 = vmul.f32 %v7262, %v7285
  %v7288 = vmul.f32 %v7264, %v7285
  %v7289 = vmul.f32 %v7266, %v7285
  %v7290 = vmul.f32 %v7268, %v7285
  %v7291 = vmul.f32 %v7270, %v7285
  %v7292 = vmul.f32 %v7272, %v7285
  %v7293 = vlaneseq
  %v7294 = vshrl.u32 %v7293, 7
  %v7295 = vsub.s32 1, %v7294
  %v7296 = vrot.slane %v657, %v7295
  %v7297 = vmul.f32 %v7260, %v7296
  %v7298 = vmul.f32 %v7262, %v7296
  %v7299 = vmul.f32 %v7264, %v7296
  %v7300 = vmul.f32 %v7266, %v7296
  %v7301 = vmul.f32 %v7268, %v7296
  %v7302 = vmul.f32 %v7270, %v7296
  %v7303 = vmul.f32 %v7272, %v7296
  %v7311 = vrot.slane %v7297, 1
  %v7312 = vrot.slane %v7298, 1
  %v7313 = vrot.slane %v7299, 1
  %v7314 = vrot.slane %v7300, 1
  %v7315 = vrot.slane %v7301, 1
  %v7316 = vrot.slane %v7302, 1
  %v7317 = vrot.slane %v7303, 1
  %v7325 = vadd.f32 %v7286, %v7311
  %v7326 = vadd.f32 %v7287, %v7312
  %v7327 = vadd.f32 %v7288, %v7313
  %v7328 = vadd.f32 %v7289, %v7314
  %v7329 = vadd.f32 %v7290, %v7315
  %v7330 = vadd.f32 %v7291, %v7316
  %v7331 = vadd.f32 %v7292, %v7317
  %v7332 = vlaneseq
  %v7333 = vshrl.u32 %v7332, 7
  %v7334 = vsub.s32 2, %v7333
  %v7335 = vrot.slane %v657, %v7334
  %v7336 = vmul.f32 %v7260, %v7335
  %v7337 = vmul.f32 %v7261, %v7335
  %v7338 = vmul.f32 %v7262, %v7335
  %v7339 = vmul.f32 %v7263, %v7335
  %v7340 = vmul.f32 %v7264, %v7335
  %v7341 = vmul.f32 %v7265, %v7335
  %v7342 = vmul.f32 %v7266, %v7335
  %v7343 = vmul.f32 %v7267, %v7335
  %v7344 = vmul.f32 %v7268, %v7335
  %v7345 = vmul.f32 %v7269, %v7335
  %v7346 = vmul.f32 %v7270, %v7335
  %v7347 = vmul.f32 %v7271, %v7335
  %v7348 = vmul.f32 %v7272, %v7335
  %v7349 = vmul.f32 %v7273, %v7335
  %v7364 = vrot.slane %v7336, 2
  %v7365 = vrot.slane %v7337, 2
  %v7366 = vsel %vm801, %v7364, %v7365
  %v7367 = vrot.slane %v7338, 2
  %v7368 = vrot.slane %v7339, 2
  %v7369 = vsel %vm801, %v7367, %v7368
  %v7370 = vrot.slane %v7340, 2
  %v7371 = vrot.slane %v7341, 2
  %v7372 = vsel %vm801, %v7370, %v7371
  %v7373 = vrot.slane %v7342, 2
  %v7374 = vrot.slane %v7343, 2
  %v7375 = vsel %vm801, %v7373, %v7374
  %v7376 = vrot.slane %v7344, 2
  %v7377 = vrot.slane %v7345, 2
  %v7378 = vsel %vm801, %v7376, %v7377
  %v7379 = vrot.slane %v7346, 2
  %v7380 = vrot.slane %v7347, 2
  %v7381 = vsel %vm801, %v7379, %v7380
  %v7382 = vrot.slane %v7348, 2
  %v7383 = vrot.slane %v7349, 2
  %v7384 = vsel %vm801, %v7382, %v7383
  %v7392 = vadd.f32 %v7325, %v7366
  %v7393 = vadd.f32 %v7326, %v7369
  %v7394 = vadd.f32 %v7327, %v7372
  %v7395 = vadd.f32 %v7328, %v7375
  %v7396 = vadd.f32 %v7329, %v7378
  %v7397 = vadd.f32 %v7330, %v7381
  %v7398 = vadd.f32 %v7331, %v7384
  %v7399 = vlaneseq
  %v7400 = vshrl.u32 %v7399, 7
  %v7401 = vsub.s32 3, %v7400
  %v7402 = vrot.slane %v657, %v7401
  %v7403 = vmul.f32 %v7260, %v7402
  %v7404 = vmul.f32 %v7261, %v7402
  %v7405 = vmul.f32 %v7262, %v7402
  %v7406 = vmul.f32 %v7263, %v7402
  %v7407 = vmul.f32 %v7264, %v7402
  %v7408 = vmul.f32 %v7265, %v7402
  %v7409 = vmul.f32 %v7266, %v7402
  %v7410 = vmul.f32 %v7267, %v7402
  %v7411 = vmul.f32 %v7268, %v7402
  %v7412 = vmul.f32 %v7269, %v7402
  %v7413 = vmul.f32 %v7270, %v7402
  %v7414 = vmul.f32 %v7271, %v7402
  %v7415 = vmul.f32 %v7272, %v7402
  %v7416 = vmul.f32 %v7273, %v7402
  %v7431 = vrot.slane %v7403, 3
  %v7432 = vrot.slane %v7404, 3
  %v7433 = vsel %vm869, %v7431, %v7432
  %v7434 = vrot.slane %v7405, 3
  %v7435 = vrot.slane %v7406, 3
  %v7436 = vsel %vm869, %v7434, %v7435
  %v7437 = vrot.slane %v7407, 3
  %v7438 = vrot.slane %v7408, 3
  %v7439 = vsel %vm869, %v7437, %v7438
  %v7440 = vrot.slane %v7409, 3
  %v7441 = vrot.slane %v7410, 3
  %v7442 = vsel %vm869, %v7440, %v7441
  %v7443 = vrot.slane %v7411, 3
  %v7444 = vrot.slane %v7412, 3
  %v7445 = vsel %vm869, %v7443, %v7444
  %v7446 = vrot.slane %v7413, 3
  %v7447 = vrot.slane %v7414, 3
  %v7448 = vsel %vm869, %v7446, %v7447
  %v7449 = vrot.slane %v7415, 3
  %v7450 = vrot.slane %v7416, 3
  %v7451 = vsel %vm869, %v7449, %v7450
  %v7459 = vadd.f32 %v7392, %v7433
  %v7460 = vadd.f32 %v7393, %v7436
  %v7461 = vadd.f32 %v7394, %v7439
  %v7462 = vadd.f32 %v7395, %v7442
  %v7463 = vadd.f32 %v7396, %v7445
  %v7464 = vadd.f32 %v7397, %v7448
  %v7465 = vadd.f32 %v7398, %v7451
  %v7466 = vlaneseq
  %v7467 = vshrl.u32 %v7466, 7
  %v7468 = vsub.s32 4, %v7467
  %v7469 = vrot.slane %v657, %v7468
  %v7470 = vmul.f32 %v7260, %v7469
  %v7471 = vmul.f32 %v7261, %v7469
  %v7472 = vmul.f32 %v7262, %v7469
  %v7473 = vmul.f32 %v7263, %v7469
  %v7474 = vmul.f32 %v7264, %v7469
  %v7475 = vmul.f32 %v7265, %v7469
  %v7476 = vmul.f32 %v7266, %v7469
  %v7477 = vmul.f32 %v7267, %v7469
  %v7478 = vmul.f32 %v7268, %v7469
  %v7479 = vmul.f32 %v7269, %v7469
  %v7480 = vmul.f32 %v7270, %v7469
  %v7481 = vmul.f32 %v7271, %v7469
  %v7482 = vmul.f32 %v7272, %v7469
  %v7483 = vmul.f32 %v7273, %v7469
  %v7498 = vrot.slane %v7470, 4
  %v7499 = vrot.slane %v7471, 4
  %v7500 = vsel %vm937, %v7498, %v7499
  %v7501 = vrot.slane %v7472, 4
  %v7502 = vrot.slane %v7473, 4
  %v7503 = vsel %vm937, %v7501, %v7502
  %v7504 = vrot.slane %v7474, 4
  %v7505 = vrot.slane %v7475, 4
  %v7506 = vsel %vm937, %v7504, %v7505
  %v7507 = vrot.slane %v7476, 4
  %v7508 = vrot.slane %v7477, 4
  %v7509 = vsel %vm937, %v7507, %v7508
  %v7510 = vrot.slane %v7478, 4
  %v7511 = vrot.slane %v7479, 4
  %v7512 = vsel %vm937, %v7510, %v7511
  %v7513 = vrot.slane %v7480, 4
  %v7514 = vrot.slane %v7481, 4
  %v7515 = vsel %vm937, %v7513, %v7514
  %v7516 = vrot.slane %v7482, 4
  %v7517 = vrot.slane %v7483, 4
  %v7518 = vsel %vm937, %v7516, %v7517
  %v7526 = vadd.f32 %v7459, %v7500
  %v7527 = vadd.f32 %v7460, %v7503
  %v7528 = vadd.f32 %v7461, %v7506
  %v7529 = vadd.f32 %v7462, %v7509
  %v7530 = vadd.f32 %v7463, %v7512
  %v7531 = vadd.f32 %v7464, %v7515
  %v7532 = vadd.f32 %v7465, %v7518
  %v7533 = vlaneseq
  %v7534 = vshrl.u32 %v7533, 7
  %v7535 = vsub.s32 0, %v7534
  %v7536 = vrot.slane %v666, %v7535
  %v7537 = vmul.f32 %v7262, %v7536
  %v7538 = vmul.f32 %v7264, %v7536
  %v7539 = vmul.f32 %v7266, %v7536
  %v7540 = vmul.f32 %v7268, %v7536
  %v7541 = vmul.f32 %v7270, %v7536
  %v7542 = vmul.f32 %v7272, %v7536
  %v7543 = vmul.f32 %v7274, %v7536
  %v7544 = vadd.f32 %v7526, %v7537
  %v7545 = vadd.f32 %v7527, %v7538
  %v7546 = vadd.f32 %v7528, %v7539
  %v7547 = vadd.f32 %v7529, %v7540
  %v7548 = vadd.f32 %v7530, %v7541
  %v7549 = vadd.f32 %v7531, %v7542
  %v7550 = vadd.f32 %v7532, %v7543
  %v7551 = vlaneseq
  %v7552 = vshrl.u32 %v7551, 7
  %v7553 = vsub.s32 1, %v7552
  %v7554 = vrot.slane %v666, %v7553
  %v7555 = vmul.f32 %v7262, %v7554
  %v7556 = vmul.f32 %v7264, %v7554
  %v7557 = vmul.f32 %v7266, %v7554
  %v7558 = vmul.f32 %v7268, %v7554
  %v7559 = vmul.f32 %v7270, %v7554
  %v7560 = vmul.f32 %v7272, %v7554
  %v7561 = vmul.f32 %v7274, %v7554
  %v7569 = vrot.slane %v7555, 1
  %v7570 = vrot.slane %v7556, 1
  %v7571 = vrot.slane %v7557, 1
  %v7572 = vrot.slane %v7558, 1
  %v7573 = vrot.slane %v7559, 1
  %v7574 = vrot.slane %v7560, 1
  %v7575 = vrot.slane %v7561, 1
  %v7583 = vadd.f32 %v7544, %v7569
  %v7584 = vadd.f32 %v7545, %v7570
  %v7585 = vadd.f32 %v7546, %v7571
  %v7586 = vadd.f32 %v7547, %v7572
  %v7587 = vadd.f32 %v7548, %v7573
  %v7588 = vadd.f32 %v7549, %v7574
  %v7589 = vadd.f32 %v7550, %v7575
  %v7590 = vlaneseq
  %v7591 = vshrl.u32 %v7590, 7
  %v7592 = vsub.s32 2, %v7591
  %v7593 = vrot.slane %v666, %v7592
  %v7594 = vmul.f32 %v7262, %v7593
  %v7595 = vmul.f32 %v7263, %v7593
  %v7596 = vmul.f32 %v7264, %v7593
  %v7597 = vmul.f32 %v7265, %v7593
  %v7598 = vmul.f32 %v7266, %v7593
  %v7599 = vmul.f32 %v7267, %v7593
  %v7600 = vmul.f32 %v7268, %v7593
  %v7601 = vmul.f32 %v7269, %v7593
  %v7602 = vmul.f32 %v7270, %v7593
  %v7603 = vmul.f32 %v7271, %v7593
  %v7604 = vmul.f32 %v7272, %v7593
  %v7605 = vmul.f32 %v7273, %v7593
  %v7606 = vmul.f32 %v7274, %v7593
  %v7607 = vmul.f32 %v7275, %v7593
  %v7622 = vrot.slane %v7594, 2
  %v7623 = vrot.slane %v7595, 2
  %v7624 = vsel %vm801, %v7622, %v7623
  %v7625 = vrot.slane %v7596, 2
  %v7626 = vrot.slane %v7597, 2
  %v7627 = vsel %vm801, %v7625, %v7626
  %v7628 = vrot.slane %v7598, 2
  %v7629 = vrot.slane %v7599, 2
  %v7630 = vsel %vm801, %v7628, %v7629
  %v7631 = vrot.slane %v7600, 2
  %v7632 = vrot.slane %v7601, 2
  %v7633 = vsel %vm801, %v7631, %v7632
  %v7634 = vrot.slane %v7602, 2
  %v7635 = vrot.slane %v7603, 2
  %v7636 = vsel %vm801, %v7634, %v7635
  %v7637 = vrot.slane %v7604, 2
  %v7638 = vrot.slane %v7605, 2
  %v7639 = vsel %vm801, %v7637, %v7638
  %v7640 = vrot.slane %v7606, 2
  %v7641 = vrot.slane %v7607, 2
  %v7642 = vsel %vm801, %v7640, %v7641
  %v7650 = vadd.f32 %v7583, %v7624
  %v7651 = vadd.f32 %v7584, %v7627
  %v7652 = vadd.f32 %v7585, %v7630
  %v7653 = vadd.f32 %v7586, %v7633
  %v7654 = vadd.f32 %v7587, %v7636
  %v7655 = vadd.f32 %v7588, %v7639
  %v7656 = vadd.f32 %v7589, %v7642
  %v7657 = vlaneseq
  %v7658 = vshrl.u32 %v7657, 7
  %v7659 = vsub.s32 3, %v7658
  %v7660 = vrot.slane %v666, %v7659
  %v7661 = vmul.f32 %v7262, %v7660
  %v7662 = vmul.f32 %v7263, %v7660
  %v7663 = vmul.f32 %v7264, %v7660
  %v7664 = vmul.f32 %v7265, %v7660
  %v7665 = vmul.f32 %v7266, %v7660
  %v7666 = vmul.f32 %v7267, %v7660
  %v7667 = vmul.f32 %v7268, %v7660
  %v7668 = vmul.f32 %v7269, %v7660
  %v7669 = vmul.f32 %v7270, %v7660
  %v7670 = vmul.f32 %v7271, %v7660
  %v7671 = vmul.f32 %v7272, %v7660
  %v7672 = vmul.f32 %v7273, %v7660
  %v7673 = vmul.f32 %v7274, %v7660
  %v7674 = vmul.f32 %v7275, %v7660
  %v7689 = vrot.slane %v7661, 3
  %v7690 = vrot.slane %v7662, 3
  %v7691 = vsel %vm869, %v7689, %v7690
  %v7692 = vrot.slane %v7663, 3
  %v7693 = vrot.slane %v7664, 3
  %v7694 = vsel %vm869, %v7692, %v7693
  %v7695 = vrot.slane %v7665, 3
  %v7696 = vrot.slane %v7666, 3
  %v7697 = vsel %vm869, %v7695, %v7696
  %v7698 = vrot.slane %v7667, 3
  %v7699 = vrot.slane %v7668, 3
  %v7700 = vsel %vm869, %v7698, %v7699
  %v7701 = vrot.slane %v7669, 3
  %v7702 = vrot.slane %v7670, 3
  %v7703 = vsel %vm869, %v7701, %v7702
  %v7704 = vrot.slane %v7671, 3
  %v7705 = vrot.slane %v7672, 3
  %v7706 = vsel %vm869, %v7704, %v7705
  %v7707 = vrot.slane %v7673, 3
  %v7708 = vrot.slane %v7674, 3
  %v7709 = vsel %vm869, %v7707, %v7708
  %v7717 = vadd.f32 %v7650, %v7691
  %v7718 = vadd.f32 %v7651, %v7694
  %v7719 = vadd.f32 %v7652, %v7697
  %v7720 = vadd.f32 %v7653, %v7700
  %v7721 = vadd.f32 %v7654, %v7703
  %v7722 = vadd.f32 %v7655, %v7706
  %v7723 = vadd.f32 %v7656, %v7709
  %v7724 = vlaneseq
  %v7725 = vshrl.u32 %v7724, 7
  %v7726 = vsub.s32 4, %v7725
  %v7727 = vrot.slane %v666, %v7726
  %v7728 = vmul.f32 %v7262, %v7727
  %v7729 = vmul.f32 %v7263, %v7727
  %v7730 = vmul.f32 %v7264, %v7727
  %v7731 = vmul.f32 %v7265, %v7727
  %v7732 = vmul.f32 %v7266, %v7727
  %v7733 = vmul.f32 %v7267, %v7727
  %v7734 = vmul.f32 %v7268, %v7727
  %v7735 = vmul.f32 %v7269, %v7727
  %v7736 = vmul.f32 %v7270, %v7727
  %v7737 = vmul.f32 %v7271, %v7727
  %v7738 = vmul.f32 %v7272, %v7727
  %v7739 = vmul.f32 %v7273, %v7727
  %v7740 = vmul.f32 %v7274, %v7727
  %v7741 = vmul.f32 %v7275, %v7727
  %v7756 = vrot.slane %v7728, 4
  %v7757 = vrot.slane %v7729, 4
  %v7758 = vsel %vm937, %v7756, %v7757
  %v7759 = vrot.slane %v7730, 4
  %v7760 = vrot.slane %v7731, 4
  %v7761 = vsel %vm937, %v7759, %v7760
  %v7762 = vrot.slane %v7732, 4
  %v7763 = vrot.slane %v7733, 4
  %v7764 = vsel %vm937, %v7762, %v7763
  %v7765 = vrot.slane %v7734, 4
  %v7766 = vrot.slane %v7735, 4
  %v7767 = vsel %vm937, %v7765, %v7766
  %v7768 = vrot.slane %v7736, 4
  %v7769 = vrot.slane %v7737, 4
  %v7770 = vsel %vm937, %v7768, %v7769
  %v7771 = vrot.slane %v7738, 4
  %v7772 = vrot.slane %v7739, 4
  %v7773 = vsel %vm937, %v7771, %v7772
  %v7774 = vrot.slane %v7740, 4
  %v7775 = vrot.slane %v7741, 4
  %v7776 = vsel %vm937, %v7774, %v7775
  %v7784 = vadd.f32 %v7717, %v7758
  %v7785 = vadd.f32 %v7718, %v7761
  %v7786 = vadd.f32 %v7719, %v7764
  %v7787 = vadd.f32 %v7720, %v7767
  %v7788 = vadd.f32 %v7721, %v7770
  %v7789 = vadd.f32 %v7722, %v7773
  %v7790 = vadd.f32 %v7723, %v7776
  %v7791 = vlaneseq
  %v7792 = vshrl.u32 %v7791, 7
  %v7793 = vsub.s32 0, %v7792
  %v7794 = vrot.slane %v675, %v7793
  %v7795 = vmul.f32 %v7264, %v7794
  %v7796 = vmul.f32 %v7266, %v7794
  %v7797 = vmul.f32 %v7268, %v7794
  %v7798 = vmul.f32 %v7270, %v7794
  %v7799 = vmul.f32 %v7272, %v7794
  %v7800 = vmul.f32 %v7274, %v7794
  %v7801 = vmul.f32 %v7276, %v7794
  %v7802 = vadd.f32 %v7784, %v7795
  %v7803 = vadd.f32 %v7785, %v7796
  %v7804 = vadd.f32 %v7786, %v7797
  %v7805 = vadd.f32 %v7787, %v7798
  %v7806 = vadd.f32 %v7788, %v7799
  %v7807 = vadd.f32 %v7789, %v7800
  %v7808 = vadd.f32 %v7790, %v7801
  %v7809 = vlaneseq
  %v7810 = vshrl.u32 %v7809, 7
  %v7811 = vsub.s32 1, %v7810
  %v7812 = vrot.slane %v675, %v7811
  %v7813 = vmul.f32 %v7264, %v7812
  %v7814 = vmul.f32 %v7266, %v7812
  %v7815 = vmul.f32 %v7268, %v7812
  %v7816 = vmul.f32 %v7270, %v7812
  %v7817 = vmul.f32 %v7272, %v7812
  %v7818 = vmul.f32 %v7274, %v7812
  %v7819 = vmul.f32 %v7276, %v7812
  %v7827 = vrot.slane %v7813, 1
  %v7828 = vrot.slane %v7814, 1
  %v7829 = vrot.slane %v7815, 1
  %v7830 = vrot.slane %v7816, 1
  %v7831 = vrot.slane %v7817, 1
  %v7832 = vrot.slane %v7818, 1
  %v7833 = vrot.slane %v7819, 1
  %v7841 = vadd.f32 %v7802, %v7827
  %v7842 = vadd.f32 %v7803, %v7828
  %v7843 = vadd.f32 %v7804, %v7829
  %v7844 = vadd.f32 %v7805, %v7830
  %v7845 = vadd.f32 %v7806, %v7831
  %v7846 = vadd.f32 %v7807, %v7832
  %v7847 = vadd.f32 %v7808, %v7833
  %v7848 = vlaneseq
  %v7849 = vshrl.u32 %v7848, 7
  %v7850 = vsub.s32 2, %v7849
  %v7851 = vrot.slane %v675, %v7850
  %v7852 = vmul.f32 %v7264, %v7851
  %v7853 = vmul.f32 %v7265, %v7851
  %v7854 = vmul.f32 %v7266, %v7851
  %v7855 = vmul.f32 %v7267, %v7851
  %v7856 = vmul.f32 %v7268, %v7851
  %v7857 = vmul.f32 %v7269, %v7851
  %v7858 = vmul.f32 %v7270, %v7851
  %v7859 = vmul.f32 %v7271, %v7851
  %v7860 = vmul.f32 %v7272, %v7851
  %v7861 = vmul.f32 %v7273, %v7851
  %v7862 = vmul.f32 %v7274, %v7851
  %v7863 = vmul.f32 %v7275, %v7851
  %v7864 = vmul.f32 %v7276, %v7851
  %v7865 = vmul.f32 %v7277, %v7851
  %v7880 = vrot.slane %v7852, 2
  %v7881 = vrot.slane %v7853, 2
  %v7882 = vsel %vm801, %v7880, %v7881
  %v7883 = vrot.slane %v7854, 2
  %v7884 = vrot.slane %v7855, 2
  %v7885 = vsel %vm801, %v7883, %v7884
  %v7886 = vrot.slane %v7856, 2
  %v7887 = vrot.slane %v7857, 2
  %v7888 = vsel %vm801, %v7886, %v7887
  %v7889 = vrot.slane %v7858, 2
  %v7890 = vrot.slane %v7859, 2
  %v7891 = vsel %vm801, %v7889, %v7890
  %v7892 = vrot.slane %v7860, 2
  %v7893 = vrot.slane %v7861, 2
  %v7894 = vsel %vm801, %v7892, %v7893
  %v7895 = vrot.slane %v7862, 2
  %v7896 = vrot.slane %v7863, 2
  %v7897 = vsel %vm801, %v7895, %v7896
  %v7898 = vrot.slane %v7864, 2
  %v7899 = vrot.slane %v7865, 2
  %v7900 = vsel %vm801, %v7898, %v7899
  %v7908 = vadd.f32 %v7841, %v7882
  %v7909 = vadd.f32 %v7842, %v7885
  %v7910 = vadd.f32 %v7843, %v7888
  %v7911 = vadd.f32 %v7844, %v7891
  %v7912 = vadd.f32 %v7845, %v7894
  %v7913 = vadd.f32 %v7846, %v7897
  %v7914 = vadd.f32 %v7847, %v7900
  %v7915 = vlaneseq
  %v7916 = vshrl.u32 %v7915, 7
  %v7917 = vsub.s32 3, %v7916
  %v7918 = vrot.slane %v675, %v7917
  %v7919 = vmul.f32 %v7264, %v7918
  %v7920 = vmul.f32 %v7265, %v7918
  %v7921 = vmul.f32 %v7266, %v7918
  %v7922 = vmul.f32 %v7267, %v7918
  %v7923 = vmul.f32 %v7268, %v7918
  %v7924 = vmul.f32 %v7269, %v7918
  %v7925 = vmul.f32 %v7270, %v7918
  %v7926 = vmul.f32 %v7271, %v7918
  %v7927 = vmul.f32 %v7272, %v7918
  %v7928 = vmul.f32 %v7273, %v7918
  %v7929 = vmul.f32 %v7274, %v7918
  %v7930 = vmul.f32 %v7275, %v7918
  %v7931 = vmul.f32 %v7276, %v7918
  %v7932 = vmul.f32 %v7277, %v7918
  %v7947 = vrot.slane %v7919, 3
  %v7948 = vrot.slane %v7920, 3
  %v7949 = vsel %vm869, %v7947, %v7948
  %v7950 = vrot.slane %v7921, 3
  %v7951 = vrot.slane %v7922, 3
  %v7952 = vsel %vm869, %v7950, %v7951
  %v7953 = vrot.slane %v7923, 3
  %v7954 = vrot.slane %v7924, 3
  %v7955 = vsel %vm869, %v7953, %v7954
  %v7956 = vrot.slane %v7925, 3
  %v7957 = vrot.slane %v7926, 3
  %v7958 = vsel %vm869, %v7956, %v7957
  %v7959 = vrot.slane %v7927, 3
  %v7960 = vrot.slane %v7928, 3
  %v7961 = vsel %vm869, %v7959, %v7960
  %v7962 = vrot.slane %v7929, 3
  %v7963 = vrot.slane %v7930, 3
  %v7964 = vsel %vm869, %v7962, %v7963
  %v7965 = vrot.slane %v7931, 3
  %v7966 = vrot.slane %v7932, 3
  %v7967 = vsel %vm869, %v7965, %v7966
  %v7975 = vadd.f32 %v7908, %v7949
  %v7976 = vadd.f32 %v7909, %v7952
  %v7977 = vadd.f32 %v7910, %v7955
  %v7978 = vadd.f32 %v7911, %v7958
  %v7979 = vadd.f32 %v7912, %v7961
  %v7980 = vadd.f32 %v7913, %v7964
  %v7981 = vadd.f32 %v7914, %v7967
  %v7982 = vlaneseq
  %v7983 = vshrl.u32 %v7982, 7
  %v7984 = vsub.s32 4, %v7983
  %v7985 = vrot.slane %v675, %v7984
  %v7986 = vmul.f32 %v7264, %v7985
  %v7987 = vmul.f32 %v7265, %v7985
  %v7988 = vmul.f32 %v7266, %v7985
  %v7989 = vmul.f32 %v7267, %v7985
  %v7990 = vmul.f32 %v7268, %v7985
  %v7991 = vmul.f32 %v7269, %v7985
  %v7992 = vmul.f32 %v7270, %v7985
  %v7993 = vmul.f32 %v7271, %v7985
  %v7994 = vmul.f32 %v7272, %v7985
  %v7995 = vmul.f32 %v7273, %v7985
  %v7996 = vmul.f32 %v7274, %v7985
  %v7997 = vmul.f32 %v7275, %v7985
  %v7998 = vmul.f32 %v7276, %v7985
  %v7999 = vmul.f32 %v7277, %v7985
  %v8014 = vrot.slane %v7986, 4
  %v8015 = vrot.slane %v7987, 4
  %v8016 = vsel %vm937, %v8014, %v8015
  %v8017 = vrot.slane %v7988, 4
  %v8018 = vrot.slane %v7989, 4
  %v8019 = vsel %vm937, %v8017, %v8018
  %v8020 = vrot.slane %v7990, 4
  %v8021 = vrot.slane %v7991, 4
  %v8022 = vsel %vm937, %v8020, %v8021
  %v8023 = vrot.slane %v7992, 4
  %v8024 = vrot.slane %v7993, 4
  %v8025 = vsel %vm937, %v8023, %v8024
  %v8026 = vrot.slane %v7994, 4
  %v8027 = vrot.slane %v7995, 4
  %v8028 = vsel %vm937, %v8026, %v8027
  %v8029 = vrot.slane %v7996, 4
  %v8030 = vrot.slane %v7997, 4
  %v8031 = vsel %vm937, %v8029, %v8030
  %v8032 = vrot.slane %v7998, 4
  %v8033 = vrot.slane %v7999, 4
  %v8034 = vsel %vm937, %v8032, %v8033
  %v8042 = vadd.f32 %v7975, %v8016
  %v8043 = vadd.f32 %v7976, %v8019
  %v8044 = vadd.f32 %v7977, %v8022
  %v8045 = vadd.f32 %v7978, %v8025
  %v8046 = vadd.f32 %v7979, %v8028
  %v8047 = vadd.f32 %v7980, %v8031
  %v8048 = vadd.f32 %v7981, %v8034
  %v8049 = vlaneseq
  %v8050 = vshrl.u32 %v8049, 7
  %v8051 = vsub.s32 0, %v8050
  %v8052 = vrot.slane %v684, %v8051
  %v8053 = vmul.f32 %v7266, %v8052
  %v8054 = vmul.f32 %v7268, %v8052
  %v8055 = vmul.f32 %v7270, %v8052
  %v8056 = vmul.f32 %v7272, %v8052
  %v8057 = vmul.f32 %v7274, %v8052
  %v8058 = vmul.f32 %v7276, %v8052
  %v8059 = vmul.f32 %v7278, %v8052
  %v8060 = vadd.f32 %v8042, %v8053
  %v8061 = vadd.f32 %v8043, %v8054
  %v8062 = vadd.f32 %v8044, %v8055
  %v8063 = vadd.f32 %v8045, %v8056
  %v8064 = vadd.f32 %v8046, %v8057
  %v8065 = vadd.f32 %v8047, %v8058
  %v8066 = vadd.f32 %v8048, %v8059
  %v8067 = vlaneseq
  %v8068 = vshrl.u32 %v8067, 7
  %v8069 = vsub.s32 1, %v8068
  %v8070 = vrot.slane %v684, %v8069
  %v8071 = vmul.f32 %v7266, %v8070
  %v8072 = vmul.f32 %v7268, %v8070
  %v8073 = vmul.f32 %v7270, %v8070
  %v8074 = vmul.f32 %v7272, %v8070
  %v8075 = vmul.f32 %v7274, %v8070
  %v8076 = vmul.f32 %v7276, %v8070
  %v8077 = vmul.f32 %v7278, %v8070
  %v8085 = vrot.slane %v8071, 1
  %v8086 = vrot.slane %v8072, 1
  %v8087 = vrot.slane %v8073, 1
  %v8088 = vrot.slane %v8074, 1
  %v8089 = vrot.slane %v8075, 1
  %v8090 = vrot.slane %v8076, 1
  %v8091 = vrot.slane %v8077, 1
  %v8099 = vadd.f32 %v8060, %v8085
  %v8100 = vadd.f32 %v8061, %v8086
  %v8101 = vadd.f32 %v8062, %v8087
  %v8102 = vadd.f32 %v8063, %v8088
  %v8103 = vadd.f32 %v8064, %v8089
  %v8104 = vadd.f32 %v8065, %v8090
  %v8105 = vadd.f32 %v8066, %v8091
  %v8106 = vlaneseq
  %v8107 = vshrl.u32 %v8106, 7
  %v8108 = vsub.s32 2, %v8107
  %v8109 = vrot.slane %v684, %v8108
  %v8110 = vmul.f32 %v7266, %v8109
  %v8111 = vmul.f32 %v7267, %v8109
  %v8112 = vmul.f32 %v7268, %v8109
  %v8113 = vmul.f32 %v7269, %v8109
  %v8114 = vmul.f32 %v7270, %v8109
  %v8115 = vmul.f32 %v7271, %v8109
  %v8116 = vmul.f32 %v7272, %v8109
  %v8117 = vmul.f32 %v7273, %v8109
  %v8118 = vmul.f32 %v7274, %v8109
  %v8119 = vmul.f32 %v7275, %v8109
  %v8120 = vmul.f32 %v7276, %v8109
  %v8121 = vmul.f32 %v7277, %v8109
  %v8122 = vmul.f32 %v7278, %v8109
  %v8123 = vmul.f32 %v7279, %v8109
  %v8138 = vrot.slane %v8110, 2
  %v8139 = vrot.slane %v8111, 2
  %v8140 = vsel %vm801, %v8138, %v8139
  %v8141 = vrot.slane %v8112, 2
  %v8142 = vrot.slane %v8113, 2
  %v8143 = vsel %vm801, %v8141, %v8142
  %v8144 = vrot.slane %v8114, 2
  %v8145 = vrot.slane %v8115, 2
  %v8146 = vsel %vm801, %v8144, %v8145
  %v8147 = vrot.slane %v8116, 2
  %v8148 = vrot.slane %v8117, 2
  %v8149 = vsel %vm801, %v8147, %v8148
  %v8150 = vrot.slane %v8118, 2
  %v8151 = vrot.slane %v8119, 2
  %v8152 = vsel %vm801, %v8150, %v8151
  %v8153 = vrot.slane %v8120, 2
  %v8154 = vrot.slane %v8121, 2
  %v8155 = vsel %vm801, %v8153, %v8154
  %v8156 = vrot.slane %v8122, 2
  %v8157 = vrot.slane %v8123, 2
  %v8158 = vsel %vm801, %v8156, %v8157
  %v8166 = vadd.f32 %v8099, %v8140
  %v8167 = vadd.f32 %v8100, %v8143
  %v8168 = vadd.f32 %v8101, %v8146
  %v8169 = vadd.f32 %v8102, %v8149
  %v8170 = vadd.f32 %v8103, %v8152
  %v8171 = vadd.f32 %v8104, %v8155
  %v8172 = vadd.f32 %v8105, %v8158
  %v8173 = vlaneseq
  %v8174 = vshrl.u32 %v8173, 7
  %v8175 = vsub.s32 3, %v8174
  %v8176 = vrot.slane %v684, %v8175
  %v8177 = vmul.f32 %v7266, %v8176
  %v8178 = vmul.f32 %v7267, %v8176
  %v8179 = vmul.f32 %v7268, %v8176
  %v8180 = vmul.f32 %v7269, %v8176
  %v8181 = vmul.f32 %v7270, %v8176
  %v8182 = vmul.f32 %v7271, %v8176
  %v8183 = vmul.f32 %v7272, %v8176
  %v8184 = vmul.f32 %v7273, %v8176
  %v8185 = vmul.f32 %v7274, %v8176
  %v8186 = vmul.f32 %v7275, %v8176
  %v8187 = vmul.f32 %v7276, %v8176
  %v8188 = vmul.f32 %v7277, %v8176
  %v8189 = vmul.f32 %v7278, %v8176
  %v8190 = vmul.f32 %v7279, %v8176
  %v8205 = vrot.slane %v8177, 3
  %v8206 = vrot.slane %v8178, 3
  %v8207 = vsel %vm869, %v8205, %v8206
  %v8208 = vrot.slane %v8179, 3
  %v8209 = vrot.slane %v8180, 3
  %v8210 = vsel %vm869, %v8208, %v8209
  %v8211 = vrot.slane %v8181, 3
  %v8212 = vrot.slane %v8182, 3
  %v8213 = vsel %vm869, %v8211, %v8212
  %v8214 = vrot.slane %v8183, 3
  %v8215 = vrot.slane %v8184, 3
  %v8216 = vsel %vm869, %v8214, %v8215
  %v8217 = vrot.slane %v8185, 3
  %v8218 = vrot.slane %v8186, 3
  %v8219 = vsel %vm869, %v8217, %v8218
  %v8220 = vrot.slane %v8187, 3
  %v8221 = vrot.slane %v8188, 3
  %v8222 = vsel %vm869, %v8220, %v8221
  %v8223 = vrot.slane %v8189, 3
  %v8224 = vrot.slane %v8190, 3
  %v8225 = vsel %vm869, %v8223, %v8224
  %v8233 = vadd.f32 %v8166, %v8207
  %v8234 = vadd.f32 %v8167, %v8210
  %v8235 = vadd.f32 %v8168, %v8213
  %v8236 = vadd.f32 %v8169, %v8216
  %v8237 = vadd.f32 %v8170, %v8219
  %v8238 = vadd.f32 %v8171, %v8222
  %v8239 = vadd.f32 %v8172, %v8225
  %v8240 = vlaneseq
  %v8241 = vshrl.u32 %v8240, 7
  %v8242 = vsub.s32 4, %v8241
  %v8243 = vrot.slane %v684, %v8242
  %v8244 = vmul.f32 %v7266, %v8243
  %v8245 = vmul.f32 %v7267, %v8243
  %v8246 = vmul.f32 %v7268, %v8243
  %v8247 = vmul.f32 %v7269, %v8243
  %v8248 = vmul.f32 %v7270, %v8243
  %v8249 = vmul.f32 %v7271, %v8243
  %v8250 = vmul.f32 %v7272, %v8243
  %v8251 = vmul.f32 %v7273, %v8243
  %v8252 = vmul.f32 %v7274, %v8243
  %v8253 = vmul.f32 %v7275, %v8243
  %v8254 = vmul.f32 %v7276, %v8243
  %v8255 = vmul.f32 %v7277, %v8243
  %v8256 = vmul.f32 %v7278, %v8243
  %v8257 = vmul.f32 %v7279, %v8243
  %v8272 = vrot.slane %v8244, 4
  %v8273 = vrot.slane %v8245, 4
  %v8274 = vsel %vm937, %v8272, %v8273
  %v8275 = vrot.slane %v8246, 4
  %v8276 = vrot.slane %v8247, 4
  %v8277 = vsel %vm937, %v8275, %v8276
  %v8278 = vrot.slane %v8248, 4
  %v8279 = vrot.slane %v8249, 4
  %v8280 = vsel %vm937, %v8278, %v8279
  %v8281 = vrot.slane %v8250, 4
  %v8282 = vrot.slane %v8251, 4
  %v8283 = vsel %vm937, %v8281, %v8282
  %v8284 = vrot.slane %v8252, 4
  %v8285 = vrot.slane %v8253, 4
  %v8286 = vsel %vm937, %v8284, %v8285
  %v8287 = vrot.slane %v8254, 4
  %v8288 = vrot.slane %v8255, 4
  %v8289 = vsel %vm937, %v8287, %v8288
  %v8290 = vrot.slane %v8256, 4
  %v8291 = vrot.slane %v8257, 4
  %v8292 = vsel %vm937, %v8290, %v8291
  %v8300 = vadd.f32 %v8233, %v8274
  %v8301 = vadd.f32 %v8234, %v8277
  %v8302 = vadd.f32 %v8235, %v8280
  %v8303 = vadd.f32 %v8236, %v8283
  %v8304 = vadd.f32 %v8237, %v8286
  %v8305 = vadd.f32 %v8238, %v8289
  %v8306 = vadd.f32 %v8239, %v8292
  %v8307 = vlaneseq
  %v8308 = vshrl.u32 %v8307, 7
  %v8309 = vsub.s32 0, %v8308
  %v8310 = vrot.slane %v693, %v8309
  %v8311 = vmul.f32 %v7268, %v8310
  %v8312 = vmul.f32 %v7270, %v8310
  %v8313 = vmul.f32 %v7272, %v8310
  %v8314 = vmul.f32 %v7274, %v8310
  %v8315 = vmul.f32 %v7276, %v8310
  %v8316 = vmul.f32 %v7278, %v8310
  %v8317 = vmul.f32 %v7280, %v8310
  %v8318 = vadd.f32 %v8300, %v8311
  %v8319 = vadd.f32 %v8301, %v8312
  %v8320 = vadd.f32 %v8302, %v8313
  %v8321 = vadd.f32 %v8303, %v8314
  %v8322 = vadd.f32 %v8304, %v8315
  %v8323 = vadd.f32 %v8305, %v8316
  %v8324 = vadd.f32 %v8306, %v8317
  %v8325 = vlaneseq
  %v8326 = vshrl.u32 %v8325, 7
  %v8327 = vsub.s32 1, %v8326
  %v8328 = vrot.slane %v693, %v8327
  %v8329 = vmul.f32 %v7268, %v8328
  %v8330 = vmul.f32 %v7270, %v8328
  %v8331 = vmul.f32 %v7272, %v8328
  %v8332 = vmul.f32 %v7274, %v8328
  %v8333 = vmul.f32 %v7276, %v8328
  %v8334 = vmul.f32 %v7278, %v8328
  %v8335 = vmul.f32 %v7280, %v8328
  %v8343 = vrot.slane %v8329, 1
  %v8344 = vrot.slane %v8330, 1
  %v8345 = vrot.slane %v8331, 1
  %v8346 = vrot.slane %v8332, 1
  %v8347 = vrot.slane %v8333, 1
  %v8348 = vrot.slane %v8334, 1
  %v8349 = vrot.slane %v8335, 1
  %v8357 = vadd.f32 %v8318, %v8343
  %v8358 = vadd.f32 %v8319, %v8344
  %v8359 = vadd.f32 %v8320, %v8345
  %v8360 = vadd.f32 %v8321, %v8346
  %v8361 = vadd.f32 %v8322, %v8347
  %v8362 = vadd.f32 %v8323, %v8348
  %v8363 = vadd.f32 %v8324, %v8349
  %v8364 = vlaneseq
  %v8365 = vshrl.u32 %v8364, 7
  %v8366 = vsub.s32 2, %v8365
  %v8367 = vrot.slane %v693, %v8366
  %v8368 = vmul.f32 %v7268, %v8367
  %v8369 = vmul.f32 %v7269, %v8367
  %v8370 = vmul.f32 %v7270, %v8367
  %v8371 = vmul.f32 %v7271, %v8367
  %v8372 = vmul.f32 %v7272, %v8367
  %v8373 = vmul.f32 %v7273, %v8367
  %v8374 = vmul.f32 %v7274, %v8367
  %v8375 = vmul.f32 %v7275, %v8367
  %v8376 = vmul.f32 %v7276, %v8367
  %v8377 = vmul.f32 %v7277, %v8367
  %v8378 = vmul.f32 %v7278, %v8367
  %v8379 = vmul.f32 %v7279, %v8367
  %v8380 = vmul.f32 %v7280, %v8367
  %v8381 = vmul.f32 %v7281, %v8367
  %v8396 = vrot.slane %v8368, 2
  %v8397 = vrot.slane %v8369, 2
  %v8398 = vsel %vm801, %v8396, %v8397
  %v8399 = vrot.slane %v8370, 2
  %v8400 = vrot.slane %v8371, 2
  %v8401 = vsel %vm801, %v8399, %v8400
  %v8402 = vrot.slane %v8372, 2
  %v8403 = vrot.slane %v8373, 2
  %v8404 = vsel %vm801, %v8402, %v8403
  %v8405 = vrot.slane %v8374, 2
  %v8406 = vrot.slane %v8375, 2
  %v8407 = vsel %vm801, %v8405, %v8406
  %v8408 = vrot.slane %v8376, 2
  %v8409 = vrot.slane %v8377, 2
  %v8410 = vsel %vm801, %v8408, %v8409
  %v8411 = vrot.slane %v8378, 2
  %v8412 = vrot.slane %v8379, 2
  %v8413 = vsel %vm801, %v8411, %v8412
  %v8414 = vrot.slane %v8380, 2
  %v8415 = vrot.slane %v8381, 2
  %v8416 = vsel %vm801, %v8414, %v8415
  %v8424 = vadd.f32 %v8357, %v8398
  %v8425 = vadd.f32 %v8358, %v8401
  %v8426 = vadd.f32 %v8359, %v8404
  %v8427 = vadd.f32 %v8360, %v8407
  %v8428 = vadd.f32 %v8361, %v8410
  %v8429 = vadd.f32 %v8362, %v8413
  %v8430 = vadd.f32 %v8363, %v8416
  %v8431 = vlaneseq
  %v8432 = vshrl.u32 %v8431, 7
  %v8433 = vsub.s32 3, %v8432
  %v8434 = vrot.slane %v693, %v8433
  %v8435 = vmul.f32 %v7268, %v8434
  %v8436 = vmul.f32 %v7269, %v8434
  %v8437 = vmul.f32 %v7270, %v8434
  %v8438 = vmul.f32 %v7271, %v8434
  %v8439 = vmul.f32 %v7272, %v8434
  %v8440 = vmul.f32 %v7273, %v8434
  %v8441 = vmul.f32 %v7274, %v8434
  %v8442 = vmul.f32 %v7275, %v8434
  %v8443 = vmul.f32 %v7276, %v8434
  %v8444 = vmul.f32 %v7277, %v8434
  %v8445 = vmul.f32 %v7278, %v8434
  %v8446 = vmul.f32 %v7279, %v8434
  %v8447 = vmul.f32 %v7280, %v8434
  %v8448 = vmul.f32 %v7281, %v8434
  %v8463 = vrot.slane %v8435, 3
  %v8464 = vrot.slane %v8436, 3
  %v8465 = vsel %vm869, %v8463, %v8464
  %v8466 = vrot.slane %v8437, 3
  %v8467 = vrot.slane %v8438, 3
  %v8468 = vsel %vm869, %v8466, %v8467
  %v8469 = vrot.slane %v8439, 3
  %v8470 = vrot.slane %v8440, 3
  %v8471 = vsel %vm869, %v8469, %v8470
  %v8472 = vrot.slane %v8441, 3
  %v8473 = vrot.slane %v8442, 3
  %v8474 = vsel %vm869, %v8472, %v8473
  %v8475 = vrot.slane %v8443, 3
  %v8476 = vrot.slane %v8444, 3
  %v8477 = vsel %vm869, %v8475, %v8476
  %v8478 = vrot.slane %v8445, 3
  %v8479 = vrot.slane %v8446, 3
  %v8480 = vsel %vm869, %v8478, %v8479
  %v8481 = vrot.slane %v8447, 3
  %v8482 = vrot.slane %v8448, 3
  %v8483 = vsel %vm869, %v8481, %v8482
  %v8491 = vadd.f32 %v8424, %v8465
  %v8492 = vadd.f32 %v8425, %v8468
  %v8493 = vadd.f32 %v8426, %v8471
  %v8494 = vadd.f32 %v8427, %v8474
  %v8495 = vadd.f32 %v8428, %v8477
  %v8496 = vadd.f32 %v8429, %v8480
  %v8497 = vadd.f32 %v8430, %v8483
  %v8498 = vlaneseq
  %v8499 = vshrl.u32 %v8498, 7
  %v8500 = vsub.s32 4, %v8499
  %v8501 = vrot.slane %v693, %v8500
  %v8502 = vmul.f32 %v7268, %v8501
  %v8503 = vmul.f32 %v7269, %v8501
  %v8504 = vmul.f32 %v7270, %v8501
  %v8505 = vmul.f32 %v7271, %v8501
  %v8506 = vmul.f32 %v7272, %v8501
  %v8507 = vmul.f32 %v7273, %v8501
  %v8508 = vmul.f32 %v7274, %v8501
  %v8509 = vmul.f32 %v7275, %v8501
  %v8510 = vmul.f32 %v7276, %v8501
  %v8511 = vmul.f32 %v7277, %v8501
  %v8512 = vmul.f32 %v7278, %v8501
  %v8513 = vmul.f32 %v7279, %v8501
  %v8514 = vmul.f32 %v7280, %v8501
  %v8515 = vmul.f32 %v7281, %v8501
  %v8530 = vrot.slane %v8502, 4
  %v8531 = vrot.slane %v8503, 4
  %v8532 = vsel %vm937, %v8530, %v8531
  %v8533 = vrot.slane %v8504, 4
  %v8534 = vrot.slane %v8505, 4
  %v8535 = vsel %vm937, %v8533, %v8534
  %v8536 = vrot.slane %v8506, 4
  %v8537 = vrot.slane %v8507, 4
  %v8538 = vsel %vm937, %v8536, %v8537
  %v8539 = vrot.slane %v8508, 4
  %v8540 = vrot.slane %v8509, 4
  %v8541 = vsel %vm937, %v8539, %v8540
  %v8542 = vrot.slane %v8510, 4
  %v8543 = vrot.slane %v8511, 4
  %v8544 = vsel %vm937, %v8542, %v8543
  %v8545 = vrot.slane %v8512, 4
  %v8546 = vrot.slane %v8513, 4
  %v8547 = vsel %vm937, %v8545, %v8546
  %v8548 = vrot.slane %v8514, 4
  %v8549 = vrot.slane %v8515, 4
  %v8550 = vsel %vm937, %v8548, %v8549
  %v8558 = vadd.f32 %v8491, %v8532
  %v8559 = vadd.f32 %v8492, %v8535
  %v8560 = vadd.f32 %v8493, %v8538
  %v8561 = vadd.f32 %v8494, %v8541
  %v8562 = vadd.f32 %v8495, %v8544
  %v8563 = vadd.f32 %v8496, %v8547
  %v8564 = vadd.f32 %v8497, %v8550
  %8565 = vst [vmem:[%s2 + $0x28] sm:$0x7f] %v8558
  %8566 = vst [vmem:[%s2 + $0x70] sm:$0x7f] %v8559
  %8567 = vst [vmem:[%s2 + $0xb8] sm:$0x7f] %v8560
  %8568 = vst [vmem:[%s2 + $0x100] sm:$0x7f] %v8561
  %8569 = vst [vmem:[%s2 + $0x148] sm:$0x7f] %v8562
  %8570 = vst [vmem:[%s2 + $0x190] sm:$0x7f] %v8563
  %8571 = vst [vmem:[%s2 + $0x1d8] sm:$0x7f] %v8564
  %v8572 = vld [vmem:[#allocation2 + $0x30] sm:$0xff]
  %v8573 = vld [vmem:[#allocation2 + $0x78] sm:$0x7]
  %v8574 = vld [vmem:[#allocation2 + $0xc0] sm:$0xff]
  %v8575 = vld [vmem:[#allocation2 + $0x108] sm:$0x7]
  %v8576 = vld [vmem:[#allocation2 + $0x150] sm:$0xff]
  %v8577 = vld [vmem:[#allocation2 + $0x198] sm:$0x7]
  %v8578 = vld [vmem:[#allocation2 + $0x1e0] sm:$0xff]
  %v8579 = vld [vmem:[#allocation2 + $0x228] sm:$0x7]
  %v8580 = vld [vmem:[#allocation2 + $0x270] sm:$0xff]
  %v8581 = vld [vmem:[#allocation2 + $0x2b8] sm:$0x7]
  %v8582 = vld [vmem:[#allocation2 + $0x300] sm:$0xff]
  %v8583 = vld [vmem:[#allocation2 + $0x348] sm:$0x7]
  %v8584 = vld [vmem:[#allocation2 + $0x390] sm:$0xff]
  %v8585 = vld [vmem:[#allocation2 + $0x3d8] sm:$0x7]
  %v8586 = vld [vmem:[#allocation2 + $0x420] sm:$0xff]
  %v8587 = vld [vmem:[#allocation2 + $0x468] sm:$0x7]
  %v8588 = vld [vmem:[#allocation2 + $0x4b0] sm:$0xff]
  %v8589 = vld [vmem:[#allocation2 + $0x4f8] sm:$0x7]
  %v8590 = vld [vmem:[#allocation2 + $0x540] sm:$0xff]
  %v8591 = vld [vmem:[#allocation2 + $0x588] sm:$0x7]
  %v8592 = vld [vmem:[#allocation2 + $0x5d0] sm:$0xff]
  %v8593 = vld [vmem:[#allocation2 + $0x618] sm:$0x7]
  %v8594 = vlaneseq
  %v8595 = vshrl.u32 %v8594, 7
  %v8596 = vsub.s32 0, %v8595
  %v8597 = vrot.slane %v658, %v8596
  %v8598 = vmul.f32 %v8572, %v8597
  %v8599 = vmul.f32 %v8574, %v8597
  %v8600 = vmul.f32 %v8576, %v8597
  %v8601 = vmul.f32 %v8578, %v8597
  %v8602 = vmul.f32 %v8580, %v8597
  %v8603 = vmul.f32 %v8582, %v8597
  %v8604 = vmul.f32 %v8584, %v8597
  %v8605 = vlaneseq
  %v8606 = vshrl.u32 %v8605, 7
  %v8607 = vsub.s32 1, %v8606
  %v8608 = vrot.slane %v658, %v8607
  %v8609 = vmul.f32 %v8572, %v8608
  %v8610 = vmul.f32 %v8574, %v8608
  %v8611 = vmul.f32 %v8576, %v8608
  %v8612 = vmul.f32 %v8578, %v8608
  %v8613 = vmul.f32 %v8580, %v8608
  %v8614 = vmul.f32 %v8582, %v8608
  %v8615 = vmul.f32 %v8584, %v8608
  %v8623 = vrot.slane %v8609, 1
  %v8624 = vrot.slane %v8610, 1
  %v8625 = vrot.slane %v8611, 1
  %v8626 = vrot.slane %v8612, 1
  %v8627 = vrot.slane %v8613, 1
  %v8628 = vrot.slane %v8614, 1
  %v8629 = vrot.slane %v8615, 1
  %v8637 = vadd.f32 %v8598, %v8623
  %v8638 = vadd.f32 %v8599, %v8624
  %v8639 = vadd.f32 %v8600, %v8625
  %v8640 = vadd.f32 %v8601, %v8626
  %v8641 = vadd.f32 %v8602, %v8627
  %v8642 = vadd.f32 %v8603, %v8628
  %v8643 = vadd.f32 %v8604, %v8629
  %v8644 = vlaneseq
  %v8645 = vshrl.u32 %v8644, 7
  %v8646 = vsub.s32 2, %v8645
  %v8647 = vrot.slane %v658, %v8646
  %v8648 = vmul.f32 %v8572, %v8647
  %v8649 = vmul.f32 %v8573, %v8647
  %v8650 = vmul.f32 %v8574, %v8647
  %v8651 = vmul.f32 %v8575, %v8647
  %v8652 = vmul.f32 %v8576, %v8647
  %v8653 = vmul.f32 %v8577, %v8647
  %v8654 = vmul.f32 %v8578, %v8647
  %v8655 = vmul.f32 %v8579, %v8647
  %v8656 = vmul.f32 %v8580, %v8647
  %v8657 = vmul.f32 %v8581, %v8647
  %v8658 = vmul.f32 %v8582, %v8647
  %v8659 = vmul.f32 %v8583, %v8647
  %v8660 = vmul.f32 %v8584, %v8647
  %v8661 = vmul.f32 %v8585, %v8647
  %v8676 = vrot.slane %v8648, 2
  %v8677 = vrot.slane %v8649, 2
  %v8678 = vsel %vm801, %v8676, %v8677
  %v8679 = vrot.slane %v8650, 2
  %v8680 = vrot.slane %v8651, 2
  %v8681 = vsel %vm801, %v8679, %v8680
  %v8682 = vrot.slane %v8652, 2
  %v8683 = vrot.slane %v8653, 2
  %v8684 = vsel %vm801, %v8682, %v8683
  %v8685 = vrot.slane %v8654, 2
  %v8686 = vrot.slane %v8655, 2
  %v8687 = vsel %vm801, %v8685, %v8686
  %v8688 = vrot.slane %v8656, 2
  %v8689 = vrot.slane %v8657, 2
  %v8690 = vsel %vm801, %v8688, %v8689
  %v8691 = vrot.slane %v8658, 2
  %v8692 = vrot.slane %v8659, 2
  %v8693 = vsel %vm801, %v8691, %v8692
  %v8694 = vrot.slane %v8660, 2
  %v8695 = vrot.slane %v8661, 2
  %v8696 = vsel %vm801, %v8694, %v8695
  %v8704 = vadd.f32 %v8637, %v8678
  %v8705 = vadd.f32 %v8638, %v8681
  %v8706 = vadd.f32 %v8639, %v8684
  %v8707 = vadd.f32 %v8640, %v8687
  %v8708 = vadd.f32 %v8641, %v8690
  %v8709 = vadd.f32 %v8642, %v8693
  %v8710 = vadd.f32 %v8643, %v8696
  %v8711 = vlaneseq
  %v8712 = vshrl.u32 %v8711, 7
  %v8713 = vsub.s32 3, %v8712
  %v8714 = vrot.slane %v658, %v8713
  %v8715 = vmul.f32 %v8572, %v8714
  %v8716 = vmul.f32 %v8573, %v8714
  %v8717 = vmul.f32 %v8574, %v8714
  %v8718 = vmul.f32 %v8575, %v8714
  %v8719 = vmul.f32 %v8576, %v8714
  %v8720 = vmul.f32 %v8577, %v8714
  %v8721 = vmul.f32 %v8578, %v8714
  %v8722 = vmul.f32 %v8579, %v8714
  %v8723 = vmul.f32 %v8580, %v8714
  %v8724 = vmul.f32 %v8581, %v8714
  %v8725 = vmul.f32 %v8582, %v8714
  %v8726 = vmul.f32 %v8583, %v8714
  %v8727 = vmul.f32 %v8584, %v8714
  %v8728 = vmul.f32 %v8585, %v8714
  %v8743 = vrot.slane %v8715, 3
  %v8744 = vrot.slane %v8716, 3
  %v8745 = vsel %vm869, %v8743, %v8744
  %v8746 = vrot.slane %v8717, 3
  %v8747 = vrot.slane %v8718, 3
  %v8748 = vsel %vm869, %v8746, %v8747
  %v8749 = vrot.slane %v8719, 3
  %v8750 = vrot.slane %v8720, 3
  %v8751 = vsel %vm869, %v8749, %v8750
  %v8752 = vrot.slane %v8721, 3
  %v8753 = vrot.slane %v8722, 3
  %v8754 = vsel %vm869, %v8752, %v8753
  %v8755 = vrot.slane %v8723, 3
  %v8756 = vrot.slane %v8724, 3
  %v8757 = vsel %vm869, %v8755, %v8756
  %v8758 = vrot.slane %v8725, 3
  %v8759 = vrot.slane %v8726, 3
  %v8760 = vsel %vm869, %v8758, %v8759
  %v8761 = vrot.slane %v8727, 3
  %v8762 = vrot.slane %v8728, 3
  %v8763 = vsel %vm869, %v8761, %v8762
  %v8771 = vadd.f32 %v8704, %v8745
  %v8772 = vadd.f32 %v8705, %v8748
  %v8773 = vadd.f32 %v8706, %v8751
  %v8774 = vadd.f32 %v8707, %v8754
  %v8775 = vadd.f32 %v8708, %v8757
  %v8776 = vadd.f32 %v8709, %v8760
  %v8777 = vadd.f32 %v8710, %v8763
  %v8778 = vlaneseq
  %v8779 = vshrl.u32 %v8778, 7
  %v8780 = vsub.s32 4, %v8779
  %v8781 = vrot.slane %v658, %v8780
  %v8782 = vmul.f32 %v8572, %v8781
  %v8783 = vmul.f32 %v8573, %v8781
  %v8784 = vmul.f32 %v8574, %v8781
  %v8785 = vmul.f32 %v8575, %v8781
  %v8786 = vmul.f32 %v8576, %v8781
  %v8787 = vmul.f32 %v8577, %v8781
  %v8788 = vmul.f32 %v8578, %v8781
  %v8789 = vmul.f32 %v8579, %v8781
  %v8790 = vmul.f32 %v8580, %v8781
  %v8791 = vmul.f32 %v8581, %v8781
  %v8792 = vmul.f32 %v8582, %v8781
  %v8793 = vmul.f32 %v8583, %v8781
  %v8794 = vmul.f32 %v8584, %v8781
  %v8795 = vmul.f32 %v8585, %v8781
  %v8810 = vrot.slane %v8782, 4
  %v8811 = vrot.slane %v8783, 4
  %v8812 = vsel %vm937, %v8810, %v8811
  %v8813 = vrot.slane %v8784, 4
  %v8814 = vrot.slane %v8785, 4
  %v8815 = vsel %vm937, %v8813, %v8814
  %v8816 = vrot.slane %v8786, 4
  %v8817 = vrot.slane %v8787, 4
  %v8818 = vsel %vm937, %v8816, %v8817
  %v8819 = vrot.slane %v8788, 4
  %v8820 = vrot.slane %v8789, 4
  %v8821 = vsel %vm937, %v8819, %v8820
  %v8822 = vrot.slane %v8790, 4
  %v8823 = vrot.slane %v8791, 4
  %v8824 = vsel %vm937, %v8822, %v8823
  %v8825 = vrot.slane %v8792, 4
  %v8826 = vrot.slane %v8793, 4
  %v8827 = vsel %vm937, %v8825, %v8826
  %v8828 = vrot.slane %v8794, 4
  %v8829 = vrot.slane %v8795, 4
  %v8830 = vsel %vm937, %v8828, %v8829
  %v8838 = vadd.f32 %v8771, %v8812
  %v8839 = vadd.f32 %v8772, %v8815
  %v8840 = vadd.f32 %v8773, %v8818
  %v8841 = vadd.f32 %v8774, %v8821
  %v8842 = vadd.f32 %v8775, %v8824
  %v8843 = vadd.f32 %v8776, %v8827
  %v8844 = vadd.f32 %v8777, %v8830
  %v8845 = vlaneseq
  %v8846 = vshrl.u32 %v8845, 7
  %v8847 = vsub.s32 0, %v8846
  %v8848 = vrot.slane %v667, %v8847
  %v8849 = vmul.f32 %v8574, %v8848
  %v8850 = vmul.f32 %v8576, %v8848
  %v8851 = vmul.f32 %v8578, %v8848
  %v8852 = vmul.f32 %v8580, %v8848
  %v8853 = vmul.f32 %v8582, %v8848
  %v8854 = vmul.f32 %v8584, %v8848
  %v8855 = vmul.f32 %v8586, %v8848
  %v8856 = vadd.f32 %v8838, %v8849
  %v8857 = vadd.f32 %v8839, %v8850
  %v8858 = vadd.f32 %v8840, %v8851
  %v8859 = vadd.f32 %v8841, %v8852
  %v8860 = vadd.f32 %v8842, %v8853
  %v8861 = vadd.f32 %v8843, %v8854
  %v8862 = vadd.f32 %v8844, %v8855
  %v8863 = vlaneseq
  %v8864 = vshrl.u32 %v8863, 7
  %v8865 = vsub.s32 1, %v8864
  %v8866 = vrot.slane %v667, %v8865
  %v8867 = vmul.f32 %v8574, %v8866
  %v8868 = vmul.f32 %v8576, %v8866
  %v8869 = vmul.f32 %v8578, %v8866
  %v8870 = vmul.f32 %v8580, %v8866
  %v8871 = vmul.f32 %v8582, %v8866
  %v8872 = vmul.f32 %v8584, %v8866
  %v8873 = vmul.f32 %v8586, %v8866
  %v8881 = vrot.slane %v8867, 1
  %v8882 = vrot.slane %v8868, 1
  %v8883 = vrot.slane %v8869, 1
  %v8884 = vrot.slane %v8870, 1
  %v8885 = vrot.slane %v8871, 1
  %v8886 = vrot.slane %v8872, 1
  %v8887 = vrot.slane %v8873, 1
  %v8895 = vadd.f32 %v8856, %v8881
  %v8896 = vadd.f32 %v8857, %v8882
  %v8897 = vadd.f32 %v8858, %v8883
  %v8898 = vadd.f32 %v8859, %v8884
  %v8899 = vadd.f32 %v8860, %v8885
  %v8900 = vadd.f32 %v8861, %v8886
  %v8901 = vadd.f32 %v8862, %v8887
  %v8902 = vlaneseq
  %v8903 = vshrl.u32 %v8902, 7
  %v8904 = vsub.s32 2, %v8903
  %v8905 = vrot.slane %v667, %v8904
  %v8906 = vmul.f32 %v8574, %v8905
  %v8907 = vmul.f32 %v8575, %v8905
  %v8908 = vmul.f32 %v8576, %v8905
  %v8909 = vmul.f32 %v8577, %v8905
  %v8910 = vmul.f32 %v8578, %v8905
  %v8911 = vmul.f32 %v8579, %v8905
  %v8912 = vmul.f32 %v8580, %v8905
  %v8913 = vmul.f32 %v8581, %v8905
  %v8914 = vmul.f32 %v8582, %v8905
  %v8915 = vmul.f32 %v8583, %v8905
  %v8916 = vmul.f32 %v8584, %v8905
  %v8917 = vmul.f32 %v8585, %v8905
  %v8918 = vmul.f32 %v8586, %v8905
  %v8919 = vmul.f32 %v8587, %v8905
  %v8934 = vrot.slane %v8906, 2
  %v8935 = vrot.slane %v8907, 2
  %v8936 = vsel %vm801, %v8934, %v8935
  %v8937 = vrot.slane %v8908, 2
  %v8938 = vrot.slane %v8909, 2
  %v8939 = vsel %vm801, %v8937, %v8938
  %v8940 = vrot.slane %v8910, 2
  %v8941 = vrot.slane %v8911, 2
  %v8942 = vsel %vm801, %v8940, %v8941
  %v8943 = vrot.slane %v8912, 2
  %v8944 = vrot.slane %v8913, 2
  %v8945 = vsel %vm801, %v8943, %v8944
  %v8946 = vrot.slane %v8914, 2
  %v8947 = vrot.slane %v8915, 2
  %v8948 = vsel %vm801, %v8946, %v8947
  %v8949 = vrot.slane %v8916, 2
  %v8950 = vrot.slane %v8917, 2
  %v8951 = vsel %vm801, %v8949, %v8950
  %v8952 = vrot.slane %v8918, 2
  %v8953 = vrot.slane %v8919, 2
  %v8954 = vsel %vm801, %v8952, %v8953
  %v8962 = vadd.f32 %v8895, %v8936
  %v8963 = vadd.f32 %v8896, %v8939
  %v8964 = vadd.f32 %v8897, %v8942
  %v8965 = vadd.f32 %v8898, %v8945
  %v8966 = vadd.f32 %v8899, %v8948
  %v8967 = vadd.f32 %v8900, %v8951
  %v8968 = vadd.f32 %v8901, %v8954
  %v8969 = vlaneseq
  %v8970 = vshrl.u32 %v8969, 7
  %v8971 = vsub.s32 3, %v8970
  %v8972 = vrot.slane %v667, %v8971
  %v8973 = vmul.f32 %v8574, %v8972
  %v8974 = vmul.f32 %v8575, %v8972
  %v8975 = vmul.f32 %v8576, %v8972
  %v8976 = vmul.f32 %v8577, %v8972
  %v8977 = vmul.f32 %v8578, %v8972
  %v8978 = vmul.f32 %v8579, %v8972
  %v8979 = vmul.f32 %v8580, %v8972
  %v8980 = vmul.f32 %v8581, %v8972
  %v8981 = vmul.f32 %v8582, %v8972
  %v8982 = vmul.f32 %v8583, %v8972
  %v8983 = vmul.f32 %v8584, %v8972
  %v8984 = vmul.f32 %v8585, %v8972
  %v8985 = vmul.f32 %v8586, %v8972
  %v8986 = vmul.f32 %v8587, %v8972
  %v9001 = vrot.slane %v8973, 3
  %v9002 = vrot.slane %v8974, 3
  %v9003 = vsel %vm869, %v9001, %v9002
  %v9004 = vrot.slane %v8975, 3
  %v9005 = vrot.slane %v8976, 3
  %v9006 = vsel %vm869, %v9004, %v9005
  %v9007 = vrot.slane %v8977, 3
  %v9008 = vrot.slane %v8978, 3
  %v9009 = vsel %vm869, %v9007, %v9008
  %v9010 = vrot.slane %v8979, 3
  %v9011 = vrot.slane %v8980, 3
  %v9012 = vsel %vm869, %v9010, %v9011
  %v9013 = vrot.slane %v8981, 3
  %v9014 = vrot.slane %v8982, 3
  %v9015 = vsel %vm869, %v9013, %v9014
  %v9016 = vrot.slane %v8983, 3
  %v9017 = vrot.slane %v8984, 3
  %v9018 = vsel %vm869, %v9016, %v9017
  %v9019 = vrot.slane %v8985, 3
  %v9020 = vrot.slane %v8986, 3
  %v9021 = vsel %vm869, %v9019, %v9020
  %v9029 = vadd.f32 %v8962, %v9003
  %v9030 = vadd.f32 %v8963, %v9006
  %v9031 = vadd.f32 %v8964, %v9009
  %v9032 = vadd.f32 %v8965, %v9012
  %v9033 = vadd.f32 %v8966, %v9015
  %v9034 = vadd.f32 %v8967, %v9018
  %v9035 = vadd.f32 %v8968, %v9021
  %v9036 = vlaneseq
  %v9037 = vshrl.u32 %v9036, 7
  %v9038 = vsub.s32 4, %v9037
  %v9039 = vrot.slane %v667, %v9038
  %v9040 = vmul.f32 %v8574, %v9039
  %v9041 = vmul.f32 %v8575, %v9039
  %v9042 = vmul.f32 %v8576, %v9039
  %v9043 = vmul.f32 %v8577, %v9039
  %v9044 = vmul.f32 %v8578, %v9039
  %v9045 = vmul.f32 %v8579, %v9039
  %v9046 = vmul.f32 %v8580, %v9039
  %v9047 = vmul.f32 %v8581, %v9039
  %v9048 = vmul.f32 %v8582, %v9039
  %v9049 = vmul.f32 %v8583, %v9039
  %v9050 = vmul.f32 %v8584, %v9039
  %v9051 = vmul.f32 %v8585, %v9039
  %v9052 = vmul.f32 %v8586, %v9039
  %v9053 = vmul.f32 %v8587, %v9039
  %v9068 = vrot.slane %v9040, 4
  %v9069 = vrot.slane %v9041, 4
  %v9070 = vsel %vm937, %v9068, %v9069
  %v9071 = vrot.slane %v9042, 4
  %v9072 = vrot.slane %v9043, 4
  %v9073 = vsel %vm937, %v9071, %v9072
  %v9074 = vrot.slane %v9044, 4
  %v9075 = vrot.slane %v9045, 4
  %v9076 = vsel %vm937, %v9074, %v9075
  %v9077 = vrot.slane %v9046, 4
  %v9078 = vrot.slane %v9047, 4
  %v9079 = vsel %vm937, %v9077, %v9078
  %v9080 = vrot.slane %v9048, 4
  %v9081 = vrot.slane %v9049, 4
  %v9082 = vsel %vm937, %v9080, %v9081
  %v9083 = vrot.slane %v9050, 4
  %v9084 = vrot.slane %v9051, 4
  %v9085 = vsel %vm937, %v9083, %v9084
  %v9086 = vrot.slane %v9052, 4
  %v9087 = vrot.slane %v9053, 4
  %v9088 = vsel %vm937, %v9086, %v9087
  %v9096 = vadd.f32 %v9029, %v9070
  %v9097 = vadd.f32 %v9030, %v9073
  %v9098 = vadd.f32 %v9031, %v9076
  %v9099 = vadd.f32 %v9032, %v9079
  %v9100 = vadd.f32 %v9033, %v9082
  %v9101 = vadd.f32 %v9034, %v9085
  %v9102 = vadd.f32 %v9035, %v9088
  %v9103 = vlaneseq
  %v9104 = vshrl.u32 %v9103, 7
  %v9105 = vsub.s32 0, %v9104
  %v9106 = vrot.slane %v676, %v9105
  %v9107 = vmul.f32 %v8576, %v9106
  %v9108 = vmul.f32 %v8578, %v9106
  %v9109 = vmul.f32 %v8580, %v9106
  %v9110 = vmul.f32 %v8582, %v9106
  %v9111 = vmul.f32 %v8584, %v9106
  %v9112 = vmul.f32 %v8586, %v9106
  %v9113 = vmul.f32 %v8588, %v9106
  %v9114 = vadd.f32 %v9096, %v9107
  %v9115 = vadd.f32 %v9097, %v9108
  %v9116 = vadd.f32 %v9098, %v9109
  %v9117 = vadd.f32 %v9099, %v9110
  %v9118 = vadd.f32 %v9100, %v9111
  %v9119 = vadd.f32 %v9101, %v9112
  %v9120 = vadd.f32 %v9102, %v9113
  %v9121 = vlaneseq
  %v9122 = vshrl.u32 %v9121, 7
  %v9123 = vsub.s32 1, %v9122
  %v9124 = vrot.slane %v676, %v9123
  %v9125 = vmul.f32 %v8576, %v9124
  %v9126 = vmul.f32 %v8578, %v9124
  %v9127 = vmul.f32 %v8580, %v9124
  %v9128 = vmul.f32 %v8582, %v9124
  %v9129 = vmul.f32 %v8584, %v9124
  %v9130 = vmul.f32 %v8586, %v9124
  %v9131 = vmul.f32 %v8588, %v9124
  %v9139 = vrot.slane %v9125, 1
  %v9140 = vrot.slane %v9126, 1
  %v9141 = vrot.slane %v9127, 1
  %v9142 = vrot.slane %v9128, 1
  %v9143 = vrot.slane %v9129, 1
  %v9144 = vrot.slane %v9130, 1
  %v9145 = vrot.slane %v9131, 1
  %v9153 = vadd.f32 %v9114, %v9139
  %v9154 = vadd.f32 %v9115, %v9140
  %v9155 = vadd.f32 %v9116, %v9141
  %v9156 = vadd.f32 %v9117, %v9142
  %v9157 = vadd.f32 %v9118, %v9143
  %v9158 = vadd.f32 %v9119, %v9144
  %v9159 = vadd.f32 %v9120, %v9145
  %v9160 = vlaneseq
  %v9161 = vshrl.u32 %v9160, 7
  %v9162 = vsub.s32 2, %v9161
  %v9163 = vrot.slane %v676, %v9162
  %v9164 = vmul.f32 %v8576, %v9163
  %v9165 = vmul.f32 %v8577, %v9163
  %v9166 = vmul.f32 %v8578, %v9163
  %v9167 = vmul.f32 %v8579, %v9163
  %v9168 = vmul.f32 %v8580, %v9163
  %v9169 = vmul.f32 %v8581, %v9163
  %v9170 = vmul.f32 %v8582, %v9163
  %v9171 = vmul.f32 %v8583, %v9163
  %v9172 = vmul.f32 %v8584, %v9163
  %v9173 = vmul.f32 %v8585, %v9163
  %v9174 = vmul.f32 %v8586, %v9163
  %v9175 = vmul.f32 %v8587, %v9163
  %v9176 = vmul.f32 %v8588, %v9163
  %v9177 = vmul.f32 %v8589, %v9163
  %v9192 = vrot.slane %v9164, 2
  %v9193 = vrot.slane %v9165, 2
  %v9194 = vsel %vm801, %v9192, %v9193
  %v9195 = vrot.slane %v9166, 2
  %v9196 = vrot.slane %v9167, 2
  %v9197 = vsel %vm801, %v9195, %v9196
  %v9198 = vrot.slane %v9168, 2
  %v9199 = vrot.slane %v9169, 2
  %v9200 = vsel %vm801, %v9198, %v9199
  %v9201 = vrot.slane %v9170, 2
  %v9202 = vrot.slane %v9171, 2
  %v9203 = vsel %vm801, %v9201, %v9202
  %v9204 = vrot.slane %v9172, 2
  %v9205 = vrot.slane %v9173, 2
  %v9206 = vsel %vm801, %v9204, %v9205
  %v9207 = vrot.slane %v9174, 2
  %v9208 = vrot.slane %v9175, 2
  %v9209 = vsel %vm801, %v9207, %v9208
  %v9210 = vrot.slane %v9176, 2
  %v9211 = vrot.slane %v9177, 2
  %v9212 = vsel %vm801, %v9210, %v9211
  %v9220 = vadd.f32 %v9153, %v9194
  %v9221 = vadd.f32 %v9154, %v9197
  %v9222 = vadd.f32 %v9155, %v9200
  %v9223 = vadd.f32 %v9156, %v9203
  %v9224 = vadd.f32 %v9157, %v9206
  %v9225 = vadd.f32 %v9158, %v9209
  %v9226 = vadd.f32 %v9159, %v9212
  %v9227 = vlaneseq
  %v9228 = vshrl.u32 %v9227, 7
  %v9229 = vsub.s32 3, %v9228
  %v9230 = vrot.slane %v676, %v9229
  %v9231 = vmul.f32 %v8576, %v9230
  %v9232 = vmul.f32 %v8577, %v9230
  %v9233 = vmul.f32 %v8578, %v9230
  %v9234 = vmul.f32 %v8579, %v9230
  %v9235 = vmul.f32 %v8580, %v9230
  %v9236 = vmul.f32 %v8581, %v9230
  %v9237 = vmul.f32 %v8582, %v9230
  %v9238 = vmul.f32 %v8583, %v9230
  %v9239 = vmul.f32 %v8584, %v9230
  %v9240 = vmul.f32 %v8585, %v9230
  %v9241 = vmul.f32 %v8586, %v9230
  %v9242 = vmul.f32 %v8587, %v9230
  %v9243 = vmul.f32 %v8588, %v9230
  %v9244 = vmul.f32 %v8589, %v9230
  %v9259 = vrot.slane %v9231, 3
  %v9260 = vrot.slane %v9232, 3
  %v9261 = vsel %vm869, %v9259, %v9260
  %v9262 = vrot.slane %v9233, 3
  %v9263 = vrot.slane %v9234, 3
  %v9264 = vsel %vm869, %v9262, %v9263
  %v9265 = vrot.slane %v9235, 3
  %v9266 = vrot.slane %v9236, 3
  %v9267 = vsel %vm869, %v9265, %v9266
  %v9268 = vrot.slane %v9237, 3
  %v9269 = vrot.slane %v9238, 3
  %v9270 = vsel %vm869, %v9268, %v9269
  %v9271 = vrot.slane %v9239, 3
  %v9272 = vrot.slane %v9240, 3
  %v9273 = vsel %vm869, %v9271, %v9272
  %v9274 = vrot.slane %v9241, 3
  %v9275 = vrot.slane %v9242, 3
  %v9276 = vsel %vm869, %v9274, %v9275
  %v9277 = vrot.slane %v9243, 3
  %v9278 = vrot.slane %v9244, 3
  %v9279 = vsel %vm869, %v9277, %v9278
  %v9287 = vadd.f32 %v9220, %v9261
  %v9288 = vadd.f32 %v9221, %v9264
  %v9289 = vadd.f32 %v9222, %v9267
  %v9290 = vadd.f32 %v9223, %v9270
  %v9291 = vadd.f32 %v9224, %v9273
  %v9292 = vadd.f32 %v9225, %v9276
  %v9293 = vadd.f32 %v9226, %v9279
  %v9294 = vlaneseq
  %v9295 = vshrl.u32 %v9294, 7
  %v9296 = vsub.s32 4, %v9295
  %v9297 = vrot.slane %v676, %v9296
  %v9298 = vmul.f32 %v8576, %v9297
  %v9299 = vmul.f32 %v8577, %v9297
  %v9300 = vmul.f32 %v8578, %v9297
  %v9301 = vmul.f32 %v8579, %v9297
  %v9302 = vmul.f32 %v8580, %v9297
  %v9303 = vmul.f32 %v8581, %v9297
  %v9304 = vmul.f32 %v8582, %v9297
  %v9305 = vmul.f32 %v8583, %v9297
  %v9306 = vmul.f32 %v8584, %v9297
  %v9307 = vmul.f32 %v8585, %v9297
  %v9308 = vmul.f32 %v8586, %v9297
  %v9309 = vmul.f32 %v8587, %v9297
  %v9310 = vmul.f32 %v8588, %v9297
  %v9311 = vmul.f32 %v8589, %v9297
  %v9326 = vrot.slane %v9298, 4
  %v9327 = vrot.slane %v9299, 4
  %v9328 = vsel %vm937, %v9326, %v9327
  %v9329 = vrot.slane %v9300, 4
  %v9330 = vrot.slane %v9301, 4
  %v9331 = vsel %vm937, %v9329, %v9330
  %v9332 = vrot.slane %v9302, 4
  %v9333 = vrot.slane %v9303, 4
  %v9334 = vsel %vm937, %v9332, %v9333
  %v9335 = vrot.slane %v9304, 4
  %v9336 = vrot.slane %v9305, 4
  %v9337 = vsel %vm937, %v9335, %v9336
  %v9338 = vrot.slane %v9306, 4
  %v9339 = vrot.slane %v9307, 4
  %v9340 = vsel %vm937, %v9338, %v9339
  %v9341 = vrot.slane %v9308, 4
  %v9342 = vrot.slane %v9309, 4
  %v9343 = vsel %vm937, %v9341, %v9342
  %v9344 = vrot.slane %v9310, 4
  %v9345 = vrot.slane %v9311, 4
  %v9346 = vsel %vm937, %v9344, %v9345
  %v9354 = vadd.f32 %v9287, %v9328
  %v9355 = vadd.f32 %v9288, %v9331
  %v9356 = vadd.f32 %v9289, %v9334
  %v9357 = vadd.f32 %v9290, %v9337
  %v9358 = vadd.f32 %v9291, %v9340
  %v9359 = vadd.f32 %v9292, %v9343
  %v9360 = vadd.f32 %v9293, %v9346
  %v9361 = vlaneseq
  %v9362 = vshrl.u32 %v9361, 7
  %v9363 = vsub.s32 0, %v9362
  %v9364 = vrot.slane %v685, %v9363
  %v9365 = vmul.f32 %v8578, %v9364
  %v9366 = vmul.f32 %v8580, %v9364
  %v9367 = vmul.f32 %v8582, %v9364
  %v9368 = vmul.f32 %v8584, %v9364
  %v9369 = vmul.f32 %v8586, %v9364
  %v9370 = vmul.f32 %v8588, %v9364
  %v9371 = vmul.f32 %v8590, %v9364
  %v9372 = vadd.f32 %v9354, %v9365
  %v9373 = vadd.f32 %v9355, %v9366
  %v9374 = vadd.f32 %v9356, %v9367
  %v9375 = vadd.f32 %v9357, %v9368
  %v9376 = vadd.f32 %v9358, %v9369
  %v9377 = vadd.f32 %v9359, %v9370
  %v9378 = vadd.f32 %v9360, %v9371
  %v9379 = vlaneseq
  %v9380 = vshrl.u32 %v9379, 7
  %v9381 = vsub.s32 1, %v9380
  %v9382 = vrot.slane %v685, %v9381
  %v9383 = vmul.f32 %v8578, %v9382
  %v9384 = vmul.f32 %v8580, %v9382
  %v9385 = vmul.f32 %v8582, %v9382
  %v9386 = vmul.f32 %v8584, %v9382
  %v9387 = vmul.f32 %v8586, %v9382
  %v9388 = vmul.f32 %v8588, %v9382
  %v9389 = vmul.f32 %v8590, %v9382
  %v9397 = vrot.slane %v9383, 1
  %v9398 = vrot.slane %v9384, 1
  %v9399 = vrot.slane %v9385, 1
  %v9400 = vrot.slane %v9386, 1
  %v9401 = vrot.slane %v9387, 1
  %v9402 = vrot.slane %v9388, 1
  %v9403 = vrot.slane %v9389, 1
  %v9411 = vadd.f32 %v9372, %v9397
  %v9412 = vadd.f32 %v9373, %v9398
  %v9413 = vadd.f32 %v9374, %v9399
  %v9414 = vadd.f32 %v9375, %v9400
  %v9415 = vadd.f32 %v9376, %v9401
  %v9416 = vadd.f32 %v9377, %v9402
  %v9417 = vadd.f32 %v9378, %v9403
  %v9418 = vlaneseq
  %v9419 = vshrl.u32 %v9418, 7
  %v9420 = vsub.s32 2, %v9419
  %v9421 = vrot.slane %v685, %v9420
  %v9422 = vmul.f32 %v8578, %v9421
  %v9423 = vmul.f32 %v8579, %v9421
  %v9424 = vmul.f32 %v8580, %v9421
  %v9425 = vmul.f32 %v8581, %v9421
  %v9426 = vmul.f32 %v8582, %v9421
  %v9427 = vmul.f32 %v8583, %v9421
  %v9428 = vmul.f32 %v8584, %v9421
  %v9429 = vmul.f32 %v8585, %v9421
  %v9430 = vmul.f32 %v8586, %v9421
  %v9431 = vmul.f32 %v8587, %v9421
  %v9432 = vmul.f32 %v8588, %v9421
  %v9433 = vmul.f32 %v8589, %v9421
  %v9434 = vmul.f32 %v8590, %v9421
  %v9435 = vmul.f32 %v8591, %v9421
  %v9450 = vrot.slane %v9422, 2
  %v9451 = vrot.slane %v9423, 2
  %v9452 = vsel %vm801, %v9450, %v9451
  %v9453 = vrot.slane %v9424, 2
  %v9454 = vrot.slane %v9425, 2
  %v9455 = vsel %vm801, %v9453, %v9454
  %v9456 = vrot.slane %v9426, 2
  %v9457 = vrot.slane %v9427, 2
  %v9458 = vsel %vm801, %v9456, %v9457
  %v9459 = vrot.slane %v9428, 2
  %v9460 = vrot.slane %v9429, 2
  %v9461 = vsel %vm801, %v9459, %v9460
  %v9462 = vrot.slane %v9430, 2
  %v9463 = vrot.slane %v9431, 2
  %v9464 = vsel %vm801, %v9462, %v9463
  %v9465 = vrot.slane %v9432, 2
  %v9466 = vrot.slane %v9433, 2
  %v9467 = vsel %vm801, %v9465, %v9466
  %v9468 = vrot.slane %v9434, 2
  %v9469 = vrot.slane %v9435, 2
  %v9470 = vsel %vm801, %v9468, %v9469
  %v9478 = vadd.f32 %v9411, %v9452
  %v9479 = vadd.f32 %v9412, %v9455
  %v9480 = vadd.f32 %v9413, %v9458
  %v9481 = vadd.f32 %v9414, %v9461
  %v9482 = vadd.f32 %v9415, %v9464
  %v9483 = vadd.f32 %v9416, %v9467
  %v9484 = vadd.f32 %v9417, %v9470
  %v9485 = vlaneseq
  %v9486 = vshrl.u32 %v9485, 7
  %v9487 = vsub.s32 3, %v9486
  %v9488 = vrot.slane %v685, %v9487
  %v9489 = vmul.f32 %v8578, %v9488
  %v9490 = vmul.f32 %v8579, %v9488
  %v9491 = vmul.f32 %v8580, %v9488
  %v9492 = vmul.f32 %v8581, %v9488
  %v9493 = vmul.f32 %v8582, %v9488
  %v9494 = vmul.f32 %v8583, %v9488
  %v9495 = vmul.f32 %v8584, %v9488
  %v9496 = vmul.f32 %v8585, %v9488
  %v9497 = vmul.f32 %v8586, %v9488
  %v9498 = vmul.f32 %v8587, %v9488
  %v9499 = vmul.f32 %v8588, %v9488
  %v9500 = vmul.f32 %v8589, %v9488
  %v9501 = vmul.f32 %v8590, %v9488
  %v9502 = vmul.f32 %v8591, %v9488
  %v9517 = vrot.slane %v9489, 3
  %v9518 = vrot.slane %v9490, 3
  %v9519 = vsel %vm869, %v9517, %v9518
  %v9520 = vrot.slane %v9491, 3
  %v9521 = vrot.slane %v9492, 3
  %v9522 = vsel %vm869, %v9520, %v9521
  %v9523 = vrot.slane %v9493, 3
  %v9524 = vrot.slane %v9494, 3
  %v9525 = vsel %vm869, %v9523, %v9524
  %v9526 = vrot.slane %v9495, 3
  %v9527 = vrot.slane %v9496, 3
  %v9528 = vsel %vm869, %v9526, %v9527
  %v9529 = vrot.slane %v9497, 3
  %v9530 = vrot.slane %v9498, 3
  %v9531 = vsel %vm869, %v9529, %v9530
  %v9532 = vrot.slane %v9499, 3
  %v9533 = vrot.slane %v9500, 3
  %v9534 = vsel %vm869, %v9532, %v9533
  %v9535 = vrot.slane %v9501, 3
  %v9536 = vrot.slane %v9502, 3
  %v9537 = vsel %vm869, %v9535, %v9536
  %v9545 = vadd.f32 %v9478, %v9519
  %v9546 = vadd.f32 %v9479, %v9522
  %v9547 = vadd.f32 %v9480, %v9525
  %v9548 = vadd.f32 %v9481, %v9528
  %v9549 = vadd.f32 %v9482, %v9531
  %v9550 = vadd.f32 %v9483, %v9534
  %v9551 = vadd.f32 %v9484, %v9537
  %v9552 = vlaneseq
  %v9553 = vshrl.u32 %v9552, 7
  %v9554 = vsub.s32 4, %v9553
  %v9555 = vrot.slane %v685, %v9554
  %v9556 = vmul.f32 %v8578, %v9555
  %v9557 = vmul.f32 %v8579, %v9555
  %v9558 = vmul.f32 %v8580, %v9555
  %v9559 = vmul.f32 %v8581, %v9555
  %v9560 = vmul.f32 %v8582, %v9555
  %v9561 = vmul.f32 %v8583, %v9555
  %v9562 = vmul.f32 %v8584, %v9555
  %v9563 = vmul.f32 %v8585, %v9555
  %v9564 = vmul.f32 %v8586, %v9555
  %v9565 = vmul.f32 %v8587, %v9555
  %v9566 = vmul.f32 %v8588, %v9555
  %v9567 = vmul.f32 %v8589, %v9555
  %v9568 = vmul.f32 %v8590, %v9555
  %v9569 = vmul.f32 %v8591, %v9555
  %v9584 = vrot.slane %v9556, 4
  %v9585 = vrot.slane %v9557, 4
  %v9586 = vsel %vm937, %v9584, %v9585
  %v9587 = vrot.slane %v9558, 4
  %v9588 = vrot.slane %v9559, 4
  %v9589 = vsel %vm937, %v9587, %v9588
  %v9590 = vrot.slane %v9560, 4
  %v9591 = vrot.slane %v9561, 4
  %v9592 = vsel %vm937, %v9590, %v9591
  %v9593 = vrot.slane %v9562, 4
  %v9594 = vrot.slane %v9563, 4
  %v9595 = vsel %vm937, %v9593, %v9594
  %v9596 = vrot.slane %v9564, 4
  %v9597 = vrot.slane %v9565, 4
  %v9598 = vsel %vm937, %v9596, %v9597
  %v9599 = vrot.slane %v9566, 4
  %v9600 = vrot.slane %v9567, 4
  %v9601 = vsel %vm937, %v9599, %v9600
  %v9602 = vrot.slane %v9568, 4
  %v9603 = vrot.slane %v9569, 4
  %v9604 = vsel %vm937, %v9602, %v9603
  %v9612 = vadd.f32 %v9545, %v9586
  %v9613 = vadd.f32 %v9546, %v9589
  %v9614 = vadd.f32 %v9547, %v9592
  %v9615 = vadd.f32 %v9548, %v9595
  %v9616 = vadd.f32 %v9549, %v9598
  %v9617 = vadd.f32 %v9550, %v9601
  %v9618 = vadd.f32 %v9551, %v9604
  %v9619 = vlaneseq
  %v9620 = vshrl.u32 %v9619, 7
  %v9621 = vsub.s32 0, %v9620
  %v9622 = vrot.slane %v694, %v9621
  %v9623 = vmul.f32 %v8580, %v9622
  %v9624 = vmul.f32 %v8582, %v9622
  %v9625 = vmul.f32 %v8584, %v9622
  %v9626 = vmul.f32 %v8586, %v9622
  %v9627 = vmul.f32 %v8588, %v9622
  %v9628 = vmul.f32 %v8590, %v9622
  %v9629 = vmul.f32 %v8592, %v9622
  %v9630 = vadd.f32 %v9612, %v9623
  %v9631 = vadd.f32 %v9613, %v9624
  %v9632 = vadd.f32 %v9614, %v9625
  %v9633 = vadd.f32 %v9615, %v9626
  %v9634 = vadd.f32 %v9616, %v9627
  %v9635 = vadd.f32 %v9617, %v9628
  %v9636 = vadd.f32 %v9618, %v9629
  %v9637 = vlaneseq
  %v9638 = vshrl.u32 %v9637, 7
  %v9639 = vsub.s32 1, %v9638
  %v9640 = vrot.slane %v694, %v9639
  %v9641 = vmul.f32 %v8580, %v9640
  %v9642 = vmul.f32 %v8582, %v9640
  %v9643 = vmul.f32 %v8584, %v9640
  %v9644 = vmul.f32 %v8586, %v9640
  %v9645 = vmul.f32 %v8588, %v9640
  %v9646 = vmul.f32 %v8590, %v9640
  %v9647 = vmul.f32 %v8592, %v9640
  %v9655 = vrot.slane %v9641, 1
  %v9656 = vrot.slane %v9642, 1
  %v9657 = vrot.slane %v9643, 1
  %v9658 = vrot.slane %v9644, 1
  %v9659 = vrot.slane %v9645, 1
  %v9660 = vrot.slane %v9646, 1
  %v9661 = vrot.slane %v9647, 1
  %v9669 = vadd.f32 %v9630, %v9655
  %v9670 = vadd.f32 %v9631, %v9656
  %v9671 = vadd.f32 %v9632, %v9657
  %v9672 = vadd.f32 %v9633, %v9658
  %v9673 = vadd.f32 %v9634, %v9659
  %v9674 = vadd.f32 %v9635, %v9660
  %v9675 = vadd.f32 %v9636, %v9661
  %v9676 = vlaneseq
  %v9677 = vshrl.u32 %v9676, 7
  %v9678 = vsub.s32 2, %v9677
  %v9679 = vrot.slane %v694, %v9678
  %v9680 = vmul.f32 %v8580, %v9679
  %v9681 = vmul.f32 %v8581, %v9679
  %v9682 = vmul.f32 %v8582, %v9679
  %v9683 = vmul.f32 %v8583, %v9679
  %v9684 = vmul.f32 %v8584, %v9679
  %v9685 = vmul.f32 %v8585, %v9679
  %v9686 = vmul.f32 %v8586, %v9679
  %v9687 = vmul.f32 %v8587, %v9679
  %v9688 = vmul.f32 %v8588, %v9679
  %v9689 = vmul.f32 %v8589, %v9679
  %v9690 = vmul.f32 %v8590, %v9679
  %v9691 = vmul.f32 %v8591, %v9679
  %v9692 = vmul.f32 %v8592, %v9679
  %v9693 = vmul.f32 %v8593, %v9679
  %v9708 = vrot.slane %v9680, 2
  %v9709 = vrot.slane %v9681, 2
  %v9710 = vsel %vm801, %v9708, %v9709
  %v9711 = vrot.slane %v9682, 2
  %v9712 = vrot.slane %v9683, 2
  %v9713 = vsel %vm801, %v9711, %v9712
  %v9714 = vrot.slane %v9684, 2
  %v9715 = vrot.slane %v9685, 2
  %v9716 = vsel %vm801, %v9714, %v9715
  %v9717 = vrot.slane %v9686, 2
  %v9718 = vrot.slane %v9687, 2
  %v9719 = vsel %vm801, %v9717, %v9718
  %v9720 = vrot.slane %v9688, 2
  %v9721 = vrot.slane %v9689, 2
  %v9722 = vsel %vm801, %v9720, %v9721
  %v9723 = vrot.slane %v9690, 2
  %v9724 = vrot.slane %v9691, 2
  %v9725 = vsel %vm801, %v9723, %v9724
  %v9726 = vrot.slane %v9692, 2
  %v9727 = vrot.slane %v9693, 2
  %v9728 = vsel %vm801, %v9726, %v9727
  %v9736 = vadd.f32 %v9669, %v9710
  %v9737 = vadd.f32 %v9670, %v9713
  %v9738 = vadd.f32 %v9671, %v9716
  %v9739 = vadd.f32 %v9672, %v9719
  %v9740 = vadd.f32 %v9673, %v9722
  %v9741 = vadd.f32 %v9674, %v9725
  %v9742 = vadd.f32 %v9675, %v9728
  %v9743 = vlaneseq
  %v9744 = vshrl.u32 %v9743, 7
  %v9745 = vsub.s32 3, %v9744
  %v9746 = vrot.slane %v694, %v9745
  %v9747 = vmul.f32 %v8580, %v9746
  %v9748 = vmul.f32 %v8581, %v9746
  %v9749 = vmul.f32 %v8582, %v9746
  %v9750 = vmul.f32 %v8583, %v9746
  %v9751 = vmul.f32 %v8584, %v9746
  %v9752 = vmul.f32 %v8585, %v9746
  %v9753 = vmul.f32 %v8586, %v9746
  %v9754 = vmul.f32 %v8587, %v9746
  %v9755 = vmul.f32 %v8588, %v9746
  %v9756 = vmul.f32 %v8589, %v9746
  %v9757 = vmul.f32 %v8590, %v9746
  %v9758 = vmul.f32 %v8591, %v9746
  %v9759 = vmul.f32 %v8592, %v9746
  %v9760 = vmul.f32 %v8593, %v9746
  %v9775 = vrot.slane %v9747, 3
  %v9776 = vrot.slane %v9748, 3
  %v9777 = vsel %vm869, %v9775, %v9776
  %v9778 = vrot.slane %v9749, 3
  %v9779 = vrot.slane %v9750, 3
  %v9780 = vsel %vm869, %v9778, %v9779
  %v9781 = vrot.slane %v9751, 3
  %v9782 = vrot.slane %v9752, 3
  %v9783 = vsel %vm869, %v9781, %v9782
  %v9784 = vrot.slane %v9753, 3
  %v9785 = vrot.slane %v9754, 3
  %v9786 = vsel %vm869, %v9784, %v9785
  %v9787 = vrot.slane %v9755, 3
  %v9788 = vrot.slane %v9756, 3
  %v9789 = vsel %vm869, %v9787, %v9788
  %v9790 = vrot.slane %v9757, 3
  %v9791 = vrot.slane %v9758, 3
  %v9792 = vsel %vm869, %v9790, %v9791
  %v9793 = vrot.slane %v9759, 3
  %v9794 = vrot.slane %v9760, 3
  %v9795 = vsel %vm869, %v9793, %v9794
  %v9803 = vadd.f32 %v9736, %v9777
  %v9804 = vadd.f32 %v9737, %v9780
  %v9805 = vadd.f32 %v9738, %v9783
  %v9806 = vadd.f32 %v9739, %v9786
  %v9807 = vadd.f32 %v9740, %v9789
  %v9808 = vadd.f32 %v9741, %v9792
  %v9809 = vadd.f32 %v9742, %v9795
  %v9810 = vlaneseq
  %v9811 = vshrl.u32 %v9810, 7
  %v9812 = vsub.s32 4, %v9811
  %v9813 = vrot.slane %v694, %v9812
  %v9814 = vmul.f32 %v8580, %v9813
  %v9815 = vmul.f32 %v8581, %v9813
  %v9816 = vmul.f32 %v8582, %v9813
  %v9817 = vmul.f32 %v8583, %v9813
  %v9818 = vmul.f32 %v8584, %v9813
  %v9819 = vmul.f32 %v8585, %v9813
  %v9820 = vmul.f32 %v8586, %v9813
  %v9821 = vmul.f32 %v8587, %v9813
  %v9822 = vmul.f32 %v8588, %v9813
  %v9823 = vmul.f32 %v8589, %v9813
  %v9824 = vmul.f32 %v8590, %v9813
  %v9825 = vmul.f32 %v8591, %v9813
  %v9826 = vmul.f32 %v8592, %v9813
  %v9827 = vmul.f32 %v8593, %v9813
  %v9842 = vrot.slane %v9814, 4
  %v9843 = vrot.slane %v9815, 4
  %v9844 = vsel %vm937, %v9842, %v9843
  %v9845 = vrot.slane %v9816, 4
  %v9846 = vrot.slane %v9817, 4
  %v9847 = vsel %vm937, %v9845, %v9846
  %v9848 = vrot.slane %v9818, 4
  %v9849 = vrot.slane %v9819, 4
  %v9850 = vsel %vm937, %v9848, %v9849
  %v9851 = vrot.slane %v9820, 4
  %v9852 = vrot.slane %v9821, 4
  %v9853 = vsel %vm937, %v9851, %v9852
  %v9854 = vrot.slane %v9822, 4
  %v9855 = vrot.slane %v9823, 4
  %v9856 = vsel %vm937, %v9854, %v9855
  %v9857 = vrot.slane %v9824, 4
  %v9858 = vrot.slane %v9825, 4
  %v9859 = vsel %vm937, %v9857, %v9858
  %v9860 = vrot.slane %v9826, 4
  %v9861 = vrot.slane %v9827, 4
  %v9862 = vsel %vm937, %v9860, %v9861
  %v9870 = vadd.f32 %v9803, %v9844
  %v9871 = vadd.f32 %v9804, %v9847
  %v9872 = vadd.f32 %v9805, %v9850
  %v9873 = vadd.f32 %v9806, %v9853
  %v9874 = vadd.f32 %v9807, %v9856
  %v9875 = vadd.f32 %v9808, %v9859
  %v9876 = vadd.f32 %v9809, %v9862
  %9877 = vst [vmem:[%s2 + $0x30] sm:$0x7f] %v9870
  %9878 = vst [vmem:[%s2 + $0x78] sm:$0x7f] %v9871
  %9879 = vst [vmem:[%s2 + $0xc0] sm:$0x7f] %v9872
  %9880 = vst [vmem:[%s2 + $0x108] sm:$0x7f] %v9873
  %9881 = vst [vmem:[%s2 + $0x150] sm:$0x7f] %v9874
  %9882 = vst [vmem:[%s2 + $0x198] sm:$0x7f] %v9875
  %9883 = vst [vmem:[%s2 + $0x1e0] sm:$0x7f] %v9876
  %v9884 = vld [vmem:[#allocation2 + $0x38] sm:$0xff]
  %v9885 = vld [vmem:[#allocation2 + $0x80] sm:$0x7]
  %v9886 = vld [vmem:[#allocation2 + $0xc8] sm:$0xff]
  %v9887 = vld [vmem:[#allocation2 + $0x110] sm:$0x7]
  %v9888 = vld [vmem:[#allocation2 + $0x158] sm:$0xff]
  %v9889 = vld [vmem:[#allocation2 + $0x1a0] sm:$0x7]
  %v9890 = vld [vmem:[#allocation2 + $0x1e8] sm:$0xff]
  %v9891 = vld [vmem:[#allocation2 + $0x230] sm:$0x7]
  %v9892 = vld [vmem:[#allocation2 + $0x278] sm:$0xff]
  %v9893 = vld [vmem:[#allocation2 + $0x2c0] sm:$0x7]
  %v9894 = vld [vmem:[#allocation2 + $0x308] sm:$0xff]
  %v9895 = vld [vmem:[#allocation2 + $0x350] sm:$0x7]
  %v9896 = vld [vmem:[#allocation2 + $0x398] sm:$0xff]
  %v9897 = vld [vmem:[#allocation2 + $0x3e0] sm:$0x7]
  %v9898 = vld [vmem:[#allocation2 + $0x428] sm:$0xff]
  %v9899 = vld [vmem:[#allocation2 + $0x470] sm:$0x7]
  %v9900 = vld [vmem:[#allocation2 + $0x4b8] sm:$0xff]
  %v9901 = vld [vmem:[#allocation2 + $0x500] sm:$0x7]
  %v9902 = vld [vmem:[#allocation2 + $0x548] sm:$0xff]
  %v9903 = vld [vmem:[#allocation2 + $0x590] sm:$0x7]
  %v9904 = vld [vmem:[#allocation2 + $0x5d8] sm:$0xff]
  %v9905 = vld [vmem:[#allocation2 + $0x620] sm:$0x7]
  %v9906 = vlaneseq
  %v9907 = vshrl.u32 %v9906, 7
  %v9908 = vsub.s32 0, %v9907
  %v9909 = vrot.slane %v659, %v9908
  %v9910 = vmul.f32 %v9884, %v9909
  %v9911 = vmul.f32 %v9886, %v9909
  %v9912 = vmul.f32 %v9888, %v9909
  %v9913 = vmul.f32 %v9890, %v9909
  %v9914 = vmul.f32 %v9892, %v9909
  %v9915 = vmul.f32 %v9894, %v9909
  %v9916 = vmul.f32 %v9896, %v9909
  %v9917 = vlaneseq
  %v9918 = vshrl.u32 %v9917, 7
  %v9919 = vsub.s32 1, %v9918
  %v9920 = vrot.slane %v659, %v9919
  %v9921 = vmul.f32 %v9884, %v9920
  %v9922 = vmul.f32 %v9886, %v9920
  %v9923 = vmul.f32 %v9888, %v9920
  %v9924 = vmul.f32 %v9890, %v9920
  %v9925 = vmul.f32 %v9892, %v9920
  %v9926 = vmul.f32 %v9894, %v9920
  %v9927 = vmul.f32 %v9896, %v9920
  %v9935 = vrot.slane %v9921, 1
  %v9936 = vrot.slane %v9922, 1
  %v9937 = vrot.slane %v9923, 1
  %v9938 = vrot.slane %v9924, 1
  %v9939 = vrot.slane %v9925, 1
  %v9940 = vrot.slane %v9926, 1
  %v9941 = vrot.slane %v9927, 1
  %v9949 = vadd.f32 %v9910, %v9935
  %v9950 = vadd.f32 %v9911, %v9936
  %v9951 = vadd.f32 %v9912, %v9937
  %v9952 = vadd.f32 %v9913, %v9938
  %v9953 = vadd.f32 %v9914, %v9939
  %v9954 = vadd.f32 %v9915, %v9940
  %v9955 = vadd.f32 %v9916, %v9941
  %v9956 = vlaneseq
  %v9957 = vshrl.u32 %v9956, 7
  %v9958 = vsub.s32 2, %v9957
  %v9959 = vrot.slane %v659, %v9958
  %v9960 = vmul.f32 %v9884, %v9959
  %v9961 = vmul.f32 %v9885, %v9959
  %v9962 = vmul.f32 %v9886, %v9959
  %v9963 = vmul.f32 %v9887, %v9959
  %v9964 = vmul.f32 %v9888, %v9959
  %v9965 = vmul.f32 %v9889, %v9959
  %v9966 = vmul.f32 %v9890, %v9959
  %v9967 = vmul.f32 %v9891, %v9959
  %v9968 = vmul.f32 %v9892, %v9959
  %v9969 = vmul.f32 %v9893, %v9959
  %v9970 = vmul.f32 %v9894, %v9959
  %v9971 = vmul.f32 %v9895, %v9959
  %v9972 = vmul.f32 %v9896, %v9959
  %v9973 = vmul.f32 %v9897, %v9959
  %v9988 = vrot.slane %v9960, 2
  %v9989 = vrot.slane %v9961, 2
  %v9990 = vsel %vm801, %v9988, %v9989
  %v9991 = vrot.slane %v9962, 2
  %v9992 = vrot.slane %v9963, 2
  %v9993 = vsel %vm801, %v9991, %v9992
  %v9994 = vrot.slane %v9964, 2
  %v9995 = vrot.slane %v9965, 2
  %v9996 = vsel %vm801, %v9994, %v9995
  %v9997 = vrot.slane %v9966, 2
  %v9998 = vrot.slane %v9967, 2
  %v9999 = vsel %vm801, %v9997, %v9998
  %v10000 = vrot.slane %v9968, 2
  %v10001 = vrot.slane %v9969, 2
  %v10002 = vsel %vm801, %v10000, %v10001
  %v10003 = vrot.slane %v9970, 2
  %v10004 = vrot.slane %v9971, 2
  %v10005 = vsel %vm801, %v10003, %v10004
  %v10006 = vrot.slane %v9972, 2
  %v10007 = vrot.slane %v9973, 2
  %v10008 = vsel %vm801, %v10006, %v10007
  %v10016 = vadd.f32 %v9949, %v9990
  %v10017 = vadd.f32 %v9950, %v9993
  %v10018 = vadd.f32 %v9951, %v9996
  %v10019 = vadd.f32 %v9952, %v9999
  %v10020 = vadd.f32 %v9953, %v10002
  %v10021 = vadd.f32 %v9954, %v10005
  %v10022 = vadd.f32 %v9955, %v10008
  %v10023 = vlaneseq
  %v10024 = vshrl.u32 %v10023, 7
  %v10025 = vsub.s32 3, %v10024
  %v10026 = vrot.slane %v659, %v10025
  %v10027 = vmul.f32 %v9884, %v10026
  %v10028 = vmul.f32 %v9885, %v10026
  %v10029 = vmul.f32 %v9886, %v10026
  %v10030 = vmul.f32 %v9887, %v10026
  %v10031 = vmul.f32 %v9888, %v10026
  %v10032 = vmul.f32 %v9889, %v10026
  %v10033 = vmul.f32 %v9890, %v10026
  %v10034 = vmul.f32 %v9891, %v10026
  %v10035 = vmul.f32 %v9892, %v10026
  %v10036 = vmul.f32 %v9893, %v10026
  %v10037 = vmul.f32 %v9894, %v10026
  %v10038 = vmul.f32 %v9895, %v10026
  %v10039 = vmul.f32 %v9896, %v10026
  %v10040 = vmul.f32 %v9897, %v10026
  %v10055 = vrot.slane %v10027, 3
  %v10056 = vrot.slane %v10028, 3
  %v10057 = vsel %vm869, %v10055, %v10056
  %v10058 = vrot.slane %v10029, 3
  %v10059 = vrot.slane %v10030, 3
  %v10060 = vsel %vm869, %v10058, %v10059
  %v10061 = vrot.slane %v10031, 3
  %v10062 = vrot.slane %v10032, 3
  %v10063 = vsel %vm869, %v10061, %v10062
  %v10064 = vrot.slane %v10033, 3
  %v10065 = vrot.slane %v10034, 3
  %v10066 = vsel %vm869, %v10064, %v10065
  %v10067 = vrot.slane %v10035, 3
  %v10068 = vrot.slane %v10036, 3
  %v10069 = vsel %vm869, %v10067, %v10068
  %v10070 = vrot.slane %v10037, 3
  %v10071 = vrot.slane %v10038, 3
  %v10072 = vsel %vm869, %v10070, %v10071
  %v10073 = vrot.slane %v10039, 3
  %v10074 = vrot.slane %v10040, 3
  %v10075 = vsel %vm869, %v10073, %v10074
  %v10083 = vadd.f32 %v10016, %v10057
  %v10084 = vadd.f32 %v10017, %v10060
  %v10085 = vadd.f32 %v10018, %v10063
  %v10086 = vadd.f32 %v10019, %v10066
  %v10087 = vadd.f32 %v10020, %v10069
  %v10088 = vadd.f32 %v10021, %v10072
  %v10089 = vadd.f32 %v10022, %v10075
  %v10090 = vlaneseq
  %v10091 = vshrl.u32 %v10090, 7
  %v10092 = vsub.s32 4, %v10091
  %v10093 = vrot.slane %v659, %v10092
  %v10094 = vmul.f32 %v9884, %v10093
  %v10095 = vmul.f32 %v9885, %v10093
  %v10096 = vmul.f32 %v9886, %v10093
  %v10097 = vmul.f32 %v9887, %v10093
  %v10098 = vmul.f32 %v9888, %v10093
  %v10099 = vmul.f32 %v9889, %v10093
  %v10100 = vmul.f32 %v9890, %v10093
  %v10101 = vmul.f32 %v9891, %v10093
  %v10102 = vmul.f32 %v9892, %v10093
  %v10103 = vmul.f32 %v9893, %v10093
  %v10104 = vmul.f32 %v9894, %v10093
  %v10105 = vmul.f32 %v9895, %v10093
  %v10106 = vmul.f32 %v9896, %v10093
  %v10107 = vmul.f32 %v9897, %v10093
  %v10122 = vrot.slane %v10094, 4
  %v10123 = vrot.slane %v10095, 4
  %v10124 = vsel %vm937, %v10122, %v10123
  %v10125 = vrot.slane %v10096, 4
  %v10126 = vrot.slane %v10097, 4
  %v10127 = vsel %vm937, %v10125, %v10126
  %v10128 = vrot.slane %v10098, 4
  %v10129 = vrot.slane %v10099, 4
  %v10130 = vsel %vm937, %v10128, %v10129
  %v10131 = vrot.slane %v10100, 4
  %v10132 = vrot.slane %v10101, 4
  %v10133 = vsel %vm937, %v10131, %v10132
  %v10134 = vrot.slane %v10102, 4
  %v10135 = vrot.slane %v10103, 4
  %v10136 = vsel %vm937, %v10134, %v10135
  %v10137 = vrot.slane %v10104, 4
  %v10138 = vrot.slane %v10105, 4
  %v10139 = vsel %vm937, %v10137, %v10138
  %v10140 = vrot.slane %v10106, 4
  %v10141 = vrot.slane %v10107, 4
  %v10142 = vsel %vm937, %v10140, %v10141
  %v10150 = vadd.f32 %v10083, %v10124
  %v10151 = vadd.f32 %v10084, %v10127
  %v10152 = vadd.f32 %v10085, %v10130
  %v10153 = vadd.f32 %v10086, %v10133
  %v10154 = vadd.f32 %v10087, %v10136
  %v10155 = vadd.f32 %v10088, %v10139
  %v10156 = vadd.f32 %v10089, %v10142
  %v10157 = vlaneseq
  %v10158 = vshrl.u32 %v10157, 7
  %v10159 = vsub.s32 0, %v10158
  %v10160 = vrot.slane %v668, %v10159
  %v10161 = vmul.f32 %v9886, %v10160
  %v10162 = vmul.f32 %v9888, %v10160
  %v10163 = vmul.f32 %v9890, %v10160
  %v10164 = vmul.f32 %v9892, %v10160
  %v10165 = vmul.f32 %v9894, %v10160
  %v10166 = vmul.f32 %v9896, %v10160
  %v10167 = vmul.f32 %v9898, %v10160
  %v10168 = vadd.f32 %v10150, %v10161
  %v10169 = vadd.f32 %v10151, %v10162
  %v10170 = vadd.f32 %v10152, %v10163
  %v10171 = vadd.f32 %v10153, %v10164
  %v10172 = vadd.f32 %v10154, %v10165
  %v10173 = vadd.f32 %v10155, %v10166
  %v10174 = vadd.f32 %v10156, %v10167
  %v10175 = vlaneseq
  %v10176 = vshrl.u32 %v10175, 7
  %v10177 = vsub.s32 1, %v10176
  %v10178 = vrot.slane %v668, %v10177
  %v10179 = vmul.f32 %v9886, %v10178
  %v10180 = vmul.f32 %v9888, %v10178
  %v10181 = vmul.f32 %v9890, %v10178
  %v10182 = vmul.f32 %v9892, %v10178
  %v10183 = vmul.f32 %v9894, %v10178
  %v10184 = vmul.f32 %v9896, %v10178
  %v10185 = vmul.f32 %v9898, %v10178
  %v10193 = vrot.slane %v10179, 1
  %v10194 = vrot.slane %v10180, 1
  %v10195 = vrot.slane %v10181, 1
  %v10196 = vrot.slane %v10182, 1
  %v10197 = vrot.slane %v10183, 1
  %v10198 = vrot.slane %v10184, 1
  %v10199 = vrot.slane %v10185, 1
  %v10207 = vadd.f32 %v10168, %v10193
  %v10208 = vadd.f32 %v10169, %v10194
  %v10209 = vadd.f32 %v10170, %v10195
  %v10210 = vadd.f32 %v10171, %v10196
  %v10211 = vadd.f32 %v10172, %v10197
  %v10212 = vadd.f32 %v10173, %v10198
  %v10213 = vadd.f32 %v10174, %v10199
  %v10214 = vlaneseq
  %v10215 = vshrl.u32 %v10214, 7
  %v10216 = vsub.s32 2, %v10215
  %v10217 = vrot.slane %v668, %v10216
  %v10218 = vmul.f32 %v9886, %v10217
  %v10219 = vmul.f32 %v9887, %v10217
  %v10220 = vmul.f32 %v9888, %v10217
  %v10221 = vmul.f32 %v9889, %v10217
  %v10222 = vmul.f32 %v9890, %v10217
  %v10223 = vmul.f32 %v9891, %v10217
  %v10224 = vmul.f32 %v9892, %v10217
  %v10225 = vmul.f32 %v9893, %v10217
  %v10226 = vmul.f32 %v9894, %v10217
  %v10227 = vmul.f32 %v9895, %v10217
  %v10228 = vmul.f32 %v9896, %v10217
  %v10229 = vmul.f32 %v9897, %v10217
  %v10230 = vmul.f32 %v9898, %v10217
  %v10231 = vmul.f32 %v9899, %v10217
  %v10246 = vrot.slane %v10218, 2
  %v10247 = vrot.slane %v10219, 2
  %v10248 = vsel %vm801, %v10246, %v10247
  %v10249 = vrot.slane %v10220, 2
  %v10250 = vrot.slane %v10221, 2
  %v10251 = vsel %vm801, %v10249, %v10250
  %v10252 = vrot.slane %v10222, 2
  %v10253 = vrot.slane %v10223, 2
  %v10254 = vsel %vm801, %v10252, %v10253
  %v10255 = vrot.slane %v10224, 2
  %v10256 = vrot.slane %v10225, 2
  %v10257 = vsel %vm801, %v10255, %v10256
  %v10258 = vrot.slane %v10226, 2
  %v10259 = vrot.slane %v10227, 2
  %v10260 = vsel %vm801, %v10258, %v10259
  %v10261 = vrot.slane %v10228, 2
  %v10262 = vrot.slane %v10229, 2
  %v10263 = vsel %vm801, %v10261, %v10262
  %v10264 = vrot.slane %v10230, 2
  %v10265 = vrot.slane %v10231, 2
  %v10266 = vsel %vm801, %v10264, %v10265
  %v10274 = vadd.f32 %v10207, %v10248
  %v10275 = vadd.f32 %v10208, %v10251
  %v10276 = vadd.f32 %v10209, %v10254
  %v10277 = vadd.f32 %v10210, %v10257
  %v10278 = vadd.f32 %v10211, %v10260
  %v10279 = vadd.f32 %v10212, %v10263
  %v10280 = vadd.f32 %v10213, %v10266
  %v10281 = vlaneseq
  %v10282 = vshrl.u32 %v10281, 7
  %v10283 = vsub.s32 3, %v10282
  %v10284 = vrot.slane %v668, %v10283
  %v10285 = vmul.f32 %v9886, %v10284
  %v10286 = vmul.f32 %v9887, %v10284
  %v10287 = vmul.f32 %v9888, %v10284
  %v10288 = vmul.f32 %v9889, %v10284
  %v10289 = vmul.f32 %v9890, %v10284
  %v10290 = vmul.f32 %v9891, %v10284
  %v10291 = vmul.f32 %v9892, %v10284
  %v10292 = vmul.f32 %v9893, %v10284
  %v10293 = vmul.f32 %v9894, %v10284
  %v10294 = vmul.f32 %v9895, %v10284
  %v10295 = vmul.f32 %v9896, %v10284
  %v10296 = vmul.f32 %v9897, %v10284
  %v10297 = vmul.f32 %v9898, %v10284
  %v10298 = vmul.f32 %v9899, %v10284
  %v10313 = vrot.slane %v10285, 3
  %v10314 = vrot.slane %v10286, 3
  %v10315 = vsel %vm869, %v10313, %v10314
  %v10316 = vrot.slane %v10287, 3
  %v10317 = vrot.slane %v10288, 3
  %v10318 = vsel %vm869, %v10316, %v10317
  %v10319 = vrot.slane %v10289, 3
  %v10320 = vrot.slane %v10290, 3
  %v10321 = vsel %vm869, %v10319, %v10320
  %v10322 = vrot.slane %v10291, 3
  %v10323 = vrot.slane %v10292, 3
  %v10324 = vsel %vm869, %v10322, %v10323
  %v10325 = vrot.slane %v10293, 3
  %v10326 = vrot.slane %v10294, 3
  %v10327 = vsel %vm869, %v10325, %v10326
  %v10328 = vrot.slane %v10295, 3
  %v10329 = vrot.slane %v10296, 3
  %v10330 = vsel %vm869, %v10328, %v10329
  %v10331 = vrot.slane %v10297, 3
  %v10332 = vrot.slane %v10298, 3
  %v10333 = vsel %vm869, %v10331, %v10332
  %v10341 = vadd.f32 %v10274, %v10315
  %v10342 = vadd.f32 %v10275, %v10318
  %v10343 = vadd.f32 %v10276, %v10321
  %v10344 = vadd.f32 %v10277, %v10324
  %v10345 = vadd.f32 %v10278, %v10327
  %v10346 = vadd.f32 %v10279, %v10330
  %v10347 = vadd.f32 %v10280, %v10333
  %v10348 = vlaneseq
  %v10349 = vshrl.u32 %v10348, 7
  %v10350 = vsub.s32 4, %v10349
  %v10351 = vrot.slane %v668, %v10350
  %v10352 = vmul.f32 %v9886, %v10351
  %v10353 = vmul.f32 %v9887, %v10351
  %v10354 = vmul.f32 %v9888, %v10351
  %v10355 = vmul.f32 %v9889, %v10351
  %v10356 = vmul.f32 %v9890, %v10351
  %v10357 = vmul.f32 %v9891, %v10351
  %v10358 = vmul.f32 %v9892, %v10351
  %v10359 = vmul.f32 %v9893, %v10351
  %v10360 = vmul.f32 %v9894, %v10351
  %v10361 = vmul.f32 %v9895, %v10351
  %v10362 = vmul.f32 %v9896, %v10351
  %v10363 = vmul.f32 %v9897, %v10351
  %v10364 = vmul.f32 %v9898, %v10351
  %v10365 = vmul.f32 %v9899, %v10351
  %v10380 = vrot.slane %v10352, 4
  %v10381 = vrot.slane %v10353, 4
  %v10382 = vsel %vm937, %v10380, %v10381
  %v10383 = vrot.slane %v10354, 4
  %v10384 = vrot.slane %v10355, 4
  %v10385 = vsel %vm937, %v10383, %v10384
  %v10386 = vrot.slane %v10356, 4
  %v10387 = vrot.slane %v10357, 4
  %v10388 = vsel %vm937, %v10386, %v10387
  %v10389 = vrot.slane %v10358, 4
  %v10390 = vrot.slane %v10359, 4
  %v10391 = vsel %vm937, %v10389, %v10390
  %v10392 = vrot.slane %v10360, 4
  %v10393 = vrot.slane %v10361, 4
  %v10394 = vsel %vm937, %v10392, %v10393
  %v10395 = vrot.slane %v10362, 4
  %v10396 = vrot.slane %v10363, 4
  %v10397 = vsel %vm937, %v10395, %v10396
  %v10398 = vrot.slane %v10364, 4
  %v10399 = vrot.slane %v10365, 4
  %v10400 = vsel %vm937, %v10398, %v10399
  %v10408 = vadd.f32 %v10341, %v10382
  %v10409 = vadd.f32 %v10342, %v10385
  %v10410 = vadd.f32 %v10343, %v10388
  %v10411 = vadd.f32 %v10344, %v10391
  %v10412 = vadd.f32 %v10345, %v10394
  %v10413 = vadd.f32 %v10346, %v10397
  %v10414 = vadd.f32 %v10347, %v10400
  %v10415 = vlaneseq
  %v10416 = vshrl.u32 %v10415, 7
  %v10417 = vsub.s32 0, %v10416
  %v10418 = vrot.slane %v677, %v10417
  %v10419 = vmul.f32 %v9888, %v10418
  %v10420 = vmul.f32 %v9890, %v10418
  %v10421 = vmul.f32 %v9892, %v10418
  %v10422 = vmul.f32 %v9894, %v10418
  %v10423 = vmul.f32 %v9896, %v10418
  %v10424 = vmul.f32 %v9898, %v10418
  %v10425 = vmul.f32 %v9900, %v10418
  %v10426 = vadd.f32 %v10408, %v10419
  %v10427 = vadd.f32 %v10409, %v10420
  %v10428 = vadd.f32 %v10410, %v10421
  %v10429 = vadd.f32 %v10411, %v10422
  %v10430 = vadd.f32 %v10412, %v10423
  %v10431 = vadd.f32 %v10413, %v10424
  %v10432 = vadd.f32 %v10414, %v10425
  %v10433 = vlaneseq
  %v10434 = vshrl.u32 %v10433, 7
  %v10435 = vsub.s32 1, %v10434
  %v10436 = vrot.slane %v677, %v10435
  %v10437 = vmul.f32 %v9888, %v10436
  %v10438 = vmul.f32 %v9890, %v10436
  %v10439 = vmul.f32 %v9892, %v10436
  %v10440 = vmul.f32 %v9894, %v10436
  %v10441 = vmul.f32 %v9896, %v10436
  %v10442 = vmul.f32 %v9898, %v10436
  %v10443 = vmul.f32 %v9900, %v10436
  %v10451 = vrot.slane %v10437, 1
  %v10452 = vrot.slane %v10438, 1
  %v10453 = vrot.slane %v10439, 1
  %v10454 = vrot.slane %v10440, 1
  %v10455 = vrot.slane %v10441, 1
  %v10456 = vrot.slane %v10442, 1
  %v10457 = vrot.slane %v10443, 1
  %v10465 = vadd.f32 %v10426, %v10451
  %v10466 = vadd.f32 %v10427, %v10452
  %v10467 = vadd.f32 %v10428, %v10453
  %v10468 = vadd.f32 %v10429, %v10454
  %v10469 = vadd.f32 %v10430, %v10455
  %v10470 = vadd.f32 %v10431, %v10456
  %v10471 = vadd.f32 %v10432, %v10457
  %v10472 = vlaneseq
  %v10473 = vshrl.u32 %v10472, 7
  %v10474 = vsub.s32 2, %v10473
  %v10475 = vrot.slane %v677, %v10474
  %v10476 = vmul.f32 %v9888, %v10475
  %v10477 = vmul.f32 %v9889, %v10475
  %v10478 = vmul.f32 %v9890, %v10475
  %v10479 = vmul.f32 %v9891, %v10475
  %v10480 = vmul.f32 %v9892, %v10475
  %v10481 = vmul.f32 %v9893, %v10475
  %v10482 = vmul.f32 %v9894, %v10475
  %v10483 = vmul.f32 %v9895, %v10475
  %v10484 = vmul.f32 %v9896, %v10475
  %v10485 = vmul.f32 %v9897, %v10475
  %v10486 = vmul.f32 %v9898, %v10475
  %v10487 = vmul.f32 %v9899, %v10475
  %v10488 = vmul.f32 %v9900, %v10475
  %v10489 = vmul.f32 %v9901, %v10475
  %v10504 = vrot.slane %v10476, 2
  %v10505 = vrot.slane %v10477, 2
  %v10506 = vsel %vm801, %v10504, %v10505
  %v10507 = vrot.slane %v10478, 2
  %v10508 = vrot.slane %v10479, 2
  %v10509 = vsel %vm801, %v10507, %v10508
  %v10510 = vrot.slane %v10480, 2
  %v10511 = vrot.slane %v10481, 2
  %v10512 = vsel %vm801, %v10510, %v10511
  %v10513 = vrot.slane %v10482, 2
  %v10514 = vrot.slane %v10483, 2
  %v10515 = vsel %vm801, %v10513, %v10514
  %v10516 = vrot.slane %v10484, 2
  %v10517 = vrot.slane %v10485, 2
  %v10518 = vsel %vm801, %v10516, %v10517
  %v10519 = vrot.slane %v10486, 2
  %v10520 = vrot.slane %v10487, 2
  %v10521 = vsel %vm801, %v10519, %v10520
  %v10522 = vrot.slane %v10488, 2
  %v10523 = vrot.slane %v10489, 2
  %v10524 = vsel %vm801, %v10522, %v10523
  %v10532 = vadd.f32 %v10465, %v10506
  %v10533 = vadd.f32 %v10466, %v10509
  %v10534 = vadd.f32 %v10467, %v10512
  %v10535 = vadd.f32 %v10468, %v10515
  %v10536 = vadd.f32 %v10469, %v10518
  %v10537 = vadd.f32 %v10470, %v10521
  %v10538 = vadd.f32 %v10471, %v10524
  %v10539 = vlaneseq
  %v10540 = vshrl.u32 %v10539, 7
  %v10541 = vsub.s32 3, %v10540
  %v10542 = vrot.slane %v677, %v10541
  %v10543 = vmul.f32 %v9888, %v10542
  %v10544 = vmul.f32 %v9889, %v10542
  %v10545 = vmul.f32 %v9890, %v10542
  %v10546 = vmul.f32 %v9891, %v10542
  %v10547 = vmul.f32 %v9892, %v10542
  %v10548 = vmul.f32 %v9893, %v10542
  %v10549 = vmul.f32 %v9894, %v10542
  %v10550 = vmul.f32 %v9895, %v10542
  %v10551 = vmul.f32 %v9896, %v10542
  %v10552 = vmul.f32 %v9897, %v10542
  %v10553 = vmul.f32 %v9898, %v10542
  %v10554 = vmul.f32 %v9899, %v10542
  %v10555 = vmul.f32 %v9900, %v10542
  %v10556 = vmul.f32 %v9901, %v10542
  %v10571 = vrot.slane %v10543, 3
  %v10572 = vrot.slane %v10544, 3
  %v10573 = vsel %vm869, %v10571, %v10572
  %v10574 = vrot.slane %v10545, 3
  %v10575 = vrot.slane %v10546, 3
  %v10576 = vsel %vm869, %v10574, %v10575
  %v10577 = vrot.slane %v10547, 3
  %v10578 = vrot.slane %v10548, 3
  %v10579 = vsel %vm869, %v10577, %v10578
  %v10580 = vrot.slane %v10549, 3
  %v10581 = vrot.slane %v10550, 3
  %v10582 = vsel %vm869, %v10580, %v10581
  %v10583 = vrot.slane %v10551, 3
  %v10584 = vrot.slane %v10552, 3
  %v10585 = vsel %vm869, %v10583, %v10584
  %v10586 = vrot.slane %v10553, 3
  %v10587 = vrot.slane %v10554, 3
  %v10588 = vsel %vm869, %v10586, %v10587
  %v10589 = vrot.slane %v10555, 3
  %v10590 = vrot.slane %v10556, 3
  %v10591 = vsel %vm869, %v10589, %v10590
  %v10599 = vadd.f32 %v10532, %v10573
  %v10600 = vadd.f32 %v10533, %v10576
  %v10601 = vadd.f32 %v10534, %v10579
  %v10602 = vadd.f32 %v10535, %v10582
  %v10603 = vadd.f32 %v10536, %v10585
  %v10604 = vadd.f32 %v10537, %v10588
  %v10605 = vadd.f32 %v10538, %v10591
  %v10606 = vlaneseq
  %v10607 = vshrl.u32 %v10606, 7
  %v10608 = vsub.s32 4, %v10607
  %v10609 = vrot.slane %v677, %v10608
  %v10610 = vmul.f32 %v9888, %v10609
  %v10611 = vmul.f32 %v9889, %v10609
  %v10612 = vmul.f32 %v9890, %v10609
  %v10613 = vmul.f32 %v9891, %v10609
  %v10614 = vmul.f32 %v9892, %v10609
  %v10615 = vmul.f32 %v9893, %v10609
  %v10616 = vmul.f32 %v9894, %v10609
  %v10617 = vmul.f32 %v9895, %v10609
  %v10618 = vmul.f32 %v9896, %v10609
  %v10619 = vmul.f32 %v9897, %v10609
  %v10620 = vmul.f32 %v9898, %v10609
  %v10621 = vmul.f32 %v9899, %v10609
  %v10622 = vmul.f32 %v9900, %v10609
  %v10623 = vmul.f32 %v9901, %v10609
  %v10638 = vrot.slane %v10610, 4
  %v10639 = vrot.slane %v10611, 4
  %v10640 = vsel %vm937, %v10638, %v10639
  %v10641 = vrot.slane %v10612, 4
  %v10642 = vrot.slane %v10613, 4
  %v10643 = vsel %vm937, %v10641, %v10642
  %v10644 = vrot.slane %v10614, 4
  %v10645 = vrot.slane %v10615, 4
  %v10646 = vsel %vm937, %v10644, %v10645
  %v10647 = vrot.slane %v10616, 4
  %v10648 = vrot.slane %v10617, 4
  %v10649 = vsel %vm937, %v10647, %v10648
  %v10650 = vrot.slane %v10618, 4
  %v10651 = vrot.slane %v10619, 4
  %v10652 = vsel %vm937, %v10650, %v10651
  %v10653 = vrot.slane %v10620, 4
  %v10654 = vrot.slane %v10621, 4
  %v10655 = vsel %vm937, %v10653, %v10654
  %v10656 = vrot.slane %v10622, 4
  %v10657 = vrot.slane %v10623, 4
  %v10658 = vsel %vm937, %v10656, %v10657
  %v10666 = vadd.f32 %v10599, %v10640
  %v10667 = vadd.f32 %v10600, %v10643
  %v10668 = vadd.f32 %v10601, %v10646
  %v10669 = vadd.f32 %v10602, %v10649
  %v10670 = vadd.f32 %v10603, %v10652
  %v10671 = vadd.f32 %v10604, %v10655
  %v10672 = vadd.f32 %v10605, %v10658
  %v10673 = vlaneseq
  %v10674 = vshrl.u32 %v10673, 7
  %v10675 = vsub.s32 0, %v10674
  %v10676 = vrot.slane %v686, %v10675
  %v10677 = vmul.f32 %v9890, %v10676
  %v10678 = vmul.f32 %v9892, %v10676
  %v10679 = vmul.f32 %v9894, %v10676
  %v10680 = vmul.f32 %v9896, %v10676
  %v10681 = vmul.f32 %v9898, %v10676
  %v10682 = vmul.f32 %v9900, %v10676
  %v10683 = vmul.f32 %v9902, %v10676
  %v10684 = vadd.f32 %v10666, %v10677
  %v10685 = vadd.f32 %v10667, %v10678
  %v10686 = vadd.f32 %v10668, %v10679
  %v10687 = vadd.f32 %v10669, %v10680
  %v10688 = vadd.f32 %v10670, %v10681
  %v10689 = vadd.f32 %v10671, %v10682
  %v10690 = vadd.f32 %v10672, %v10683
  %v10691 = vlaneseq
  %v10692 = vshrl.u32 %v10691, 7
  %v10693 = vsub.s32 1, %v10692
  %v10694 = vrot.slane %v686, %v10693
  %v10695 = vmul.f32 %v9890, %v10694
  %v10696 = vmul.f32 %v9892, %v10694
  %v10697 = vmul.f32 %v9894, %v10694
  %v10698 = vmul.f32 %v9896, %v10694
  %v10699 = vmul.f32 %v9898, %v10694
  %v10700 = vmul.f32 %v9900, %v10694
  %v10701 = vmul.f32 %v9902, %v10694
  %v10709 = vrot.slane %v10695, 1
  %v10710 = vrot.slane %v10696, 1
  %v10711 = vrot.slane %v10697, 1
  %v10712 = vrot.slane %v10698, 1
  %v10713 = vrot.slane %v10699, 1
  %v10714 = vrot.slane %v10700, 1
  %v10715 = vrot.slane %v10701, 1
  %v10723 = vadd.f32 %v10684, %v10709
  %v10724 = vadd.f32 %v10685, %v10710
  %v10725 = vadd.f32 %v10686, %v10711
  %v10726 = vadd.f32 %v10687, %v10712
  %v10727 = vadd.f32 %v10688, %v10713
  %v10728 = vadd.f32 %v10689, %v10714
  %v10729 = vadd.f32 %v10690, %v10715
  %v10730 = vlaneseq
  %v10731 = vshrl.u32 %v10730, 7
  %v10732 = vsub.s32 2, %v10731
  %v10733 = vrot.slane %v686, %v10732
  %v10734 = vmul.f32 %v9890, %v10733
  %v10735 = vmul.f32 %v9891, %v10733
  %v10736 = vmul.f32 %v9892, %v10733
  %v10737 = vmul.f32 %v9893, %v10733
  %v10738 = vmul.f32 %v9894, %v10733
  %v10739 = vmul.f32 %v9895, %v10733
  %v10740 = vmul.f32 %v9896, %v10733
  %v10741 = vmul.f32 %v9897, %v10733
  %v10742 = vmul.f32 %v9898, %v10733
  %v10743 = vmul.f32 %v9899, %v10733
  %v10744 = vmul.f32 %v9900, %v10733
  %v10745 = vmul.f32 %v9901, %v10733
  %v10746 = vmul.f32 %v9902, %v10733
  %v10747 = vmul.f32 %v9903, %v10733
  %v10762 = vrot.slane %v10734, 2
  %v10763 = vrot.slane %v10735, 2
  %v10764 = vsel %vm801, %v10762, %v10763
  %v10765 = vrot.slane %v10736, 2
  %v10766 = vrot.slane %v10737, 2
  %v10767 = vsel %vm801, %v10765, %v10766
  %v10768 = vrot.slane %v10738, 2
  %v10769 = vrot.slane %v10739, 2
  %v10770 = vsel %vm801, %v10768, %v10769
  %v10771 = vrot.slane %v10740, 2
  %v10772 = vrot.slane %v10741, 2
  %v10773 = vsel %vm801, %v10771, %v10772
  %v10774 = vrot.slane %v10742, 2
  %v10775 = vrot.slane %v10743, 2
  %v10776 = vsel %vm801, %v10774, %v10775
  %v10777 = vrot.slane %v10744, 2
  %v10778 = vrot.slane %v10745, 2
  %v10779 = vsel %vm801, %v10777, %v10778
  %v10780 = vrot.slane %v10746, 2
  %v10781 = vrot.slane %v10747, 2
  %v10782 = vsel %vm801, %v10780, %v10781
  %v10790 = vadd.f32 %v10723, %v10764
  %v10791 = vadd.f32 %v10724, %v10767
  %v10792 = vadd.f32 %v10725, %v10770
  %v10793 = vadd.f32 %v10726, %v10773
  %v10794 = vadd.f32 %v10727, %v10776
  %v10795 = vadd.f32 %v10728, %v10779
  %v10796 = vadd.f32 %v10729, %v10782
  %v10797 = vlaneseq
  %v10798 = vshrl.u32 %v10797, 7
  %v10799 = vsub.s32 3, %v10798
  %v10800 = vrot.slane %v686, %v10799
  %v10801 = vmul.f32 %v9890, %v10800
  %v10802 = vmul.f32 %v9891, %v10800
  %v10803 = vmul.f32 %v9892, %v10800
  %v10804 = vmul.f32 %v9893, %v10800
  %v10805 = vmul.f32 %v9894, %v10800
  %v10806 = vmul.f32 %v9895, %v10800
  %v10807 = vmul.f32 %v9896, %v10800
  %v10808 = vmul.f32 %v9897, %v10800
  %v10809 = vmul.f32 %v9898, %v10800
  %v10810 = vmul.f32 %v9899, %v10800
  %v10811 = vmul.f32 %v9900, %v10800
  %v10812 = vmul.f32 %v9901, %v10800
  %v10813 = vmul.f32 %v9902, %v10800
  %v10814 = vmul.f32 %v9903, %v10800
  %v10829 = vrot.slane %v10801, 3
  %v10830 = vrot.slane %v10802, 3
  %v10831 = vsel %vm869, %v10829, %v10830
  %v10832 = vrot.slane %v10803, 3
  %v10833 = vrot.slane %v10804, 3
  %v10834 = vsel %vm869, %v10832, %v10833
  %v10835 = vrot.slane %v10805, 3
  %v10836 = vrot.slane %v10806, 3
  %v10837 = vsel %vm869, %v10835, %v10836
  %v10838 = vrot.slane %v10807, 3
  %v10839 = vrot.slane %v10808, 3
  %v10840 = vsel %vm869, %v10838, %v10839
  %v10841 = vrot.slane %v10809, 3
  %v10842 = vrot.slane %v10810, 3
  %v10843 = vsel %vm869, %v10841, %v10842
  %v10844 = vrot.slane %v10811, 3
  %v10845 = vrot.slane %v10812, 3
  %v10846 = vsel %vm869, %v10844, %v10845
  %v10847 = vrot.slane %v10813, 3
  %v10848 = vrot.slane %v10814, 3
  %v10849 = vsel %vm869, %v10847, %v10848
  %v10857 = vadd.f32 %v10790, %v10831
  %v10858 = vadd.f32 %v10791, %v10834
  %v10859 = vadd.f32 %v10792, %v10837
  %v10860 = vadd.f32 %v10793, %v10840
  %v10861 = vadd.f32 %v10794, %v10843
  %v10862 = vadd.f32 %v10795, %v10846
  %v10863 = vadd.f32 %v10796, %v10849
  %v10864 = vlaneseq
  %v10865 = vshrl.u32 %v10864, 7
  %v10866 = vsub.s32 4, %v10865
  %v10867 = vrot.slane %v686, %v10866
  %v10868 = vmul.f32 %v9890, %v10867
  %v10869 = vmul.f32 %v9891, %v10867
  %v10870 = vmul.f32 %v9892, %v10867
  %v10871 = vmul.f32 %v9893, %v10867
  %v10872 = vmul.f32 %v9894, %v10867
  %v10873 = vmul.f32 %v9895, %v10867
  %v10874 = vmul.f32 %v9896, %v10867
  %v10875 = vmul.f32 %v9897, %v10867
  %v10876 = vmul.f32 %v9898, %v10867
  %v10877 = vmul.f32 %v9899, %v10867
  %v10878 = vmul.f32 %v9900, %v10867
  %v10879 = vmul.f32 %v9901, %v10867
  %v10880 = vmul.f32 %v9902, %v10867
  %v10881 = vmul.f32 %v9903, %v10867
  %v10896 = vrot.slane %v10868, 4
  %v10897 = vrot.slane %v10869, 4
  %v10898 = vsel %vm937, %v10896, %v10897
  %v10899 = vrot.slane %v10870, 4
  %v10900 = vrot.slane %v10871, 4
  %v10901 = vsel %vm937, %v10899, %v10900
  %v10902 = vrot.slane %v10872, 4
  %v10903 = vrot.slane %v10873, 4
  %v10904 = vsel %vm937, %v10902, %v10903
  %v10905 = vrot.slane %v10874, 4
  %v10906 = vrot.slane %v10875, 4
  %v10907 = vsel %vm937, %v10905, %v10906
  %v10908 = vrot.slane %v10876, 4
  %v10909 = vrot.slane %v10877, 4
  %v10910 = vsel %vm937, %v10908, %v10909
  %v10911 = vrot.slane %v10878, 4
  %v10912 = vrot.slane %v10879, 4
  %v10913 = vsel %vm937, %v10911, %v10912
  %v10914 = vrot.slane %v10880, 4
  %v10915 = vrot.slane %v10881, 4
  %v10916 = vsel %vm937, %v10914, %v10915
  %v10924 = vadd.f32 %v10857, %v10898
  %v10925 = vadd.f32 %v10858, %v10901
  %v10926 = vadd.f32 %v10859, %v10904
  %v10927 = vadd.f32 %v10860, %v10907
  %v10928 = vadd.f32 %v10861, %v10910
  %v10929 = vadd.f32 %v10862, %v10913
  %v10930 = vadd.f32 %v10863, %v10916
  %v10931 = vlaneseq
  %v10932 = vshrl.u32 %v10931, 7
  %v10933 = vsub.s32 0, %v10932
  %v10934 = vrot.slane %v695, %v10933
  %v10935 = vmul.f32 %v9892, %v10934
  %v10936 = vmul.f32 %v9894, %v10934
  %v10937 = vmul.f32 %v9896, %v10934
  %v10938 = vmul.f32 %v9898, %v10934
  %v10939 = vmul.f32 %v9900, %v10934
  %v10940 = vmul.f32 %v9902, %v10934
  %v10941 = vmul.f32 %v9904, %v10934
  %v10942 = vadd.f32 %v10924, %v10935
  %v10943 = vadd.f32 %v10925, %v10936
  %v10944 = vadd.f32 %v10926, %v10937
  %v10945 = vadd.f32 %v10927, %v10938
  %v10946 = vadd.f32 %v10928, %v10939
  %v10947 = vadd.f32 %v10929, %v10940
  %v10948 = vadd.f32 %v10930, %v10941
  %v10949 = vlaneseq
  %v10950 = vshrl.u32 %v10949, 7
  %v10951 = vsub.s32 1, %v10950
  %v10952 = vrot.slane %v695, %v10951
  %v10953 = vmul.f32 %v9892, %v10952
  %v10954 = vmul.f32 %v9894, %v10952
  %v10955 = vmul.f32 %v9896, %v10952
  %v10956 = vmul.f32 %v9898, %v10952
  %v10957 = vmul.f32 %v9900, %v10952
  %v10958 = vmul.f32 %v9902, %v10952
  %v10959 = vmul.f32 %v9904, %v10952
  %v10967 = vrot.slane %v10953, 1
  %v10968 = vrot.slane %v10954, 1
  %v10969 = vrot.slane %v10955, 1
  %v10970 = vrot.slane %v10956, 1
  %v10971 = vrot.slane %v10957, 1
  %v10972 = vrot.slane %v10958, 1
  %v10973 = vrot.slane %v10959, 1
  %v10981 = vadd.f32 %v10942, %v10967
  %v10982 = vadd.f32 %v10943, %v10968
  %v10983 = vadd.f32 %v10944, %v10969
  %v10984 = vadd.f32 %v10945, %v10970
  %v10985 = vadd.f32 %v10946, %v10971
  %v10986 = vadd.f32 %v10947, %v10972
  %v10987 = vadd.f32 %v10948, %v10973
  %v10988 = vlaneseq
  %v10989 = vshrl.u32 %v10988, 7
  %v10990 = vsub.s32 2, %v10989
  %v10991 = vrot.slane %v695, %v10990
  %v10992 = vmul.f32 %v9892, %v10991
  %v10993 = vmul.f32 %v9893, %v10991
  %v10994 = vmul.f32 %v9894, %v10991
  %v10995 = vmul.f32 %v9895, %v10991
  %v10996 = vmul.f32 %v9896, %v10991
  %v10997 = vmul.f32 %v9897, %v10991
  %v10998 = vmul.f32 %v9898, %v10991
  %v10999 = vmul.f32 %v9899, %v10991
  %v11000 = vmul.f32 %v9900, %v10991
  %v11001 = vmul.f32 %v9901, %v10991
  %v11002 = vmul.f32 %v9902, %v10991
  %v11003 = vmul.f32 %v9903, %v10991
  %v11004 = vmul.f32 %v9904, %v10991
  %v11005 = vmul.f32 %v9905, %v10991
  %v11020 = vrot.slane %v10992, 2
  %v11021 = vrot.slane %v10993, 2
  %v11022 = vsel %vm801, %v11020, %v11021
  %v11023 = vrot.slane %v10994, 2
  %v11024 = vrot.slane %v10995, 2
  %v11025 = vsel %vm801, %v11023, %v11024
  %v11026 = vrot.slane %v10996, 2
  %v11027 = vrot.slane %v10997, 2
  %v11028 = vsel %vm801, %v11026, %v11027
  %v11029 = vrot.slane %v10998, 2
  %v11030 = vrot.slane %v10999, 2
  %v11031 = vsel %vm801, %v11029, %v11030
  %v11032 = vrot.slane %v11000, 2
  %v11033 = vrot.slane %v11001, 2
  %v11034 = vsel %vm801, %v11032, %v11033
  %v11035 = vrot.slane %v11002, 2
  %v11036 = vrot.slane %v11003, 2
  %v11037 = vsel %vm801, %v11035, %v11036
  %v11038 = vrot.slane %v11004, 2
  %v11039 = vrot.slane %v11005, 2
  %v11040 = vsel %vm801, %v11038, %v11039
  %v11048 = vadd.f32 %v10981, %v11022
  %v11049 = vadd.f32 %v10982, %v11025
  %v11050 = vadd.f32 %v10983, %v11028
  %v11051 = vadd.f32 %v10984, %v11031
  %v11052 = vadd.f32 %v10985, %v11034
  %v11053 = vadd.f32 %v10986, %v11037
  %v11054 = vadd.f32 %v10987, %v11040
  %v11055 = vlaneseq
  %v11056 = vshrl.u32 %v11055, 7
  %v11057 = vsub.s32 3, %v11056
  %v11058 = vrot.slane %v695, %v11057
  %v11059 = vmul.f32 %v9892, %v11058
  %v11060 = vmul.f32 %v9893, %v11058
  %v11061 = vmul.f32 %v9894, %v11058
  %v11062 = vmul.f32 %v9895, %v11058
  %v11063 = vmul.f32 %v9896, %v11058
  %v11064 = vmul.f32 %v9897, %v11058
  %v11065 = vmul.f32 %v9898, %v11058
  %v11066 = vmul.f32 %v9899, %v11058
  %v11067 = vmul.f32 %v9900, %v11058
  %v11068 = vmul.f32 %v9901, %v11058
  %v11069 = vmul.f32 %v9902, %v11058
  %v11070 = vmul.f32 %v9903, %v11058
  %v11071 = vmul.f32 %v9904, %v11058
  %v11072 = vmul.f32 %v9905, %v11058
  %v11087 = vrot.slane %v11059, 3
  %v11088 = vrot.slane %v11060, 3
  %v11089 = vsel %vm869, %v11087, %v11088
  %v11090 = vrot.slane %v11061, 3
  %v11091 = vrot.slane %v11062, 3
  %v11092 = vsel %vm869, %v11090, %v11091
  %v11093 = vrot.slane %v11063, 3
  %v11094 = vrot.slane %v11064, 3
  %v11095 = vsel %vm869, %v11093, %v11094
  %v11096 = vrot.slane %v11065, 3
  %v11097 = vrot.slane %v11066, 3
  %v11098 = vsel %vm869, %v11096, %v11097
  %v11099 = vrot.slane %v11067, 3
  %v11100 = vrot.slane %v11068, 3
  %v11101 = vsel %vm869, %v11099, %v11100
  %v11102 = vrot.slane %v11069, 3
  %v11103 = vrot.slane %v11070, 3
  %v11104 = vsel %vm869, %v11102, %v11103
  %v11105 = vrot.slane %v11071, 3
  %v11106 = vrot.slane %v11072, 3
  %v11107 = vsel %vm869, %v11105, %v11106
  %v11115 = vadd.f32 %v11048, %v11089
  %v11116 = vadd.f32 %v11049, %v11092
  %v11117 = vadd.f32 %v11050, %v11095
  %v11118 = vadd.f32 %v11051, %v11098
  %v11119 = vadd.f32 %v11052, %v11101
  %v11120 = vadd.f32 %v11053, %v11104
  %v11121 = vadd.f32 %v11054, %v11107
  %v11122 = vlaneseq
  %v11123 = vshrl.u32 %v11122, 7
  %v11124 = vsub.s32 4, %v11123
  %v11125 = vrot.slane %v695, %v11124
  %v11126 = vmul.f32 %v9892, %v11125
  %v11127 = vmul.f32 %v9893, %v11125
  %v11128 = vmul.f32 %v9894, %v11125
  %v11129 = vmul.f32 %v9895, %v11125
  %v11130 = vmul.f32 %v9896, %v11125
  %v11131 = vmul.f32 %v9897, %v11125
  %v11132 = vmul.f32 %v9898, %v11125
  %v11133 = vmul.f32 %v9899, %v11125
  %v11134 = vmul.f32 %v9900, %v11125
  %v11135 = vmul.f32 %v9901, %v11125
  %v11136 = vmul.f32 %v9902, %v11125
  %v11137 = vmul.f32 %v9903, %v11125
  %v11138 = vmul.f32 %v9904, %v11125
  %v11139 = vmul.f32 %v9905, %v11125
  %v11154 = vrot.slane %v11126, 4
  %v11155 = vrot.slane %v11127, 4
  %v11156 = vsel %vm937, %v11154, %v11155
  %v11157 = vrot.slane %v11128, 4
  %v11158 = vrot.slane %v11129, 4
  %v11159 = vsel %vm937, %v11157, %v11158
  %v11160 = vrot.slane %v11130, 4
  %v11161 = vrot.slane %v11131, 4
  %v11162 = vsel %vm937, %v11160, %v11161
  %v11163 = vrot.slane %v11132, 4
  %v11164 = vrot.slane %v11133, 4
  %v11165 = vsel %vm937, %v11163, %v11164
  %v11166 = vrot.slane %v11134, 4
  %v11167 = vrot.slane %v11135, 4
  %v11168 = vsel %vm937, %v11166, %v11167
  %v11169 = vrot.slane %v11136, 4
  %v11170 = vrot.slane %v11137, 4
  %v11171 = vsel %vm937, %v11169, %v11170
  %v11172 = vrot.slane %v11138, 4
  %v11173 = vrot.slane %v11139, 4
  %v11174 = vsel %vm937, %v11172, %v11173
  %v11182 = vadd.f32 %v11115, %v11156
  %v11183 = vadd.f32 %v11116, %v11159
  %v11184 = vadd.f32 %v11117, %v11162
  %v11185 = vadd.f32 %v11118, %v11165
  %v11186 = vadd.f32 %v11119, %v11168
  %v11187 = vadd.f32 %v11120, %v11171
  %v11188 = vadd.f32 %v11121, %v11174
  %11189 = vst [vmem:[%s2 + $0x38] sm:$0x7f] %v11182
  %11190 = vst [vmem:[%s2 + $0x80] sm:$0x7f] %v11183
  %11191 = vst [vmem:[%s2 + $0xc8] sm:$0x7f] %v11184
  %11192 = vst [vmem:[%s2 + $0x110] sm:$0x7f] %v11185
  %11193 = vst [vmem:[%s2 + $0x158] sm:$0x7f] %v11186
  %11194 = vst [vmem:[%s2 + $0x1a0] sm:$0x7f] %v11187
  %11195 = vst [vmem:[%s2 + $0x1e8] sm:$0x7f] %v11188
  %v11196 = vld [vmem:[#allocation2 + $0x40] sm:$0xff]
  %v11197 = vld [vmem:[#allocation2 + $0x88] sm:$0x7]
  %v11198 = vld [vmem:[#allocation2 + $0xd0] sm:$0xff]
  %v11199 = vld [vmem:[#allocation2 + $0x118] sm:$0x7]
  %v11200 = vld [vmem:[#allocation2 + $0x160] sm:$0xff]
  %v11201 = vld [vmem:[#allocation2 + $0x1a8] sm:$0x7]
  %v11202 = vld [vmem:[#allocation2 + $0x1f0] sm:$0xff]
  %v11203 = vld [vmem:[#allocation2 + $0x238] sm:$0x7]
  %v11204 = vld [vmem:[#allocation2 + $0x280] sm:$0xff]
  %v11205 = vld [vmem:[#allocation2 + $0x2c8] sm:$0x7]
  %v11206 = vld [vmem:[#allocation2 + $0x310] sm:$0xff]
  %v11207 = vld [vmem:[#allocation2 + $0x358] sm:$0x7]
  %v11208 = vld [vmem:[#allocation2 + $0x3a0] sm:$0xff]
  %v11209 = vld [vmem:[#allocation2 + $0x3e8] sm:$0x7]
  %v11210 = vld [vmem:[#allocation2 + $0x430] sm:$0xff]
  %v11211 = vld [vmem:[#allocation2 + $0x478] sm:$0x7]
  %v11212 = vld [vmem:[#allocation2 + $0x4c0] sm:$0xff]
  %v11213 = vld [vmem:[#allocation2 + $0x508] sm:$0x7]
  %v11214 = vld [vmem:[#allocation2 + $0x550] sm:$0xff]
  %v11215 = vld [vmem:[#allocation2 + $0x598] sm:$0x7]
  %v11216 = vld [vmem:[#allocation2 + $0x5e0] sm:$0xff]
  %v11217 = vld [vmem:[#allocation2 + $0x628] sm:$0x7]
  %v11218 = vlaneseq
  %v11219 = vshrl.u32 %v11218, 7
  %v11220 = vsub.s32 0, %v11219
  %v11221 = vrot.slane %v660, %v11220
  %v11222 = vmul.f32 %v11196, %v11221
  %v11223 = vmul.f32 %v11198, %v11221
  %v11224 = vmul.f32 %v11200, %v11221
  %v11225 = vmul.f32 %v11202, %v11221
  %v11226 = vmul.f32 %v11204, %v11221
  %v11227 = vmul.f32 %v11206, %v11221
  %v11228 = vmul.f32 %v11208, %v11221
  %v11229 = vlaneseq
  %v11230 = vshrl.u32 %v11229, 7
  %v11231 = vsub.s32 1, %v11230
  %v11232 = vrot.slane %v660, %v11231
  %v11233 = vmul.f32 %v11196, %v11232
  %v11234 = vmul.f32 %v11198, %v11232
  %v11235 = vmul.f32 %v11200, %v11232
  %v11236 = vmul.f32 %v11202, %v11232
  %v11237 = vmul.f32 %v11204, %v11232
  %v11238 = vmul.f32 %v11206, %v11232
  %v11239 = vmul.f32 %v11208, %v11232
  %v11247 = vrot.slane %v11233, 1
  %v11248 = vrot.slane %v11234, 1
  %v11249 = vrot.slane %v11235, 1
  %v11250 = vrot.slane %v11236, 1
  %v11251 = vrot.slane %v11237, 1
  %v11252 = vrot.slane %v11238, 1
  %v11253 = vrot.slane %v11239, 1
  %v11261 = vadd.f32 %v11222, %v11247
  %v11262 = vadd.f32 %v11223, %v11248
  %v11263 = vadd.f32 %v11224, %v11249
  %v11264 = vadd.f32 %v11225, %v11250
  %v11265 = vadd.f32 %v11226, %v11251
  %v11266 = vadd.f32 %v11227, %v11252
  %v11267 = vadd.f32 %v11228, %v11253
  %v11268 = vlaneseq
  %v11269 = vshrl.u32 %v11268, 7
  %v11270 = vsub.s32 2, %v11269
  %v11271 = vrot.slane %v660, %v11270
  %v11272 = vmul.f32 %v11196, %v11271
  %v11273 = vmul.f32 %v11197, %v11271
  %v11274 = vmul.f32 %v11198, %v11271
  %v11275 = vmul.f32 %v11199, %v11271
  %v11276 = vmul.f32 %v11200, %v11271
  %v11277 = vmul.f32 %v11201, %v11271
  %v11278 = vmul.f32 %v11202, %v11271
  %v11279 = vmul.f32 %v11203, %v11271
  %v11280 = vmul.f32 %v11204, %v11271
  %v11281 = vmul.f32 %v11205, %v11271
  %v11282 = vmul.f32 %v11206, %v11271
  %v11283 = vmul.f32 %v11207, %v11271
  %v11284 = vmul.f32 %v11208, %v11271
  %v11285 = vmul.f32 %v11209, %v11271
  %v11300 = vrot.slane %v11272, 2
  %v11301 = vrot.slane %v11273, 2
  %v11302 = vsel %vm801, %v11300, %v11301
  %v11303 = vrot.slane %v11274, 2
  %v11304 = vrot.slane %v11275, 2
  %v11305 = vsel %vm801, %v11303, %v11304
  %v11306 = vrot.slane %v11276, 2
  %v11307 = vrot.slane %v11277, 2
  %v11308 = vsel %vm801, %v11306, %v11307
  %v11309 = vrot.slane %v11278, 2
  %v11310 = vrot.slane %v11279, 2
  %v11311 = vsel %vm801, %v11309, %v11310
  %v11312 = vrot.slane %v11280, 2
  %v11313 = vrot.slane %v11281, 2
  %v11314 = vsel %vm801, %v11312, %v11313
  %v11315 = vrot.slane %v11282, 2
  %v11316 = vrot.slane %v11283, 2
  %v11317 = vsel %vm801, %v11315, %v11316
  %v11318 = vrot.slane %v11284, 2
  %v11319 = vrot.slane %v11285, 2
  %v11320 = vsel %vm801, %v11318, %v11319
  %v11328 = vadd.f32 %v11261, %v11302
  %v11329 = vadd.f32 %v11262, %v11305
  %v11330 = vadd.f32 %v11263, %v11308
  %v11331 = vadd.f32 %v11264, %v11311
  %v11332 = vadd.f32 %v11265, %v11314
  %v11333 = vadd.f32 %v11266, %v11317
  %v11334 = vadd.f32 %v11267, %v11320
  %v11335 = vlaneseq
  %v11336 = vshrl.u32 %v11335, 7
  %v11337 = vsub.s32 3, %v11336
  %v11338 = vrot.slane %v660, %v11337
  %v11339 = vmul.f32 %v11196, %v11338
  %v11340 = vmul.f32 %v11197, %v11338
  %v11341 = vmul.f32 %v11198, %v11338
  %v11342 = vmul.f32 %v11199, %v11338
  %v11343 = vmul.f32 %v11200, %v11338
  %v11344 = vmul.f32 %v11201, %v11338
  %v11345 = vmul.f32 %v11202, %v11338
  %v11346 = vmul.f32 %v11203, %v11338
  %v11347 = vmul.f32 %v11204, %v11338
  %v11348 = vmul.f32 %v11205, %v11338
  %v11349 = vmul.f32 %v11206, %v11338
  %v11350 = vmul.f32 %v11207, %v11338
  %v11351 = vmul.f32 %v11208, %v11338
  %v11352 = vmul.f32 %v11209, %v11338
  %v11367 = vrot.slane %v11339, 3
  %v11368 = vrot.slane %v11340, 3
  %v11369 = vsel %vm869, %v11367, %v11368
  %v11370 = vrot.slane %v11341, 3
  %v11371 = vrot.slane %v11342, 3
  %v11372 = vsel %vm869, %v11370, %v11371
  %v11373 = vrot.slane %v11343, 3
  %v11374 = vrot.slane %v11344, 3
  %v11375 = vsel %vm869, %v11373, %v11374
  %v11376 = vrot.slane %v11345, 3
  %v11377 = vrot.slane %v11346, 3
  %v11378 = vsel %vm869, %v11376, %v11377
  %v11379 = vrot.slane %v11347, 3
  %v11380 = vrot.slane %v11348, 3
  %v11381 = vsel %vm869, %v11379, %v11380
  %v11382 = vrot.slane %v11349, 3
  %v11383 = vrot.slane %v11350, 3
  %v11384 = vsel %vm869, %v11382, %v11383
  %v11385 = vrot.slane %v11351, 3
  %v11386 = vrot.slane %v11352, 3
  %v11387 = vsel %vm869, %v11385, %v11386
  %v11395 = vadd.f32 %v11328, %v11369
  %v11396 = vadd.f32 %v11329, %v11372
  %v11397 = vadd.f32 %v11330, %v11375
  %v11398 = vadd.f32 %v11331, %v11378
  %v11399 = vadd.f32 %v11332, %v11381
  %v11400 = vadd.f32 %v11333, %v11384
  %v11401 = vadd.f32 %v11334, %v11387
  %v11402 = vlaneseq
  %v11403 = vshrl.u32 %v11402, 7
  %v11404 = vsub.s32 4, %v11403
  %v11405 = vrot.slane %v660, %v11404
  %v11406 = vmul.f32 %v11196, %v11405
  %v11407 = vmul.f32 %v11197, %v11405
  %v11408 = vmul.f32 %v11198, %v11405
  %v11409 = vmul.f32 %v11199, %v11405
  %v11410 = vmul.f32 %v11200, %v11405
  %v11411 = vmul.f32 %v11201, %v11405
  %v11412 = vmul.f32 %v11202, %v11405
  %v11413 = vmul.f32 %v11203, %v11405
  %v11414 = vmul.f32 %v11204, %v11405
  %v11415 = vmul.f32 %v11205, %v11405
  %v11416 = vmul.f32 %v11206, %v11405
  %v11417 = vmul.f32 %v11207, %v11405
  %v11418 = vmul.f32 %v11208, %v11405
  %v11419 = vmul.f32 %v11209, %v11405
  %v11434 = vrot.slane %v11406, 4
  %v11435 = vrot.slane %v11407, 4
  %v11436 = vsel %vm937, %v11434, %v11435
  %v11437 = vrot.slane %v11408, 4
  %v11438 = vrot.slane %v11409, 4
  %v11439 = vsel %vm937, %v11437, %v11438
  %v11440 = vrot.slane %v11410, 4
  %v11441 = vrot.slane %v11411, 4
  %v11442 = vsel %vm937, %v11440, %v11441
  %v11443 = vrot.slane %v11412, 4
  %v11444 = vrot.slane %v11413, 4
  %v11445 = vsel %vm937, %v11443, %v11444
  %v11446 = vrot.slane %v11414, 4
  %v11447 = vrot.slane %v11415, 4
  %v11448 = vsel %vm937, %v11446, %v11447
  %v11449 = vrot.slane %v11416, 4
  %v11450 = vrot.slane %v11417, 4
  %v11451 = vsel %vm937, %v11449, %v11450
  %v11452 = vrot.slane %v11418, 4
  %v11453 = vrot.slane %v11419, 4
  %v11454 = vsel %vm937, %v11452, %v11453
  %v11462 = vadd.f32 %v11395, %v11436
  %v11463 = vadd.f32 %v11396, %v11439
  %v11464 = vadd.f32 %v11397, %v11442
  %v11465 = vadd.f32 %v11398, %v11445
  %v11466 = vadd.f32 %v11399, %v11448
  %v11467 = vadd.f32 %v11400, %v11451
  %v11468 = vadd.f32 %v11401, %v11454
  %v11469 = vlaneseq
  %v11470 = vshrl.u32 %v11469, 7
  %v11471 = vsub.s32 0, %v11470
  %v11472 = vrot.slane %v669, %v11471
  %v11473 = vmul.f32 %v11198, %v11472
  %v11474 = vmul.f32 %v11200, %v11472
  %v11475 = vmul.f32 %v11202, %v11472
  %v11476 = vmul.f32 %v11204, %v11472
  %v11477 = vmul.f32 %v11206, %v11472
  %v11478 = vmul.f32 %v11208, %v11472
  %v11479 = vmul.f32 %v11210, %v11472
  %v11480 = vadd.f32 %v11462, %v11473
  %v11481 = vadd.f32 %v11463, %v11474
  %v11482 = vadd.f32 %v11464, %v11475
  %v11483 = vadd.f32 %v11465, %v11476
  %v11484 = vadd.f32 %v11466, %v11477
  %v11485 = vadd.f32 %v11467, %v11478
  %v11486 = vadd.f32 %v11468, %v11479
  %v11487 = vlaneseq
  %v11488 = vshrl.u32 %v11487, 7
  %v11489 = vsub.s32 1, %v11488
  %v11490 = vrot.slane %v669, %v11489
  %v11491 = vmul.f32 %v11198, %v11490
  %v11492 = vmul.f32 %v11200, %v11490
  %v11493 = vmul.f32 %v11202, %v11490
  %v11494 = vmul.f32 %v11204, %v11490
  %v11495 = vmul.f32 %v11206, %v11490
  %v11496 = vmul.f32 %v11208, %v11490
  %v11497 = vmul.f32 %v11210, %v11490
  %v11505 = vrot.slane %v11491, 1
  %v11506 = vrot.slane %v11492, 1
  %v11507 = vrot.slane %v11493, 1
  %v11508 = vrot.slane %v11494, 1
  %v11509 = vrot.slane %v11495, 1
  %v11510 = vrot.slane %v11496, 1
  %v11511 = vrot.slane %v11497, 1
  %v11519 = vadd.f32 %v11480, %v11505
  %v11520 = vadd.f32 %v11481, %v11506
  %v11521 = vadd.f32 %v11482, %v11507
  %v11522 = vadd.f32 %v11483, %v11508
  %v11523 = vadd.f32 %v11484, %v11509
  %v11524 = vadd.f32 %v11485, %v11510
  %v11525 = vadd.f32 %v11486, %v11511
  %v11526 = vlaneseq
  %v11527 = vshrl.u32 %v11526, 7
  %v11528 = vsub.s32 2, %v11527
  %v11529 = vrot.slane %v669, %v11528
  %v11530 = vmul.f32 %v11198, %v11529
  %v11531 = vmul.f32 %v11199, %v11529
  %v11532 = vmul.f32 %v11200, %v11529
  %v11533 = vmul.f32 %v11201, %v11529
  %v11534 = vmul.f32 %v11202, %v11529
  %v11535 = vmul.f32 %v11203, %v11529
  %v11536 = vmul.f32 %v11204, %v11529
  %v11537 = vmul.f32 %v11205, %v11529
  %v11538 = vmul.f32 %v11206, %v11529
  %v11539 = vmul.f32 %v11207, %v11529
  %v11540 = vmul.f32 %v11208, %v11529
  %v11541 = vmul.f32 %v11209, %v11529
  %v11542 = vmul.f32 %v11210, %v11529
  %v11543 = vmul.f32 %v11211, %v11529
  %v11558 = vrot.slane %v11530, 2
  %v11559 = vrot.slane %v11531, 2
  %v11560 = vsel %vm801, %v11558, %v11559
  %v11561 = vrot.slane %v11532, 2
  %v11562 = vrot.slane %v11533, 2
  %v11563 = vsel %vm801, %v11561, %v11562
  %v11564 = vrot.slane %v11534, 2
  %v11565 = vrot.slane %v11535, 2
  %v11566 = vsel %vm801, %v11564, %v11565
  %v11567 = vrot.slane %v11536, 2
  %v11568 = vrot.slane %v11537, 2
  %v11569 = vsel %vm801, %v11567, %v11568
  %v11570 = vrot.slane %v11538, 2
  %v11571 = vrot.slane %v11539, 2
  %v11572 = vsel %vm801, %v11570, %v11571
  %v11573 = vrot.slane %v11540, 2
  %v11574 = vrot.slane %v11541, 2
  %v11575 = vsel %vm801, %v11573, %v11574
  %v11576 = vrot.slane %v11542, 2
  %v11577 = vrot.slane %v11543, 2
  %v11578 = vsel %vm801, %v11576, %v11577
  %v11586 = vadd.f32 %v11519, %v11560
  %v11587 = vadd.f32 %v11520, %v11563
  %v11588 = vadd.f32 %v11521, %v11566
  %v11589 = vadd.f32 %v11522, %v11569
  %v11590 = vadd.f32 %v11523, %v11572
  %v11591 = vadd.f32 %v11524, %v11575
  %v11592 = vadd.f32 %v11525, %v11578
  %v11593 = vlaneseq
  %v11594 = vshrl.u32 %v11593, 7
  %v11595 = vsub.s32 3, %v11594
  %v11596 = vrot.slane %v669, %v11595
  %v11597 = vmul.f32 %v11198, %v11596
  %v11598 = vmul.f32 %v11199, %v11596
  %v11599 = vmul.f32 %v11200, %v11596
  %v11600 = vmul.f32 %v11201, %v11596
  %v11601 = vmul.f32 %v11202, %v11596
  %v11602 = vmul.f32 %v11203, %v11596
  %v11603 = vmul.f32 %v11204, %v11596
  %v11604 = vmul.f32 %v11205, %v11596
  %v11605 = vmul.f32 %v11206, %v11596
  %v11606 = vmul.f32 %v11207, %v11596
  %v11607 = vmul.f32 %v11208, %v11596
  %v11608 = vmul.f32 %v11209, %v11596
  %v11609 = vmul.f32 %v11210, %v11596
  %v11610 = vmul.f32 %v11211, %v11596
  %v11625 = vrot.slane %v11597, 3
  %v11626 = vrot.slane %v11598, 3
  %v11627 = vsel %vm869, %v11625, %v11626
  %v11628 = vrot.slane %v11599, 3
  %v11629 = vrot.slane %v11600, 3
  %v11630 = vsel %vm869, %v11628, %v11629
  %v11631 = vrot.slane %v11601, 3
  %v11632 = vrot.slane %v11602, 3
  %v11633 = vsel %vm869, %v11631, %v11632
  %v11634 = vrot.slane %v11603, 3
  %v11635 = vrot.slane %v11604, 3
  %v11636 = vsel %vm869, %v11634, %v11635
  %v11637 = vrot.slane %v11605, 3
  %v11638 = vrot.slane %v11606, 3
  %v11639 = vsel %vm869, %v11637, %v11638
  %v11640 = vrot.slane %v11607, 3
  %v11641 = vrot.slane %v11608, 3
  %v11642 = vsel %vm869, %v11640, %v11641
  %v11643 = vrot.slane %v11609, 3
  %v11644 = vrot.slane %v11610, 3
  %v11645 = vsel %vm869, %v11643, %v11644
  %v11653 = vadd.f32 %v11586, %v11627
  %v11654 = vadd.f32 %v11587, %v11630
  %v11655 = vadd.f32 %v11588, %v11633
  %v11656 = vadd.f32 %v11589, %v11636
  %v11657 = vadd.f32 %v11590, %v11639
  %v11658 = vadd.f32 %v11591, %v11642
  %v11659 = vadd.f32 %v11592, %v11645
  %v11660 = vlaneseq
  %v11661 = vshrl.u32 %v11660, 7
  %v11662 = vsub.s32 4, %v11661
  %v11663 = vrot.slane %v669, %v11662
  %v11664 = vmul.f32 %v11198, %v11663
  %v11665 = vmul.f32 %v11199, %v11663
  %v11666 = vmul.f32 %v11200, %v11663
  %v11667 = vmul.f32 %v11201, %v11663
  %v11668 = vmul.f32 %v11202, %v11663
  %v11669 = vmul.f32 %v11203, %v11663
  %v11670 = vmul.f32 %v11204, %v11663
  %v11671 = vmul.f32 %v11205, %v11663
  %v11672 = vmul.f32 %v11206, %v11663
  %v11673 = vmul.f32 %v11207, %v11663
  %v11674 = vmul.f32 %v11208, %v11663
  %v11675 = vmul.f32 %v11209, %v11663
  %v11676 = vmul.f32 %v11210, %v11663
  %v11677 = vmul.f32 %v11211, %v11663
  %v11692 = vrot.slane %v11664, 4
  %v11693 = vrot.slane %v11665, 4
  %v11694 = vsel %vm937, %v11692, %v11693
  %v11695 = vrot.slane %v11666, 4
  %v11696 = vrot.slane %v11667, 4
  %v11697 = vsel %vm937, %v11695, %v11696
  %v11698 = vrot.slane %v11668, 4
  %v11699 = vrot.slane %v11669, 4
  %v11700 = vsel %vm937, %v11698, %v11699
  %v11701 = vrot.slane %v11670, 4
  %v11702 = vrot.slane %v11671, 4
  %v11703 = vsel %vm937, %v11701, %v11702
  %v11704 = vrot.slane %v11672, 4
  %v11705 = vrot.slane %v11673, 4
  %v11706 = vsel %vm937, %v11704, %v11705
  %v11707 = vrot.slane %v11674, 4
  %v11708 = vrot.slane %v11675, 4
  %v11709 = vsel %vm937, %v11707, %v11708
  %v11710 = vrot.slane %v11676, 4
  %v11711 = vrot.slane %v11677, 4
  %v11712 = vsel %vm937, %v11710, %v11711
  %v11720 = vadd.f32 %v11653, %v11694
  %v11721 = vadd.f32 %v11654, %v11697
  %v11722 = vadd.f32 %v11655, %v11700
  %v11723 = vadd.f32 %v11656, %v11703
  %v11724 = vadd.f32 %v11657, %v11706
  %v11725 = vadd.f32 %v11658, %v11709
  %v11726 = vadd.f32 %v11659, %v11712
  %v11727 = vlaneseq
  %v11728 = vshrl.u32 %v11727, 7
  %v11729 = vsub.s32 0, %v11728
  %v11730 = vrot.slane %v678, %v11729
  %v11731 = vmul.f32 %v11200, %v11730
  %v11732 = vmul.f32 %v11202, %v11730
  %v11733 = vmul.f32 %v11204, %v11730
  %v11734 = vmul.f32 %v11206, %v11730
  %v11735 = vmul.f32 %v11208, %v11730
  %v11736 = vmul.f32 %v11210, %v11730
  %v11737 = vmul.f32 %v11212, %v11730
  %v11738 = vadd.f32 %v11720, %v11731
  %v11739 = vadd.f32 %v11721, %v11732
  %v11740 = vadd.f32 %v11722, %v11733
  %v11741 = vadd.f32 %v11723, %v11734
  %v11742 = vadd.f32 %v11724, %v11735
  %v11743 = vadd.f32 %v11725, %v11736
  %v11744 = vadd.f32 %v11726, %v11737
  %v11745 = vlaneseq
  %v11746 = vshrl.u32 %v11745, 7
  %v11747 = vsub.s32 1, %v11746
  %v11748 = vrot.slane %v678, %v11747
  %v11749 = vmul.f32 %v11200, %v11748
  %v11750 = vmul.f32 %v11202, %v11748
  %v11751 = vmul.f32 %v11204, %v11748
  %v11752 = vmul.f32 %v11206, %v11748
  %v11753 = vmul.f32 %v11208, %v11748
  %v11754 = vmul.f32 %v11210, %v11748
  %v11755 = vmul.f32 %v11212, %v11748
  %v11763 = vrot.slane %v11749, 1
  %v11764 = vrot.slane %v11750, 1
  %v11765 = vrot.slane %v11751, 1
  %v11766 = vrot.slane %v11752, 1
  %v11767 = vrot.slane %v11753, 1
  %v11768 = vrot.slane %v11754, 1
  %v11769 = vrot.slane %v11755, 1
  %v11777 = vadd.f32 %v11738, %v11763
  %v11778 = vadd.f32 %v11739, %v11764
  %v11779 = vadd.f32 %v11740, %v11765
  %v11780 = vadd.f32 %v11741, %v11766
  %v11781 = vadd.f32 %v11742, %v11767
  %v11782 = vadd.f32 %v11743, %v11768
  %v11783 = vadd.f32 %v11744, %v11769
  %v11784 = vlaneseq
  %v11785 = vshrl.u32 %v11784, 7
  %v11786 = vsub.s32 2, %v11785
  %v11787 = vrot.slane %v678, %v11786
  %v11788 = vmul.f32 %v11200, %v11787
  %v11789 = vmul.f32 %v11201, %v11787
  %v11790 = vmul.f32 %v11202, %v11787
  %v11791 = vmul.f32 %v11203, %v11787
  %v11792 = vmul.f32 %v11204, %v11787
  %v11793 = vmul.f32 %v11205, %v11787
  %v11794 = vmul.f32 %v11206, %v11787
  %v11795 = vmul.f32 %v11207, %v11787
  %v11796 = vmul.f32 %v11208, %v11787
  %v11797 = vmul.f32 %v11209, %v11787
  %v11798 = vmul.f32 %v11210, %v11787
  %v11799 = vmul.f32 %v11211, %v11787
  %v11800 = vmul.f32 %v11212, %v11787
  %v11801 = vmul.f32 %v11213, %v11787
  %v11816 = vrot.slane %v11788, 2
  %v11817 = vrot.slane %v11789, 2
  %v11818 = vsel %vm801, %v11816, %v11817
  %v11819 = vrot.slane %v11790, 2
  %v11820 = vrot.slane %v11791, 2
  %v11821 = vsel %vm801, %v11819, %v11820
  %v11822 = vrot.slane %v11792, 2
  %v11823 = vrot.slane %v11793, 2
  %v11824 = vsel %vm801, %v11822, %v11823
  %v11825 = vrot.slane %v11794, 2
  %v11826 = vrot.slane %v11795, 2
  %v11827 = vsel %vm801, %v11825, %v11826
  %v11828 = vrot.slane %v11796, 2
  %v11829 = vrot.slane %v11797, 2
  %v11830 = vsel %vm801, %v11828, %v11829
  %v11831 = vrot.slane %v11798, 2
  %v11832 = vrot.slane %v11799, 2
  %v11833 = vsel %vm801, %v11831, %v11832
  %v11834 = vrot.slane %v11800, 2
  %v11835 = vrot.slane %v11801, 2
  %v11836 = vsel %vm801, %v11834, %v11835
  %v11844 = vadd.f32 %v11777, %v11818
  %v11845 = vadd.f32 %v11778, %v11821
  %v11846 = vadd.f32 %v11779, %v11824
  %v11847 = vadd.f32 %v11780, %v11827
  %v11848 = vadd.f32 %v11781, %v11830
  %v11849 = vadd.f32 %v11782, %v11833
  %v11850 = vadd.f32 %v11783, %v11836
  %v11851 = vlaneseq
  %v11852 = vshrl.u32 %v11851, 7
  %v11853 = vsub.s32 3, %v11852
  %v11854 = vrot.slane %v678, %v11853
  %v11855 = vmul.f32 %v11200, %v11854
  %v11856 = vmul.f32 %v11201, %v11854
  %v11857 = vmul.f32 %v11202, %v11854
  %v11858 = vmul.f32 %v11203, %v11854
  %v11859 = vmul.f32 %v11204, %v11854
  %v11860 = vmul.f32 %v11205, %v11854
  %v11861 = vmul.f32 %v11206, %v11854
  %v11862 = vmul.f32 %v11207, %v11854
  %v11863 = vmul.f32 %v11208, %v11854
  %v11864 = vmul.f32 %v11209, %v11854
  %v11865 = vmul.f32 %v11210, %v11854
  %v11866 = vmul.f32 %v11211, %v11854
  %v11867 = vmul.f32 %v11212, %v11854
  %v11868 = vmul.f32 %v11213, %v11854
  %v11883 = vrot.slane %v11855, 3
  %v11884 = vrot.slane %v11856, 3
  %v11885 = vsel %vm869, %v11883, %v11884
  %v11886 = vrot.slane %v11857, 3
  %v11887 = vrot.slane %v11858, 3
  %v11888 = vsel %vm869, %v11886, %v11887
  %v11889 = vrot.slane %v11859, 3
  %v11890 = vrot.slane %v11860, 3
  %v11891 = vsel %vm869, %v11889, %v11890
  %v11892 = vrot.slane %v11861, 3
  %v11893 = vrot.slane %v11862, 3
  %v11894 = vsel %vm869, %v11892, %v11893
  %v11895 = vrot.slane %v11863, 3
  %v11896 = vrot.slane %v11864, 3
  %v11897 = vsel %vm869, %v11895, %v11896
  %v11898 = vrot.slane %v11865, 3
  %v11899 = vrot.slane %v11866, 3
  %v11900 = vsel %vm869, %v11898, %v11899
  %v11901 = vrot.slane %v11867, 3
  %v11902 = vrot.slane %v11868, 3
  %v11903 = vsel %vm869, %v11901, %v11902
  %v11911 = vadd.f32 %v11844, %v11885
  %v11912 = vadd.f32 %v11845, %v11888
  %v11913 = vadd.f32 %v11846, %v11891
  %v11914 = vadd.f32 %v11847, %v11894
  %v11915 = vadd.f32 %v11848, %v11897
  %v11916 = vadd.f32 %v11849, %v11900
  %v11917 = vadd.f32 %v11850, %v11903
  %v11918 = vlaneseq
  %v11919 = vshrl.u32 %v11918, 7
  %v11920 = vsub.s32 4, %v11919
  %v11921 = vrot.slane %v678, %v11920
  %v11922 = vmul.f32 %v11200, %v11921
  %v11923 = vmul.f32 %v11201, %v11921
  %v11924 = vmul.f32 %v11202, %v11921
  %v11925 = vmul.f32 %v11203, %v11921
  %v11926 = vmul.f32 %v11204, %v11921
  %v11927 = vmul.f32 %v11205, %v11921
  %v11928 = vmul.f32 %v11206, %v11921
  %v11929 = vmul.f32 %v11207, %v11921
  %v11930 = vmul.f32 %v11208, %v11921
  %v11931 = vmul.f32 %v11209, %v11921
  %v11932 = vmul.f32 %v11210, %v11921
  %v11933 = vmul.f32 %v11211, %v11921
  %v11934 = vmul.f32 %v11212, %v11921
  %v11935 = vmul.f32 %v11213, %v11921
  %v11950 = vrot.slane %v11922, 4
  %v11951 = vrot.slane %v11923, 4
  %v11952 = vsel %vm937, %v11950, %v11951
  %v11953 = vrot.slane %v11924, 4
  %v11954 = vrot.slane %v11925, 4
  %v11955 = vsel %vm937, %v11953, %v11954
  %v11956 = vrot.slane %v11926, 4
  %v11957 = vrot.slane %v11927, 4
  %v11958 = vsel %vm937, %v11956, %v11957
  %v11959 = vrot.slane %v11928, 4
  %v11960 = vrot.slane %v11929, 4
  %v11961 = vsel %vm937, %v11959, %v11960
  %v11962 = vrot.slane %v11930, 4
  %v11963 = vrot.slane %v11931, 4
  %v11964 = vsel %vm937, %v11962, %v11963
  %v11965 = vrot.slane %v11932, 4
  %v11966 = vrot.slane %v11933, 4
  %v11967 = vsel %vm937, %v11965, %v11966
  %v11968 = vrot.slane %v11934, 4
  %v11969 = vrot.slane %v11935, 4
  %v11970 = vsel %vm937, %v11968, %v11969
  %v11978 = vadd.f32 %v11911, %v11952
  %v11979 = vadd.f32 %v11912, %v11955
  %v11980 = vadd.f32 %v11913, %v11958
  %v11981 = vadd.f32 %v11914, %v11961
  %v11982 = vadd.f32 %v11915, %v11964
  %v11983 = vadd.f32 %v11916, %v11967
  %v11984 = vadd.f32 %v11917, %v11970
  %v11985 = vlaneseq
  %v11986 = vshrl.u32 %v11985, 7
  %v11987 = vsub.s32 0, %v11986
  %v11988 = vrot.slane %v687, %v11987
  %v11989 = vmul.f32 %v11202, %v11988
  %v11990 = vmul.f32 %v11204, %v11988
  %v11991 = vmul.f32 %v11206, %v11988
  %v11992 = vmul.f32 %v11208, %v11988
  %v11993 = vmul.f32 %v11210, %v11988
  %v11994 = vmul.f32 %v11212, %v11988
  %v11995 = vmul.f32 %v11214, %v11988
  %v11996 = vadd.f32 %v11978, %v11989
  %v11997 = vadd.f32 %v11979, %v11990
  %v11998 = vadd.f32 %v11980, %v11991
  %v11999 = vadd.f32 %v11981, %v11992
  %v12000 = vadd.f32 %v11982, %v11993
  %v12001 = vadd.f32 %v11983, %v11994
  %v12002 = vadd.f32 %v11984, %v11995
  %v12003 = vlaneseq
  %v12004 = vshrl.u32 %v12003, 7
  %v12005 = vsub.s32 1, %v12004
  %v12006 = vrot.slane %v687, %v12005
  %v12007 = vmul.f32 %v11202, %v12006
  %v12008 = vmul.f32 %v11204, %v12006
  %v12009 = vmul.f32 %v11206, %v12006
  %v12010 = vmul.f32 %v11208, %v12006
  %v12011 = vmul.f32 %v11210, %v12006
  %v12012 = vmul.f32 %v11212, %v12006
  %v12013 = vmul.f32 %v11214, %v12006
  %v12021 = vrot.slane %v12007, 1
  %v12022 = vrot.slane %v12008, 1
  %v12023 = vrot.slane %v12009, 1
  %v12024 = vrot.slane %v12010, 1
  %v12025 = vrot.slane %v12011, 1
  %v12026 = vrot.slane %v12012, 1
  %v12027 = vrot.slane %v12013, 1
  %v12035 = vadd.f32 %v11996, %v12021
  %v12036 = vadd.f32 %v11997, %v12022
  %v12037 = vadd.f32 %v11998, %v12023
  %v12038 = vadd.f32 %v11999, %v12024
  %v12039 = vadd.f32 %v12000, %v12025
  %v12040 = vadd.f32 %v12001, %v12026
  %v12041 = vadd.f32 %v12002, %v12027
  %v12042 = vlaneseq
  %v12043 = vshrl.u32 %v12042, 7
  %v12044 = vsub.s32 2, %v12043
  %v12045 = vrot.slane %v687, %v12044
  %v12046 = vmul.f32 %v11202, %v12045
  %v12047 = vmul.f32 %v11203, %v12045
  %v12048 = vmul.f32 %v11204, %v12045
  %v12049 = vmul.f32 %v11205, %v12045
  %v12050 = vmul.f32 %v11206, %v12045
  %v12051 = vmul.f32 %v11207, %v12045
  %v12052 = vmul.f32 %v11208, %v12045
  %v12053 = vmul.f32 %v11209, %v12045
  %v12054 = vmul.f32 %v11210, %v12045
  %v12055 = vmul.f32 %v11211, %v12045
  %v12056 = vmul.f32 %v11212, %v12045
  %v12057 = vmul.f32 %v11213, %v12045
  %v12058 = vmul.f32 %v11214, %v12045
  %v12059 = vmul.f32 %v11215, %v12045
  %v12074 = vrot.slane %v12046, 2
  %v12075 = vrot.slane %v12047, 2
  %v12076 = vsel %vm801, %v12074, %v12075
  %v12077 = vrot.slane %v12048, 2
  %v12078 = vrot.slane %v12049, 2
  %v12079 = vsel %vm801, %v12077, %v12078
  %v12080 = vrot.slane %v12050, 2
  %v12081 = vrot.slane %v12051, 2
  %v12082 = vsel %vm801, %v12080, %v12081
  %v12083 = vrot.slane %v12052, 2
  %v12084 = vrot.slane %v12053, 2
  %v12085 = vsel %vm801, %v12083, %v12084
  %v12086 = vrot.slane %v12054, 2
  %v12087 = vrot.slane %v12055, 2
  %v12088 = vsel %vm801, %v12086, %v12087
  %v12089 = vrot.slane %v12056, 2
  %v12090 = vrot.slane %v12057, 2
  %v12091 = vsel %vm801, %v12089, %v12090
  %v12092 = vrot.slane %v12058, 2
  %v12093 = vrot.slane %v12059, 2
  %v12094 = vsel %vm801, %v12092, %v12093
  %v12102 = vadd.f32 %v12035, %v12076
  %v12103 = vadd.f32 %v12036, %v12079
  %v12104 = vadd.f32 %v12037, %v12082
  %v12105 = vadd.f32 %v12038, %v12085
  %v12106 = vadd.f32 %v12039, %v12088
  %v12107 = vadd.f32 %v12040, %v12091
  %v12108 = vadd.f32 %v12041, %v12094
  %v12109 = vlaneseq
  %v12110 = vshrl.u32 %v12109, 7
  %v12111 = vsub.s32 3, %v12110
  %v12112 = vrot.slane %v687, %v12111
  %v12113 = vmul.f32 %v11202, %v12112
  %v12114 = vmul.f32 %v11203, %v12112
  %v12115 = vmul.f32 %v11204, %v12112
  %v12116 = vmul.f32 %v11205, %v12112
  %v12117 = vmul.f32 %v11206, %v12112
  %v12118 = vmul.f32 %v11207, %v12112
  %v12119 = vmul.f32 %v11208, %v12112
  %v12120 = vmul.f32 %v11209, %v12112
  %v12121 = vmul.f32 %v11210, %v12112
  %v12122 = vmul.f32 %v11211, %v12112
  %v12123 = vmul.f32 %v11212, %v12112
  %v12124 = vmul.f32 %v11213, %v12112
  %v12125 = vmul.f32 %v11214, %v12112
  %v12126 = vmul.f32 %v11215, %v12112
  %v12141 = vrot.slane %v12113, 3
  %v12142 = vrot.slane %v12114, 3
  %v12143 = vsel %vm869, %v12141, %v12142
  %v12144 = vrot.slane %v12115, 3
  %v12145 = vrot.slane %v12116, 3
  %v12146 = vsel %vm869, %v12144, %v12145
  %v12147 = vrot.slane %v12117, 3
  %v12148 = vrot.slane %v12118, 3
  %v12149 = vsel %vm869, %v12147, %v12148
  %v12150 = vrot.slane %v12119, 3
  %v12151 = vrot.slane %v12120, 3
  %v12152 = vsel %vm869, %v12150, %v12151
  %v12153 = vrot.slane %v12121, 3
  %v12154 = vrot.slane %v12122, 3
  %v12155 = vsel %vm869, %v12153, %v12154
  %v12156 = vrot.slane %v12123, 3
  %v12157 = vrot.slane %v12124, 3
  %v12158 = vsel %vm869, %v12156, %v12157
  %v12159 = vrot.slane %v12125, 3
  %v12160 = vrot.slane %v12126, 3
  %v12161 = vsel %vm869, %v12159, %v12160
  %v12169 = vadd.f32 %v12102, %v12143
  %v12170 = vadd.f32 %v12103, %v12146
  %v12171 = vadd.f32 %v12104, %v12149
  %v12172 = vadd.f32 %v12105, %v12152
  %v12173 = vadd.f32 %v12106, %v12155
  %v12174 = vadd.f32 %v12107, %v12158
  %v12175 = vadd.f32 %v12108, %v12161
  %v12176 = vlaneseq
  %v12177 = vshrl.u32 %v12176, 7
  %v12178 = vsub.s32 4, %v12177
  %v12179 = vrot.slane %v687, %v12178
  %v12180 = vmul.f32 %v11202, %v12179
  %v12181 = vmul.f32 %v11203, %v12179
  %v12182 = vmul.f32 %v11204, %v12179
  %v12183 = vmul.f32 %v11205, %v12179
  %v12184 = vmul.f32 %v11206, %v12179
  %v12185 = vmul.f32 %v11207, %v12179
  %v12186 = vmul.f32 %v11208, %v12179
  %v12187 = vmul.f32 %v11209, %v12179
  %v12188 = vmul.f32 %v11210, %v12179
  %v12189 = vmul.f32 %v11211, %v12179
  %v12190 = vmul.f32 %v11212, %v12179
  %v12191 = vmul.f32 %v11213, %v12179
  %v12192 = vmul.f32 %v11214, %v12179
  %v12193 = vmul.f32 %v11215, %v12179
  %v12208 = vrot.slane %v12180, 4
  %v12209 = vrot.slane %v12181, 4
  %v12210 = vsel %vm937, %v12208, %v12209
  %v12211 = vrot.slane %v12182, 4
  %v12212 = vrot.slane %v12183, 4
  %v12213 = vsel %vm937, %v12211, %v12212
  %v12214 = vrot.slane %v12184, 4
  %v12215 = vrot.slane %v12185, 4
  %v12216 = vsel %vm937, %v12214, %v12215
  %v12217 = vrot.slane %v12186, 4
  %v12218 = vrot.slane %v12187, 4
  %v12219 = vsel %vm937, %v12217, %v12218
  %v12220 = vrot.slane %v12188, 4
  %v12221 = vrot.slane %v12189, 4
  %v12222 = vsel %vm937, %v12220, %v12221
  %v12223 = vrot.slane %v12190, 4
  %v12224 = vrot.slane %v12191, 4
  %v12225 = vsel %vm937, %v12223, %v12224
  %v12226 = vrot.slane %v12192, 4
  %v12227 = vrot.slane %v12193, 4
  %v12228 = vsel %vm937, %v12226, %v12227
  %v12236 = vadd.f32 %v12169, %v12210
  %v12237 = vadd.f32 %v12170, %v12213
  %v12238 = vadd.f32 %v12171, %v12216
  %v12239 = vadd.f32 %v12172, %v12219
  %v12240 = vadd.f32 %v12173, %v12222
  %v12241 = vadd.f32 %v12174, %v12225
  %v12242 = vadd.f32 %v12175, %v12228
  %v12243 = vlaneseq
  %v12244 = vshrl.u32 %v12243, 7
  %v12245 = vsub.s32 0, %v12244
  %v12246 = vrot.slane %v696, %v12245
  %v12247 = vmul.f32 %v11204, %v12246
  %v12248 = vmul.f32 %v11206, %v12246
  %v12249 = vmul.f32 %v11208, %v12246
  %v12250 = vmul.f32 %v11210, %v12246
  %v12251 = vmul.f32 %v11212, %v12246
  %v12252 = vmul.f32 %v11214, %v12246
  %v12253 = vmul.f32 %v11216, %v12246
  %v12254 = vadd.f32 %v12236, %v12247
  %v12255 = vadd.f32 %v12237, %v12248
  %v12256 = vadd.f32 %v12238, %v12249
  %v12257 = vadd.f32 %v12239, %v12250
  %v12258 = vadd.f32 %v12240, %v12251
  %v12259 = vadd.f32 %v12241, %v12252
  %v12260 = vadd.f32 %v12242, %v12253
  %v12261 = vlaneseq
  %v12262 = vshrl.u32 %v12261, 7
  %v12263 = vsub.s32 1, %v12262
  %v12264 = vrot.slane %v696, %v12263
  %v12265 = vmul.f32 %v11204, %v12264
  %v12266 = vmul.f32 %v11206, %v12264
  %v12267 = vmul.f32 %v11208, %v12264
  %v12268 = vmul.f32 %v11210, %v12264
  %v12269 = vmul.f32 %v11212, %v12264
  %v12270 = vmul.f32 %v11214, %v12264
  %v12271 = vmul.f32 %v11216, %v12264
  %v12279 = vrot.slane %v12265, 1
  %v12280 = vrot.slane %v12266, 1
  %v12281 = vrot.slane %v12267, 1
  %v12282 = vrot.slane %v12268, 1
  %v12283 = vrot.slane %v12269, 1
  %v12284 = vrot.slane %v12270, 1
  %v12285 = vrot.slane %v12271, 1
  %v12293 = vadd.f32 %v12254, %v12279
  %v12294 = vadd.f32 %v12255, %v12280
  %v12295 = vadd.f32 %v12256, %v12281
  %v12296 = vadd.f32 %v12257, %v12282
  %v12297 = vadd.f32 %v12258, %v12283
  %v12298 = vadd.f32 %v12259, %v12284
  %v12299 = vadd.f32 %v12260, %v12285
  %v12300 = vlaneseq
  %v12301 = vshrl.u32 %v12300, 7
  %v12302 = vsub.s32 2, %v12301
  %v12303 = vrot.slane %v696, %v12302
  %v12304 = vmul.f32 %v11204, %v12303
  %v12305 = vmul.f32 %v11205, %v12303
  %v12306 = vmul.f32 %v11206, %v12303
  %v12307 = vmul.f32 %v11207, %v12303
  %v12308 = vmul.f32 %v11208, %v12303
  %v12309 = vmul.f32 %v11209, %v12303
  %v12310 = vmul.f32 %v11210, %v12303
  %v12311 = vmul.f32 %v11211, %v12303
  %v12312 = vmul.f32 %v11212, %v12303
  %v12313 = vmul.f32 %v11213, %v12303
  %v12314 = vmul.f32 %v11214, %v12303
  %v12315 = vmul.f32 %v11215, %v12303
  %v12316 = vmul.f32 %v11216, %v12303
  %v12317 = vmul.f32 %v11217, %v12303
  %v12332 = vrot.slane %v12304, 2
  %v12333 = vrot.slane %v12305, 2
  %v12334 = vsel %vm801, %v12332, %v12333
  %v12335 = vrot.slane %v12306, 2
  %v12336 = vrot.slane %v12307, 2
  %v12337 = vsel %vm801, %v12335, %v12336
  %v12338 = vrot.slane %v12308, 2
  %v12339 = vrot.slane %v12309, 2
  %v12340 = vsel %vm801, %v12338, %v12339
  %v12341 = vrot.slane %v12310, 2
  %v12342 = vrot.slane %v12311, 2
  %v12343 = vsel %vm801, %v12341, %v12342
  %v12344 = vrot.slane %v12312, 2
  %v12345 = vrot.slane %v12313, 2
  %v12346 = vsel %vm801, %v12344, %v12345
  %v12347 = vrot.slane %v12314, 2
  %v12348 = vrot.slane %v12315, 2
  %v12349 = vsel %vm801, %v12347, %v12348
  %v12350 = vrot.slane %v12316, 2
  %v12351 = vrot.slane %v12317, 2
  %v12352 = vsel %vm801, %v12350, %v12351
  %v12360 = vadd.f32 %v12293, %v12334
  %v12361 = vadd.f32 %v12294, %v12337
  %v12362 = vadd.f32 %v12295, %v12340
  %v12363 = vadd.f32 %v12296, %v12343
  %v12364 = vadd.f32 %v12297, %v12346
  %v12365 = vadd.f32 %v12298, %v12349
  %v12366 = vadd.f32 %v12299, %v12352
  %v12367 = vlaneseq
  %v12368 = vshrl.u32 %v12367, 7
  %v12369 = vsub.s32 3, %v12368
  %v12370 = vrot.slane %v696, %v12369
  %v12371 = vmul.f32 %v11204, %v12370
  %v12372 = vmul.f32 %v11205, %v12370
  %v12373 = vmul.f32 %v11206, %v12370
  %v12374 = vmul.f32 %v11207, %v12370
  %v12375 = vmul.f32 %v11208, %v12370
  %v12376 = vmul.f32 %v11209, %v12370
  %v12377 = vmul.f32 %v11210, %v12370
  %v12378 = vmul.f32 %v11211, %v12370
  %v12379 = vmul.f32 %v11212, %v12370
  %v12380 = vmul.f32 %v11213, %v12370
  %v12381 = vmul.f32 %v11214, %v12370
  %v12382 = vmul.f32 %v11215, %v12370
  %v12383 = vmul.f32 %v11216, %v12370
  %v12384 = vmul.f32 %v11217, %v12370
  %v12399 = vrot.slane %v12371, 3
  %v12400 = vrot.slane %v12372, 3
  %v12401 = vsel %vm869, %v12399, %v12400
  %v12402 = vrot.slane %v12373, 3
  %v12403 = vrot.slane %v12374, 3
  %v12404 = vsel %vm869, %v12402, %v12403
  %v12405 = vrot.slane %v12375, 3
  %v12406 = vrot.slane %v12376, 3
  %v12407 = vsel %vm869, %v12405, %v12406
  %v12408 = vrot.slane %v12377, 3
  %v12409 = vrot.slane %v12378, 3
  %v12410 = vsel %vm869, %v12408, %v12409
  %v12411 = vrot.slane %v12379, 3
  %v12412 = vrot.slane %v12380, 3
  %v12413 = vsel %vm869, %v12411, %v12412
  %v12414 = vrot.slane %v12381, 3
  %v12415 = vrot.slane %v12382, 3
  %v12416 = vsel %vm869, %v12414, %v12415
  %v12417 = vrot.slane %v12383, 3
  %v12418 = vrot.slane %v12384, 3
  %v12419 = vsel %vm869, %v12417, %v12418
  %v12427 = vadd.f32 %v12360, %v12401
  %v12428 = vadd.f32 %v12361, %v12404
  %v12429 = vadd.f32 %v12362, %v12407
  %v12430 = vadd.f32 %v12363, %v12410
  %v12431 = vadd.f32 %v12364, %v12413
  %v12432 = vadd.f32 %v12365, %v12416
  %v12433 = vadd.f32 %v12366, %v12419
  %v12434 = vlaneseq
  %v12435 = vshrl.u32 %v12434, 7
  %v12436 = vsub.s32 4, %v12435
  %v12437 = vrot.slane %v696, %v12436
  %v12438 = vmul.f32 %v11204, %v12437
  %v12439 = vmul.f32 %v11205, %v12437
  %v12440 = vmul.f32 %v11206, %v12437
  %v12441 = vmul.f32 %v11207, %v12437
  %v12442 = vmul.f32 %v11208, %v12437
  %v12443 = vmul.f32 %v11209, %v12437
  %v12444 = vmul.f32 %v11210, %v12437
  %v12445 = vmul.f32 %v11211, %v12437
  %v12446 = vmul.f32 %v11212, %v12437
  %v12447 = vmul.f32 %v11213, %v12437
  %v12448 = vmul.f32 %v11214, %v12437
  %v12449 = vmul.f32 %v11215, %v12437
  %v12450 = vmul.f32 %v11216, %v12437
  %v12451 = vmul.f32 %v11217, %v12437
  %v12466 = vrot.slane %v12438, 4
  %v12467 = vrot.slane %v12439, 4
  %v12468 = vsel %vm937, %v12466, %v12467
  %v12469 = vrot.slane %v12440, 4
  %v12470 = vrot.slane %v12441, 4
  %v12471 = vsel %vm937, %v12469, %v12470
  %v12472 = vrot.slane %v12442, 4
  %v12473 = vrot.slane %v12443, 4
  %v12474 = vsel %vm937, %v12472, %v12473
  %v12475 = vrot.slane %v12444, 4
  %v12476 = vrot.slane %v12445, 4
  %v12477 = vsel %vm937, %v12475, %v12476
  %v12478 = vrot.slane %v12446, 4
  %v12479 = vrot.slane %v12447, 4
  %v12480 = vsel %vm937, %v12478, %v12479
  %v12481 = vrot.slane %v12448, 4
  %v12482 = vrot.slane %v12449, 4
  %v12483 = vsel %vm937, %v12481, %v12482
  %v12484 = vrot.slane %v12450, 4
  %v12485 = vrot.slane %v12451, 4
  %v12486 = vsel %vm937, %v12484, %v12485
  %v12494 = vadd.f32 %v12427, %v12468
  %v12495 = vadd.f32 %v12428, %v12471
  %v12496 = vadd.f32 %v12429, %v12474
  %v12497 = vadd.f32 %v12430, %v12477
  %v12498 = vadd.f32 %v12431, %v12480
  %v12499 = vadd.f32 %v12432, %v12483
  %v12500 = vadd.f32 %v12433, %v12486
  %12501 = vst [vmem:[%s2 + $0x40] sm:$0x7f] %v12494
  %12502 = vst [vmem:[%s2 + $0x88] sm:$0x7f] %v12495
  %12503 = vst [vmem:[%s2 + $0xd0] sm:$0x7f] %v12496
  %12504 = vst [vmem:[%s2 + $0x118] sm:$0x7f] %v12497
  %12505 = vst [vmem:[%s2 + $0x160] sm:$0x7f] %v12498
  %12506 = vst [vmem:[%s2 + $0x1a8] sm:$0x7f] %v12499
  %12507 = vst [vmem:[%s2 + $0x1f0] sm:$0x7f] %v12500
  // Predicated region
  $region10: #{tpu_custom_call.1} parent=0 // pred_check
    _
  $region11: #{tpu_custom_call.1} parent=0 // pred_check_branch
    %12509 = sbr.rel (0) target = $region13
  $region12: #{tpu_custom_call.1} parent=0 // pred_region
    _
  $region13: #{tpu_custom_call.1} parent=0 // pred_fallthru
    _
  // Predicated region
  $region14: #{tpu_custom_call.1} parent=0 // pred_check
    _
  $region15: #{tpu_custom_call.1} parent=0 // pred_check_branch
    %12511 = sbr.rel (0) target = $region17
  $region16: #{tpu_custom_call.1} parent=0 // pred_region
    _
  $region17: #{tpu_custom_call.1} parent=0 // pred_fallthru
    _

</llo_original>
